<compile_context>
chip_gen: v5e
topology: v5e:2x2
jax: 0.10.0
libtpu: 0.0.40
codegen_flags: <defaults>
</compile_context>

<pallas_src>
import functools
import string

import numpy as np
import jax
import jax.numpy as jnp
from jax.experimental import pallas as pl
from jax.experimental.pallas import tpu as pltpu

# Small-but-consistent hyperparameters (scaled down from the PyTorch defaults).
LEXICON = string.ascii_lowercase + string.digits   # 36 characters
EMBEDDING_DIM = 32
CHAR_VECTOR_DIM = 128
HIDDEN = 128
OUT_CHANNELS = 128
OUT_EMBEDDING_DIM = 256
MAX_LENGTH = 8          # T: resized word length fed to the LSTM
MAX_WORD_LEN = 16       # static pad length for raw character indices
SUBLANE = 8             # f32 sublane tile


# ------------------------------ fused Pallas kernel -------------------------

def _word_embedding_kernel(emb_ref, enc_w_ref, enc_b_ref,
                           wih_ref, bias_ref, whh_blk_ref,
                           emb_w_ref, emb_b_ref, proj_w_ref,
                           out_ref, cv_ref,
                           gates_sc, rec_sc,
                           *, T, B, H):
    """Fused forward (B is already sublane-padded):
        cv   = relu(emb @ W_enc + b_enc)                   (T*B, C)  t-major
        gate = cv @ [W_ih_f | W_ih_b] + (b_ih + b_hh)      -> (T, B, 8H) scratch
        h    = interleaved bidirectional LSTM recurrence   -> (T, B, 2H) scratch
        x    = h @ W_emb + b_emb                           (T*B, OC)
        out  = sum_t x_t @ W_proj_t                        (B, Dout)
    MXU operands bf16 (f32 accumulation); gate math stays f32.
    """
    f32 = jnp.float32
    bf16 = jnp.bfloat16
    C = enc_w_ref.shape[1]
    OC = emb_w_ref.shape[1]
    D = proj_w_ref.shape[2]

    # --- 1) char encoder: Linear + ReLU over all (t, b) rows at once ---------
    cv = jnp.dot(emb_ref[...].astype(bf16), enc_w_ref[...],
                 preferred_element_type=f32) + enc_b_ref[...]
    cv = jnp.maximum(cv, 0.0)                                  # (T*B, C)
    cv3 = cv.reshape(T, B, C)
    for t in range(T):                                         # lane-aligned stores
        cv_ref[:, t * C:(t + 1) * C] = cv3[t]                  # -> (B, T*C)

    # --- 2) hoisted LSTM input path: both directions, all timesteps ----------
    gates = jnp.dot(cv.astype(bf16), wih_ref[...],
                    preferred_element_type=f32) + bias_ref[...]
    gates_sc[...] = gates.reshape(T, B, 8 * H)

    def gate_math(g, c):
        i = jax.nn.sigmoid(g[:, 0 * H:1 * H])
        f = jax.nn.sigmoid(g[:, 1 * H:2 * H])
        gg = jnp.tanh(g[:, 2 * H:3 * H])
        o = jax.nn.sigmoid(g[:, 3 * H:4 * H])
        c_new = f * c + i * gg
        h_new = o * jnp.tanh(c_new)
        return h_new, c_new

    h_f = jnp.zeros((B, H), f32)
    c_f = jnp.zeros((B, H), f32)
    h_b = jnp.zeros((B, H), f32)
    c_b = jnp.zeros((B, H), f32)

    # --- 3) interleaved bidirectional recurrence; ONE block-diag matmul/step -
    # TODO(synk): on v6e/v7x keep whh_blk resident in MXU staging across the
    # recurrence via pltpu.matmul_push_rhs / matmul_acc_lhs / matmul_pop.
    for k in range(T):
        tb = T - 1 - k
        hc = jnp.concatenate([h_f, h_b], axis=1)               # (B, 2H)
        hh = jnp.dot(hc.astype(bf16), whh_blk_ref[...],
                     preferred_element_type=f32)                # (B, 8H)
        gf = gates_sc[k, :, 0:4 * H] + hh[:, 0:4 * H]
        gb = gates_sc[tb, :, 4 * H:8 * H] + hh[:, 4 * H:8 * H]
        h_f, c_f = gate_math(gf, c_f)
        h_b, c_b = gate_math(gb, c_b)
        rec_sc[k, :, 0:H] = h_f
        rec_sc[tb, :, H:2 * H] = h_b

    # --- 4) rnn embedding Linear over all timesteps at once ------------------
    x = jnp.dot(rec_sc[...].reshape(T * B, 2 * H).astype(bf16), emb_w_ref[...],
                preferred_element_type=f32) + emb_b_ref[...]    # (T*B, OC)
    x3 = x.astype(bf16).reshape(T, B, OC)

    # --- 5) bias-free projection: accumulate x_t @ W_t (no scatter scratch) --
    acc = jnp.zeros((B, D), f32)
    for t in range(T):
        acc += jnp.dot(x3[t], proj_w_ref[t], preferred_element_type=f32)
    out_ref[...] = acc.astype(out_ref.dtype)


# ------------------------------ JAX glue -------------------------------------

def prepare_params(params):
    """One-time weight preprocessing (transposes / concats / block-diag / bf16
    casts) hoisted out of the per-call forward path."""
    H, C, E = HIDDEN, CHAR_VECTOR_DIM, EMBEDDING_DIM
    OC, T, D = OUT_CHANNELS, MAX_LENGTH, OUT_EMBEDDING_DIM
    bf16, f32 = jnp.bfloat16, jnp.float32

    whh_blk = jnp.zeros((2 * H, 8 * H), f32)
    whh_blk = whh_blk.at[0:H, 0:4 * H].set(params["whh_f"].T)
    whh_blk = whh_blk.at[H:2 * H, 4 * H:8 * H].set(params["whh_b"].T)

    return {
        "char_embedding": params["char_embedding"].astype(f32),
        "enc_w": params["enc_w"].T.astype(bf16),                        # (E, C)
        "enc_b": params["enc_b"].reshape(1, C).astype(f32),
        "wih": jnp.concatenate([params["wih_f"].T, params["wih_b"].T],
                               axis=1).astype(bf16),                    # (C, 8H)
        "bias": jnp.concatenate([params["bih_f"] + params["bhh_f"],
                                 params["bih_b"] + params["bhh_b"]]
                                ).reshape(1, 8 * H).astype(f32),
        "whh_blk": whh_blk.astype(bf16),                                # (2H, 8H)
        "emb_w": params["rnn_emb_w"].T.astype(bf16),                    # (2H, OC)
        "emb_b": params["rnn_emb_b"].reshape(1, OC).astype(f32),
        "proj_w": params["proj_w"].T.reshape(T, OC, D).astype(bf16),    # (T,OC,D)
    }


def _resize_embed_tmajor(char_table, ids, lens, T):
    """Batched equivalent of per-word nn.Embedding gather + F.interpolate(
    size=(T, E), mode='bilinear', align_corners=True): two gathers + lerp,
    produced directly t-major (T, B, E)."""
    e = char_table[ids.T]                                    # (Lmax, B, E)
    B, E = e.shape[1], e.shape[2]
    t = jnp.arange(T, dtype=jnp.float32)[:, None]            # (T, 1)
    lf = lens.astype(jnp.float32)[None, :]                   # (1, B)
    s = t * (lf - 1.0) / float(T - 1)                        # (T, B)
    last = (lens - 1)[None, :]
    i0 = jnp.clip(jnp.floor(s).astype(jnp.int32), 0, last)
    i1 = jnp.minimum(i0 + 1, last)
    w = (s - i0.astype(jnp.float32))[..., None]              # (T, B, 1)
    idx0 = jnp.broadcast_to(i0[..., None], (T, B, E))
    idx1 = jnp.broadcast_to(i1[..., None], (T, B, E))
    g0 = jnp.take_along_axis(e, idx0, axis=0)                # (T, B, E)
    g1 = jnp.take_along_axis(e, idx1, axis=0)
    return g0 * (1.0 - w) + g1 * w                           # (T, B, E)


@jax.jit
def word_embedding_forward(prep, ids, lens):
    B = ids.shape[0]
    T, H, C, E = MAX_LENGTH, HIDDEN, CHAR_VECTOR_DIM, EMBEDDING_DIM
    D = OUT_EMBEDDING_DIM
    B_pad = ((B + SUBLANE - 1) // SUBLANE) * SUBLANE

    # TODO(synk): the data-dependent embedding gather + variable-length resize
    # stay in batched JAX/XLA; everything downstream is one fused Pallas call.
    emb = _resize_embed_tmajor(prep["char_embedding"], ids, lens, T)   # (T,B,E)
    if B_pad != B:
        emb = jnp.pad(emb, ((0, 0), (0, B_pad - B), (0, 0)))
    emb_t = emb.reshape(T * B_pad, E)                                   # t-major

    # TODO(synk): add a batch grid with dimension_semantics=("parallel",) to use
    # v7x's second TensorCore once production B exceeds one sublane block.
    out_pad, cv_pad = pl.pallas_call(
        functools.partial(_word_embedding_kernel, T=T, B=B_pad, H=H),
        out_shape=(jax.ShapeDtypeStruct((B_pad, D), jnp.float32),
                   jax.ShapeDtypeStruct((B_pad, T * C), jnp.float32)),
        in_specs=[pl.BlockSpec(memory_space=pltpu.MemorySpace.VMEM)] * 9,
        out_specs=(pl.BlockSpec(memory_space=pltpu.MemorySpace.VMEM),
                   pl.BlockSpec(memory_space=pltpu.MemorySpace.VMEM)),
        scratch_shapes=[
            pltpu.VMEM((T, B_pad, 8 * H), jnp.float32),   # hoisted input gates
            pltpu.VMEM((T, B_pad, 2 * H), jnp.float32),   # fwd|bwd hidden states
        ],
    )(emb_t, prep["enc_w"], prep["enc_b"], prep["wih"], prep["bias"],
      prep["whh_blk"], prep["emb_w"], prep["emb_b"], prep["proj_w"])

    out = out_pad[:B]                                       # (B, Dout)
    char_vector_ori = cv_pad[:B].reshape(B, T, C)           # (B, T, C)
    return out, char_vector_ori


def init_params(key):
    ks = jax.random.split(key, 14)
    s = 0.05
    p = {}
    p["char_embedding"] = jax.random.normal(ks[0], (len(LEXICON), EMBEDDING_DIM)) * s
    # char_encoder: Linear(EMBEDDING_DIM, CHAR_VECTOR_DIM) + ReLU
    p["enc_w"] = jax.random.normal(ks[1], (CHAR_VECTOR_DIM, EMBEDDING_DIM)) * s
    p["enc_b"] = jax.random.normal(ks[2], (CHAR_VECTOR_DIM,)) * s
    # nn.LSTM(CHAR_VECTOR_DIM, HIDDEN, bidirectional=True): fwd + reverse dirs
    p["wih_f"] = jax.random.normal(ks[3], (4 * HIDDEN, CHAR_VECTOR_DIM)) * s
    p["whh_f"] = jax.random.normal(ks[4], (4 * HIDDEN, HIDDEN)) * s
    p["bih_f"] = jax.random.normal(ks[5], (4 * HIDDEN,)) * s
    p["bhh_f"] = jax.random.normal(ks[6], (4 * HIDDEN,)) * s
    p["wih_b"] = jax.random.normal(ks[7], (4 * HIDDEN, CHAR_VECTOR_DIM)) * s
    p["whh_b"] = jax.random.normal(ks[8], (4 * HIDDEN, HIDDEN)) * s
    p["bih_b"] = jax.random.normal(ks[9], (4 * HIDDEN,)) * s
    p["bhh_b"] = jax.random.normal(ks[10], (4 * HIDDEN,)) * s
    # BidirectionalLSTM.embedding: Linear(2*HIDDEN, OUT_CHANNELS)
    p["rnn_emb_w"] = jax.random.normal(ks[11], (OUT_CHANNELS, 2 * HIDDEN)) * s
    p["rnn_emb_b"] = jax.random.normal(ks[12], (OUT_CHANNELS,)) * s
    # proj: Linear(OUT_CHANNELS * MAX_LENGTH, OUT_EMBEDDING_DIM, bias=False)
    p["proj_w"] = jax.random.normal(ks[13], (OUT_EMBEDDING_DIM, OUT_CHANNELS * MAX_LENGTH)) * s
    return jax.tree.map(lambda a: a.astype(jnp.float32), p)


def pad_words(words, pad_to=MAX_WORD_LEN):
    """Pad a list of variable-length index arrays to a fixed shape so the
    jitted forward never retraces on word length."""
    for w in words:
        assert int(w.shape[0]) > 0
    lens = np.array([int(w.shape[0]) for w in words], np.int32)
    assert int(lens.max()) <= pad_to
    ids = np.zeros((len(words), pad_to), np.int32)
    for i, w in enumerate(words):
        ids[i, :int(w.shape[0])] = np.asarray(w)
    return jnp.asarray(ids), jnp.asarray(lens)


if __name__ == "__main__":
    key = jax.random.PRNGKey(0)
    pkey, k1, k2 = jax.random.split(key, 3)
    params = init_params(pkey)
    prep = prepare_params(params)          # one-time weight preprocessing

    # batch of 2 "words" of character indices (variable lengths 3 and 6)
    inputs = [
        jax.random.randint(k1, (3,), 0, len(LEXICON), dtype=jnp.int32),
        jax.random.randint(k2, (6,), 0, len(LEXICON), dtype=jnp.int32),
    ]
    ids, lens = pad_words(inputs)

    out, char_vector_ori = word_embedding_forward(prep, ids, lens)
    jax.block_until_ready((out, char_vector_ori))

    assert out.shape == (2, OUT_EMBEDDING_DIM), out.shape
    assert char_vector_ori.shape == (2, MAX_LENGTH, CHAR_VECTOR_DIM), char_vector_ori.shape
    assert bool(jnp.all(jnp.isfinite(out))) and bool(jnp.all(jnp.isfinite(char_vector_ori)))
    print("KERNEL_OK")
</pallas_src>

<mosaic_0001>
module attributes {stable_mosaic.version = 11 : i64} {
  func.func @_word_embedding_kernel(%arg0: memref<64x32xf32, #tpu.memory_space<vmem>>, %arg1: memref<32x128xbf16, #tpu.memory_space<vmem>>, %arg2: memref<1x128xf32, #tpu.memory_space<vmem>>, %arg3: memref<128x1024xbf16, #tpu.memory_space<vmem>>, %arg4: memref<1x1024xf32, #tpu.memory_space<vmem>>, %arg5: memref<256x1024xbf16, #tpu.memory_space<vmem>>, %arg6: memref<256x128xbf16, #tpu.memory_space<vmem>>, %arg7: memref<1x128xf32, #tpu.memory_space<vmem>>, %arg8: memref<8x128x256xbf16, #tpu.memory_space<vmem>>, %arg9: memref<8x256xf32, #tpu.memory_space<vmem>>, %arg10: memref<8x1024xf32, #tpu.memory_space<vmem>>, %arg11: memref<8x8x1024xf32, #tpu.memory_space<vmem>>, %arg12: memref<8x8x256xf32, #tpu.memory_space<vmem>>) attributes {dimension_semantics = [], scalar_prefetch = 0 : i64, scratch_operands = 2 : i64, tpu.core_type = #tpu.core_type<tc>} {
    %c0 = arith.constant 0 : index
    %c0_0 = arith.constant 0 : index
    %0 = vector.load %arg0[%c0, %c0_0] : memref<64x32xf32, #tpu.memory_space<vmem>>, vector<64x32xf32>
    %1 = arith.truncf %0 : vector<64x32xf32> to vector<64x32xbf16>
    %c0_1 = arith.constant 0 : index
    %c0_2 = arith.constant 0 : index
    %2 = vector.load %arg1[%c0_1, %c0_2] : memref<32x128xbf16, #tpu.memory_space<vmem>>, vector<32x128xbf16>
    %cst = arith.constant dense<0.000000e+00> : vector<64x128xf32>
    %3 = tpu.matmul %1, %2, %cst {dimension_numbers = #tpu.dot_dimension_numbers<[1], [0], [0], [1], [0, 0, 1, 1], [], []>} : vector<64x32xbf16>, vector<32x128xbf16>, vector<64x128xf32> -> vector<64x128xf32>
    %c0_3 = arith.constant 0 : index
    %c0_4 = arith.constant 0 : index
    %4 = vector.load %arg2[%c0_3, %c0_4] : memref<1x128xf32, #tpu.memory_space<vmem>>, vector<1x128xf32>
    %5 = vector.broadcast %4 : vector<1x128xf32> to vector<64x128xf32>
    %6 = arith.addf %3, %5 : vector<64x128xf32>
    %cst_5 = arith.constant 0.000000e+00 : f32
    %7 = vector.broadcast %cst_5 : f32 to vector<64x128xf32>
    %8 = arith.maximumf %6, %7 : vector<64x128xf32>
    %9 = vector.shape_cast %8 : vector<64x128xf32> to vector<8x8x128xf32>
    %10 = vector.extract_strided_slice %9 {offsets = [0, 0, 0], sizes = [1, 8, 128], strides = [1, 1, 1]} : vector<8x8x128xf32> to vector<1x8x128xf32>
    %11 = vector.shape_cast %10 : vector<1x8x128xf32> to vector<8x128xf32>
    %c0_6 = arith.constant 0 : index
    %c0_7 = arith.constant 0 : index
    %12 = vector.load %arg10[%c0_6, %c0_7] : memref<8x1024xf32, #tpu.memory_space<vmem>>, vector<8x128xf32>
    tpu.vector_store %arg10[%c0_6, %c0_7], %11 {strides = array<i32>} : memref<8x1024xf32, #tpu.memory_space<vmem>>, vector<8x128xf32>,
    %13 = vector.extract_strided_slice %9 {offsets = [1, 0, 0], sizes = [1, 8, 128], strides = [1, 1, 1]} : vector<8x8x128xf32> to vector<1x8x128xf32>
    %14 = vector.shape_cast %13 : vector<1x8x128xf32> to vector<8x128xf32>
    %c0_8 = arith.constant 0 : index
    %c128 = arith.constant 128 : index
    %15 = vector.load %arg10[%c0_8, %c128] : memref<8x1024xf32, #tpu.memory_space<vmem>>, vector<8x128xf32>
    tpu.vector_store %arg10[%c0_8, %c128], %14 {strides = array<i32>} : memref<8x1024xf32, #tpu.memory_space<vmem>>, vector<8x128xf32>,
    %16 = vector.extract_strided_slice %9 {offsets = [2, 0, 0], sizes = [1, 8, 128], strides = [1, 1, 1]} : vector<8x8x128xf32> to vector<1x8x128xf32>
    %17 = vector.shape_cast %16 : vector<1x8x128xf32> to vector<8x128xf32>
    %c0_9 = arith.constant 0 : index
    %c256 = arith.constant 256 : index
    %18 = vector.load %arg10[%c0_9, %c256] : memref<8x1024xf32, #tpu.memory_space<vmem>>, vector<8x128xf32>
    tpu.vector_store %arg10[%c0_9, %c256], %17 {strides = array<i32>} : memref<8x1024xf32, #tpu.memory_space<vmem>>, vector<8x128xf32>,
    %19 = vector.extract_strided_slice %9 {offsets = [3, 0, 0], sizes = [1, 8, 128], strides = [1, 1, 1]} : vector<8x8x128xf32> to vector<1x8x128xf32>
    %20 = vector.shape_cast %19 : vector<1x8x128xf32> to vector<8x128xf32>
    %c0_10 = arith.constant 0 : index
    %c384 = arith.constant 384 : index
    %21 = vector.load %arg10[%c0_10, %c384] : memref<8x1024xf32, #tpu.memory_space<vmem>>, vector<8x128xf32>
    tpu.vector_store %arg10[%c0_10, %c384], %20 {strides = array<i32>} : memref<8x1024xf32, #tpu.memory_space<vmem>>, vector<8x128xf32>,
    %22 = vector.extract_strided_slice %9 {offsets = [4, 0, 0], sizes = [1, 8, 128], strides = [1, 1, 1]} : vector<8x8x128xf32> to vector<1x8x128xf32>
    %23 = vector.shape_cast %22 : vector<1x8x128xf32> to vector<8x128xf32>
    %c0_11 = arith.constant 0 : index
    %c512 = arith.constant 512 : index
    %24 = vector.load %arg10[%c0_11, %c512] : memref<8x1024xf32, #tpu.memory_space<vmem>>, vector<8x128xf32>
    tpu.vector_store %arg10[%c0_11, %c512], %23 {strides = array<i32>} : memref<8x1024xf32, #tpu.memory_space<vmem>>, vector<8x128xf32>,
    %25 = vector.extract_strided_slice %9 {offsets = [5, 0, 0], sizes = [1, 8, 128], strides = [1, 1, 1]} : vector<8x8x128xf32> to vector<1x8x128xf32>
    %26 = vector.shape_cast %25 : vector<1x8x128xf32> to vector<8x128xf32>
    %c0_12 = arith.constant 0 : index
    %c640 = arith.constant 640 : index
    %27 = vector.load %arg10[%c0_12, %c640] : memref<8x1024xf32, #tpu.memory_space<vmem>>, vector<8x128xf32>
    tpu.vector_store %arg10[%c0_12, %c640], %26 {strides = array<i32>} : memref<8x1024xf32, #tpu.memory_space<vmem>>, vector<8x128xf32>,
    %28 = vector.extract_strided_slice %9 {offsets = [6, 0, 0], sizes = [1, 8, 128], strides = [1, 1, 1]} : vector<8x8x128xf32> to vector<1x8x128xf32>
    %29 = vector.shape_cast %28 : vector<1x8x128xf32> to vector<8x128xf32>
    %c0_13 = arith.constant 0 : index
    %c768 = arith.constant 768 : index
    %30 = vector.load %arg10[%c0_13, %c768] : memref<8x1024xf32, #tpu.memory_space<vmem>>, vector<8x128xf32>
    tpu.vector_store %arg10[%c0_13, %c768], %29 {strides = array<i32>} : memref<8x1024xf32, #tpu.memory_space<vmem>>, vector<8x128xf32>,
    %31 = vector.extract_strided_slice %9 {offsets = [7, 0, 0], sizes = [1, 8, 128], strides = [1, 1, 1]} : vector<8x8x128xf32> to vector<1x8x128xf32>
    %32 = vector.shape_cast %31 : vector<1x8x128xf32> to vector<8x128xf32>
    %c0_14 = arith.constant 0 : index
    %c896 = arith.constant 896 : index
    %33 = vector.load %arg10[%c0_14, %c896] : memref<8x1024xf32, #tpu.memory_space<vmem>>, vector<8x128xf32>
    tpu.vector_store %arg10[%c0_14, %c896], %32 {strides = array<i32>} : memref<8x1024xf32, #tpu.memory_space<vmem>>, vector<8x128xf32>,
    %34 = arith.truncf %8 : vector<64x128xf32> to vector<64x128xbf16>
    %c0_15 = arith.constant 0 : index
    %c0_16 = arith.constant 0 : index
    %35 = vector.load %arg3[%c0_15, %c0_16] : memref<128x1024xbf16, #tpu.memory_space<vmem>>, vector<128x1024xbf16>
    %cst_17 = arith.constant dense<0.000000e+00> : vector<64x1024xf32>
    %36 = tpu.matmul %34, %35, %cst_17 {dimension_numbers = #tpu.dot_dimension_numbers<[1], [0], [0], [1], [0, 0, 1, 1], [], []>} : vector<64x128xbf16>, vector<128x1024xbf16>, vector<64x1024xf32> -> vector<64x1024xf32>
    %c0_18 = arith.constant 0 : index
    %c0_19 = arith.constant 0 : index
    %37 = vector.load %arg4[%c0_18, %c0_19] : memref<1x1024xf32, #tpu.memory_space<vmem>>, vector<1x1024xf32>
    %38 = vector.broadcast %37 : vector<1x1024xf32> to vector<64x1024xf32>
    %39 = arith.addf %36, %38 : vector<64x1024xf32>
    %40 = vector.shape_cast %39 : vector<64x1024xf32> to vector<8x8x1024xf32>
    %c0_20 = arith.constant 0 : index
    %c0_21 = arith.constant 0 : index
    %c0_22 = arith.constant 0 : index
    %41 = vector.load %arg11[%c0_20, %c0_21, %c0_22] : memref<8x8x1024xf32, #tpu.memory_space<vmem>>, vector<8x8x1024xf32>
    tpu.vector_store %arg11[%c0_20, %c0_21, %c0_22], %40 {strides = array<i32>} : memref<8x8x1024xf32, #tpu.memory_space<vmem>>, vector<8x8x1024xf32>,
    %cst_23 = arith.constant 0.000000e+00 : f32
    %42 = vector.broadcast %cst_23 : f32 to vector<8x128xf32>
    %cst_24 = arith.constant 0.000000e+00 : f32
    %43 = vector.broadcast %cst_24 : f32 to vector<8x128xf32>
    %cst_25 = arith.constant 0.000000e+00 : f32
    %44 = vector.broadcast %cst_25 : f32 to vector<8x128xf32>
    %cst_26 = arith.constant 0.000000e+00 : f32
    %45 = vector.broadcast %cst_26 : f32 to vector<8x128xf32>
    %46 = tpu.concatenate %42, %44 in 1 : vector<8x128xf32>, vector<8x128xf32> -> vector<8x256xf32>
    %47 = arith.truncf %46 : vector<8x256xf32> to vector<8x256xbf16>
    %c0_27 = arith.constant 0 : index
    %c0_28 = arith.constant 0 : index
    %48 = vector.load %arg5[%c0_27, %c0_28] : memref<256x1024xbf16, #tpu.memory_space<vmem>>, vector<256x1024xbf16>
    %cst_29 = arith.constant dense<0.000000e+00> : vector<8x1024xf32>
    %49 = tpu.matmul %47, %48, %cst_29 {dimension_numbers = #tpu.dot_dimension_numbers<[1], [0], [0], [1], [0, 0, 1, 1], [], []>} : vector<8x256xbf16>, vector<256x1024xbf16>, vector<8x1024xf32> -> vector<8x1024xf32>
    %c0_30 = arith.constant 0 : index
    %c0_31 = arith.constant 0 : index
    %c0_32 = arith.constant 0 : index
    %50 = vector.load %arg11[%c0_30, %c0_31, %c0_32] : memref<8x8x1024xf32, #tpu.memory_space<vmem>>, vector<1x8x512xf32>
    %51 = vector.shape_cast %50 : vector<1x8x512xf32> to vector<8x512xf32>
    %52 = vector.extract_strided_slice %49 {offsets = [0, 0], sizes = [8, 512], strides = [1, 1]} : vector<8x1024xf32> to vector<8x512xf32>
    %53 = arith.addf %51, %52 : vector<8x512xf32>
    %c7 = arith.constant 7 : index
    %c0_33 = arith.constant 0 : index
    %c512_34 = arith.constant 512 : index
    %54 = vector.load %arg11[%c7, %c0_33, %c512_34] : memref<8x8x1024xf32, #tpu.memory_space<vmem>>, vector<1x8x512xf32>
    %55 = vector.shape_cast %54 : vector<1x8x512xf32> to vector<8x512xf32>
    %56 = vector.extract_strided_slice %49 {offsets = [0, 512], sizes = [8, 512], strides = [1, 1]} : vector<8x1024xf32> to vector<8x512xf32>
    %57 = arith.addf %55, %56 : vector<8x512xf32>
    %58 = vector.extract_strided_slice %53 {offsets = [0, 0], sizes = [8, 128], strides = [1, 1]} : vector<8x512xf32> to vector<8x128xf32>
    %59 = arith.negf %58 : vector<8x128xf32>
    %60 = math.exp %59 : vector<8x128xf32>
    %cst_35 = arith.constant 1.000000e+00 : f32
    %61 = vector.broadcast %cst_35 : f32 to vector<8x128xf32>
    %62 = arith.addf %61, %60 : vector<8x128xf32>
    %63 = arith.divf %61, %62 : vector<8x128xf32>
    %64 = vector.extract_strided_slice %53 {offsets = [0, 128], sizes = [8, 128], strides = [1, 1]} : vector<8x512xf32> to vector<8x128xf32>
    %65 = arith.negf %64 : vector<8x128xf32>
    %66 = math.exp %65 : vector<8x128xf32>
    %cst_36 = arith.constant 1.000000e+00 : f32
    %67 = vector.broadcast %cst_36 : f32 to vector<8x128xf32>
    %68 = arith.addf %67, %66 : vector<8x128xf32>
    %69 = arith.divf %67, %68 : vector<8x128xf32>
    %70 = vector.extract_strided_slice %53 {offsets = [0, 256], sizes = [8, 128], strides = [1, 1]} : vector<8x512xf32> to vector<8x128xf32>
    %71 = math.tanh %70 : vector<8x128xf32>
    %72 = vector.extract_strided_slice %53 {offsets = [0, 384], sizes = [8, 128], strides = [1, 1]} : vector<8x512xf32> to vector<8x128xf32>
    %73 = arith.negf %72 : vector<8x128xf32>
    %74 = math.exp %73 : vector<8x128xf32>
    %cst_37 = arith.constant 1.000000e+00 : f32
    %75 = vector.broadcast %cst_37 : f32 to vector<8x128xf32>
    %76 = arith.addf %75, %74 : vector<8x128xf32>
    %77 = arith.divf %75, %76 : vector<8x128xf32>
    %78 = arith.mulf %69, %43 : vector<8x128xf32>
    %79 = arith.mulf %63, %71 : vector<8x128xf32>
    %80 = arith.addf %78, %79 : vector<8x128xf32>
    %81 = math.tanh %80 : vector<8x128xf32>
    %82 = arith.mulf %77, %81 : vector<8x128xf32>
    %83 = vector.extract_strided_slice %57 {offsets = [0, 0], sizes = [8, 128], strides = [1, 1]} : vector<8x512xf32> to vector<8x128xf32>
    %84 = arith.negf %83 : vector<8x128xf32>
    %85 = math.exp %84 : vector<8x128xf32>
    %cst_38 = arith.constant 1.000000e+00 : f32
    %86 = vector.broadcast %cst_38 : f32 to vector<8x128xf32>
    %87 = arith.addf %86, %85 : vector<8x128xf32>
    %88 = arith.divf %86, %87 : vector<8x128xf32>
    %89 = vector.extract_strided_slice %57 {offsets = [0, 128], sizes = [8, 128], strides = [1, 1]} : vector<8x512xf32> to vector<8x128xf32>
    %90 = arith.negf %89 : vector<8x128xf32>
    %91 = math.exp %90 : vector<8x128xf32>
    %cst_39 = arith.constant 1.000000e+00 : f32
    %92 = vector.broadcast %cst_39 : f32 to vector<8x128xf32>
    %93 = arith.addf %92, %91 : vector<8x128xf32>
    %94 = arith.divf %92, %93 : vector<8x128xf32>
    %95 = vector.extract_strided_slice %57 {offsets = [0, 256], sizes = [8, 128], strides = [1, 1]} : vector<8x512xf32> to vector<8x128xf32>
    %96 = math.tanh %95 : vector<8x128xf32>
    %97 = vector.extract_strided_slice %57 {offsets = [0, 384], sizes = [8, 128], strides = [1, 1]} : vector<8x512xf32> to vector<8x128xf32>
    %98 = arith.negf %97 : vector<8x128xf32>
    %99 = math.exp %98 : vector<8x128xf32>
    %cst_40 = arith.constant 1.000000e+00 : f32
    %100 = vector.broadcast %cst_40 : f32 to vector<8x128xf32>
    %101 = arith.addf %100, %99 : vector<8x128xf32>
    %102 = arith.divf %100, %101 : vector<8x128xf32>
    %103 = arith.mulf %94, %45 : vector<8x128xf32>
    %104 = arith.mulf %88, %96 : vector<8x128xf32>
    %105 = arith.addf %103, %104 : vector<8x128xf32>
    %106 = math.tanh %105 : vector<8x128xf32>
    %107 = arith.mulf %102, %106 : vector<8x128xf32>
    %c0_41 = arith.constant 0 : index
    %c0_42 = arith.constant 0 : index
    %c0_43 = arith.constant 0 : index
    %108 = vector.load %arg12[%c0_41, %c0_42, %c0_43] : memref<8x8x256xf32, #tpu.memory_space<vmem>>, vector<1x8x128xf32>
    %109 = vector.shape_cast %108 : vector<1x8x128xf32> to vector<8x128xf32>
    %110 = vector.shape_cast %82 : vector<8x128xf32> to vector<1x8x128xf32>
    tpu.vector_store %arg12[%c0_41, %c0_42, %c0_43], %110 {strides = array<i32>} : memref<8x8x256xf32, #tpu.memory_space<vmem>>, vector<1x8x128xf32>,
    %c7_44 = arith.constant 7 : index
    %c0_45 = arith.constant 0 : index
    %c128_46 = arith.constant 128 : index
    %111 = vector.load %arg12[%c7_44, %c0_45, %c128_46] : memref<8x8x256xf32, #tpu.memory_space<vmem>>, vector<1x8x128xf32>
    %112 = vector.shape_cast %111 : vector<1x8x128xf32> to vector<8x128xf32>
    %113 = vector.shape_cast %107 : vector<8x128xf32> to vector<1x8x128xf32>
    tpu.vector_store %arg12[%c7_44, %c0_45, %c128_46], %113 {strides = array<i32>} : memref<8x8x256xf32, #tpu.memory_space<vmem>>, vector<1x8x128xf32>,
    %114 = tpu.concatenate %82, %107 in 1 : vector<8x128xf32>, vector<8x128xf32> -> vector<8x256xf32>
    %115 = arith.truncf %114 : vector<8x256xf32> to vector<8x256xbf16>
    %c0_47 = arith.constant 0 : index
    %c0_48 = arith.constant 0 : index
    %116 = vector.load %arg5[%c0_47, %c0_48] : memref<256x1024xbf16, #tpu.memory_space<vmem>>, vector<256x1024xbf16>
    %cst_49 = arith.constant dense<0.000000e+00> : vector<8x1024xf32>
    %117 = tpu.matmul %115, %116, %cst_49 {dimension_numbers = #tpu.dot_dimension_numbers<[1], [0], [0], [1], [0, 0, 1, 1], [], []>} : vector<8x256xbf16>, vector<256x1024xbf16>, vector<8x1024xf32> -> vector<8x1024xf32>
    %c1 = arith.constant 1 : index
    %c0_50 = arith.constant 0 : index
    %c0_51 = arith.constant 0 : index
    %118 = vector.load %arg11[%c1, %c0_50, %c0_51] : memref<8x8x1024xf32, #tpu.memory_space<vmem>>, vector<1x8x512xf32>
    %119 = vector.shape_cast %118 : vector<1x8x512xf32> to vector<8x512xf32>
    %120 = vector.extract_strided_slice %117 {offsets = [0, 0], sizes = [8, 512], strides = [1, 1]} : vector<8x1024xf32> to vector<8x512xf32>
    %121 = arith.addf %119, %120 : vector<8x512xf32>
    %c6 = arith.constant 6 : index
    %c0_52 = arith.constant 0 : index
    %c512_53 = arith.constant 512 : index
    %122 = vector.load %arg11[%c6, %c0_52, %c512_53] : memref<8x8x1024xf32, #tpu.memory_space<vmem>>, vector<1x8x512xf32>
    %123 = vector.shape_cast %122 : vector<1x8x512xf32> to vector<8x512xf32>
    %124 = vector.extract_strided_slice %117 {offsets = [0, 512], sizes = [8, 512], strides = [1, 1]} : vector<8x1024xf32> to vector<8x512xf32>
    %125 = arith.addf %123, %124 : vector<8x512xf32>
    %126 = vector.extract_strided_slice %121 {offsets = [0, 0], sizes = [8, 128], strides = [1, 1]} : vector<8x512xf32> to vector<8x128xf32>
    %127 = arith.negf %126 : vector<8x128xf32>
    %128 = math.exp %127 : vector<8x128xf32>
    %cst_54 = arith.constant 1.000000e+00 : f32
    %129 = vector.broadcast %cst_54 : f32 to vector<8x128xf32>
    %130 = arith.addf %129, %128 : vector<8x128xf32>
    %131 = arith.divf %129, %130 : vector<8x128xf32>
    %132 = vector.extract_strided_slice %121 {offsets = [0, 128], sizes = [8, 128], strides = [1, 1]} : vector<8x512xf32> to vector<8x128xf32>
    %133 = arith.negf %132 : vector<8x128xf32>
    %134 = math.exp %133 : vector<8x128xf32>
    %cst_55 = arith.constant 1.000000e+00 : f32
    %135 = vector.broadcast %cst_55 : f32 to vector<8x128xf32>
    %136 = arith.addf %135, %134 : vector<8x128xf32>
    %137 = arith.divf %135, %136 : vector<8x128xf32>
    %138 = vector.extract_strided_slice %121 {offsets = [0, 256], sizes = [8, 128], strides = [1, 1]} : vector<8x512xf32> to vector<8x128xf32>
    %139 = math.tanh %138 : vector<8x128xf32>
    %140 = vector.extract_strided_slice %121 {offsets = [0, 384], sizes = [8, 128], strides = [1, 1]} : vector<8x512xf32> to vector<8x128xf32>
    %141 = arith.negf %140 : vector<8x128xf32>
    %142 = math.exp %141 : vector<8x128xf32>
    %cst_56 = arith.constant 1.000000e+00 : f32
    %143 = vector.broadcast %cst_56 : f32 to vector<8x128xf32>
    %144 = arith.addf %143, %142 : vector<8x128xf32>
    %145 = arith.divf %143, %144 : vector<8x128xf32>
    %146 = arith.mulf %137, %80 : vector<8x128xf32>
    %147 = arith.mulf %131, %139 : vector<8x128xf32>
    %148 = arith.addf %146, %147 : vector<8x128xf32>
    %149 = math.tanh %148 : vector<8x128xf32>
    %150 = arith.mulf %145, %149 : vector<8x128xf32>
    %151 = vector.extract_strided_slice %125 {offsets = [0, 0], sizes = [8, 128], strides = [1, 1]} : vector<8x512xf32> to vector<8x128xf32>
    %152 = arith.negf %151 : vector<8x128xf32>
    %153 = math.exp %152 : vector<8x128xf32>
    %cst_57 = arith.constant 1.000000e+00 : f32
    %154 = vector.broadcast %cst_57 : f32 to vector<8x128xf32>
    %155 = arith.addf %154, %153 : vector<8x128xf32>
    %156 = arith.divf %154, %155 : vector<8x128xf32>
    %157 = vector.extract_strided_slice %125 {offsets = [0, 128], sizes = [8, 128], strides = [1, 1]} : vector<8x512xf32> to vector<8x128xf32>
    %158 = arith.negf %157 : vector<8x128xf32>
    %159 = math.exp %158 : vector<8x128xf32>
    %cst_58 = arith.constant 1.000000e+00 : f32
    %160 = vector.broadcast %cst_58 : f32 to vector<8x128xf32>
    %161 = arith.addf %160, %159 : vector<8x128xf32>
    %162 = arith.divf %160, %161 : vector<8x128xf32>
    %163 = vector.extract_strided_slice %125 {offsets = [0, 256], sizes = [8, 128], strides = [1, 1]} : vector<8x512xf32> to vector<8x128xf32>
    %164 = math.tanh %163 : vector<8x128xf32>
    %165 = vector.extract_strided_slice %125 {offsets = [0, 384], sizes = [8, 128], strides = [1, 1]} : vector<8x512xf32> to vector<8x128xf32>
    %166 = arith.negf %165 : vector<8x128xf32>
    %167 = math.exp %166 : vector<8x128xf32>
    %cst_59 = arith.constant 1.000000e+00 : f32
    %168 = vector.broadcast %cst_59 : f32 to vector<8x128xf32>
    %169 = arith.addf %168, %167 : vector<8x128xf32>
    %170 = arith.divf %168, %169 : vector<8x128xf32>
    %171 = arith.mulf %162, %105 : vector<8x128xf32>
    %172 = arith.mulf %156, %164 : vector<8x128xf32>
    %173 = arith.addf %171, %172 : vector<8x128xf32>
    %174 = math.tanh %173 : vector<8x128xf32>
    %175 = arith.mulf %170, %174 : vector<8x128xf32>
    %c1_60 = arith.constant 1 : index
    %c0_61 = arith.constant 0 : index
    %c0_62 = arith.constant 0 : index
    %176 = vector.load %arg12[%c1_60, %c0_61, %c0_62] : memref<8x8x256xf32, #tpu.memory_space<vmem>>, vector<1x8x128xf32>
    %177 = vector.shape_cast %176 : vector<1x8x128xf32> to vector<8x128xf32>
    %178 = vector.shape_cast %150 : vector<8x128xf32> to vector<1x8x128xf32>
    tpu.vector_store %arg12[%c1_60, %c0_61, %c0_62], %178 {strides = array<i32>} : memref<8x8x256xf32, #tpu.memory_space<vmem>>, vector<1x8x128xf32>,
    %c6_63 = arith.constant 6 : index
    %c0_64 = arith.constant 0 : index
    %c128_65 = arith.constant 128 : index
    %179 = vector.load %arg12[%c6_63, %c0_64, %c128_65] : memref<8x8x256xf32, #tpu.memory_space<vmem>>, vector<1x8x128xf32>
    %180 = vector.shape_cast %179 : vector<1x8x128xf32> to vector<8x128xf32>
    %181 = vector.shape_cast %175 : vector<8x128xf32> to vector<1x8x128xf32>
    tpu.vector_store %arg12[%c6_63, %c0_64, %c128_65], %181 {strides = array<i32>} : memref<8x8x256xf32, #tpu.memory_space<vmem>>, vector<1x8x128xf32>,
    %182 = tpu.concatenate %150, %175 in 1 : vector<8x128xf32>, vector<8x128xf32> -> vector<8x256xf32>
    %183 = arith.truncf %182 : vector<8x256xf32> to vector<8x256xbf16>
    %c0_66 = arith.constant 0 : index
    %c0_67 = arith.constant 0 : index
    %184 = vector.load %arg5[%c0_66, %c0_67] : memref<256x1024xbf16, #tpu.memory_space<vmem>>, vector<256x1024xbf16>
    %cst_68 = arith.constant dense<0.000000e+00> : vector<8x1024xf32>
    %185 = tpu.matmul %183, %184, %cst_68 {dimension_numbers = #tpu.dot_dimension_numbers<[1], [0], [0], [1], [0, 0, 1, 1], [], []>} : vector<8x256xbf16>, vector<256x1024xbf16>, vector<8x1024xf32> -> vector<8x1024xf32>
    %c2 = arith.constant 2 : index
    %c0_69 = arith.constant 0 : index
    %c0_70 = arith.constant 0 : index
    %186 = vector.load %arg11[%c2, %c0_69, %c0_70] : memref<8x8x1024xf32, #tpu.memory_space<vmem>>, vector<1x8x512xf32>
    %187 = vector.shape_cast %186 : vector<1x8x512xf32> to vector<8x512xf32>
    %188 = vector.extract_strided_slice %185 {offsets = [0, 0], sizes = [8, 512], strides = [1, 1]} : vector<8x1024xf32> to vector<8x512xf32>
    %189 = arith.addf %187, %188 : vector<8x512xf32>
    %c5 = arith.constant 5 : index
    %c0_71 = arith.constant 0 : index
    %c512_72 = arith.constant 512 : index
    %190 = vector.load %arg11[%c5, %c0_71, %c512_72] : memref<8x8x1024xf32, #tpu.memory_space<vmem>>, vector<1x8x512xf32>
    %191 = vector.shape_cast %190 : vector<1x8x512xf32> to vector<8x512xf32>
    %192 = vector.extract_strided_slice %185 {offsets = [0, 512], sizes = [8, 512], strides = [1, 1]} : vector<8x1024xf32> to vector<8x512xf32>
    %193 = arith.addf %191, %192 : vector<8x512xf32>
    %194 = vector.extract_strided_slice %189 {offsets = [0, 0], sizes = [8, 128], strides = [1, 1]} : vector<8x512xf32> to vector<8x128xf32>
    %195 = arith.negf %194 : vector<8x128xf32>
    %196 = math.exp %195 : vector<8x128xf32>
    %cst_73 = arith.constant 1.000000e+00 : f32
    %197 = vector.broadcast %cst_73 : f32 to vector<8x128xf32>
    %198 = arith.addf %197, %196 : vector<8x128xf32>
    %199 = arith.divf %197, %198 : vector<8x128xf32>
    %200 = vector.extract_strided_slice %189 {offsets = [0, 128], sizes = [8, 128], strides = [1, 1]} : vector<8x512xf32> to vector<8x128xf32>
    %201 = arith.negf %200 : vector<8x128xf32>
    %202 = math.exp %201 : vector<8x128xf32>
    %cst_74 = arith.constant 1.000000e+00 : f32
    %203 = vector.broadcast %cst_74 : f32 to vector<8x128xf32>
    %204 = arith.addf %203, %202 : vector<8x128xf32>
    %205 = arith.divf %203, %204 : vector<8x128xf32>
    %206 = vector.extract_strided_slice %189 {offsets = [0, 256], sizes = [8, 128], strides = [1, 1]} : vector<8x512xf32> to vector<8x128xf32>
    %207 = math.tanh %206 : vector<8x128xf32>
    %208 = vector.extract_strided_slice %189 {offsets = [0, 384], sizes = [8, 128], strides = [1, 1]} : vector<8x512xf32> to vector<8x128xf32>
    %209 = arith.negf %208 : vector<8x128xf32>
    %210 = math.exp %209 : vector<8x128xf32>
    %cst_75 = arith.constant 1.000000e+00 : f32
    %211 = vector.broadcast %cst_75 : f32 to vector<8x128xf32>
    %212 = arith.addf %211, %210 : vector<8x128xf32>
    %213 = arith.divf %211, %212 : vector<8x128xf32>
    %214 = arith.mulf %205, %148 : vector<8x128xf32>
    %215 = arith.mulf %199, %207 : vector<8x128xf32>
    %216 = arith.addf %214, %215 : vector<8x128xf32>
    %217 = math.tanh %216 : vector<8x128xf32>
    %218 = arith.mulf %213, %217 : vector<8x128xf32>
    %219 = vector.extract_strided_slice %193 {offsets = [0, 0], sizes = [8, 128], strides = [1, 1]} : vector<8x512xf32> to vector<8x128xf32>
    %220 = arith.negf %219 : vector<8x128xf32>
    %221 = math.exp %220 : vector<8x128xf32>
    %cst_76 = arith.constant 1.000000e+00 : f32
    %222 = vector.broadcast %cst_76 : f32 to vector<8x128xf32>
    %223 = arith.addf %222, %221 : vector<8x128xf32>
    %224 = arith.divf %222, %223 : vector<8x128xf32>
    %225 = vector.extract_strided_slice %193 {offsets = [0, 128], sizes = [8, 128], strides = [1, 1]} : vector<8x512xf32> to vector<8x128xf32>
    %226 = arith.negf %225 : vector<8x128xf32>
    %227 = math.exp %226 : vector<8x128xf32>
    %cst_77 = arith.constant 1.000000e+00 : f32
    %228 = vector.broadcast %cst_77 : f32 to vector<8x128xf32>
    %229 = arith.addf %228, %227 : vector<8x128xf32>
    %230 = arith.divf %228, %229 : vector<8x128xf32>
    %231 = vector.extract_strided_slice %193 {offsets = [0, 256], sizes = [8, 128], strides = [1, 1]} : vector<8x512xf32> to vector<8x128xf32>
    %232 = math.tanh %231 : vector<8x128xf32>
    %233 = vector.extract_strided_slice %193 {offsets = [0, 384], sizes = [8, 128], strides = [1, 1]} : vector<8x512xf32> to vector<8x128xf32>
    %234 = arith.negf %233 : vector<8x128xf32>
    %235 = math.exp %234 : vector<8x128xf32>
    %cst_78 = arith.constant 1.000000e+00 : f32
    %236 = vector.broadcast %cst_78 : f32 to vector<8x128xf32>
    %237 = arith.addf %236, %235 : vector<8x128xf32>
    %238 = arith.divf %236, %237 : vector<8x128xf32>
    %239 = arith.mulf %230, %173 : vector<8x128xf32>
    %240 = arith.mulf %224, %232 : vector<8x128xf32>
    %241 = arith.addf %239, %240 : vector<8x128xf32>
    %242 = math.tanh %241 : vector<8x128xf32>
    %243 = arith.mulf %238, %242 : vector<8x128xf32>
    %c2_79 = arith.constant 2 : index
    %c0_80 = arith.constant 0 : index
    %c0_81 = arith.constant 0 : index
    %244 = vector.load %arg12[%c2_79, %c0_80, %c0_81] : memref<8x8x256xf32, #tpu.memory_space<vmem>>, vector<1x8x128xf32>
    %245 = vector.shape_cast %244 : vector<1x8x128xf32> to vector<8x128xf32>
    %246 = vector.shape_cast %218 : vector<8x128xf32> to vector<1x8x128xf32>
    tpu.vector_store %arg12[%c2_79, %c0_80, %c0_81], %246 {strides = array<i32>} : memref<8x8x256xf32, #tpu.memory_space<vmem>>, vector<1x8x128xf32>,
    %c5_82 = arith.constant 5 : index
    %c0_83 = arith.constant 0 : index
    %c128_84 = arith.constant 128 : index
    %247 = vector.load %arg12[%c5_82, %c0_83, %c128_84] : memref<8x8x256xf32, #tpu.memory_space<vmem>>, vector<1x8x128xf32>
    %248 = vector.shape_cast %247 : vector<1x8x128xf32> to vector<8x128xf32>
    %249 = vector.shape_cast %243 : vector<8x128xf32> to vector<1x8x128xf32>
    tpu.vector_store %arg12[%c5_82, %c0_83, %c128_84], %249 {strides = array<i32>} : memref<8x8x256xf32, #tpu.memory_space<vmem>>, vector<1x8x128xf32>,
    %250 = tpu.concatenate %218, %243 in 1 : vector<8x128xf32>, vector<8x128xf32> -> vector<8x256xf32>
    %251 = arith.truncf %250 : vector<8x256xf32> to vector<8x256xbf16>
    %c0_85 = arith.constant 0 : index
    %c0_86 = arith.constant 0 : index
    %252 = vector.load %arg5[%c0_85, %c0_86] : memref<256x1024xbf16, #tpu.memory_space<vmem>>, vector<256x1024xbf16>
    %cst_87 = arith.constant dense<0.000000e+00> : vector<8x1024xf32>
    %253 = tpu.matmul %251, %252, %cst_87 {dimension_numbers = #tpu.dot_dimension_numbers<[1], [0], [0], [1], [0, 0, 1, 1], [], []>} : vector<8x256xbf16>, vector<256x1024xbf16>, vector<8x1024xf32> -> vector<8x1024xf32>
    %c3 = arith.constant 3 : index
    %c0_88 = arith.constant 0 : index
    %c0_89 = arith.constant 0 : index
    %254 = vector.load %arg11[%c3, %c0_88, %c0_89] : memref<8x8x1024xf32, #tpu.memory_space<vmem>>, vector<1x8x512xf32>
    %255 = vector.shape_cast %254 : vector<1x8x512xf32> to vector<8x512xf32>
    %256 = vector.extract_strided_slice %253 {offsets = [0, 0], sizes = [8, 512], strides = [1, 1]} : vector<8x1024xf32> to vector<8x512xf32>
    %257 = arith.addf %255, %256 : vector<8x512xf32>
    %c4 = arith.constant 4 : index
    %c0_90 = arith.constant 0 : index
    %c512_91 = arith.constant 512 : index
    %258 = vector.load %arg11[%c4, %c0_90, %c512_91] : memref<8x8x1024xf32, #tpu.memory_space<vmem>>, vector<1x8x512xf32>
    %259 = vector.shape_cast %258 : vector<1x8x512xf32> to vector<8x512xf32>
    %260 = vector.extract_strided_slice %253 {offsets = [0, 512], sizes = [8, 512], strides = [1, 1]} : vector<8x1024xf32> to vector<8x512xf32>
    %261 = arith.addf %259, %260 : vector<8x512xf32>
    %262 = vector.extract_strided_slice %257 {offsets = [0, 0], sizes = [8, 128], strides = [1, 1]} : vector<8x512xf32> to vector<8x128xf32>
    %263 = arith.negf %262 : vector<8x128xf32>
    %264 = math.exp %263 : vector<8x128xf32>
    %cst_92 = arith.constant 1.000000e+00 : f32
    %265 = vector.broadcast %cst_92 : f32 to vector<8x128xf32>
    %266 = arith.addf %265, %264 : vector<8x128xf32>
    %267 = arith.divf %265, %266 : vector<8x128xf32>
    %268 = vector.extract_strided_slice %257 {offsets = [0, 128], sizes = [8, 128], strides = [1, 1]} : vector<8x512xf32> to vector<8x128xf32>
    %269 = arith.negf %268 : vector<8x128xf32>
    %270 = math.exp %269 : vector<8x128xf32>
    %cst_93 = arith.constant 1.000000e+00 : f32
    %271 = vector.broadcast %cst_93 : f32 to vector<8x128xf32>
    %272 = arith.addf %271, %270 : vector<8x128xf32>
    %273 = arith.divf %271, %272 : vector<8x128xf32>
    %274 = vector.extract_strided_slice %257 {offsets = [0, 256], sizes = [8, 128], strides = [1, 1]} : vector<8x512xf32> to vector<8x128xf32>
    %275 = math.tanh %274 : vector<8x128xf32>
    %276 = vector.extract_strided_slice %257 {offsets = [0, 384], sizes = [8, 128], strides = [1, 1]} : vector<8x512xf32> to vector<8x128xf32>
    %277 = arith.negf %276 : vector<8x128xf32>
    %278 = math.exp %277 : vector<8x128xf32>
    %cst_94 = arith.constant 1.000000e+00 : f32
    %279 = vector.broadcast %cst_94 : f32 to vector<8x128xf32>
    %280 = arith.addf %279, %278 : vector<8x128xf32>
    %281 = arith.divf %279, %280 : vector<8x128xf32>
    %282 = arith.mulf %273, %216 : vector<8x128xf32>
    %283 = arith.mulf %267, %275 : vector<8x128xf32>
    %284 = arith.addf %282, %283 : vector<8x128xf32>
    %285 = math.tanh %284 : vector<8x128xf32>
    %286 = arith.mulf %281, %285 : vector<8x128xf32>
    %287 = vector.extract_strided_slice %261 {offsets = [0, 0], sizes = [8, 128], strides = [1, 1]} : vector<8x512xf32> to vector<8x128xf32>
    %288 = arith.negf %287 : vector<8x128xf32>
    %289 = math.exp %288 : vector<8x128xf32>
    %cst_95 = arith.constant 1.000000e+00 : f32
    %290 = vector.broadcast %cst_95 : f32 to vector<8x128xf32>
    %291 = arith.addf %290, %289 : vector<8x128xf32>
    %292 = arith.divf %290, %291 : vector<8x128xf32>
    %293 = vector.extract_strided_slice %261 {offsets = [0, 128], sizes = [8, 128], strides = [1, 1]} : vector<8x512xf32> to vector<8x128xf32>
    %294 = arith.negf %293 : vector<8x128xf32>
    %295 = math.exp %294 : vector<8x128xf32>
    %cst_96 = arith.constant 1.000000e+00 : f32
    %296 = vector.broadcast %cst_96 : f32 to vector<8x128xf32>
    %297 = arith.addf %296, %295 : vector<8x128xf32>
    %298 = arith.divf %296, %297 : vector<8x128xf32>
    %299 = vector.extract_strided_slice %261 {offsets = [0, 256], sizes = [8, 128], strides = [1, 1]} : vector<8x512xf32> to vector<8x128xf32>
    %300 = math.tanh %299 : vector<8x128xf32>
    %301 = vector.extract_strided_slice %261 {offsets = [0, 384], sizes = [8, 128], strides = [1, 1]} : vector<8x512xf32> to vector<8x128xf32>
    %302 = arith.negf %301 : vector<8x128xf32>
    %303 = math.exp %302 : vector<8x128xf32>
    %cst_97 = arith.constant 1.000000e+00 : f32
    %304 = vector.broadcast %cst_97 : f32 to vector<8x128xf32>
    %305 = arith.addf %304, %303 : vector<8x128xf32>
    %306 = arith.divf %304, %305 : vector<8x128xf32>
    %307 = arith.mulf %298, %241 : vector<8x128xf32>
    %308 = arith.mulf %292, %300 : vector<8x128xf32>
    %309 = arith.addf %307, %308 : vector<8x128xf32>
    %310 = math.tanh %309 : vector<8x128xf32>
    %311 = arith.mulf %306, %310 : vector<8x128xf32>
    %c3_98 = arith.constant 3 : index
    %c0_99 = arith.constant 0 : index
    %c0_100 = arith.constant 0 : index
    %312 = vector.load %arg12[%c3_98, %c0_99, %c0_100] : memref<8x8x256xf32, #tpu.memory_space<vmem>>, vector<1x8x128xf32>
    %313 = vector.shape_cast %312 : vector<1x8x128xf32> to vector<8x128xf32>
    %314 = vector.shape_cast %286 : vector<8x128xf32> to vector<1x8x128xf32>
    tpu.vector_store %arg12[%c3_98, %c0_99, %c0_100], %314 {strides = array<i32>} : memref<8x8x256xf32, #tpu.memory_space<vmem>>, vector<1x8x128xf32>,
    %c4_101 = arith.constant 4 : index
    %c0_102 = arith.constant 0 : index
    %c128_103 = arith.constant 128 : index
    %315 = vector.load %arg12[%c4_101, %c0_102, %c128_103] : memref<8x8x256xf32, #tpu.memory_space<vmem>>, vector<1x8x128xf32>
    %316 = vector.shape_cast %315 : vector<1x8x128xf32> to vector<8x128xf32>
    %317 = vector.shape_cast %311 : vector<8x128xf32> to vector<1x8x128xf32>
    tpu.vector_store %arg12[%c4_101, %c0_102, %c128_103], %317 {strides = array<i32>} : memref<8x8x256xf32, #tpu.memory_space<vmem>>, vector<1x8x128xf32>,
    %318 = tpu.concatenate %286, %311 in 1 : vector<8x128xf32>, vector<8x128xf32> -> vector<8x256xf32>
    %319 = arith.truncf %318 : vector<8x256xf32> to vector<8x256xbf16>
    %c0_104 = arith.constant 0 : index
    %c0_105 = arith.constant 0 : index
    %320 = vector.load %arg5[%c0_104, %c0_105] : memref<256x1024xbf16, #tpu.memory_space<vmem>>, vector<256x1024xbf16>
    %cst_106 = arith.constant dense<0.000000e+00> : vector<8x1024xf32>
    %321 = tpu.matmul %319, %320, %cst_106 {dimension_numbers = #tpu.dot_dimension_numbers<[1], [0], [0], [1], [0, 0, 1, 1], [], []>} : vector<8x256xbf16>, vector<256x1024xbf16>, vector<8x1024xf32> -> vector<8x1024xf32>
    %c4_107 = arith.constant 4 : index
    %c0_108 = arith.constant 0 : index
    %c0_109 = arith.constant 0 : index
    %322 = vector.load %arg11[%c4_107, %c0_108, %c0_109] : memref<8x8x1024xf32, #tpu.memory_space<vmem>>, vector<1x8x512xf32>
    %323 = vector.shape_cast %322 : vector<1x8x512xf32> to vector<8x512xf32>
    %324 = vector.extract_strided_slice %321 {offsets = [0, 0], sizes = [8, 512], strides = [1, 1]} : vector<8x1024xf32> to vector<8x512xf32>
    %325 = arith.addf %323, %324 : vector<8x512xf32>
    %c3_110 = arith.constant 3 : index
    %c0_111 = arith.constant 0 : index
    %c512_112 = arith.constant 512 : index
    %326 = vector.load %arg11[%c3_110, %c0_111, %c512_112] : memref<8x8x1024xf32, #tpu.memory_space<vmem>>, vector<1x8x512xf32>
    %327 = vector.shape_cast %326 : vector<1x8x512xf32> to vector<8x512xf32>
    %328 = vector.extract_strided_slice %321 {offsets = [0, 512], sizes = [8, 512], strides = [1, 1]} : vector<8x1024xf32> to vector<8x512xf32>
    %329 = arith.addf %327, %328 : vector<8x512xf32>
    %330 = vector.extract_strided_slice %325 {offsets = [0, 0], sizes = [8, 128], strides = [1, 1]} : vector<8x512xf32> to vector<8x128xf32>
    %331 = arith.negf %330 : vector<8x128xf32>
    %332 = math.exp %331 : vector<8x128xf32>
    %cst_113 = arith.constant 1.000000e+00 : f32
    %333 = vector.broadcast %cst_113 : f32 to vector<8x128xf32>
    %334 = arith.addf %333, %332 : vector<8x128xf32>
    %335 = arith.divf %333, %334 : vector<8x128xf32>
    %336 = vector.extract_strided_slice %325 {offsets = [0, 128], sizes = [8, 128], strides = [1, 1]} : vector<8x512xf32> to vector<8x128xf32>
    %337 = arith.negf %336 : vector<8x128xf32>
    %338 = math.exp %337 : vector<8x128xf32>
    %cst_114 = arith.constant 1.000000e+00 : f32
    %339 = vector.broadcast %cst_114 : f32 to vector<8x128xf32>
    %340 = arith.addf %339, %338 : vector<8x128xf32>
    %341 = arith.divf %339, %340 : vector<8x128xf32>
    %342 = vector.extract_strided_slice %325 {offsets = [0, 256], sizes = [8, 128], strides = [1, 1]} : vector<8x512xf32> to vector<8x128xf32>
    %343 = math.tanh %342 : vector<8x128xf32>
    %344 = vector.extract_strided_slice %325 {offsets = [0, 384], sizes = [8, 128], strides = [1, 1]} : vector<8x512xf32> to vector<8x128xf32>
    %345 = arith.negf %344 : vector<8x128xf32>
    %346 = math.exp %345 : vector<8x128xf32>
    %cst_115 = arith.constant 1.000000e+00 : f32
    %347 = vector.broadcast %cst_115 : f32 to vector<8x128xf32>
    %348 = arith.addf %347, %346 : vector<8x128xf32>
    %349 = arith.divf %347, %348 : vector<8x128xf32>
    %350 = arith.mulf %341, %284 : vector<8x128xf32>
    %351 = arith.mulf %335, %343 : vector<8x128xf32>
    %352 = arith.addf %350, %351 : vector<8x128xf32>
    %353 = math.tanh %352 : vector<8x128xf32>
    %354 = arith.mulf %349, %353 : vector<8x128xf32>
    %355 = vector.extract_strided_slice %329 {offsets = [0, 0], sizes = [8, 128], strides = [1, 1]} : vector<8x512xf32> to vector<8x128xf32>
    %356 = arith.negf %355 : vector<8x128xf32>
    %357 = math.exp %356 : vector<8x128xf32>
    %cst_116 = arith.constant 1.000000e+00 : f32
    %358 = vector.broadcast %cst_116 : f32 to vector<8x128xf32>
    %359 = arith.addf %358, %357 : vector<8x128xf32>
    %360 = arith.divf %358, %359 : vector<8x128xf32>
    %361 = vector.extract_strided_slice %329 {offsets = [0, 128], sizes = [8, 128], strides = [1, 1]} : vector<8x512xf32> to vector<8x128xf32>
    %362 = arith.negf %361 : vector<8x128xf32>
    %363 = math.exp %362 : vector<8x128xf32>
    %cst_117 = arith.constant 1.000000e+00 : f32
    %364 = vector.broadcast %cst_117 : f32 to vector<8x128xf32>
    %365 = arith.addf %364, %363 : vector<8x128xf32>
    %366 = arith.divf %364, %365 : vector<8x128xf32>
    %367 = vector.extract_strided_slice %329 {offsets = [0, 256], sizes = [8, 128], strides = [1, 1]} : vector<8x512xf32> to vector<8x128xf32>
    %368 = math.tanh %367 : vector<8x128xf32>
    %369 = vector.extract_strided_slice %329 {offsets = [0, 384], sizes = [8, 128], strides = [1, 1]} : vector<8x512xf32> to vector<8x128xf32>
    %370 = arith.negf %369 : vector<8x128xf32>
    %371 = math.exp %370 : vector<8x128xf32>
    %cst_118 = arith.constant 1.000000e+00 : f32
    %372 = vector.broadcast %cst_118 : f32 to vector<8x128xf32>
    %373 = arith.addf %372, %371 : vector<8x128xf32>
    %374 = arith.divf %372, %373 : vector<8x128xf32>
    %375 = arith.mulf %366, %309 : vector<8x128xf32>
    %376 = arith.mulf %360, %368 : vector<8x128xf32>
    %377 = arith.addf %375, %376 : vector<8x128xf32>
    %378 = math.tanh %377 : vector<8x128xf32>
    %379 = arith.mulf %374, %378 : vector<8x128xf32>
    %c4_119 = arith.constant 4 : index
    %c0_120 = arith.constant 0 : index
    %c0_121 = arith.constant 0 : index
    %380 = vector.load %arg12[%c4_119, %c0_120, %c0_121] : memref<8x8x256xf32, #tpu.memory_space<vmem>>, vector<1x8x128xf32>
    %381 = vector.shape_cast %380 : vector<1x8x128xf32> to vector<8x128xf32>
    %382 = vector.shape_cast %354 : vector<8x128xf32> to vector<1x8x128xf32>
    tpu.vector_store %arg12[%c4_119, %c0_120, %c0_121], %382 {strides = array<i32>} : memref<8x8x256xf32, #tpu.memory_space<vmem>>, vector<1x8x128xf32>,
    %c3_122 = arith.constant 3 : index
    %c0_123 = arith.constant 0 : index
    %c128_124 = arith.constant 128 : index
    %383 = vector.load %arg12[%c3_122, %c0_123, %c128_124] : memref<8x8x256xf32, #tpu.memory_space<vmem>>, vector<1x8x128xf32>
    %384 = vector.shape_cast %383 : vector<1x8x128xf32> to vector<8x128xf32>
    %385 = vector.shape_cast %379 : vector<8x128xf32> to vector<1x8x128xf32>
    tpu.vector_store %arg12[%c3_122, %c0_123, %c128_124], %385 {strides = array<i32>} : memref<8x8x256xf32, #tpu.memory_space<vmem>>, vector<1x8x128xf32>,
    %386 = tpu.concatenate %354, %379 in 1 : vector<8x128xf32>, vector<8x128xf32> -> vector<8x256xf32>
    %387 = arith.truncf %386 : vector<8x256xf32> to vector<8x256xbf16>
    %c0_125 = arith.constant 0 : index
    %c0_126 = arith.constant 0 : index
    %388 = vector.load %arg5[%c0_125, %c0_126] : memref<256x1024xbf16, #tpu.memory_space<vmem>>, vector<256x1024xbf16>
    %cst_127 = arith.constant dense<0.000000e+00> : vector<8x1024xf32>
    %389 = tpu.matmul %387, %388, %cst_127 {dimension_numbers = #tpu.dot_dimension_numbers<[1], [0], [0], [1], [0, 0, 1, 1], [], []>} : vector<8x256xbf16>, vector<256x1024xbf16>, vector<8x1024xf32> -> vector<8x1024xf32>
    %c5_128 = arith.constant 5 : index
    %c0_129 = arith.constant 0 : index
    %c0_130 = arith.constant 0 : index
    %390 = vector.load %arg11[%c5_128, %c0_129, %c0_130] : memref<8x8x1024xf32, #tpu.memory_space<vmem>>, vector<1x8x512xf32>
    %391 = vector.shape_cast %390 : vector<1x8x512xf32> to vector<8x512xf32>
    %392 = vector.extract_strided_slice %389 {offsets = [0, 0], sizes = [8, 512], strides = [1, 1]} : vector<8x1024xf32> to vector<8x512xf32>
    %393 = arith.addf %391, %392 : vector<8x512xf32>
    %c2_131 = arith.constant 2 : index
    %c0_132 = arith.constant 0 : index
    %c512_133 = arith.constant 512 : index
    %394 = vector.load %arg11[%c2_131, %c0_132, %c512_133] : memref<8x8x1024xf32, #tpu.memory_space<vmem>>, vector<1x8x512xf32>
    %395 = vector.shape_cast %394 : vector<1x8x512xf32> to vector<8x512xf32>
    %396 = vector.extract_strided_slice %389 {offsets = [0, 512], sizes = [8, 512], strides = [1, 1]} : vector<8x1024xf32> to vector<8x512xf32>
    %397 = arith.addf %395, %396 : vector<8x512xf32>
    %398 = vector.extract_strided_slice %393 {offsets = [0, 0], sizes = [8, 128], strides = [1, 1]} : vector<8x512xf32> to vector<8x128xf32>
    %399 = arith.negf %398 : vector<8x128xf32>
    %400 = math.exp %399 : vector<8x128xf32>
    %cst_134 = arith.constant 1.000000e+00 : f32
    %401 = vector.broadcast %cst_134 : f32 to vector<8x128xf32>
    %402 = arith.addf %401, %400 : vector<8x128xf32>
    %403 = arith.divf %401, %402 : vector<8x128xf32>
    %404 = vector.extract_strided_slice %393 {offsets = [0, 128], sizes = [8, 128], strides = [1, 1]} : vector<8x512xf32> to vector<8x128xf32>
    %405 = arith.negf %404 : vector<8x128xf32>
    %406 = math.exp %405 : vector<8x128xf32>
    %cst_135 = arith.constant 1.000000e+00 : f32
    %407 = vector.broadcast %cst_135 : f32 to vector<8x128xf32>
    %408 = arith.addf %407, %406 : vector<8x128xf32>
    %409 = arith.divf %407, %408 : vector<8x128xf32>
    %410 = vector.extract_strided_slice %393 {offsets = [0, 256], sizes = [8, 128], strides = [1, 1]} : vector<8x512xf32> to vector<8x128xf32>
    %411 = math.tanh %410 : vector<8x128xf32>
    %412 = vector.extract_strided_slice %393 {offsets = [0, 384], sizes = [8, 128], strides = [1, 1]} : vector<8x512xf32> to vector<8x128xf32>
    %413 = arith.negf %412 : vector<8x128xf32>
    %414 = math.exp %413 : vector<8x128xf32>
    %cst_136 = arith.constant 1.000000e+00 : f32
    %415 = vector.broadcast %cst_136 : f32 to vector<8x128xf32>
    %416 = arith.addf %415, %414 : vector<8x128xf32>
    %417 = arith.divf %415, %416 : vector<8x128xf32>
    %418 = arith.mulf %409, %352 : vector<8x128xf32>
    %419 = arith.mulf %403, %411 : vector<8x128xf32>
    %420 = arith.addf %418, %419 : vector<8x128xf32>
    %421 = math.tanh %420 : vector<8x128xf32>
    %422 = arith.mulf %417, %421 : vector<8x128xf32>
    %423 = vector.extract_strided_slice %397 {offsets = [0, 0], sizes = [8, 128], strides = [1, 1]} : vector<8x512xf32> to vector<8x128xf32>
    %424 = arith.negf %423 : vector<8x128xf32>
    %425 = math.exp %424 : vector<8x128xf32>
    %cst_137 = arith.constant 1.000000e+00 : f32
    %426 = vector.broadcast %cst_137 : f32 to vector<8x128xf32>
    %427 = arith.addf %426, %425 : vector<8x128xf32>
    %428 = arith.divf %426, %427 : vector<8x128xf32>
    %429 = vector.extract_strided_slice %397 {offsets = [0, 128], sizes = [8, 128], strides = [1, 1]} : vector<8x512xf32> to vector<8x128xf32>
    %430 = arith.negf %429 : vector<8x128xf32>
    %431 = math.exp %430 : vector<8x128xf32>
    %cst_138 = arith.constant 1.000000e+00 : f32
    %432 = vector.broadcast %cst_138 : f32 to vector<8x128xf32>
    %433 = arith.addf %432, %431 : vector<8x128xf32>
    %434 = arith.divf %432, %433 : vector<8x128xf32>
    %435 = vector.extract_strided_slice %397 {offsets = [0, 256], sizes = [8, 128], strides = [1, 1]} : vector<8x512xf32> to vector<8x128xf32>
    %436 = math.tanh %435 : vector<8x128xf32>
    %437 = vector.extract_strided_slice %397 {offsets = [0, 384], sizes = [8, 128], strides = [1, 1]} : vector<8x512xf32> to vector<8x128xf32>
    %438 = arith.negf %437 : vector<8x128xf32>
    %439 = math.exp %438 : vector<8x128xf32>
    %cst_139 = arith.constant 1.000000e+00 : f32
    %440 = vector.broadcast %cst_139 : f32 to vector<8x128xf32>
    %441 = arith.addf %440, %439 : vector<8x128xf32>
    %442 = arith.divf %440, %441 : vector<8x128xf32>
    %443 = arith.mulf %434, %377 : vector<8x128xf32>
    %444 = arith.mulf %428, %436 : vector<8x128xf32>
    %445 = arith.addf %443, %444 : vector<8x128xf32>
    %446 = math.tanh %445 : vector<8x128xf32>
    %447 = arith.mulf %442, %446 : vector<8x128xf32>
    %c5_140 = arith.constant 5 : index
    %c0_141 = arith.constant 0 : index
    %c0_142 = arith.constant 0 : index
    %448 = vector.load %arg12[%c5_140, %c0_141, %c0_142] : memref<8x8x256xf32, #tpu.memory_space<vmem>>, vector<1x8x128xf32>
    %449 = vector.shape_cast %448 : vector<1x8x128xf32> to vector<8x128xf32>
    %450 = vector.shape_cast %422 : vector<8x128xf32> to vector<1x8x128xf32>
    tpu.vector_store %arg12[%c5_140, %c0_141, %c0_142], %450 {strides = array<i32>} : memref<8x8x256xf32, #tpu.memory_space<vmem>>, vector<1x8x128xf32>,
    %c2_143 = arith.constant 2 : index
    %c0_144 = arith.constant 0 : index
    %c128_145 = arith.constant 128 : index
    %451 = vector.load %arg12[%c2_143, %c0_144, %c128_145] : memref<8x8x256xf32, #tpu.memory_space<vmem>>, vector<1x8x128xf32>
    %452 = vector.shape_cast %451 : vector<1x8x128xf32> to vector<8x128xf32>
    %453 = vector.shape_cast %447 : vector<8x128xf32> to vector<1x8x128xf32>
    tpu.vector_store %arg12[%c2_143, %c0_144, %c128_145], %453 {strides = array<i32>} : memref<8x8x256xf32, #tpu.memory_space<vmem>>, vector<1x8x128xf32>,
    %454 = tpu.concatenate %422, %447 in 1 : vector<8x128xf32>, vector<8x128xf32> -> vector<8x256xf32>
    %455 = arith.truncf %454 : vector<8x256xf32> to vector<8x256xbf16>
    %c0_146 = arith.constant 0 : index
    %c0_147 = arith.constant 0 : index
    %456 = vector.load %arg5[%c0_146, %c0_147] : memref<256x1024xbf16, #tpu.memory_space<vmem>>, vector<256x1024xbf16>
    %cst_148 = arith.constant dense<0.000000e+00> : vector<8x1024xf32>
    %457 = tpu.matmul %455, %456, %cst_148 {dimension_numbers = #tpu.dot_dimension_numbers<[1], [0], [0], [1], [0, 0, 1, 1], [], []>} : vector<8x256xbf16>, vector<256x1024xbf16>, vector<8x1024xf32> -> vector<8x1024xf32>
    %c6_149 = arith.constant 6 : index
    %c0_150 = arith.constant 0 : index
    %c0_151 = arith.constant 0 : index
    %458 = vector.load %arg11[%c6_149, %c0_150, %c0_151] : memref<8x8x1024xf32, #tpu.memory_space<vmem>>, vector<1x8x512xf32>
    %459 = vector.shape_cast %458 : vector<1x8x512xf32> to vector<8x512xf32>
    %460 = vector.extract_strided_slice %457 {offsets = [0, 0], sizes = [8, 512], strides = [1, 1]} : vector<8x1024xf32> to vector<8x512xf32>
    %461 = arith.addf %459, %460 : vector<8x512xf32>
    %c1_152 = arith.constant 1 : index
    %c0_153 = arith.constant 0 : index
    %c512_154 = arith.constant 512 : index
    %462 = vector.load %arg11[%c1_152, %c0_153, %c512_154] : memref<8x8x1024xf32, #tpu.memory_space<vmem>>, vector<1x8x512xf32>
    %463 = vector.shape_cast %462 : vector<1x8x512xf32> to vector<8x512xf32>
    %464 = vector.extract_strided_slice %457 {offsets = [0, 512], sizes = [8, 512], strides = [1, 1]} : vector<8x1024xf32> to vector<8x512xf32>
    %465 = arith.addf %463, %464 : vector<8x512xf32>
    %466 = vector.extract_strided_slice %461 {offsets = [0, 0], sizes = [8, 128], strides = [1, 1]} : vector<8x512xf32> to vector<8x128xf32>
    %467 = arith.negf %466 : vector<8x128xf32>
    %468 = math.exp %467 : vector<8x128xf32>
    %cst_155 = arith.constant 1.000000e+00 : f32
    %469 = vector.broadcast %cst_155 : f32 to vector<8x128xf32>
    %470 = arith.addf %469, %468 : vector<8x128xf32>
    %471 = arith.divf %469, %470 : vector<8x128xf32>
    %472 = vector.extract_strided_slice %461 {offsets = [0, 128], sizes = [8, 128], strides = [1, 1]} : vector<8x512xf32> to vector<8x128xf32>
    %473 = arith.negf %472 : vector<8x128xf32>
    %474 = math.exp %473 : vector<8x128xf32>
    %cst_156 = arith.constant 1.000000e+00 : f32
    %475 = vector.broadcast %cst_156 : f32 to vector<8x128xf32>
    %476 = arith.addf %475, %474 : vector<8x128xf32>
    %477 = arith.divf %475, %476 : vector<8x128xf32>
    %478 = vector.extract_strided_slice %461 {offsets = [0, 256], sizes = [8, 128], strides = [1, 1]} : vector<8x512xf32> to vector<8x128xf32>
    %479 = math.tanh %478 : vector<8x128xf32>
    %480 = vector.extract_strided_slice %461 {offsets = [0, 384], sizes = [8, 128], strides = [1, 1]} : vector<8x512xf32> to vector<8x128xf32>
    %481 = arith.negf %480 : vector<8x128xf32>
    %482 = math.exp %481 : vector<8x128xf32>
    %cst_157 = arith.constant 1.000000e+00 : f32
    %483 = vector.broadcast %cst_157 : f32 to vector<8x128xf32>
    %484 = arith.addf %483, %482 : vector<8x128xf32>
    %485 = arith.divf %483, %484 : vector<8x128xf32>
    %486 = arith.mulf %477, %420 : vector<8x128xf32>
    %487 = arith.mulf %471, %479 : vector<8x128xf32>
    %488 = arith.addf %486, %487 : vector<8x128xf32>
    %489 = math.tanh %488 : vector<8x128xf32>
    %490 = arith.mulf %485, %489 : vector<8x128xf32>
    %491 = vector.extract_strided_slice %465 {offsets = [0, 0], sizes = [8, 128], strides = [1, 1]} : vector<8x512xf32> to vector<8x128xf32>
    %492 = arith.negf %491 : vector<8x128xf32>
    %493 = math.exp %492 : vector<8x128xf32>
    %cst_158 = arith.constant 1.000000e+00 : f32
    %494 = vector.broadcast %cst_158 : f32 to vector<8x128xf32>
    %495 = arith.addf %494, %493 : vector<8x128xf32>
    %496 = arith.divf %494, %495 : vector<8x128xf32>
    %497 = vector.extract_strided_slice %465 {offsets = [0, 128], sizes = [8, 128], strides = [1, 1]} : vector<8x512xf32> to vector<8x128xf32>
    %498 = arith.negf %497 : vector<8x128xf32>
    %499 = math.exp %498 : vector<8x128xf32>
    %cst_159 = arith.constant 1.000000e+00 : f32
    %500 = vector.broadcast %cst_159 : f32 to vector<8x128xf32>
    %501 = arith.addf %500, %499 : vector<8x128xf32>
    %502 = arith.divf %500, %501 : vector<8x128xf32>
    %503 = vector.extract_strided_slice %465 {offsets = [0, 256], sizes = [8, 128], strides = [1, 1]} : vector<8x512xf32> to vector<8x128xf32>
    %504 = math.tanh %503 : vector<8x128xf32>
    %505 = vector.extract_strided_slice %465 {offsets = [0, 384], sizes = [8, 128], strides = [1, 1]} : vector<8x512xf32> to vector<8x128xf32>
    %506 = arith.negf %505 : vector<8x128xf32>
    %507 = math.exp %506 : vector<8x128xf32>
    %cst_160 = arith.constant 1.000000e+00 : f32
    %508 = vector.broadcast %cst_160 : f32 to vector<8x128xf32>
    %509 = arith.addf %508, %507 : vector<8x128xf32>
    %510 = arith.divf %508, %509 : vector<8x128xf32>
    %511 = arith.mulf %502, %445 : vector<8x128xf32>
    %512 = arith.mulf %496, %504 : vector<8x128xf32>
    %513 = arith.addf %511, %512 : vector<8x128xf32>
    %514 = math.tanh %513 : vector<8x128xf32>
    %515 = arith.mulf %510, %514 : vector<8x128xf32>
    %c6_161 = arith.constant 6 : index
    %c0_162 = arith.constant 0 : index
    %c0_163 = arith.constant 0 : index
    %516 = vector.load %arg12[%c6_161, %c0_162, %c0_163] : memref<8x8x256xf32, #tpu.memory_space<vmem>>, vector<1x8x128xf32>
    %517 = vector.shape_cast %516 : vector<1x8x128xf32> to vector<8x128xf32>
    %518 = vector.shape_cast %490 : vector<8x128xf32> to vector<1x8x128xf32>
    tpu.vector_store %arg12[%c6_161, %c0_162, %c0_163], %518 {strides = array<i32>} : memref<8x8x256xf32, #tpu.memory_space<vmem>>, vector<1x8x128xf32>,
    %c1_164 = arith.constant 1 : index
    %c0_165 = arith.constant 0 : index
    %c128_166 = arith.constant 128 : index
    %519 = vector.load %arg12[%c1_164, %c0_165, %c128_166] : memref<8x8x256xf32, #tpu.memory_space<vmem>>, vector<1x8x128xf32>
    %520 = vector.shape_cast %519 : vector<1x8x128xf32> to vector<8x128xf32>
    %521 = vector.shape_cast %515 : vector<8x128xf32> to vector<1x8x128xf32>
    tpu.vector_store %arg12[%c1_164, %c0_165, %c128_166], %521 {strides = array<i32>} : memref<8x8x256xf32, #tpu.memory_space<vmem>>, vector<1x8x128xf32>,
    %522 = tpu.concatenate %490, %515 in 1 : vector<8x128xf32>, vector<8x128xf32> -> vector<8x256xf32>
    %523 = arith.truncf %522 : vector<8x256xf32> to vector<8x256xbf16>
    %c0_167 = arith.constant 0 : index
    %c0_168 = arith.constant 0 : index
    %524 = vector.load %arg5[%c0_167, %c0_168] : memref<256x1024xbf16, #tpu.memory_space<vmem>>, vector<256x1024xbf16>
    %cst_169 = arith.constant dense<0.000000e+00> : vector<8x1024xf32>
    %525 = tpu.matmul %523, %524, %cst_169 {dimension_numbers = #tpu.dot_dimension_numbers<[1], [0], [0], [1], [0, 0, 1, 1], [], []>} : vector<8x256xbf16>, vector<256x1024xbf16>, vector<8x1024xf32> -> vector<8x1024xf32>
    %c7_170 = arith.constant 7 : index
    %c0_171 = arith.constant 0 : index
    %c0_172 = arith.constant 0 : index
    %526 = vector.load %arg11[%c7_170, %c0_171, %c0_172] : memref<8x8x1024xf32, #tpu.memory_space<vmem>>, vector<1x8x512xf32>
    %527 = vector.shape_cast %526 : vector<1x8x512xf32> to vector<8x512xf32>
    %528 = vector.extract_strided_slice %525 {offsets = [0, 0], sizes = [8, 512], strides = [1, 1]} : vector<8x1024xf32> to vector<8x512xf32>
    %529 = arith.addf %527, %528 : vector<8x512xf32>
    %c0_173 = arith.constant 0 : index
    %c0_174 = arith.constant 0 : index
    %c512_175 = arith.constant 512 : index
    %530 = vector.load %arg11[%c0_173, %c0_174, %c512_175] : memref<8x8x1024xf32, #tpu.memory_space<vmem>>, vector<1x8x512xf32>
    %531 = vector.shape_cast %530 : vector<1x8x512xf32> to vector<8x512xf32>
    %532 = vector.extract_strided_slice %525 {offsets = [0, 512], sizes = [8, 512], strides = [1, 1]} : vector<8x1024xf32> to vector<8x512xf32>
    %533 = arith.addf %531, %532 : vector<8x512xf32>
    %534 = vector.extract_strided_slice %529 {offsets = [0, 0], sizes = [8, 128], strides = [1, 1]} : vector<8x512xf32> to vector<8x128xf32>
    %535 = arith.negf %534 : vector<8x128xf32>
    %536 = math.exp %535 : vector<8x128xf32>
    %cst_176 = arith.constant 1.000000e+00 : f32
    %537 = vector.broadcast %cst_176 : f32 to vector<8x128xf32>
    %538 = arith.addf %537, %536 : vector<8x128xf32>
    %539 = arith.divf %537, %538 : vector<8x128xf32>
    %540 = vector.extract_strided_slice %529 {offsets = [0, 128], sizes = [8, 128], strides = [1, 1]} : vector<8x512xf32> to vector<8x128xf32>
    %541 = arith.negf %540 : vector<8x128xf32>
    %542 = math.exp %541 : vector<8x128xf32>
    %cst_177 = arith.constant 1.000000e+00 : f32
    %543 = vector.broadcast %cst_177 : f32 to vector<8x128xf32>
    %544 = arith.addf %543, %542 : vector<8x128xf32>
    %545 = arith.divf %543, %544 : vector<8x128xf32>
    %546 = vector.extract_strided_slice %529 {offsets = [0, 256], sizes = [8, 128], strides = [1, 1]} : vector<8x512xf32> to vector<8x128xf32>
    %547 = math.tanh %546 : vector<8x128xf32>
    %548 = vector.extract_strided_slice %529 {offsets = [0, 384], sizes = [8, 128], strides = [1, 1]} : vector<8x512xf32> to vector<8x128xf32>
    %549 = arith.negf %548 : vector<8x128xf32>
    %550 = math.exp %549 : vector<8x128xf32>
    %cst_178 = arith.constant 1.000000e+00 : f32
    %551 = vector.broadcast %cst_178 : f32 to vector<8x128xf32>
    %552 = arith.addf %551, %550 : vector<8x128xf32>
    %553 = arith.divf %551, %552 : vector<8x128xf32>
    %554 = arith.mulf %545, %488 : vector<8x128xf32>
    %555 = arith.mulf %539, %547 : vector<8x128xf32>
    %556 = arith.addf %554, %555 : vector<8x128xf32>
    %557 = math.tanh %556 : vector<8x128xf32>
    %558 = arith.mulf %553, %557 : vector<8x128xf32>
    %559 = vector.extract_strided_slice %533 {offsets = [0, 0], sizes = [8, 128], strides = [1, 1]} : vector<8x512xf32> to vector<8x128xf32>
    %560 = arith.negf %559 : vector<8x128xf32>
    %561 = math.exp %560 : vector<8x128xf32>
    %cst_179 = arith.constant 1.000000e+00 : f32
    %562 = vector.broadcast %cst_179 : f32 to vector<8x128xf32>
    %563 = arith.addf %562, %561 : vector<8x128xf32>
    %564 = arith.divf %562, %563 : vector<8x128xf32>
    %565 = vector.extract_strided_slice %533 {offsets = [0, 128], sizes = [8, 128], strides = [1, 1]} : vector<8x512xf32> to vector<8x128xf32>
    %566 = arith.negf %565 : vector<8x128xf32>
    %567 = math.exp %566 : vector<8x128xf32>
    %cst_180 = arith.constant 1.000000e+00 : f32
    %568 = vector.broadcast %cst_180 : f32 to vector<8x128xf32>
    %569 = arith.addf %568, %567 : vector<8x128xf32>
    %570 = arith.divf %568, %569 : vector<8x128xf32>
    %571 = vector.extract_strided_slice %533 {offsets = [0, 256], sizes = [8, 128], strides = [1, 1]} : vector<8x512xf32> to vector<8x128xf32>
    %572 = math.tanh %571 : vector<8x128xf32>
    %573 = vector.extract_strided_slice %533 {offsets = [0, 384], sizes = [8, 128], strides = [1, 1]} : vector<8x512xf32> to vector<8x128xf32>
    %574 = arith.negf %573 : vector<8x128xf32>
    %575 = math.exp %574 : vector<8x128xf32>
    %cst_181 = arith.constant 1.000000e+00 : f32
    %576 = vector.broadcast %cst_181 : f32 to vector<8x128xf32>
    %577 = arith.addf %576, %575 : vector<8x128xf32>
    %578 = arith.divf %576, %577 : vector<8x128xf32>
    %579 = arith.mulf %570, %513 : vector<8x128xf32>
    %580 = arith.mulf %564, %572 : vector<8x128xf32>
    %581 = arith.addf %579, %580 : vector<8x128xf32>
    %582 = math.tanh %581 : vector<8x128xf32>
    %583 = arith.mulf %578, %582 : vector<8x128xf32>
    %c7_182 = arith.constant 7 : index
    %c0_183 = arith.constant 0 : index
    %c0_184 = arith.constant 0 : index
    %584 = vector.load %arg12[%c7_182, %c0_183, %c0_184] : memref<8x8x256xf32, #tpu.memory_space<vmem>>, vector<1x8x128xf32>
    %585 = vector.shape_cast %584 : vector<1x8x128xf32> to vector<8x128xf32>
    %586 = vector.shape_cast %558 : vector<8x128xf32> to vector<1x8x128xf32>
    tpu.vector_store %arg12[%c7_182, %c0_183, %c0_184], %586 {strides = array<i32>} : memref<8x8x256xf32, #tpu.memory_space<vmem>>, vector<1x8x128xf32>,
    %c0_185 = arith.constant 0 : index
    %c0_186 = arith.constant 0 : index
    %c128_187 = arith.constant 128 : index
    %587 = vector.load %arg12[%c0_185, %c0_186, %c128_187] : memref<8x8x256xf32, #tpu.memory_space<vmem>>, vector<1x8x128xf32>
    %588 = vector.shape_cast %587 : vector<1x8x128xf32> to vector<8x128xf32>
    %589 = vector.shape_cast %583 : vector<8x128xf32> to vector<1x8x128xf32>
    tpu.vector_store %arg12[%c0_185, %c0_186, %c128_187], %589 {strides = array<i32>} : memref<8x8x256xf32, #tpu.memory_space<vmem>>, vector<1x8x128xf32>,
    %c0_188 = arith.constant 0 : index
    %c0_189 = arith.constant 0 : index
    %c0_190 = arith.constant 0 : index
    %590 = vector.load %arg12[%c0_188, %c0_189, %c0_190] : memref<8x8x256xf32, #tpu.memory_space<vmem>>, vector<8x8x256xf32>
    %591 = vector.shape_cast %590 : vector<8x8x256xf32> to vector<64x256xf32>
    %592 = arith.truncf %591 : vector<64x256xf32> to vector<64x256xbf16>
    %c0_191 = arith.constant 0 : index
    %c0_192 = arith.constant 0 : index
    %593 = vector.load %arg6[%c0_191, %c0_192] : memref<256x128xbf16, #tpu.memory_space<vmem>>, vector<256x128xbf16>
    %cst_193 = arith.constant dense<0.000000e+00> : vector<64x128xf32>
    %594 = tpu.matmul %592, %593, %cst_193 {dimension_numbers = #tpu.dot_dimension_numbers<[1], [0], [0], [1], [0, 0, 1, 1], [], []>} : vector<64x256xbf16>, vector<256x128xbf16>, vector<64x128xf32> -> vector<64x128xf32>
    %c0_194 = arith.constant 0 : index
    %c0_195 = arith.constant 0 : index
    %595 = vector.load %arg7[%c0_194, %c0_195] : memref<1x128xf32, #tpu.memory_space<vmem>>, vector<1x128xf32>
    %596 = vector.broadcast %595 : vector<1x128xf32> to vector<64x128xf32>
    %597 = arith.addf %594, %596 : vector<64x128xf32>
    %598 = arith.truncf %597 : vector<64x128xf32> to vector<64x128xbf16>
    %599 = vector.shape_cast %598 : vector<64x128xbf16> to vector<8x8x128xbf16>
    %cst_196 = arith.constant 0.000000e+00 : f32
    %600 = vector.broadcast %cst_196 : f32 to vector<8x256xf32>
    %601 = vector.extract_strided_slice %599 {offsets = [0, 0, 0], sizes = [1, 8, 128], strides = [1, 1, 1]} : vector<8x8x128xbf16> to vector<1x8x128xbf16>
    %602 = vector.shape_cast %601 : vector<1x8x128xbf16> to vector<8x128xbf16>
    %c0_197 = arith.constant 0 : index
    %c0_198 = arith.constant 0 : index
    %c0_199 = arith.constant 0 : index
    %603 = vector.load %arg8[%c0_197, %c0_198, %c0_199] : memref<8x128x256xbf16, #tpu.memory_space<vmem>>, vector<1x128x256xbf16>
    %604 = vector.shape_cast %603 : vector<1x128x256xbf16> to vector<128x256xbf16>
    %cst_200 = arith.constant dense<0.000000e+00> : vector<8x256xf32>
    %605 = tpu.matmul %602, %604, %cst_200 {dimension_numbers = #tpu.dot_dimension_numbers<[1], [0], [0], [1], [0, 0, 1, 1], [], []>} : vector<8x128xbf16>, vector<128x256xbf16>, vector<8x256xf32> -> vector<8x256xf32>
    %606 = arith.addf %600, %605 : vector<8x256xf32>
    %607 = vector.extract_strided_slice %599 {offsets = [1, 0, 0], sizes = [1, 8, 128], strides = [1, 1, 1]} : vector<8x8x128xbf16> to vector<1x8x128xbf16>
    %608 = vector.shape_cast %607 : vector<1x8x128xbf16> to vector<8x128xbf16>
    %c1_201 = arith.constant 1 : index
    %c0_202 = arith.constant 0 : index
    %c0_203 = arith.constant 0 : index
    %609 = vector.load %arg8[%c1_201, %c0_202, %c0_203] : memref<8x128x256xbf16, #tpu.memory_space<vmem>>, vector<1x128x256xbf16>
    %610 = vector.shape_cast %609 : vector<1x128x256xbf16> to vector<128x256xbf16>
    %cst_204 = arith.constant dense<0.000000e+00> : vector<8x256xf32>
    %611 = tpu.matmul %608, %610, %cst_204 {dimension_numbers = #tpu.dot_dimension_numbers<[1], [0], [0], [1], [0, 0, 1, 1], [], []>} : vector<8x128xbf16>, vector<128x256xbf16>, vector<8x256xf32> -> vector<8x256xf32>
    %612 = arith.addf %606, %611 : vector<8x256xf32>
    %613 = vector.extract_strided_slice %599 {offsets = [2, 0, 0], sizes = [1, 8, 128], strides = [1, 1, 1]} : vector<8x8x128xbf16> to vector<1x8x128xbf16>
    %614 = vector.shape_cast %613 : vector<1x8x128xbf16> to vector<8x128xbf16>
    %c2_205 = arith.constant 2 : index
    %c0_206 = arith.constant 0 : index
    %c0_207 = arith.constant 0 : index
    %615 = vector.load %arg8[%c2_205, %c0_206, %c0_207] : memref<8x128x256xbf16, #tpu.memory_space<vmem>>, vector<1x128x256xbf16>
    %616 = vector.shape_cast %615 : vector<1x128x256xbf16> to vector<128x256xbf16>
    %cst_208 = arith.constant dense<0.000000e+00> : vector<8x256xf32>
    %617 = tpu.matmul %614, %616, %cst_208 {dimension_numbers = #tpu.dot_dimension_numbers<[1], [0], [0], [1], [0, 0, 1, 1], [], []>} : vector<8x128xbf16>, vector<128x256xbf16>, vector<8x256xf32> -> vector<8x256xf32>
    %618 = arith.addf %612, %617 : vector<8x256xf32>
    %619 = vector.extract_strided_slice %599 {offsets = [3, 0, 0], sizes = [1, 8, 128], strides = [1, 1, 1]} : vector<8x8x128xbf16> to vector<1x8x128xbf16>
    %620 = vector.shape_cast %619 : vector<1x8x128xbf16> to vector<8x128xbf16>
    %c3_209 = arith.constant 3 : index
    %c0_210 = arith.constant 0 : index
    %c0_211 = arith.constant 0 : index
    %621 = vector.load %arg8[%c3_209, %c0_210, %c0_211] : memref<8x128x256xbf16, #tpu.memory_space<vmem>>, vector<1x128x256xbf16>
    %622 = vector.shape_cast %621 : vector<1x128x256xbf16> to vector<128x256xbf16>
    %cst_212 = arith.constant dense<0.000000e+00> : vector<8x256xf32>
    %623 = tpu.matmul %620, %622, %cst_212 {dimension_numbers = #tpu.dot_dimension_numbers<[1], [0], [0], [1], [0, 0, 1, 1], [], []>} : vector<8x128xbf16>, vector<128x256xbf16>, vector<8x256xf32> -> vector<8x256xf32>
    %624 = arith.addf %618, %623 : vector<8x256xf32>
    %625 = vector.extract_strided_slice %599 {offsets = [4, 0, 0], sizes = [1, 8, 128], strides = [1, 1, 1]} : vector<8x8x128xbf16> to vector<1x8x128xbf16>
    %626 = vector.shape_cast %625 : vector<1x8x128xbf16> to vector<8x128xbf16>
    %c4_213 = arith.constant 4 : index
    %c0_214 = arith.constant 0 : index
    %c0_215 = arith.constant 0 : index
    %627 = vector.load %arg8[%c4_213, %c0_214, %c0_215] : memref<8x128x256xbf16, #tpu.memory_space<vmem>>, vector<1x128x256xbf16>
    %628 = vector.shape_cast %627 : vector<1x128x256xbf16> to vector<128x256xbf16>
    %cst_216 = arith.constant dense<0.000000e+00> : vector<8x256xf32>
    %629 = tpu.matmul %626, %628, %cst_216 {dimension_numbers = #tpu.dot_dimension_numbers<[1], [0], [0], [1], [0, 0, 1, 1], [], []>} : vector<8x128xbf16>, vector<128x256xbf16>, vector<8x256xf32> -> vector<8x256xf32>
    %630 = arith.addf %624, %629 : vector<8x256xf32>
    %631 = vector.extract_strided_slice %599 {offsets = [5, 0, 0], sizes = [1, 8, 128], strides = [1, 1, 1]} : vector<8x8x128xbf16> to vector<1x8x128xbf16>
    %632 = vector.shape_cast %631 : vector<1x8x128xbf16> to vector<8x128xbf16>
    %c5_217 = arith.constant 5 : index
    %c0_218 = arith.constant 0 : index
    %c0_219 = arith.constant 0 : index
    %633 = vector.load %arg8[%c5_217, %c0_218, %c0_219] : memref<8x128x256xbf16, #tpu.memory_space<vmem>>, vector<1x128x256xbf16>
    %634 = vector.shape_cast %633 : vector<1x128x256xbf16> to vector<128x256xbf16>
    %cst_220 = arith.constant dense<0.000000e+00> : vector<8x256xf32>
    %635 = tpu.matmul %632, %634, %cst_220 {dimension_numbers = #tpu.dot_dimension_numbers<[1], [0], [0], [1], [0, 0, 1, 1], [], []>} : vector<8x128xbf16>, vector<128x256xbf16>, vector<8x256xf32> -> vector<8x256xf32>
    %636 = arith.addf %630, %635 : vector<8x256xf32>
    %637 = vector.extract_strided_slice %599 {offsets = [6, 0, 0], sizes = [1, 8, 128], strides = [1, 1, 1]} : vector<8x8x128xbf16> to vector<1x8x128xbf16>
    %638 = vector.shape_cast %637 : vector<1x8x128xbf16> to vector<8x128xbf16>
    %c6_221 = arith.constant 6 : index
    %c0_222 = arith.constant 0 : index
    %c0_223 = arith.constant 0 : index
    %639 = vector.load %arg8[%c6_221, %c0_222, %c0_223] : memref<8x128x256xbf16, #tpu.memory_space<vmem>>, vector<1x128x256xbf16>
    %640 = vector.shape_cast %639 : vector<1x128x256xbf16> to vector<128x256xbf16>
    %cst_224 = arith.constant dense<0.000000e+00> : vector<8x256xf32>
    %641 = tpu.matmul %638, %640, %cst_224 {dimension_numbers = #tpu.dot_dimension_numbers<[1], [0], [0], [1], [0, 0, 1, 1], [], []>} : vector<8x128xbf16>, vector<128x256xbf16>, vector<8x256xf32> -> vector<8x256xf32>
    %642 = arith.addf %636, %641 : vector<8x256xf32>
    %643 = vector.extract_strided_slice %599 {offsets = [7, 0, 0], sizes = [1, 8, 128], strides = [1, 1, 1]} : vector<8x8x128xbf16> to vector<1x8x128xbf16>
    %644 = vector.shape_cast %643 : vector<1x8x128xbf16> to vector<8x128xbf16>
    %c7_225 = arith.constant 7 : index
    %c0_226 = arith.constant 0 : index
    %c0_227 = arith.constant 0 : index
    %645 = vector.load %arg8[%c7_225, %c0_226, %c0_227] : memref<8x128x256xbf16, #tpu.memory_space<vmem>>, vector<1x128x256xbf16>
    %646 = vector.shape_cast %645 : vector<1x128x256xbf16> to vector<128x256xbf16>
    %cst_228 = arith.constant dense<0.000000e+00> : vector<8x256xf32>
    %647 = tpu.matmul %644, %646, %cst_228 {dimension_numbers = #tpu.dot_dimension_numbers<[1], [0], [0], [1], [0, 0, 1, 1], [], []>} : vector<8x128xbf16>, vector<128x256xbf16>, vector<8x256xf32> -> vector<8x256xf32>
    %648 = arith.addf %642, %647 : vector<8x256xf32>
    %c0_229 = arith.constant 0 : index
    %c0_230 = arith.constant 0 : index
    %649 = vector.load %arg9[%c0_229, %c0_230] : memref<8x256xf32, #tpu.memory_space<vmem>>, vector<8x256xf32>
    tpu.vector_store %arg9[%c0_229, %c0_230], %648 {strides = array<i32>} : memref<8x256xf32, #tpu.memory_space<vmem>>, vector<8x256xf32>,
    return
  }
}

</mosaic_0001>

<llo_original>
// kernel: word_embedding_forward.1
$region0: #{word_embedding_forward.1}
  #allocation0 [shape = 'u32[]', space=smem, size = 0x4, offset = 0x4, fixed_abs, tag = 'smem constant byte address 0x4 - core index']
  #allocation1 [shape = 'u32[72,128]{1,0:T(1,128)}', space=vmem, size = 0x9000, scoped, tag = 'internal scratch']
  #allocation2 [shape = 'f32[8,8,1024]{2,1,0:T(8,128)}', space=vmem, size = 0x40000, scoped, tag = 'scratch operand']
  #allocation3 [shape = 'f32[8,8,256]{2,1,0:T(8,128)}', space=vmem, size = 0x10000, scoped, tag = 'scratch operand']
  %s0 = inlined_call_operand.vmem [shape: f32[64,32], index: 0, kind: input, shape index: {}]
  %s1 = inlined_call_operand.vmem [shape: bf16[32,128], index: 1, kind: input, shape index: {}]
  %s2 = inlined_call_operand.vmem [shape: f32[1,128], index: 2, kind: input, shape index: {}]
  %s3 = inlined_call_operand.vmem [shape: bf16[128,1024], index: 3, kind: input, shape index: {}]
  %s4 = inlined_call_operand.vmem [shape: f32[1,1024], index: 4, kind: input, shape index: {}]
  %s5 = inlined_call_operand.vmem [shape: bf16[256,1024], index: 5, kind: input, shape index: {}]
  %s6 = inlined_call_operand.vmem [shape: bf16[256,128], index: 6, kind: input, shape index: {}]
  %s7 = inlined_call_operand.vmem [shape: f32[1,128], index: 7, kind: input, shape index: {}]
  %s8 = inlined_call_operand.vmem [shape: bf16[8,128,256], index: 8, kind: input, shape index: {}]
  %s9 = inlined_call_operand.vmem [shape: f32[8,256], index: 9, kind: output, shape index: {0}]
  %s10 = inlined_call_operand.vmem [shape: f32[8,1024], index: 10, kind: output, shape index: {1}]
  %11 = xla_tuple %s9, %s10
  %s12 = sld [smem:[#allocation0]]
  $region54: #{word_embedding_forward.1} parent=0
    _
  %s14 = ssub.s32 1, %s12
  %s15 = scalar_select 0, %s14, %s12
  // Predicated region
  $region2: #{word_embedding_forward.1} parent=0 // pred_check
    _
  $region3: #{word_embedding_forward.1} parent=0 // pred_check_branch
    %17 = sbr.rel (0) target = $region5
  $region4: #{word_embedding_forward.1} parent=0 // pred_region
    _
  $region5: #{word_embedding_forward.1} parent=0 // pred_fallthru
    _
  // Predicated region
  $region6: #{word_embedding_forward.1} parent=0 // pred_check
    _
  $region7: #{word_embedding_forward.1} parent=0 // pred_check_branch
    %19 = sbr.rel (0) target = $region9
  $region8: #{word_embedding_forward.1} parent=0 // pred_region
    _
  $region9: #{word_embedding_forward.1} parent=0 // pred_fallthru
    _
  // Predicated region
  $region10: #{word_embedding_forward.1} parent=0 // pred_check
    _
  $region11: #{word_embedding_forward.1} parent=0 // pred_check_branch
    %21 = sbr.rel (0) target = $region13
  $region12: #{word_embedding_forward.1} parent=0 // pred_region
    _
  $region13: #{word_embedding_forward.1} parent=0 // pred_fallthru
    _
  // Predicated region
  $region14: #{word_embedding_forward.1} parent=0 // pred_check
    _
  $region15: #{word_embedding_forward.1} parent=0 // pred_check_branch
    %23 = sbr.rel (0) target = $region17
  $region16: #{word_embedding_forward.1} parent=0 // pred_region
    _
  $region17: #{word_embedding_forward.1} parent=0 // pred_fallthru
    _
  // Predicated region
  $region18: #{word_embedding_forward.1} parent=0 // pred_check
    _
  $region19: #{word_embedding_forward.1} parent=0 // pred_check_branch
    %25 = sbr.rel (0) target = $region21
  $region20: #{word_embedding_forward.1} parent=0 // pred_region
    _
  $region21: #{word_embedding_forward.1} parent=0 // pred_fallthru
    _
  // Predicated region
  $region22: #{word_embedding_forward.1} parent=0 // pred_check
    _
  $region23: #{word_embedding_forward.1} parent=0 // pred_check_branch
    %27 = sbr.rel (0) target = $region25
  $region24: #{word_embedding_forward.1} parent=0 // pred_region
    _
  $region25: #{word_embedding_forward.1} parent=0 // pred_fallthru
    _
  // Predicated region
  $region26: #{word_embedding_forward.1} parent=0 // pred_check
    _
  $region27: #{word_embedding_forward.1} parent=0 // pred_check_branch
    %29 = sbr.rel (0) target = $region29
  $region28: #{word_embedding_forward.1} parent=0 // pred_region
    _
  $region29: #{word_embedding_forward.1} parent=0 // pred_fallthru
    _
  // Predicated region
  $region30: #{word_embedding_forward.1} parent=0 // pred_check
    _
  $region31: #{word_embedding_forward.1} parent=0 // pred_check_branch
    %31 = sbr.rel (0) target = $region33
  $region32: #{word_embedding_forward.1} parent=0 // pred_region
    _
  $region33: #{word_embedding_forward.1} parent=0 // pred_fallthru
    _
  // Predicated region
  $region34: #{word_embedding_forward.1} parent=0 // pred_check
    _
  $region35: #{word_embedding_forward.1} parent=0 // pred_check_branch
    %33 = sbr.rel (0) target = $region37
  $region36: #{word_embedding_forward.1} parent=0 // pred_region
    _
  $region37: #{word_embedding_forward.1} parent=0 // pred_fallthru
    _
  %v35 = vld [vmem:[%s0] sm:$0xff]
  %v36 = vld [vmem:[%s0 + $0x8] sm:$0xff]
  %v37 = vld [vmem:[%s0 + $0x10] sm:$0xff]
  %v38 = vld [vmem:[%s0 + $0x18] sm:$0xff]
  %v39 = vld [vmem:[%s0 + $0x20] sm:$0xff]
  %v40 = vld [vmem:[%s0 + $0x28] sm:$0xff]
  %v41 = vld [vmem:[%s0 + $0x30] sm:$0xff]
  %v42 = vld [vmem:[%s0 + $0x38] sm:$0xff]
  %v43 = vpack.c.bf16 %v36, %v35
  %v44 = vpack.c.bf16 %v38, %v37
  %v45 = vpack.c.bf16 %v40, %v39
  %v46 = vpack.c.bf16 %v42, %v41
  %v47 = vld [vmem:[%s1] sm:$0xf]
  %v48 = vld [vmem:[%s1 + $0x4] sm:$0xf]
  %v49 = vld [vmem:[%s1 + $0x8] sm:$0xf]
  %v50 = vld [vmem:[%s1 + $0xc] sm:$0xf]
  %v51 = vld [vmem:[%s2] sm:$0x1]
  %v53 = vperm.slane %v51, 0
  %v59 = vunpack.c.l.b16 %v47
  %v60 = vunpack.c.l.b16 %v48
  %v61 = vunpack.c.l.b16 %v49
  %v62 = vunpack.c.l.b16 %v50
  %v63 = vpack.c.b16 %v60, %v59
  %v64 = vpack.c.b16 %v62, %v61
  %vm67 = vcmask 261120
  %v69 = vsel %vm67, %v43, 0
  %v72 = vsel %vm67, %v44, 0
  %v75 = vsel %vm67, %v45, 0
  %v78 = vsel %vm67, %v46, 0
  %80 = vmatpush.bf16.msra.mxu0 0
  %81 = vmatpush.bf16.msra.mxu0 0
  %82 = vmatpush.bf16.msra.mxu0 0
  %83 = vmatpush.bf16.msra.mxu0 0
  %84 = vmatpush.bf16.msra.mxu0 0
  %85 = vmatpush.bf16.msra.mxu0 0
  %86 = vmatpush.bf16.msra.mxu0 %v64
  %87 = vmatpush.bf16.msra.mxu0 %v63
  %88 = vmatmul.bf16.gmra.mxu0 %v69
  %v89 = vpop.f32.mrf.mxu0
  %v90 = vadd.f32 %v53, %v89
  %v91 = vpop.f32.mrf.mxu0
  %v92 = vadd.f32 %v53, %v91
  %93 = vmatmul.bf16.gmra.mxu0 %v72
  %v94 = vpop.f32.mrf.mxu0
  %v95 = vadd.f32 %v53, %v94
  %v96 = vpop.f32.mrf.mxu0
  %v97 = vadd.f32 %v53, %v96
  %98 = vmatmul.bf16.gmra.mxu0 %v75
  %v99 = vpop.f32.mrf.mxu0
  %v100 = vadd.f32 %v53, %v99
  %v101 = vpop.f32.mrf.mxu0
  %v102 = vadd.f32 %v53, %v101
  %103 = vmatmul.bf16.gmra.mxu0 %v78
  %v104 = vpop.f32.mrf.mxu0
  %v105 = vadd.f32 %v53, %v104
  %v106 = vpop.f32.mrf.mxu0
  %v107 = vadd.f32 %v53, %v106
  %108 = vdwg.mxu0
  %v109 = vmax.f32 %v90, 0.0
  %v110 = vmax.f32 %v92, 0.0
  %v111 = vmax.f32 %v95, 0.0
  %v112 = vmax.f32 %v97, 0.0
  %v113 = vmax.f32 %v100, 0.0
  %v114 = vmax.f32 %v102, 0.0
  %v115 = vmax.f32 %v105, 0.0
  %v116 = vmax.f32 %v107, 0.0
  %117 = vst [vmem:[%s10] sm:$0xff] %v109
  %118 = vst [vmem:[%s10 + $0x8] sm:$0xff] %v110
  %119 = vst [vmem:[%s10 + $0x10] sm:$0xff] %v111
  %120 = vst [vmem:[%s10 + $0x18] sm:$0xff] %v112
  %121 = vst [vmem:[%s10 + $0x20] sm:$0xff] %v113
  %122 = vst [vmem:[%s10 + $0x28] sm:$0xff] %v114
  %123 = vst [vmem:[%s10 + $0x30] sm:$0xff] %v115
  %124 = vst [vmem:[%s10 + $0x38] sm:$0xff] %v116
  %v125 = vpack.c.bf16 %v110, %v109
  %v126 = vpack.c.bf16 %v112, %v111
  %v127 = vpack.c.bf16 %v114, %v113
  %v128 = vpack.c.bf16 %v116, %v115
  %v129 = vld [vmem:[%s3] sm:$0xff]
  %v130 = vld [vmem:[%s3 + $0x8] sm:$0xff]
  %v131 = vld [vmem:[%s3 + $0x10] sm:$0xff]
  %v132 = vld [vmem:[%s3 + $0x18] sm:$0xff]
  %v133 = vld [vmem:[%s3 + $0x20] sm:$0xff]
  %v134 = vld [vmem:[%s3 + $0x28] sm:$0xff]
  %v135 = vld [vmem:[%s3 + $0x30] sm:$0xff]
  %v136 = vld [vmem:[%s3 + $0x38] sm:$0xff]
  %v137 = vld [vmem:[%s3 + $0x40] sm:$0xff]
  %v138 = vld [vmem:[%s3 + $0x48] sm:$0xff]
  %v139 = vld [vmem:[%s3 + $0x50] sm:$0xff]
  %v140 = vld [vmem:[%s3 + $0x58] sm:$0xff]
  %v141 = vld [vmem:[%s3 + $0x60] sm:$0xff]
  %v142 = vld [vmem:[%s3 + $0x68] sm:$0xff]
  %v143 = vld [vmem:[%s3 + $0x70] sm:$0xff]
  %v144 = vld [vmem:[%s3 + $0x78] sm:$0xff]
  %v145 = vld [vmem:[%s3 + $0x80] sm:$0xff]
  %v146 = vld [vmem:[%s3 + $0x88] sm:$0xff]
  %v147 = vld [vmem:[%s3 + $0x90] sm:$0xff]
  %v148 = vld [vmem:[%s3 + $0x98] sm:$0xff]
  %v149 = vld [vmem:[%s3 + $0xa0] sm:$0xff]
  %v150 = vld [vmem:[%s3 + $0xa8] sm:$0xff]
  %v151 = vld [vmem:[%s3 + $0xb0] sm:$0xff]
  %v152 = vld [vmem:[%s3 + $0xb8] sm:$0xff]
  %v153 = vld [vmem:[%s3 + $0xc0] sm:$0xff]
  %v154 = vld [vmem:[%s3 + $0xc8] sm:$0xff]
  %v155 = vld [vmem:[%s3 + $0xd0] sm:$0xff]
  %v156 = vld [vmem:[%s3 + $0xd8] sm:$0xff]
  %v157 = vld [vmem:[%s3 + $0xe0] sm:$0xff]
  %v158 = vld [vmem:[%s3 + $0xe8] sm:$0xff]
  %v159 = vld [vmem:[%s3 + $0xf0] sm:$0xff]
  %v160 = vld [vmem:[%s3 + $0xf8] sm:$0xff]
  %v161 = vld [vmem:[%s3 + $0x100] sm:$0xff]
  %v162 = vld [vmem:[%s3 + $0x108] sm:$0xff]
  %v163 = vld [vmem:[%s3 + $0x110] sm:$0xff]
  %v164 = vld [vmem:[%s3 + $0x118] sm:$0xff]
  %v165 = vld [vmem:[%s3 + $0x120] sm:$0xff]
  %v166 = vld [vmem:[%s3 + $0x128] sm:$0xff]
  %v167 = vld [vmem:[%s3 + $0x130] sm:$0xff]
  %v168 = vld [vmem:[%s3 + $0x138] sm:$0xff]
  %v169 = vld [vmem:[%s3 + $0x140] sm:$0xff]
  %v170 = vld [vmem:[%s3 + $0x148] sm:$0xff]
  %v171 = vld [vmem:[%s3 + $0x150] sm:$0xff]
  %v172 = vld [vmem:[%s3 + $0x158] sm:$0xff]
  %v173 = vld [vmem:[%s3 + $0x160] sm:$0xff]
  %v174 = vld [vmem:[%s3 + $0x168] sm:$0xff]
  %v175 = vld [vmem:[%s3 + $0x170] sm:$0xff]
  %v176 = vld [vmem:[%s3 + $0x178] sm:$0xff]
  %v177 = vld [vmem:[%s3 + $0x180] sm:$0xff]
  %v178 = vld [vmem:[%s3 + $0x188] sm:$0xff]
  %v179 = vld [vmem:[%s3 + $0x190] sm:$0xff]
  %v180 = vld [vmem:[%s3 + $0x198] sm:$0xff]
  %v181 = vld [vmem:[%s3 + $0x1a0] sm:$0xff]
  %v182 = vld [vmem:[%s3 + $0x1a8] sm:$0xff]
  %v183 = vld [vmem:[%s3 + $0x1b0] sm:$0xff]
  %v184 = vld [vmem:[%s3 + $0x1b8] sm:$0xff]
  %v185 = vld [vmem:[%s3 + $0x1c0] sm:$0xff]
  %v186 = vld [vmem:[%s3 + $0x1c8] sm:$0xff]
  %v187 = vld [vmem:[%s3 + $0x1d0] sm:$0xff]
  %v188 = vld [vmem:[%s3 + $0x1d8] sm:$0xff]
  %v189 = vld [vmem:[%s3 + $0x1e0] sm:$0xff]
  %v190 = vld [vmem:[%s3 + $0x1e8] sm:$0xff]
  %v191 = vld [vmem:[%s3 + $0x1f0] sm:$0xff]
  %v192 = vld [vmem:[%s3 + $0x1f8] sm:$0xff]
  %v193 = vld [vmem:[%s4] sm:$0xff]
  %v195 = vperm.slane %v193, 0
  %v196 = vperm.slane %v193, 1
  %v197 = vperm.slane %v193, 2
  %v198 = vperm.slane %v193, 3
  %v199 = vperm.slane %v193, 4
  %v200 = vperm.slane %v193, 5
  %v201 = vperm.slane %v193, 6
  %v202 = vperm.slane %v193, 7
  %v275 = vunpack.c.l.b16 %v129
  %v276 = vunpack.c.h.b16 %v129
  %v277 = vunpack.c.l.b16 %v130
  %v278 = vunpack.c.h.b16 %v130
  %v279 = vunpack.c.l.b16 %v131
  %v280 = vunpack.c.h.b16 %v131
  %v281 = vunpack.c.l.b16 %v132
  %v282 = vunpack.c.h.b16 %v132
  %v283 = vunpack.c.l.b16 %v133
  %v284 = vunpack.c.h.b16 %v133
  %v285 = vunpack.c.l.b16 %v134
  %v286 = vunpack.c.h.b16 %v134
  %v287 = vunpack.c.l.b16 %v135
  %v288 = vunpack.c.h.b16 %v135
  %v289 = vunpack.c.l.b16 %v136
  %v290 = vunpack.c.h.b16 %v136
  %v291 = vunpack.c.l.b16 %v137
  %v292 = vunpack.c.h.b16 %v137
  %v293 = vunpack.c.l.b16 %v138
  %v294 = vunpack.c.h.b16 %v138
  %v295 = vunpack.c.l.b16 %v139
  %v296 = vunpack.c.h.b16 %v139
  %v297 = vunpack.c.l.b16 %v140
  %v298 = vunpack.c.h.b16 %v140
  %v299 = vunpack.c.l.b16 %v141
  %v300 = vunpack.c.h.b16 %v141
  %v301 = vunpack.c.l.b16 %v142
  %v302 = vunpack.c.h.b16 %v142
  %v303 = vunpack.c.l.b16 %v143
  %v304 = vunpack.c.h.b16 %v143
  %v305 = vunpack.c.l.b16 %v144
  %v306 = vunpack.c.h.b16 %v144
  %v307 = vunpack.c.l.b16 %v145
  %v308 = vunpack.c.h.b16 %v145
  %v309 = vunpack.c.l.b16 %v146
  %v310 = vunpack.c.h.b16 %v146
  %v311 = vunpack.c.l.b16 %v147
  %v312 = vunpack.c.h.b16 %v147
  %v313 = vunpack.c.l.b16 %v148
  %v314 = vunpack.c.h.b16 %v148
  %v315 = vunpack.c.l.b16 %v149
  %v316 = vunpack.c.h.b16 %v149
  %v317 = vunpack.c.l.b16 %v150
  %v318 = vunpack.c.h.b16 %v150
  %v319 = vunpack.c.l.b16 %v151
  %v320 = vunpack.c.h.b16 %v151
  %v321 = vunpack.c.l.b16 %v152
  %v322 = vunpack.c.h.b16 %v152
  %v323 = vunpack.c.l.b16 %v153
  %v324 = vunpack.c.h.b16 %v153
  %v325 = vunpack.c.l.b16 %v154
  %v326 = vunpack.c.h.b16 %v154
  %v327 = vunpack.c.l.b16 %v155
  %v328 = vunpack.c.h.b16 %v155
  %v329 = vunpack.c.l.b16 %v156
  %v330 = vunpack.c.h.b16 %v156
  %v331 = vunpack.c.l.b16 %v157
  %v332 = vunpack.c.h.b16 %v157
  %v333 = vunpack.c.l.b16 %v158
  %v334 = vunpack.c.h.b16 %v158
  %v335 = vunpack.c.l.b16 %v159
  %v336 = vunpack.c.h.b16 %v159
  %v337 = vunpack.c.l.b16 %v160
  %v338 = vunpack.c.h.b16 %v160
  %v339 = vunpack.c.l.b16 %v161
  %v340 = vunpack.c.h.b16 %v161
  %v341 = vunpack.c.l.b16 %v162
  %v342 = vunpack.c.h.b16 %v162
  %v343 = vunpack.c.l.b16 %v163
  %v344 = vunpack.c.h.b16 %v163
  %v345 = vunpack.c.l.b16 %v164
  %v346 = vunpack.c.h.b16 %v164
  %v347 = vunpack.c.l.b16 %v165
  %v348 = vunpack.c.h.b16 %v165
  %v349 = vunpack.c.l.b16 %v166
  %v350 = vunpack.c.h.b16 %v166
  %v351 = vunpack.c.l.b16 %v167
  %v352 = vunpack.c.h.b16 %v167
  %v353 = vunpack.c.l.b16 %v168
  %v354 = vunpack.c.h.b16 %v168
  %v355 = vunpack.c.l.b16 %v169
  %v356 = vunpack.c.h.b16 %v169
  %v357 = vunpack.c.l.b16 %v170
  %v358 = vunpack.c.h.b16 %v170
  %v359 = vunpack.c.l.b16 %v171
  %v360 = vunpack.c.h.b16 %v171
  %v361 = vunpack.c.l.b16 %v172
  %v362 = vunpack.c.h.b16 %v172
  %v363 = vunpack.c.l.b16 %v173
  %v364 = vunpack.c.h.b16 %v173
  %v365 = vunpack.c.l.b16 %v174
  %v366 = vunpack.c.h.b16 %v174
  %v367 = vunpack.c.l.b16 %v175
  %v368 = vunpack.c.h.b16 %v175
  %v369 = vunpack.c.l.b16 %v176
  %v370 = vunpack.c.h.b16 %v176
  %v371 = vunpack.c.l.b16 %v177
  %v372 = vunpack.c.h.b16 %v177
  %v373 = vunpack.c.l.b16 %v178
  %v374 = vunpack.c.h.b16 %v178
  %v375 = vunpack.c.l.b16 %v179
  %v376 = vunpack.c.h.b16 %v179
  %v377 = vunpack.c.l.b16 %v180
  %v378 = vunpack.c.h.b16 %v180
  %v379 = vunpack.c.l.b16 %v181
  %v380 = vunpack.c.h.b16 %v181
  %v381 = vunpack.c.l.b16 %v182
  %v382 = vunpack.c.h.b16 %v182
  %v383 = vunpack.c.l.b16 %v183
  %v384 = vunpack.c.h.b16 %v183
  %v385 = vunpack.c.l.b16 %v184
  %v386 = vunpack.c.h.b16 %v184
  %v387 = vunpack.c.l.b16 %v185
  %v388 = vunpack.c.h.b16 %v185
  %v389 = vunpack.c.l.b16 %v186
  %v390 = vunpack.c.h.b16 %v186
  %v391 = vunpack.c.l.b16 %v187
  %v392 = vunpack.c.h.b16 %v187
  %v393 = vunpack.c.l.b16 %v188
  %v394 = vunpack.c.h.b16 %v188
  %v395 = vunpack.c.l.b16 %v189
  %v396 = vunpack.c.h.b16 %v189
  %v397 = vunpack.c.l.b16 %v190
  %v398 = vunpack.c.h.b16 %v190
  %v399 = vunpack.c.l.b16 %v191
  %v400 = vunpack.c.h.b16 %v191
  %v401 = vunpack.c.l.b16 %v192
  %v402 = vunpack.c.h.b16 %v192
  %v403 = vpack.c.b16 %v283, %v275
  %v404 = vpack.c.b16 %v284, %v276
  %v405 = vpack.c.b16 %v285, %v277
  %v406 = vpack.c.b16 %v286, %v278
  %v407 = vpack.c.b16 %v287, %v279
  %v408 = vpack.c.b16 %v288, %v280
  %v409 = vpack.c.b16 %v289, %v281
  %v410 = vpack.c.b16 %v290, %v282
  %v411 = vpack.c.b16 %v299, %v291
  %v412 = vpack.c.b16 %v300, %v292
  %v413 = vpack.c.b16 %v301, %v293
  %v414 = vpack.c.b16 %v302, %v294
  %v415 = vpack.c.b16 %v303, %v295
  %v416 = vpack.c.b16 %v304, %v296
  %v417 = vpack.c.b16 %v305, %v297
  %v418 = vpack.c.b16 %v306, %v298
  %v419 = vpack.c.b16 %v315, %v307
  %v420 = vpack.c.b16 %v316, %v308
  %v421 = vpack.c.b16 %v317, %v309
  %v422 = vpack.c.b16 %v318, %v310
  %v423 = vpack.c.b16 %v319, %v311
  %v424 = vpack.c.b16 %v320, %v312
  %v425 = vpack.c.b16 %v321, %v313
  %v426 = vpack.c.b16 %v322, %v314
  %v427 = vpack.c.b16 %v331, %v323
  %v428 = vpack.c.b16 %v332, %v324
  %v429 = vpack.c.b16 %v333, %v325
  %v430 = vpack.c.b16 %v334, %v326
  %v431 = vpack.c.b16 %v335, %v327
  %v432 = vpack.c.b16 %v336, %v328
  %v433 = vpack.c.b16 %v337, %v329
  %v434 = vpack.c.b16 %v338, %v330
  %v435 = vpack.c.b16 %v347, %v339
  %v436 = vpack.c.b16 %v348, %v340
  %v437 = vpack.c.b16 %v349, %v341
  %v438 = vpack.c.b16 %v350, %v342
  %v439 = vpack.c.b16 %v351, %v343
  %v440 = vpack.c.b16 %v352, %v344
  %v441 = vpack.c.b16 %v353, %v345
  %v442 = vpack.c.b16 %v354, %v346
  %v443 = vpack.c.b16 %v363, %v355
  %v444 = vpack.c.b16 %v364, %v356
  %v445 = vpack.c.b16 %v365, %v357
  %v446 = vpack.c.b16 %v366, %v358
  %v447 = vpack.c.b16 %v367, %v359
  %v448 = vpack.c.b16 %v368, %v360
  %v449 = vpack.c.b16 %v369, %v361
  %v450 = vpack.c.b16 %v370, %v362
  %v451 = vpack.c.b16 %v379, %v371
  %v452 = vpack.c.b16 %v380, %v372
  %v453 = vpack.c.b16 %v381, %v373
  %v454 = vpack.c.b16 %v382, %v374
  %v455 = vpack.c.b16 %v383, %v375
  %v456 = vpack.c.b16 %v384, %v376
  %v457 = vpack.c.b16 %v385, %v377
  %v458 = vpack.c.b16 %v386, %v378
  %v459 = vpack.c.b16 %v395, %v387
  %v460 = vpack.c.b16 %v396, %v388
  %v461 = vpack.c.b16 %v397, %v389
  %v462 = vpack.c.b16 %v398, %v390
  %v463 = vpack.c.b16 %v399, %v391
  %v464 = vpack.c.b16 %v400, %v392
  %v465 = vpack.c.b16 %v401, %v393
  %v466 = vpack.c.b16 %v402, %v394
  %531 = vmatpush.bf16.msra.mxu0 %v459
  %532 = vmatpush.bf16.msra.mxu0 %v451
  %533 = vmatpush.bf16.msra.mxu0 %v443
  %534 = vmatpush.bf16.msra.mxu0 %v435
  %535 = vmatpush.bf16.msra.mxu0 %v427
  %536 = vmatpush.bf16.msra.mxu0 %v419
  %537 = vmatpush.bf16.msra.mxu0 %v411
  %538 = vmatpush.bf16.msra.mxu0 %v403
  %539 = vmatmul.bf16.gmra.mxu0 %v125
  %v540 = vpop.f32.mrf.mxu0
  %v541 = vadd.f32 %v195, %v540
  %v542 = vpop.f32.mrf.mxu0
  %v543 = vadd.f32 %v195, %v542
  %544 = vmatmul.bf16.gmra.mxu0 %v126
  %v545 = vpop.f32.mrf.mxu0
  %v546 = vadd.f32 %v195, %v545
  %v547 = vpop.f32.mrf.mxu0
  %v548 = vadd.f32 %v195, %v547
  %549 = vmatmul.bf16.gmra.mxu0 %v127
  %v550 = vpop.f32.mrf.mxu0
  %v551 = vadd.f32 %v195, %v550
  %v552 = vpop.f32.mrf.mxu0
  %v553 = vadd.f32 %v195, %v552
  %554 = vmatmul.bf16.gmra.mxu0 %v128
  %v555 = vpop.f32.mrf.mxu0
  %v556 = vadd.f32 %v195, %v555
  %v557 = vpop.f32.mrf.mxu0
  %v558 = vadd.f32 %v195, %v557
  %559 = vdwg.mxu0
  %560 = vmatpush.bf16.msra.mxu0 %v460
  %561 = vmatpush.bf16.msra.mxu0 %v452
  %562 = vmatpush.bf16.msra.mxu0 %v444
  %563 = vmatpush.bf16.msra.mxu0 %v436
  %564 = vmatpush.bf16.msra.mxu0 %v428
  %565 = vmatpush.bf16.msra.mxu0 %v420
  %566 = vmatpush.bf16.msra.mxu0 %v412
  %567 = vmatpush.bf16.msra.mxu0 %v404
  %568 = vmatmul.bf16.gmra.mxu0 %v125
  %v569 = vpop.f32.mrf.mxu0
  %v570 = vadd.f32 %v196, %v569
  %v571 = vpop.f32.mrf.mxu0
  %v572 = vadd.f32 %v196, %v571
  %573 = vmatmul.bf16.gmra.mxu0 %v126
  %v574 = vpop.f32.mrf.mxu0
  %v575 = vadd.f32 %v196, %v574
  %v576 = vpop.f32.mrf.mxu0
  %v577 = vadd.f32 %v196, %v576
  %578 = vmatmul.bf16.gmra.mxu0 %v127
  %v579 = vpop.f32.mrf.mxu0
  %v580 = vadd.f32 %v196, %v579
  %v581 = vpop.f32.mrf.mxu0
  %v582 = vadd.f32 %v196, %v581
  %583 = vmatmul.bf16.gmra.mxu0 %v128
  %v584 = vpop.f32.mrf.mxu0
  %v585 = vadd.f32 %v196, %v584
  %v586 = vpop.f32.mrf.mxu0
  %v587 = vadd.f32 %v196, %v586
  %588 = vdwg.mxu0
  %589 = vmatpush.bf16.msra.mxu0 %v461
  %590 = vmatpush.bf16.msra.mxu0 %v453
  %591 = vmatpush.bf16.msra.mxu0 %v445
  %592 = vmatpush.bf16.msra.mxu0 %v437
  %593 = vmatpush.bf16.msra.mxu0 %v429
  %594 = vmatpush.bf16.msra.mxu0 %v421
  %595 = vmatpush.bf16.msra.mxu0 %v413
  %596 = vmatpush.bf16.msra.mxu0 %v405
  %597 = vmatmul.bf16.gmra.mxu0 %v125
  %v598 = vpop.f32.mrf.mxu0
  %v599 = vadd.f32 %v197, %v598
  %v600 = vpop.f32.mrf.mxu0
  %v601 = vadd.f32 %v197, %v600
  %602 = vmatmul.bf16.gmra.mxu0 %v126
  %v603 = vpop.f32.mrf.mxu0
  %v604 = vadd.f32 %v197, %v603
  %v605 = vpop.f32.mrf.mxu0
  %v606 = vadd.f32 %v197, %v605
  %607 = vmatmul.bf16.gmra.mxu0 %v127
  %v608 = vpop.f32.mrf.mxu0
  %v609 = vadd.f32 %v197, %v608
  %v610 = vpop.f32.mrf.mxu0
  %v611 = vadd.f32 %v197, %v610
  %612 = vmatmul.bf16.gmra.mxu0 %v128
  %v613 = vpop.f32.mrf.mxu0
  %v614 = vadd.f32 %v197, %v613
  %v615 = vpop.f32.mrf.mxu0
  %v616 = vadd.f32 %v197, %v615
  %617 = vdwg.mxu0
  %618 = vmatpush.bf16.msra.mxu0 %v462
  %619 = vmatpush.bf16.msra.mxu0 %v454
  %620 = vmatpush.bf16.msra.mxu0 %v446
  %621 = vmatpush.bf16.msra.mxu0 %v438
  %622 = vmatpush.bf16.msra.mxu0 %v430
  %623 = vmatpush.bf16.msra.mxu0 %v422
  %624 = vmatpush.bf16.msra.mxu0 %v414
  %625 = vmatpush.bf16.msra.mxu0 %v406
  %626 = vmatmul.bf16.gmra.mxu0 %v125
  %v627 = vpop.f32.mrf.mxu0
  %v628 = vadd.f32 %v198, %v627
  %v629 = vpop.f32.mrf.mxu0
  %v630 = vadd.f32 %v198, %v629
  %631 = vmatmul.bf16.gmra.mxu0 %v126
  %v632 = vpop.f32.mrf.mxu0
  %v633 = vadd.f32 %v198, %v632
  %v634 = vpop.f32.mrf.mxu0
  %v635 = vadd.f32 %v198, %v634
  %636 = vmatmul.bf16.gmra.mxu0 %v127
  %v637 = vpop.f32.mrf.mxu0
  %v638 = vadd.f32 %v198, %v637
  %v639 = vpop.f32.mrf.mxu0
  %v640 = vadd.f32 %v198, %v639
  %641 = vmatmul.bf16.gmra.mxu0 %v128
  %v642 = vpop.f32.mrf.mxu0
  %v643 = vadd.f32 %v198, %v642
  %v644 = vpop.f32.mrf.mxu0
  %v645 = vadd.f32 %v198, %v644
  %646 = vdwg.mxu0
  %647 = vmatpush.bf16.msra.mxu0 %v463
  %648 = vmatpush.bf16.msra.mxu0 %v455
  %649 = vmatpush.bf16.msra.mxu0 %v447
  %650 = vmatpush.bf16.msra.mxu0 %v439
  %651 = vmatpush.bf16.msra.mxu0 %v431
  %652 = vmatpush.bf16.msra.mxu0 %v423
  %653 = vmatpush.bf16.msra.mxu0 %v415
  %654 = vmatpush.bf16.msra.mxu0 %v407
  %655 = vmatmul.bf16.gmra.mxu0 %v125
  %v656 = vpop.f32.mrf.mxu0
  %v657 = vadd.f32 %v199, %v656
  %v658 = vpop.f32.mrf.mxu0
  %v659 = vadd.f32 %v199, %v658
  %660 = vmatmul.bf16.gmra.mxu0 %v126
  %v661 = vpop.f32.mrf.mxu0
  %v662 = vadd.f32 %v199, %v661
  %v663 = vpop.f32.mrf.mxu0
  %v664 = vadd.f32 %v199, %v663
  %665 = vmatmul.bf16.gmra.mxu0 %v127
  %v666 = vpop.f32.mrf.mxu0
  %v667 = vadd.f32 %v199, %v666
  %v668 = vpop.f32.mrf.mxu0
  %v669 = vadd.f32 %v199, %v668
  %670 = vmatmul.bf16.gmra.mxu0 %v128
  %v671 = vpop.f32.mrf.mxu0
  %v672 = vadd.f32 %v199, %v671
  %v673 = vpop.f32.mrf.mxu0
  %v674 = vadd.f32 %v199, %v673
  %675 = vdwg.mxu0
  %676 = vmatpush.bf16.msra.mxu0 %v464
  %677 = vmatpush.bf16.msra.mxu0 %v456
  %678 = vmatpush.bf16.msra.mxu0 %v448
  %679 = vmatpush.bf16.msra.mxu0 %v440
  %680 = vmatpush.bf16.msra.mxu0 %v432
  %681 = vmatpush.bf16.msra.mxu0 %v424
  %682 = vmatpush.bf16.msra.mxu0 %v416
  %683 = vmatpush.bf16.msra.mxu0 %v408
  %684 = vmatmul.bf16.gmra.mxu0 %v125
  %v685 = vpop.f32.mrf.mxu0
  %v686 = vadd.f32 %v200, %v685
  %v687 = vpop.f32.mrf.mxu0
  %v688 = vadd.f32 %v200, %v687
  %689 = vmatmul.bf16.gmra.mxu0 %v126
  %v690 = vpop.f32.mrf.mxu0
  %v691 = vadd.f32 %v200, %v690
  %v692 = vpop.f32.mrf.mxu0
  %v693 = vadd.f32 %v200, %v692
  %694 = vmatmul.bf16.gmra.mxu0 %v127
  %v695 = vpop.f32.mrf.mxu0
  %v696 = vadd.f32 %v200, %v695
  %v697 = vpop.f32.mrf.mxu0
  %v698 = vadd.f32 %v200, %v697
  %699 = vmatmul.bf16.gmra.mxu0 %v128
  %v700 = vpop.f32.mrf.mxu0
  %v701 = vadd.f32 %v200, %v700
  %v702 = vpop.f32.mrf.mxu0
  %v703 = vadd.f32 %v200, %v702
  %704 = vdwg.mxu0
  %705 = vmatpush.bf16.msra.mxu0 %v465
  %706 = vmatpush.bf16.msra.mxu0 %v457
  %707 = vmatpush.bf16.msra.mxu0 %v449
  %708 = vmatpush.bf16.msra.mxu0 %v441
  %709 = vmatpush.bf16.msra.mxu0 %v433
  %710 = vmatpush.bf16.msra.mxu0 %v425
  %711 = vmatpush.bf16.msra.mxu0 %v417
  %712 = vmatpush.bf16.msra.mxu0 %v409
  %713 = vmatmul.bf16.gmra.mxu0 %v125
  %v714 = vpop.f32.mrf.mxu0
  %v715 = vadd.f32 %v201, %v714
  %v716 = vpop.f32.mrf.mxu0
  %v717 = vadd.f32 %v201, %v716
  %718 = vmatmul.bf16.gmra.mxu0 %v126
  %v719 = vpop.f32.mrf.mxu0
  %v720 = vadd.f32 %v201, %v719
  %v721 = vpop.f32.mrf.mxu0
  %v722 = vadd.f32 %v201, %v721
  %723 = vmatmul.bf16.gmra.mxu0 %v127
  %v724 = vpop.f32.mrf.mxu0
  %v725 = vadd.f32 %v201, %v724
  %v726 = vpop.f32.mrf.mxu0
  %v727 = vadd.f32 %v201, %v726
  %728 = vmatmul.bf16.gmra.mxu0 %v128
  %v729 = vpop.f32.mrf.mxu0
  %v730 = vadd.f32 %v201, %v729
  %v731 = vpop.f32.mrf.mxu0
  %v732 = vadd.f32 %v201, %v731
  %733 = vdwg.mxu0
  %734 = vmatpush.bf16.msra.mxu0 %v466
  %735 = vmatpush.bf16.msra.mxu0 %v458
  %736 = vmatpush.bf16.msra.mxu0 %v450
  %737 = vmatpush.bf16.msra.mxu0 %v442
  %738 = vmatpush.bf16.msra.mxu0 %v434
  %739 = vmatpush.bf16.msra.mxu0 %v426
  %740 = vmatpush.bf16.msra.mxu0 %v418
  %741 = vmatpush.bf16.msra.mxu0 %v410
  %742 = vmatmul.bf16.gmra.mxu0 %v125
  %v743 = vpop.f32.mrf.mxu0
  %v744 = vadd.f32 %v202, %v743
  %v745 = vpop.f32.mrf.mxu0
  %v746 = vadd.f32 %v202, %v745
  %747 = vmatmul.bf16.gmra.mxu0 %v126
  %v748 = vpop.f32.mrf.mxu0
  %v749 = vadd.f32 %v202, %v748
  %v750 = vpop.f32.mrf.mxu0
  %v751 = vadd.f32 %v202, %v750
  %752 = vmatmul.bf16.gmra.mxu0 %v127
  %v753 = vpop.f32.mrf.mxu0
  %v754 = vadd.f32 %v202, %v753
  %v755 = vpop.f32.mrf.mxu0
  %v756 = vadd.f32 %v202, %v755
  %757 = vmatmul.bf16.gmra.mxu0 %v128
  %v758 = vpop.f32.mrf.mxu0
  %v759 = vadd.f32 %v202, %v758
  %v760 = vpop.f32.mrf.mxu0
  %v761 = vadd.f32 %v202, %v760
  %762 = vdwg.mxu0
  %763 = vst [vmem:[#allocation2] sm:$0xff] %v541
  %764 = vst [vmem:[#allocation2 + $0x8] sm:$0xff] %v570
  %765 = vst [vmem:[#allocation2 + $0x10] sm:$0xff] %v599
  %766 = vst [vmem:[#allocation2 + $0x18] sm:$0xff] %v628
  %767 = vst [vmem:[#allocation2 + $0x20] sm:$0xff] %v657
  %768 = vst [vmem:[#allocation2 + $0x28] sm:$0xff] %v686
  %769 = vst [vmem:[#allocation2 + $0x30] sm:$0xff] %v715
  %770 = vst [vmem:[#allocation2 + $0x38] sm:$0xff] %v744
  %771 = vst [vmem:[#allocation2 + $0x40] sm:$0xff] %v543
  %772 = vst [vmem:[#allocation2 + $0x48] sm:$0xff] %v572
  %773 = vst [vmem:[#allocation2 + $0x50] sm:$0xff] %v601
  %774 = vst [vmem:[#allocation2 + $0x58] sm:$0xff] %v630
  %775 = vst [vmem:[#allocation2 + $0x60] sm:$0xff] %v659
  %776 = vst [vmem:[#allocation2 + $0x68] sm:$0xff] %v688
  %777 = vst [vmem:[#allocation2 + $0x70] sm:$0xff] %v717
  %778 = vst [vmem:[#allocation2 + $0x78] sm:$0xff] %v746
  %779 = vst [vmem:[#allocation2 + $0x80] sm:$0xff] %v546
  %780 = vst [vmem:[#allocation2 + $0x88] sm:$0xff] %v575
  %781 = vst [vmem:[#allocation2 + $0x90] sm:$0xff] %v604
  %782 = vst [vmem:[#allocation2 + $0x98] sm:$0xff] %v633
  %783 = vst [vmem:[#allocation2 + $0xa0] sm:$0xff] %v662
  %784 = vst [vmem:[#allocation2 + $0xa8] sm:$0xff] %v691
  %785 = vst [vmem:[#allocation2 + $0xb0] sm:$0xff] %v720
  %786 = vst [vmem:[#allocation2 + $0xb8] sm:$0xff] %v749
  %787 = vst [vmem:[#allocation2 + $0xc0] sm:$0xff] %v548
  %788 = vst [vmem:[#allocation2 + $0xc8] sm:$0xff] %v577
  %789 = vst [vmem:[#allocation2 + $0xd0] sm:$0xff] %v606
  %790 = vst [vmem:[#allocation2 + $0xd8] sm:$0xff] %v635
  %791 = vst [vmem:[#allocation2 + $0xe0] sm:$0xff] %v664
  %792 = vst [vmem:[#allocation2 + $0xe8] sm:$0xff] %v693
  %793 = vst [vmem:[#allocation2 + $0xf0] sm:$0xff] %v722
  %794 = vst [vmem:[#allocation2 + $0xf8] sm:$0xff] %v751
  %795 = vst [vmem:[#allocation2 + $0x100] sm:$0xff] %v551
  %796 = vst [vmem:[#allocation2 + $0x108] sm:$0xff] %v580
  %797 = vst [vmem:[#allocation2 + $0x110] sm:$0xff] %v609
  %798 = vst [vmem:[#allocation2 + $0x118] sm:$0xff] %v638
  %799 = vst [vmem:[#allocation2 + $0x120] sm:$0xff] %v667
  %800 = vst [vmem:[#allocation2 + $0x128] sm:$0xff] %v696
  %801 = vst [vmem:[#allocation2 + $0x130] sm:$0xff] %v725
  %802 = vst [vmem:[#allocation2 + $0x138] sm:$0xff] %v754
  %803 = vst [vmem:[#allocation2 + $0x140] sm:$0xff] %v553
  %804 = vst [vmem:[#allocation2 + $0x148] sm:$0xff] %v582
  %805 = vst [vmem:[#allocation2 + $0x150] sm:$0xff] %v611
  %806 = vst [vmem:[#allocation2 + $0x158] sm:$0xff] %v640
  %807 = vst [vmem:[#allocation2 + $0x160] sm:$0xff] %v669
  %808 = vst [vmem:[#allocation2 + $0x168] sm:$0xff] %v698
  %809 = vst [vmem:[#allocation2 + $0x170] sm:$0xff] %v727
  %810 = vst [vmem:[#allocation2 + $0x178] sm:$0xff] %v756
  %811 = vst [vmem:[#allocation2 + $0x180] sm:$0xff] %v556
  %812 = vst [vmem:[#allocation2 + $0x188] sm:$0xff] %v585
  %813 = vst [vmem:[#allocation2 + $0x190] sm:$0xff] %v614
  %814 = vst [vmem:[#allocation2 + $0x198] sm:$0xff] %v643
  %815 = vst [vmem:[#allocation2 + $0x1a0] sm:$0xff] %v672
  %816 = vst [vmem:[#allocation2 + $0x1a8] sm:$0xff] %v701
  %817 = vst [vmem:[#allocation2 + $0x1b0] sm:$0xff] %v730
  %818 = vst [vmem:[#allocation2 + $0x1b8] sm:$0xff] %v759
  %819 = vst [vmem:[#allocation2 + $0x1c0] sm:$0xff] %v558
  %820 = vst [vmem:[#allocation2 + $0x1c8] sm:$0xff] %v587
  %821 = vst [vmem:[#allocation2 + $0x1d0] sm:$0xff] %v616
  %822 = vst [vmem:[#allocation2 + $0x1d8] sm:$0xff] %v645
  %823 = vst [vmem:[#allocation2 + $0x1e0] sm:$0xff] %v674
  %824 = vst [vmem:[#allocation2 + $0x1e8] sm:$0xff] %v703
  %825 = vst [vmem:[#allocation2 + $0x1f0] sm:$0xff] %v732
  %826 = vst [vmem:[#allocation2 + $0x1f8] sm:$0xff] %v761
  %v827 = vpack.c.bf16 0.0, 0.0
  %v828 = vld [vmem:[%s5] sm:$0xff]
  %v829 = vld [vmem:[%s5 + $0x8] sm:$0xff]
  %v830 = vld [vmem:[%s5 + $0x10] sm:$0xff]
  %v831 = vld [vmem:[%s5 + $0x18] sm:$0xff]
  %v832 = vld [vmem:[%s5 + $0x20] sm:$0xff]
  %v833 = vld [vmem:[%s5 + $0x28] sm:$0xff]
  %v834 = vld [vmem:[%s5 + $0x30] sm:$0xff]
  %v835 = vld [vmem:[%s5 + $0x38] sm:$0xff]
  %v836 = vld [vmem:[%s5 + $0x40] sm:$0xff]
  %v837 = vld [vmem:[%s5 + $0x48] sm:$0xff]
  %v838 = vld [vmem:[%s5 + $0x50] sm:$0xff]
  %v839 = vld [vmem:[%s5 + $0x58] sm:$0xff]
  %v840 = vld [vmem:[%s5 + $0x60] sm:$0xff]
  %v841 = vld [vmem:[%s5 + $0x68] sm:$0xff]
  %v842 = vld [vmem:[%s5 + $0x70] sm:$0xff]
  %v843 = vld [vmem:[%s5 + $0x78] sm:$0xff]
  %v844 = vld [vmem:[%s5 + $0x80] sm:$0xff]
  %v845 = vld [vmem:[%s5 + $0x88] sm:$0xff]
  %v846 = vld [vmem:[%s5 + $0x90] sm:$0xff]
  %v847 = vld [vmem:[%s5 + $0x98] sm:$0xff]
  %v848 = vld [vmem:[%s5 + $0xa0] sm:$0xff]
  %v849 = vld [vmem:[%s5 + $0xa8] sm:$0xff]
  %v850 = vld [vmem:[%s5 + $0xb0] sm:$0xff]
  %v851 = vld [vmem:[%s5 + $0xb8] sm:$0xff]
  %v852 = vld [vmem:[%s5 + $0xc0] sm:$0xff]
  %v853 = vld [vmem:[%s5 + $0xc8] sm:$0xff]
  %v854 = vld [vmem:[%s5 + $0xd0] sm:$0xff]
  %v855 = vld [vmem:[%s5 + $0xd8] sm:$0xff]
  %v856 = vld [vmem:[%s5 + $0xe0] sm:$0xff]
  %v857 = vld [vmem:[%s5 + $0xe8] sm:$0xff]
  %v858 = vld [vmem:[%s5 + $0xf0] sm:$0xff]
  %v859 = vld [vmem:[%s5 + $0xf8] sm:$0xff]
  %v860 = vld [vmem:[%s5 + $0x100] sm:$0xff]
  %v861 = vld [vmem:[%s5 + $0x108] sm:$0xff]
  %v862 = vld [vmem:[%s5 + $0x110] sm:$0xff]
  %v863 = vld [vmem:[%s5 + $0x118] sm:$0xff]
  %v864 = vld [vmem:[%s5 + $0x120] sm:$0xff]
  %v865 = vld [vmem:[%s5 + $0x128] sm:$0xff]
  %v866 = vld [vmem:[%s5 + $0x130] sm:$0xff]
  %v867 = vld [vmem:[%s5 + $0x138] sm:$0xff]
  %v868 = vld [vmem:[%s5 + $0x140] sm:$0xff]
  %v869 = vld [vmem:[%s5 + $0x148] sm:$0xff]
  %v870 = vld [vmem:[%s5 + $0x150] sm:$0xff]
  %v871 = vld [vmem:[%s5 + $0x158] sm:$0xff]
  %v872 = vld [vmem:[%s5 + $0x160] sm:$0xff]
  %v873 = vld [vmem:[%s5 + $0x168] sm:$0xff]
  %v874 = vld [vmem:[%s5 + $0x170] sm:$0xff]
  %v875 = vld [vmem:[%s5 + $0x178] sm:$0xff]
  %v876 = vld [vmem:[%s5 + $0x180] sm:$0xff]
  %v877 = vld [vmem:[%s5 + $0x188] sm:$0xff]
  %v878 = vld [vmem:[%s5 + $0x190] sm:$0xff]
  %v879 = vld [vmem:[%s5 + $0x198] sm:$0xff]
  %v880 = vld [vmem:[%s5 + $0x1a0] sm:$0xff]
  %v881 = vld [vmem:[%s5 + $0x1a8] sm:$0xff]
  %v882 = vld [vmem:[%s5 + $0x1b0] sm:$0xff]
  %v883 = vld [vmem:[%s5 + $0x1b8] sm:$0xff]
  %v884 = vld [vmem:[%s5 + $0x1c0] sm:$0xff]
  %v885 = vld [vmem:[%s5 + $0x1c8] sm:$0xff]
  %v886 = vld [vmem:[%s5 + $0x1d0] sm:$0xff]
  %v887 = vld [vmem:[%s5 + $0x1d8] sm:$0xff]
  %v888 = vld [vmem:[%s5 + $0x1e0] sm:$0xff]
  %v889 = vld [vmem:[%s5 + $0x1e8] sm:$0xff]
  %v890 = vld [vmem:[%s5 + $0x1f0] sm:$0xff]
  %v891 = vld [vmem:[%s5 + $0x1f8] sm:$0xff]
  %v892 = vld [vmem:[%s5 + $0x200] sm:$0xff]
  %v893 = vld [vmem:[%s5 + $0x208] sm:$0xff]
  %v894 = vld [vmem:[%s5 + $0x210] sm:$0xff]
  %v895 = vld [vmem:[%s5 + $0x218] sm:$0xff]
  %v896 = vld [vmem:[%s5 + $0x220] sm:$0xff]
  %v897 = vld [vmem:[%s5 + $0x228] sm:$0xff]
  %v898 = vld [vmem:[%s5 + $0x230] sm:$0xff]
  %v899 = vld [vmem:[%s5 + $0x238] sm:$0xff]
  %v900 = vld [vmem:[%s5 + $0x240] sm:$0xff]
  %v901 = vld [vmem:[%s5 + $0x248] sm:$0xff]
  %v902 = vld [vmem:[%s5 + $0x250] sm:$0xff]
  %v903 = vld [vmem:[%s5 + $0x258] sm:$0xff]
  %v904 = vld [vmem:[%s5 + $0x260] sm:$0xff]
  %v905 = vld [vmem:[%s5 + $0x268] sm:$0xff]
  %v906 = vld [vmem:[%s5 + $0x270] sm:$0xff]
  %v907 = vld [vmem:[%s5 + $0x278] sm:$0xff]
  %v908 = vld [vmem:[%s5 + $0x280] sm:$0xff]
  %v909 = vld [vmem:[%s5 + $0x288] sm:$0xff]
  %v910 = vld [vmem:[%s5 + $0x290] sm:$0xff]
  %v911 = vld [vmem:[%s5 + $0x298] sm:$0xff]
  %v912 = vld [vmem:[%s5 + $0x2a0] sm:$0xff]
  %v913 = vld [vmem:[%s5 + $0x2a8] sm:$0xff]
  %v914 = vld [vmem:[%s5 + $0x2b0] sm:$0xff]
  %v915 = vld [vmem:[%s5 + $0x2b8] sm:$0xff]
  %v916 = vld [vmem:[%s5 + $0x2c0] sm:$0xff]
  %v917 = vld [vmem:[%s5 + $0x2c8] sm:$0xff]
  %v918 = vld [vmem:[%s5 + $0x2d0] sm:$0xff]
  %v919 = vld [vmem:[%s5 + $0x2d8] sm:$0xff]
  %v920 = vld [vmem:[%s5 + $0x2e0] sm:$0xff]
  %v921 = vld [vmem:[%s5 + $0x2e8] sm:$0xff]
  %v922 = vld [vmem:[%s5 + $0x2f0] sm:$0xff]
  %v923 = vld [vmem:[%s5 + $0x2f8] sm:$0xff]
  %v924 = vld [vmem:[%s5 + $0x300] sm:$0xff]
  %v925 = vld [vmem:[%s5 + $0x308] sm:$0xff]
  %v926 = vld [vmem:[%s5 + $0x310] sm:$0xff]
  %v927 = vld [vmem:[%s5 + $0x318] sm:$0xff]
  %v928 = vld [vmem:[%s5 + $0x320] sm:$0xff]
  %v929 = vld [vmem:[%s5 + $0x328] sm:$0xff]
  %v930 = vld [vmem:[%s5 + $0x330] sm:$0xff]
  %v931 = vld [vmem:[%s5 + $0x338] sm:$0xff]
  %v932 = vld [vmem:[%s5 + $0x340] sm:$0xff]
  %v933 = vld [vmem:[%s5 + $0x348] sm:$0xff]
  %v934 = vld [vmem:[%s5 + $0x350] sm:$0xff]
  %v935 = vld [vmem:[%s5 + $0x358] sm:$0xff]
  %v936 = vld [vmem:[%s5 + $0x360] sm:$0xff]
  %v937 = vld [vmem:[%s5 + $0x368] sm:$0xff]
  %v938 = vld [vmem:[%s5 + $0x370] sm:$0xff]
  %v939 = vld [vmem:[%s5 + $0x378] sm:$0xff]
  %v940 = vld [vmem:[%s5 + $0x380] sm:$0xff]
  %v941 = vld [vmem:[%s5 + $0x388] sm:$0xff]
  %v942 = vld [vmem:[%s5 + $0x390] sm:$0xff]
  %v943 = vld [vmem:[%s5 + $0x398] sm:$0xff]
  %v944 = vld [vmem:[%s5 + $0x3a0] sm:$0xff]
  %v945 = vld [vmem:[%s5 + $0x3a8] sm:$0xff]
  %v946 = vld [vmem:[%s5 + $0x3b0] sm:$0xff]
  %v947 = vld [vmem:[%s5 + $0x3b8] sm:$0xff]
  %v948 = vld [vmem:[%s5 + $0x3c0] sm:$0xff]
  %v949 = vld [vmem:[%s5 + $0x3c8] sm:$0xff]
  %v950 = vld [vmem:[%s5 + $0x3d0] sm:$0xff]
  %v951 = vld [vmem:[%s5 + $0x3d8] sm:$0xff]
  %v952 = vld [vmem:[%s5 + $0x3e0] sm:$0xff]
  %v953 = vld [vmem:[%s5 + $0x3e8] sm:$0xff]
  %v954 = vld [vmem:[%s5 + $0x3f0] sm:$0xff]
  %v955 = vld [vmem:[%s5 + $0x3f8] sm:$0xff]
  %v1084 = vunpack.c.l.b16 %v828
  %v1085 = vunpack.c.h.b16 %v828
  %v1086 = vunpack.c.l.b16 %v829
  %v1087 = vunpack.c.h.b16 %v829
  %v1088 = vunpack.c.l.b16 %v830
  %v1089 = vunpack.c.h.b16 %v830
  %v1090 = vunpack.c.l.b16 %v831
  %v1091 = vunpack.c.h.b16 %v831
  %v1092 = vunpack.c.l.b16 %v832
  %v1093 = vunpack.c.h.b16 %v832
  %v1094 = vunpack.c.l.b16 %v833
  %v1095 = vunpack.c.h.b16 %v833
  %v1096 = vunpack.c.l.b16 %v834
  %v1097 = vunpack.c.h.b16 %v834
  %v1098 = vunpack.c.l.b16 %v835
  %v1099 = vunpack.c.h.b16 %v835
  %v1100 = vunpack.c.l.b16 %v836
  %v1101 = vunpack.c.h.b16 %v836
  %v1102 = vunpack.c.l.b16 %v837
  %v1103 = vunpack.c.h.b16 %v837
  %v1104 = vunpack.c.l.b16 %v838
  %v1105 = vunpack.c.h.b16 %v838
  %v1106 = vunpack.c.l.b16 %v839
  %v1107 = vunpack.c.h.b16 %v839
  %v1108 = vunpack.c.l.b16 %v840
  %v1109 = vunpack.c.h.b16 %v840
  %v1110 = vunpack.c.l.b16 %v841
  %v1111 = vunpack.c.h.b16 %v841
  %v1112 = vunpack.c.l.b16 %v842
  %v1113 = vunpack.c.h.b16 %v842
  %v1114 = vunpack.c.l.b16 %v843
  %v1115 = vunpack.c.h.b16 %v843
  %v1116 = vunpack.c.l.b16 %v844
  %v1117 = vunpack.c.h.b16 %v844
  %v1118 = vunpack.c.l.b16 %v845
  %v1119 = vunpack.c.h.b16 %v845
  %v1120 = vunpack.c.l.b16 %v846
  %v1121 = vunpack.c.h.b16 %v846
  %v1122 = vunpack.c.l.b16 %v847
  %v1123 = vunpack.c.h.b16 %v847
  %v1124 = vunpack.c.l.b16 %v848
  %v1125 = vunpack.c.h.b16 %v848
  %v1126 = vunpack.c.l.b16 %v849
  %v1127 = vunpack.c.h.b16 %v849
  %v1128 = vunpack.c.l.b16 %v850
  %v1129 = vunpack.c.h.b16 %v850
  %v1130 = vunpack.c.l.b16 %v851
  %v1131 = vunpack.c.h.b16 %v851
  %v1132 = vunpack.c.l.b16 %v852
  %v1133 = vunpack.c.h.b16 %v852
  %v1134 = vunpack.c.l.b16 %v853
  %v1135 = vunpack.c.h.b16 %v853
  %v1136 = vunpack.c.l.b16 %v854
  %v1137 = vunpack.c.h.b16 %v854
  %v1138 = vunpack.c.l.b16 %v855
  %v1139 = vunpack.c.h.b16 %v855
  %v1140 = vunpack.c.l.b16 %v856
  %v1141 = vunpack.c.h.b16 %v856
  %v1142 = vunpack.c.l.b16 %v857
  %v1143 = vunpack.c.h.b16 %v857
  %v1144 = vunpack.c.l.b16 %v858
  %v1145 = vunpack.c.h.b16 %v858
  %v1146 = vunpack.c.l.b16 %v859
  %v1147 = vunpack.c.h.b16 %v859
  %v1148 = vunpack.c.l.b16 %v860
  %v1149 = vunpack.c.h.b16 %v860
  %v1150 = vunpack.c.l.b16 %v861
  %v1151 = vunpack.c.h.b16 %v861
  %v1152 = vunpack.c.l.b16 %v862
  %v1153 = vunpack.c.h.b16 %v862
  %v1154 = vunpack.c.l.b16 %v863
  %v1155 = vunpack.c.h.b16 %v863
  %v1156 = vunpack.c.l.b16 %v864
  %v1157 = vunpack.c.h.b16 %v864
  %v1158 = vunpack.c.l.b16 %v865
  %v1159 = vunpack.c.h.b16 %v865
  %v1160 = vunpack.c.l.b16 %v866
  %v1161 = vunpack.c.h.b16 %v866
  %v1162 = vunpack.c.l.b16 %v867
  %v1163 = vunpack.c.h.b16 %v867
  %v1164 = vunpack.c.l.b16 %v868
  %v1165 = vunpack.c.h.b16 %v868
  %v1166 = vunpack.c.l.b16 %v869
  %v1167 = vunpack.c.h.b16 %v869
  %v1168 = vunpack.c.l.b16 %v870
  %v1169 = vunpack.c.h.b16 %v870
  %v1170 = vunpack.c.l.b16 %v871
  %v1171 = vunpack.c.h.b16 %v871
  %v1172 = vunpack.c.l.b16 %v872
  %v1173 = vunpack.c.h.b16 %v872
  %v1174 = vunpack.c.l.b16 %v873
  %v1175 = vunpack.c.h.b16 %v873
  %v1176 = vunpack.c.l.b16 %v874
  %v1177 = vunpack.c.h.b16 %v874
  %v1178 = vunpack.c.l.b16 %v875
  %v1179 = vunpack.c.h.b16 %v875
  %v1180 = vunpack.c.l.b16 %v876
  %v1181 = vunpack.c.h.b16 %v876
  %v1182 = vunpack.c.l.b16 %v877
  %v1183 = vunpack.c.h.b16 %v877
  %v1184 = vunpack.c.l.b16 %v878
  %v1185 = vunpack.c.h.b16 %v878
  %v1186 = vunpack.c.l.b16 %v879
  %v1187 = vunpack.c.h.b16 %v879
  %v1188 = vunpack.c.l.b16 %v880
  %v1189 = vunpack.c.h.b16 %v880
  %v1190 = vunpack.c.l.b16 %v881
  %v1191 = vunpack.c.h.b16 %v881
  %v1192 = vunpack.c.l.b16 %v882
  %v1193 = vunpack.c.h.b16 %v882
  %v1194 = vunpack.c.l.b16 %v883
  %v1195 = vunpack.c.h.b16 %v883
  %v1196 = vunpack.c.l.b16 %v884
  %v1197 = vunpack.c.h.b16 %v884
  %v1198 = vunpack.c.l.b16 %v885
  %v1199 = vunpack.c.h.b16 %v885
  %v1200 = vunpack.c.l.b16 %v886
  %v1201 = vunpack.c.h.b16 %v886
  %v1202 = vunpack.c.l.b16 %v887
  %v1203 = vunpack.c.h.b16 %v887
  %v1204 = vunpack.c.l.b16 %v888
  %v1205 = vunpack.c.h.b16 %v888
  %v1206 = vunpack.c.l.b16 %v889
  %v1207 = vunpack.c.h.b16 %v889
  %v1208 = vunpack.c.l.b16 %v890
  %v1209 = vunpack.c.h.b16 %v890
  %v1210 = vunpack.c.l.b16 %v891
  %v1211 = vunpack.c.h.b16 %v891
  %v1212 = vunpack.c.l.b16 %v892
  %v1213 = vunpack.c.h.b16 %v892
  %v1214 = vunpack.c.l.b16 %v893
  %v1215 = vunpack.c.h.b16 %v893
  %v1216 = vunpack.c.l.b16 %v894
  %v1217 = vunpack.c.h.b16 %v894
  %v1218 = vunpack.c.l.b16 %v895
  %v1219 = vunpack.c.h.b16 %v895
  %v1220 = vunpack.c.l.b16 %v896
  %v1221 = vunpack.c.h.b16 %v896
  %v1222 = vunpack.c.l.b16 %v897
  %v1223 = vunpack.c.h.b16 %v897
  %v1224 = vunpack.c.l.b16 %v898
  %v1225 = vunpack.c.h.b16 %v898
  %v1226 = vunpack.c.l.b16 %v899
  %v1227 = vunpack.c.h.b16 %v899
  %v1228 = vunpack.c.l.b16 %v900
  %v1229 = vunpack.c.h.b16 %v900
  %v1230 = vunpack.c.l.b16 %v901
  %v1231 = vunpack.c.h.b16 %v901
  %v1232 = vunpack.c.l.b16 %v902
  %v1233 = vunpack.c.h.b16 %v902
  %v1234 = vunpack.c.l.b16 %v903
  %v1235 = vunpack.c.h.b16 %v903
  %v1236 = vunpack.c.l.b16 %v904
  %v1237 = vunpack.c.h.b16 %v904
  %v1238 = vunpack.c.l.b16 %v905
  %v1239 = vunpack.c.h.b16 %v905
  %v1240 = vunpack.c.l.b16 %v906
  %v1241 = vunpack.c.h.b16 %v906
  %v1242 = vunpack.c.l.b16 %v907
  %v1243 = vunpack.c.h.b16 %v907
  %v1244 = vunpack.c.l.b16 %v908
  %v1245 = vunpack.c.h.b16 %v908
  %v1246 = vunpack.c.l.b16 %v909
  %v1247 = vunpack.c.h.b16 %v909
  %v1248 = vunpack.c.l.b16 %v910
  %v1249 = vunpack.c.h.b16 %v910
  %v1250 = vunpack.c.l.b16 %v911
  %v1251 = vunpack.c.h.b16 %v911
  %v1252 = vunpack.c.l.b16 %v912
  %v1253 = vunpack.c.h.b16 %v912
  %v1254 = vunpack.c.l.b16 %v913
  %v1255 = vunpack.c.h.b16 %v913
  %v1256 = vunpack.c.l.b16 %v914
  %v1257 = vunpack.c.h.b16 %v914
  %v1258 = vunpack.c.l.b16 %v915
  %v1259 = vunpack.c.h.b16 %v915
  %v1260 = vunpack.c.l.b16 %v916
  %v1261 = vunpack.c.h.b16 %v916
  %v1262 = vunpack.c.l.b16 %v917
  %v1263 = vunpack.c.h.b16 %v917
  %v1264 = vunpack.c.l.b16 %v918
  %v1265 = vunpack.c.h.b16 %v918
  %v1266 = vunpack.c.l.b16 %v919
  %v1267 = vunpack.c.h.b16 %v919
  %v1268 = vunpack.c.l.b16 %v920
  %v1269 = vunpack.c.h.b16 %v920
  %v1270 = vunpack.c.l.b16 %v921
  %v1271 = vunpack.c.h.b16 %v921
  %v1272 = vunpack.c.l.b16 %v922
  %v1273 = vunpack.c.h.b16 %v922
  %v1274 = vunpack.c.l.b16 %v923
  %v1275 = vunpack.c.h.b16 %v923
  %v1276 = vunpack.c.l.b16 %v924
  %v1277 = vunpack.c.h.b16 %v924
  %v1278 = vunpack.c.l.b16 %v925
  %v1279 = vunpack.c.h.b16 %v925
  %v1280 = vunpack.c.l.b16 %v926
  %v1281 = vunpack.c.h.b16 %v926
  %v1282 = vunpack.c.l.b16 %v927
  %v1283 = vunpack.c.h.b16 %v927
  %v1284 = vunpack.c.l.b16 %v928
  %v1285 = vunpack.c.h.b16 %v928
  %v1286 = vunpack.c.l.b16 %v929
  %v1287 = vunpack.c.h.b16 %v929
  %v1288 = vunpack.c.l.b16 %v930
  %v1289 = vunpack.c.h.b16 %v930
  %v1290 = vunpack.c.l.b16 %v931
  %v1291 = vunpack.c.h.b16 %v931
  %v1292 = vunpack.c.l.b16 %v932
  %v1293 = vunpack.c.h.b16 %v932
  %v1294 = vunpack.c.l.b16 %v933
  %v1295 = vunpack.c.h.b16 %v933
  %v1296 = vunpack.c.l.b16 %v934
  %v1297 = vunpack.c.h.b16 %v934
  %v1298 = vunpack.c.l.b16 %v935
  %v1299 = vunpack.c.h.b16 %v935
  %v1300 = vunpack.c.l.b16 %v936
  %v1301 = vunpack.c.h.b16 %v936
  %v1302 = vunpack.c.l.b16 %v937
  %v1303 = vunpack.c.h.b16 %v937
  %v1304 = vunpack.c.l.b16 %v938
  %v1305 = vunpack.c.h.b16 %v938
  %v1306 = vunpack.c.l.b16 %v939
  %v1307 = vunpack.c.h.b16 %v939
  %v1308 = vunpack.c.l.b16 %v940
  %v1309 = vunpack.c.h.b16 %v940
  %v1310 = vunpack.c.l.b16 %v941
  %v1311 = vunpack.c.h.b16 %v941
  %v1312 = vunpack.c.l.b16 %v942
  %v1313 = vunpack.c.h.b16 %v942
  %v1314 = vunpack.c.l.b16 %v943
  %v1315 = vunpack.c.h.b16 %v943
  %v1316 = vunpack.c.l.b16 %v944
  %v1317 = vunpack.c.h.b16 %v944
  %v1318 = vunpack.c.l.b16 %v945
  %v1319 = vunpack.c.h.b16 %v945
  %v1320 = vunpack.c.l.b16 %v946
  %v1321 = vunpack.c.h.b16 %v946
  %v1322 = vunpack.c.l.b16 %v947
  %v1323 = vunpack.c.h.b16 %v947
  %v1324 = vunpack.c.l.b16 %v948
  %v1325 = vunpack.c.h.b16 %v948
  %v1326 = vunpack.c.l.b16 %v949
  %v1327 = vunpack.c.h.b16 %v949
  %v1328 = vunpack.c.l.b16 %v950
  %v1329 = vunpack.c.h.b16 %v950
  %v1330 = vunpack.c.l.b16 %v951
  %v1331 = vunpack.c.h.b16 %v951
  %v1332 = vunpack.c.l.b16 %v952
  %v1333 = vunpack.c.h.b16 %v952
  %v1334 = vunpack.c.l.b16 %v953
  %v1335 = vunpack.c.h.b16 %v953
  %v1336 = vunpack.c.l.b16 %v954
  %v1337 = vunpack.c.h.b16 %v954
  %v1338 = vunpack.c.l.b16 %v955
  %v1339 = vunpack.c.h.b16 %v955
  %v1340 = vpack.c.b16 %v1092, %v1084
  %v1341 = vpack.c.b16 %v1093, %v1085
  %v1342 = vpack.c.b16 %v1094, %v1086
  %v1343 = vpack.c.b16 %v1095, %v1087
  %v1344 = vpack.c.b16 %v1096, %v1088
  %v1345 = vpack.c.b16 %v1097, %v1089
  %v1346 = vpack.c.b16 %v1098, %v1090
  %v1347 = vpack.c.b16 %v1099, %v1091
  %v1348 = vpack.c.b16 %v1108, %v1100
  %v1349 = vpack.c.b16 %v1109, %v1101
  %v1350 = vpack.c.b16 %v1110, %v1102
  %v1351 = vpack.c.b16 %v1111, %v1103
  %v1352 = vpack.c.b16 %v1112, %v1104
  %v1353 = vpack.c.b16 %v1113, %v1105
  %v1354 = vpack.c.b16 %v1114, %v1106
  %v1355 = vpack.c.b16 %v1115, %v1107
  %v1356 = vpack.c.b16 %v1124, %v1116
  %v1357 = vpack.c.b16 %v1125, %v1117
  %v1358 = vpack.c.b16 %v1126, %v1118
  %v1359 = vpack.c.b16 %v1127, %v1119
  %v1360 = vpack.c.b16 %v1128, %v1120
  %v1361 = vpack.c.b16 %v1129, %v1121
  %v1362 = vpack.c.b16 %v1130, %v1122
  %v1363 = vpack.c.b16 %v1131, %v1123
  %v1364 = vpack.c.b16 %v1140, %v1132
  %v1365 = vpack.c.b16 %v1141, %v1133
  %v1366 = vpack.c.b16 %v1142, %v1134
  %v1367 = vpack.c.b16 %v1143, %v1135
  %v1368 = vpack.c.b16 %v1144, %v1136
  %v1369 = vpack.c.b16 %v1145, %v1137
  %v1370 = vpack.c.b16 %v1146, %v1138
  %v1371 = vpack.c.b16 %v1147, %v1139
  %v1372 = vpack.c.b16 %v1156, %v1148
  %v1373 = vpack.c.b16 %v1157, %v1149
  %v1374 = vpack.c.b16 %v1158, %v1150
  %v1375 = vpack.c.b16 %v1159, %v1151
  %v1376 = vpack.c.b16 %v1160, %v1152
  %v1377 = vpack.c.b16 %v1161, %v1153
  %v1378 = vpack.c.b16 %v1162, %v1154
  %v1379 = vpack.c.b16 %v1163, %v1155
  %v1380 = vpack.c.b16 %v1172, %v1164
  %v1381 = vpack.c.b16 %v1173, %v1165
  %v1382 = vpack.c.b16 %v1174, %v1166
  %v1383 = vpack.c.b16 %v1175, %v1167
  %v1384 = vpack.c.b16 %v1176, %v1168
  %v1385 = vpack.c.b16 %v1177, %v1169
  %v1386 = vpack.c.b16 %v1178, %v1170
  %v1387 = vpack.c.b16 %v1179, %v1171
  %v1388 = vpack.c.b16 %v1188, %v1180
  %v1389 = vpack.c.b16 %v1189, %v1181
  %v1390 = vpack.c.b16 %v1190, %v1182
  %v1391 = vpack.c.b16 %v1191, %v1183
  %v1392 = vpack.c.b16 %v1192, %v1184
  %v1393 = vpack.c.b16 %v1193, %v1185
  %v1394 = vpack.c.b16 %v1194, %v1186
  %v1395 = vpack.c.b16 %v1195, %v1187
  %v1396 = vpack.c.b16 %v1204, %v1196
  %v1397 = vpack.c.b16 %v1205, %v1197
  %v1398 = vpack.c.b16 %v1206, %v1198
  %v1399 = vpack.c.b16 %v1207, %v1199
  %v1400 = vpack.c.b16 %v1208, %v1200
  %v1401 = vpack.c.b16 %v1209, %v1201
  %v1402 = vpack.c.b16 %v1210, %v1202
  %v1403 = vpack.c.b16 %v1211, %v1203
  %v1404 = vpack.c.b16 %v1220, %v1212
  %v1405 = vpack.c.b16 %v1221, %v1213
  %v1406 = vpack.c.b16 %v1222, %v1214
  %v1407 = vpack.c.b16 %v1223, %v1215
  %v1408 = vpack.c.b16 %v1224, %v1216
  %v1409 = vpack.c.b16 %v1225, %v1217
  %v1410 = vpack.c.b16 %v1226, %v1218
  %v1411 = vpack.c.b16 %v1227, %v1219
  %v1412 = vpack.c.b16 %v1236, %v1228
  %v1413 = vpack.c.b16 %v1237, %v1229
  %v1414 = vpack.c.b16 %v1238, %v1230
  %v1415 = vpack.c.b16 %v1239, %v1231
  %v1416 = vpack.c.b16 %v1240, %v1232
  %v1417 = vpack.c.b16 %v1241, %v1233
  %v1418 = vpack.c.b16 %v1242, %v1234
  %v1419 = vpack.c.b16 %v1243, %v1235
  %v1420 = vpack.c.b16 %v1252, %v1244
  %v1421 = vpack.c.b16 %v1253, %v1245
  %v1422 = vpack.c.b16 %v1254, %v1246
  %v1423 = vpack.c.b16 %v1255, %v1247
  %v1424 = vpack.c.b16 %v1256, %v1248
  %v1425 = vpack.c.b16 %v1257, %v1249
  %v1426 = vpack.c.b16 %v1258, %v1250
  %v1427 = vpack.c.b16 %v1259, %v1251
  %v1428 = vpack.c.b16 %v1268, %v1260
  %v1429 = vpack.c.b16 %v1269, %v1261
  %v1430 = vpack.c.b16 %v1270, %v1262
  %v1431 = vpack.c.b16 %v1271, %v1263
  %v1432 = vpack.c.b16 %v1272, %v1264
  %v1433 = vpack.c.b16 %v1273, %v1265
  %v1434 = vpack.c.b16 %v1274, %v1266
  %v1435 = vpack.c.b16 %v1275, %v1267
  %v1436 = vpack.c.b16 %v1284, %v1276
  %v1437 = vpack.c.b16 %v1285, %v1277
  %v1438 = vpack.c.b16 %v1286, %v1278
  %v1439 = vpack.c.b16 %v1287, %v1279
  %v1440 = vpack.c.b16 %v1288, %v1280
  %v1441 = vpack.c.b16 %v1289, %v1281
  %v1442 = vpack.c.b16 %v1290, %v1282
  %v1443 = vpack.c.b16 %v1291, %v1283
  %v1444 = vpack.c.b16 %v1300, %v1292
  %v1445 = vpack.c.b16 %v1301, %v1293
  %v1446 = vpack.c.b16 %v1302, %v1294
  %v1447 = vpack.c.b16 %v1303, %v1295
  %v1448 = vpack.c.b16 %v1304, %v1296
  %v1449 = vpack.c.b16 %v1305, %v1297
  %v1450 = vpack.c.b16 %v1306, %v1298
  %v1451 = vpack.c.b16 %v1307, %v1299
  %v1452 = vpack.c.b16 %v1316, %v1308
  %v1453 = vpack.c.b16 %v1317, %v1309
  %v1454 = vpack.c.b16 %v1318, %v1310
  %v1455 = vpack.c.b16 %v1319, %v1311
  %v1456 = vpack.c.b16 %v1320, %v1312
  %v1457 = vpack.c.b16 %v1321, %v1313
  %v1458 = vpack.c.b16 %v1322, %v1314
  %v1459 = vpack.c.b16 %v1323, %v1315
  %v1460 = vpack.c.b16 %v1332, %v1324
  %v1461 = vpack.c.b16 %v1333, %v1325
  %v1462 = vpack.c.b16 %v1334, %v1326
  %v1463 = vpack.c.b16 %v1335, %v1327
  %v1464 = vpack.c.b16 %v1336, %v1328
  %v1465 = vpack.c.b16 %v1337, %v1329
  %v1466 = vpack.c.b16 %v1338, %v1330
  %v1467 = vpack.c.b16 %v1339, %v1331
  %1596 = vmatpush.bf16.msra.mxu0 %v1396
  %1597 = vmatpush.bf16.msra.mxu0 %v1388
  %1598 = vmatpush.bf16.msra.mxu0 %v1380
  %1599 = vmatpush.bf16.msra.mxu0 %v1372
  %1600 = vmatpush.bf16.msra.mxu0 %v1364
  %1601 = vmatpush.bf16.msra.mxu0 %v1356
  %1602 = vmatpush.bf16.msra.mxu0 %v1348
  %1603 = vmatpush.bf16.msra.mxu0 %v1340
  %1604 = vmatmul.bf16.gmra.mxu0 %v827
  %v1605 = vpop.f32.mrf.mxu0
  %v1606 = vadd.f32 0.0, %v1605
  %v1607 = vpop.f32.mrf.mxu0
  %1608 = vdwg.mxu0
  %1609 = vmatpush.bf16.msra.mxu0 %v1460
  %1610 = vmatpush.bf16.msra.mxu0 %v1452
  %1611 = vmatpush.bf16.msra.mxu0 %v1444
  %1612 = vmatpush.bf16.msra.mxu0 %v1436
  %1613 = vmatpush.bf16.msra.mxu0 %v1428
  %1614 = vmatpush.bf16.msra.mxu0 %v1420
  %1615 = vmatpush.bf16.msra.mxu0 %v1412
  %1616 = vmatpush.bf16.msra.mxu0 %v1404
  %1617 = vmatmul.bf16.gmra.mxu0 %v827
  %v1618 = vpop.f32.mrf.mxu0
  %v1619 = vadd.f32 %v1606, %v1618
  %v1620 = vpop.f32.mrf.mxu0
  %1621 = vdwg.mxu0
  %1622 = vmatpush.bf16.msra.mxu0 %v1397
  %1623 = vmatpush.bf16.msra.mxu0 %v1389
  %1624 = vmatpush.bf16.msra.mxu0 %v1381
  %1625 = vmatpush.bf16.msra.mxu0 %v1373
  %1626 = vmatpush.bf16.msra.mxu0 %v1365
  %1627 = vmatpush.bf16.msra.mxu0 %v1357
  %1628 = vmatpush.bf16.msra.mxu0 %v1349
  %1629 = vmatpush.bf16.msra.mxu0 %v1341
  %1630 = vmatmul.bf16.gmra.mxu0 %v827
  %v1631 = vpop.f32.mrf.mxu0
  %v1632 = vadd.f32 0.0, %v1631
  %v1633 = vpop.f32.mrf.mxu0
  %1634 = vdwg.mxu0
  %1635 = vmatpush.bf16.msra.mxu0 %v1461
  %1636 = vmatpush.bf16.msra.mxu0 %v1453
  %1637 = vmatpush.bf16.msra.mxu0 %v1445
  %1638 = vmatpush.bf16.msra.mxu0 %v1437
  %1639 = vmatpush.bf16.msra.mxu0 %v1429
  %1640 = vmatpush.bf16.msra.mxu0 %v1421
  %1641 = vmatpush.bf16.msra.mxu0 %v1413
  %1642 = vmatpush.bf16.msra.mxu0 %v1405
  %1643 = vmatmul.bf16.gmra.mxu0 %v827
  %v1644 = vpop.f32.mrf.mxu0
  %v1645 = vadd.f32 %v1632, %v1644
  %v1646 = vpop.f32.mrf.mxu0
  %1647 = vdwg.mxu0
  %1648 = vmatpush.bf16.msra.mxu0 %v1398
  %1649 = vmatpush.bf16.msra.mxu0 %v1390
  %1650 = vmatpush.bf16.msra.mxu0 %v1382
  %1651 = vmatpush.bf16.msra.mxu0 %v1374
  %1652 = vmatpush.bf16.msra.mxu0 %v1366
  %1653 = vmatpush.bf16.msra.mxu0 %v1358
  %1654 = vmatpush.bf16.msra.mxu0 %v1350
  %1655 = vmatpush.bf16.msra.mxu0 %v1342
  %1656 = vmatmul.bf16.gmra.mxu0 %v827
  %v1657 = vpop.f32.mrf.mxu0
  %v1658 = vadd.f32 0.0, %v1657
  %v1659 = vpop.f32.mrf.mxu0
  %1660 = vdwg.mxu0
  %1661 = vmatpush.bf16.msra.mxu0 %v1462
  %1662 = vmatpush.bf16.msra.mxu0 %v1454
  %1663 = vmatpush.bf16.msra.mxu0 %v1446
  %1664 = vmatpush.bf16.msra.mxu0 %v1438
  %1665 = vmatpush.bf16.msra.mxu0 %v1430
  %1666 = vmatpush.bf16.msra.mxu0 %v1422
  %1667 = vmatpush.bf16.msra.mxu0 %v1414
  %1668 = vmatpush.bf16.msra.mxu0 %v1406
  %1669 = vmatmul.bf16.gmra.mxu0 %v827
  %v1670 = vpop.f32.mrf.mxu0
  %v1671 = vadd.f32 %v1658, %v1670
  %v1672 = vpop.f32.mrf.mxu0
  %1673 = vdwg.mxu0
  %1674 = vmatpush.bf16.msra.mxu0 %v1399
  %1675 = vmatpush.bf16.msra.mxu0 %v1391
  %1676 = vmatpush.bf16.msra.mxu0 %v1383
  %1677 = vmatpush.bf16.msra.mxu0 %v1375
  %1678 = vmatpush.bf16.msra.mxu0 %v1367
  %1679 = vmatpush.bf16.msra.mxu0 %v1359
  %1680 = vmatpush.bf16.msra.mxu0 %v1351
  %1681 = vmatpush.bf16.msra.mxu0 %v1343
  %1682 = vmatmul.bf16.gmra.mxu0 %v827
  %v1683 = vpop.f32.mrf.mxu0
  %v1684 = vadd.f32 0.0, %v1683
  %v1685 = vpop.f32.mrf.mxu0
  %1686 = vdwg.mxu0
  %1687 = vmatpush.bf16.msra.mxu0 %v1463
  %1688 = vmatpush.bf16.msra.mxu0 %v1455
  %1689 = vmatpush.bf16.msra.mxu0 %v1447
  %1690 = vmatpush.bf16.msra.mxu0 %v1439
  %1691 = vmatpush.bf16.msra.mxu0 %v1431
  %1692 = vmatpush.bf16.msra.mxu0 %v1423
  %1693 = vmatpush.bf16.msra.mxu0 %v1415
  %1694 = vmatpush.bf16.msra.mxu0 %v1407
  %1695 = vmatmul.bf16.gmra.mxu0 %v827
  %v1696 = vpop.f32.mrf.mxu0
  %v1697 = vadd.f32 %v1684, %v1696
  %v1698 = vpop.f32.mrf.mxu0
  %1699 = vdwg.mxu0
  %1700 = vmatpush.bf16.msra.mxu0 %v1400
  %1701 = vmatpush.bf16.msra.mxu0 %v1392
  %1702 = vmatpush.bf16.msra.mxu0 %v1384
  %1703 = vmatpush.bf16.msra.mxu0 %v1376
  %1704 = vmatpush.bf16.msra.mxu0 %v1368
  %1705 = vmatpush.bf16.msra.mxu0 %v1360
  %1706 = vmatpush.bf16.msra.mxu0 %v1352
  %1707 = vmatpush.bf16.msra.mxu0 %v1344
  %1708 = vmatmul.bf16.gmra.mxu0 %v827
  %v1709 = vpop.f32.mrf.mxu0
  %v1710 = vadd.f32 0.0, %v1709
  %v1711 = vpop.f32.mrf.mxu0
  %1712 = vdwg.mxu0
  %1713 = vmatpush.bf16.msra.mxu0 %v1464
  %1714 = vmatpush.bf16.msra.mxu0 %v1456
  %1715 = vmatpush.bf16.msra.mxu0 %v1448
  %1716 = vmatpush.bf16.msra.mxu0 %v1440
  %1717 = vmatpush.bf16.msra.mxu0 %v1432
  %1718 = vmatpush.bf16.msra.mxu0 %v1424
  %1719 = vmatpush.bf16.msra.mxu0 %v1416
  %1720 = vmatpush.bf16.msra.mxu0 %v1408
  %1721 = vmatmul.bf16.gmra.mxu0 %v827
  %v1722 = vpop.f32.mrf.mxu0
  %v1723 = vadd.f32 %v1710, %v1722
  %v1724 = vpop.f32.mrf.mxu0
  %1725 = vdwg.mxu0
  %1726 = vmatpush.bf16.msra.mxu0 %v1401
  %1727 = vmatpush.bf16.msra.mxu0 %v1393
  %1728 = vmatpush.bf16.msra.mxu0 %v1385
  %1729 = vmatpush.bf16.msra.mxu0 %v1377
  %1730 = vmatpush.bf16.msra.mxu0 %v1369
  %1731 = vmatpush.bf16.msra.mxu0 %v1361
  %1732 = vmatpush.bf16.msra.mxu0 %v1353
  %1733 = vmatpush.bf16.msra.mxu0 %v1345
  %1734 = vmatmul.bf16.gmra.mxu0 %v827
  %v1735 = vpop.f32.mrf.mxu0
  %v1736 = vadd.f32 0.0, %v1735
  %v1737 = vpop.f32.mrf.mxu0
  %1738 = vdwg.mxu0
  %1739 = vmatpush.bf16.msra.mxu0 %v1465
  %1740 = vmatpush.bf16.msra.mxu0 %v1457
  %1741 = vmatpush.bf16.msra.mxu0 %v1449
  %1742 = vmatpush.bf16.msra.mxu0 %v1441
  %1743 = vmatpush.bf16.msra.mxu0 %v1433
  %1744 = vmatpush.bf16.msra.mxu0 %v1425
  %1745 = vmatpush.bf16.msra.mxu0 %v1417
  %1746 = vmatpush.bf16.msra.mxu0 %v1409
  %1747 = vmatmul.bf16.gmra.mxu0 %v827
  %v1748 = vpop.f32.mrf.mxu0
  %v1749 = vadd.f32 %v1736, %v1748
  %v1750 = vpop.f32.mrf.mxu0
  %1751 = vdwg.mxu0
  %1752 = vmatpush.bf16.msra.mxu0 %v1402
  %1753 = vmatpush.bf16.msra.mxu0 %v1394
  %1754 = vmatpush.bf16.msra.mxu0 %v1386
  %1755 = vmatpush.bf16.msra.mxu0 %v1378
  %1756 = vmatpush.bf16.msra.mxu0 %v1370
  %1757 = vmatpush.bf16.msra.mxu0 %v1362
  %1758 = vmatpush.bf16.msra.mxu0 %v1354
  %1759 = vmatpush.bf16.msra.mxu0 %v1346
  %1760 = vmatmul.bf16.gmra.mxu0 %v827
  %v1761 = vpop.f32.mrf.mxu0
  %v1762 = vadd.f32 0.0, %v1761
  %v1763 = vpop.f32.mrf.mxu0
  %1764 = vdwg.mxu0
  %1765 = vmatpush.bf16.msra.mxu0 %v1466
  %1766 = vmatpush.bf16.msra.mxu0 %v1458
  %1767 = vmatpush.bf16.msra.mxu0 %v1450
  %1768 = vmatpush.bf16.msra.mxu0 %v1442
  %1769 = vmatpush.bf16.msra.mxu0 %v1434
  %1770 = vmatpush.bf16.msra.mxu0 %v1426
  %1771 = vmatpush.bf16.msra.mxu0 %v1418
  %1772 = vmatpush.bf16.msra.mxu0 %v1410
  %1773 = vmatmul.bf16.gmra.mxu0 %v827
  %v1774 = vpop.f32.mrf.mxu0
  %v1775 = vadd.f32 %v1762, %v1774
  %v1776 = vpop.f32.mrf.mxu0
  %1777 = vdwg.mxu0
  %1778 = vmatpush.bf16.msra.mxu0 %v1403
  %1779 = vmatpush.bf16.msra.mxu0 %v1395
  %1780 = vmatpush.bf16.msra.mxu0 %v1387
  %1781 = vmatpush.bf16.msra.mxu0 %v1379
  %1782 = vmatpush.bf16.msra.mxu0 %v1371
  %1783 = vmatpush.bf16.msra.mxu0 %v1363
  %1784 = vmatpush.bf16.msra.mxu0 %v1355
  %1785 = vmatpush.bf16.msra.mxu0 %v1347
  %1786 = vmatmul.bf16.gmra.mxu0 %v827
  %v1787 = vpop.f32.mrf.mxu0
  %v1788 = vadd.f32 0.0, %v1787
  %v1789 = vpop.f32.mrf.mxu0
  %1790 = vdwg.mxu0
  %1791 = vmatpush.bf16.msra.mxu0 %v1467
  %1792 = vmatpush.bf16.msra.mxu0 %v1459
  %1793 = vmatpush.bf16.msra.mxu0 %v1451
  %1794 = vmatpush.bf16.msra.mxu0 %v1443
  %1795 = vmatpush.bf16.msra.mxu0 %v1435
  %1796 = vmatpush.bf16.msra.mxu0 %v1427
  %1797 = vmatpush.bf16.msra.mxu0 %v1419
  %1798 = vmatpush.bf16.msra.mxu0 %v1411
  %1799 = vmatmul.bf16.gmra.mxu0 %v827
  %v1800 = vpop.f32.mrf.mxu0
  %v1801 = vadd.f32 %v1788, %v1800
  %v1802 = vpop.f32.mrf.mxu0
  %1803 = vdwg.mxu0
  %v1804 = vld [vmem:[#allocation2] sm:$0xff]
  %v1805 = vld [vmem:[#allocation2 + $0x8] sm:$0xff]
  %v1806 = vld [vmem:[#allocation2 + $0x10] sm:$0xff]
  %v1807 = vld [vmem:[#allocation2 + $0x18] sm:$0xff]
  %v1808 = vadd.f32 %v1804, %v1619
  %v1809 = vadd.f32 %v1805, %v1645
  %v1810 = vadd.f32 %v1806, %v1671
  %v1811 = vadd.f32 %v1807, %v1697
  %s1812 = scalar_lea.vmem [#allocation2], 448
  %v1813 = vld [vmem:[%s1812 + $0x20] sm:$0xff]
  %v1814 = vld [vmem:[%s1812 + $0x28] sm:$0xff]
  %v1815 = vld [vmem:[%s1812 + $0x30] sm:$0xff]
  %v1816 = vld [vmem:[%s1812 + $0x38] sm:$0xff]
  %v1817 = vadd.f32 %v1813, %v1723
  %v1818 = vadd.f32 %v1814, %v1749
  %v1819 = vadd.f32 %v1815, %v1775
  %v1820 = vadd.f32 %v1816, %v1801
  %v1821 = vxor.u32 %v1808, 2147483648
  %v1822 = vmul.f32 %v1821, 1.442695
  %v1823 = vpow.pop %v1822
  %v1824 = vadd.f32 %v1823, 1.0
  %v1825 = vrcp.pop %v1824
  %v1826 = vmul.f32 %v1824, %v1825
  %v1827 = vsub.f32 1.0, %v1826
  %v1828 = vmul.f32 %v1825, %v1827
  %v1829 = vadd.f32 %v1825, %v1828
  %vm1830 = vweird.f32 %v1824
  %vm1831 = vweird.f32 %v1825
  %vm1832 = vmor %vm1830, %vm1831
  %v1833 = vsel %vm1832, %v1825, %v1829
  %v1834 = vand.u32 2147483647, %v1824
  %vm1835 = vcmp.eq.f32.partialorder %v1834, 8.507059e+37
  %v1836 = vand.u32 %v1824, 2147483648
  %v1837 = vor.u32 1.1754944e-38, %v1836
  %v1838 = vsel %vm1835, %v1837, %v1833
  %v1839 = vmul.f32 1.0, %v1838
  %v1840 = vxor.u32 %v1809, 2147483648
  %v1841 = vmul.f32 %v1840, 1.442695
  %v1842 = vpow.pop %v1841
  %v1843 = vadd.f32 %v1842, 1.0
  %v1844 = vrcp.pop %v1843
  %v1845 = vmul.f32 %v1843, %v1844
  %v1846 = vsub.f32 1.0, %v1845
  %v1847 = vmul.f32 %v1844, %v1846
  %v1848 = vadd.f32 %v1844, %v1847
  %vm1849 = vweird.f32 %v1843
  %vm1850 = vweird.f32 %v1844
  %vm1851 = vmor %vm1849, %vm1850
  %v1852 = vsel %vm1851, %v1844, %v1848
  %v1853 = vand.u32 2147483647, %v1843
  %vm1854 = vcmp.eq.f32.partialorder %v1853, 8.507059e+37
  %v1855 = vand.u32 %v1843, 2147483648
  %v1856 = vor.u32 1.1754944e-38, %v1855
  %v1857 = vsel %vm1854, %v1856, %v1852
  %v1858 = vmul.f32 1.0, %v1857
  %v1859 = vtanh.pop %v1810
  %v1860 = vxor.u32 %v1811, 2147483648
  %v1861 = vmul.f32 %v1860, 1.442695
  %v1862 = vpow.pop %v1861
  %v1863 = vadd.f32 %v1862, 1.0
  %v1864 = vrcp.pop %v1863
  %v1865 = vmul.f32 %v1863, %v1864
  %v1866 = vsub.f32 1.0, %v1865
  %v1867 = vmul.f32 %v1864, %v1866
  %v1868 = vadd.f32 %v1864, %v1867
  %vm1869 = vweird.f32 %v1863
  %vm1870 = vweird.f32 %v1864
  %vm1871 = vmor %vm1869, %vm1870
  %v1872 = vsel %vm1871, %v1864, %v1868
  %v1873 = vand.u32 2147483647, %v1863
  %vm1874 = vcmp.eq.f32.partialorder %v1873, 8.507059e+37
  %v1875 = vand.u32 %v1863, 2147483648
  %v1876 = vor.u32 1.1754944e-38, %v1875
  %v1877 = vsel %vm1874, %v1876, %v1872
  %v1878 = vmul.f32 1.0, %v1877
  %v1879 = vmul.f32 %v1858, 0.0
  %v1880 = vmul.f32 %v1839, %v1859
  %v1881 = vadd.f32 %v1879, %v1880
  %v1882 = vtanh.pop %v1881
  %v1883 = vmul.f32 %v1878, %v1882
  %v1884 = vxor.u32 %v1817, 2147483648
  %v1885 = vmul.f32 %v1884, 1.442695
  %v1886 = vpow.pop %v1885
  %v1887 = vadd.f32 %v1886, 1.0
  %v1888 = vrcp.pop %v1887
  %v1889 = vmul.f32 %v1887, %v1888
  %v1890 = vsub.f32 1.0, %v1889
  %v1891 = vmul.f32 %v1888, %v1890
  %v1892 = vadd.f32 %v1888, %v1891
  %vm1893 = vweird.f32 %v1887
  %vm1894 = vweird.f32 %v1888
  %vm1895 = vmor %vm1893, %vm1894
  %v1896 = vsel %vm1895, %v1888, %v1892
  %v1897 = vand.u32 2147483647, %v1887
  %vm1898 = vcmp.eq.f32.partialorder %v1897, 8.507059e+37
  %v1899 = vand.u32 %v1887, 2147483648
  %v1900 = vor.u32 1.1754944e-38, %v1899
  %v1901 = vsel %vm1898, %v1900, %v1896
  %v1902 = vmul.f32 1.0, %v1901
  %v1903 = vxor.u32 %v1818, 2147483648
  %v1904 = vmul.f32 %v1903, 1.442695
  %v1905 = vpow.pop %v1904
  %v1906 = vadd.f32 %v1905, 1.0
  %v1907 = vrcp.pop %v1906
  %v1908 = vmul.f32 %v1906, %v1907
  %v1909 = vsub.f32 1.0, %v1908
  %v1910 = vmul.f32 %v1907, %v1909
  %v1911 = vadd.f32 %v1907, %v1910
  %vm1912 = vweird.f32 %v1906
  %vm1913 = vweird.f32 %v1907
  %vm1914 = vmor %vm1912, %vm1913
  %v1915 = vsel %vm1914, %v1907, %v1911
  %v1916 = vand.u32 2147483647, %v1906
  %vm1917 = vcmp.eq.f32.partialorder %v1916, 8.507059e+37
  %v1918 = vand.u32 %v1906, 2147483648
  %v1919 = vor.u32 1.1754944e-38, %v1918
  %v1920 = vsel %vm1917, %v1919, %v1915
  %v1921 = vmul.f32 1.0, %v1920
  %v1922 = vtanh.pop %v1819
  %v1923 = vxor.u32 %v1820, 2147483648
  %v1924 = vmul.f32 %v1923, 1.442695
  %v1925 = vpow.pop %v1924
  %v1926 = vadd.f32 %v1925, 1.0
  %v1927 = vrcp.pop %v1926
  %v1928 = vmul.f32 %v1926, %v1927
  %v1929 = vsub.f32 1.0, %v1928
  %v1930 = vmul.f32 %v1927, %v1929
  %v1931 = vadd.f32 %v1927, %v1930
  %vm1932 = vweird.f32 %v1926
  %vm1933 = vweird.f32 %v1927
  %vm1934 = vmor %vm1932, %vm1933
  %v1935 = vsel %vm1934, %v1927, %v1931
  %v1936 = vand.u32 2147483647, %v1926
  %vm1937 = vcmp.eq.f32.partialorder %v1936, 8.507059e+37
  %v1938 = vand.u32 %v1926, 2147483648
  %v1939 = vor.u32 1.1754944e-38, %v1938
  %v1940 = vsel %vm1937, %v1939, %v1935
  %v1941 = vmul.f32 1.0, %v1940
  %v1942 = vmul.f32 %v1921, 0.0
  %v1943 = vmul.f32 %v1902, %v1922
  %v1944 = vadd.f32 %v1942, %v1943
  %v1945 = vtanh.pop %v1944
  %v1946 = vmul.f32 %v1941, %v1945
  %1947 = vst [vmem:[#allocation3] sm:$0xff] %v1883
  %s1948 = scalar_lea.vmem [#allocation3], 112
  %1949 = vst [vmem:[%s1948 + $0x8] sm:$0xff] %v1946
  %v1950 = vpack.c.bf16 %v1883, %v1883
  %v1951 = vpack.c.bf16 %v1946, %v1946
  %v1952 = vld [vmem:[%s5] sm:$0xff]
  %v1953 = vld [vmem:[%s5 + $0x8] sm:$0xff]
  %v1954 = vld [vmem:[%s5 + $0x10] sm:$0xff]
  %v1955 = vld [vmem:[%s5 + $0x18] sm:$0xff]
  %v1956 = vld [vmem:[%s5 + $0x20] sm:$0xff]
  %v1957 = vld [vmem:[%s5 + $0x28] sm:$0xff]
  %v1958 = vld [vmem:[%s5 + $0x30] sm:$0xff]
  %v1959 = vld [vmem:[%s5 + $0x38] sm:$0xff]
  %v1960 = vld [vmem:[%s5 + $0x40] sm:$0xff]
  %v1961 = vld [vmem:[%s5 + $0x48] sm:$0xff]
  %v1962 = vld [vmem:[%s5 + $0x50] sm:$0xff]
  %v1963 = vld [vmem:[%s5 + $0x58] sm:$0xff]
  %v1964 = vld [vmem:[%s5 + $0x60] sm:$0xff]
  %v1965 = vld [vmem:[%s5 + $0x68] sm:$0xff]
  %v1966 = vld [vmem:[%s5 + $0x70] sm:$0xff]
  %v1967 = vld [vmem:[%s5 + $0x78] sm:$0xff]
  %v1968 = vld [vmem:[%s5 + $0x80] sm:$0xff]
  %v1969 = vld [vmem:[%s5 + $0x88] sm:$0xff]
  %v1970 = vld [vmem:[%s5 + $0x90] sm:$0xff]
  %v1971 = vld [vmem:[%s5 + $0x98] sm:$0xff]
  %v1972 = vld [vmem:[%s5 + $0xa0] sm:$0xff]
  %v1973 = vld [vmem:[%s5 + $0xa8] sm:$0xff]
  %v1974 = vld [vmem:[%s5 + $0xb0] sm:$0xff]
  %v1975 = vld [vmem:[%s5 + $0xb8] sm:$0xff]
  %v1976 = vld [vmem:[%s5 + $0xc0] sm:$0xff]
  %v1977 = vld [vmem:[%s5 + $0xc8] sm:$0xff]
  %v1978 = vld [vmem:[%s5 + $0xd0] sm:$0xff]
  %v1979 = vld [vmem:[%s5 + $0xd8] sm:$0xff]
  %v1980 = vld [vmem:[%s5 + $0xe0] sm:$0xff]
  %v1981 = vld [vmem:[%s5 + $0xe8] sm:$0xff]
  %v1982 = vld [vmem:[%s5 + $0xf0] sm:$0xff]
  %v1983 = vld [vmem:[%s5 + $0xf8] sm:$0xff]
  %v1984 = vld [vmem:[%s5 + $0x100] sm:$0xff]
  %v1985 = vld [vmem:[%s5 + $0x108] sm:$0xff]
  %v1986 = vld [vmem:[%s5 + $0x110] sm:$0xff]
  %v1987 = vld [vmem:[%s5 + $0x118] sm:$0xff]
  %v1988 = vld [vmem:[%s5 + $0x120] sm:$0xff]
  %v1989 = vld [vmem:[%s5 + $0x128] sm:$0xff]
  %v1990 = vld [vmem:[%s5 + $0x130] sm:$0xff]
  %v1991 = vld [vmem:[%s5 + $0x138] sm:$0xff]
  %v1992 = vld [vmem:[%s5 + $0x140] sm:$0xff]
  %v1993 = vld [vmem:[%s5 + $0x148] sm:$0xff]
  %v1994 = vld [vmem:[%s5 + $0x150] sm:$0xff]
  %v1995 = vld [vmem:[%s5 + $0x158] sm:$0xff]
  %v1996 = vld [vmem:[%s5 + $0x160] sm:$0xff]
  %v1997 = vld [vmem:[%s5 + $0x168] sm:$0xff]
  %v1998 = vld [vmem:[%s5 + $0x170] sm:$0xff]
  %v1999 = vld [vmem:[%s5 + $0x178] sm:$0xff]
  %v2000 = vld [vmem:[%s5 + $0x180] sm:$0xff]
  %v2001 = vld [vmem:[%s5 + $0x188] sm:$0xff]
  %v2002 = vld [vmem:[%s5 + $0x190] sm:$0xff]
  %v2003 = vld [vmem:[%s5 + $0x198] sm:$0xff]
  %v2004 = vld [vmem:[%s5 + $0x1a0] sm:$0xff]
  %v2005 = vld [vmem:[%s5 + $0x1a8] sm:$0xff]
  %v2006 = vld [vmem:[%s5 + $0x1b0] sm:$0xff]
  %v2007 = vld [vmem:[%s5 + $0x1b8] sm:$0xff]
  %v2008 = vld [vmem:[%s5 + $0x1c0] sm:$0xff]
  %v2009 = vld [vmem:[%s5 + $0x1c8] sm:$0xff]
  %v2010 = vld [vmem:[%s5 + $0x1d0] sm:$0xff]
  %v2011 = vld [vmem:[%s5 + $0x1d8] sm:$0xff]
  %v2012 = vld [vmem:[%s5 + $0x1e0] sm:$0xff]
  %v2013 = vld [vmem:[%s5 + $0x1e8] sm:$0xff]
  %v2014 = vld [vmem:[%s5 + $0x1f0] sm:$0xff]
  %v2015 = vld [vmem:[%s5 + $0x1f8] sm:$0xff]
  %v2016 = vld [vmem:[%s5 + $0x200] sm:$0xff]
  %v2017 = vld [vmem:[%s5 + $0x208] sm:$0xff]
  %v2018 = vld [vmem:[%s5 + $0x210] sm:$0xff]
  %v2019 = vld [vmem:[%s5 + $0x218] sm:$0xff]
  %v2020 = vld [vmem:[%s5 + $0x220] sm:$0xff]
  %v2021 = vld [vmem:[%s5 + $0x228] sm:$0xff]
  %v2022 = vld [vmem:[%s5 + $0x230] sm:$0xff]
  %v2023 = vld [vmem:[%s5 + $0x238] sm:$0xff]
  %v2024 = vld [vmem:[%s5 + $0x240] sm:$0xff]
  %v2025 = vld [vmem:[%s5 + $0x248] sm:$0xff]
  %v2026 = vld [vmem:[%s5 + $0x250] sm:$0xff]
  %v2027 = vld [vmem:[%s5 + $0x258] sm:$0xff]
  %v2028 = vld [vmem:[%s5 + $0x260] sm:$0xff]
  %v2029 = vld [vmem:[%s5 + $0x268] sm:$0xff]
  %v2030 = vld [vmem:[%s5 + $0x270] sm:$0xff]
  %v2031 = vld [vmem:[%s5 + $0x278] sm:$0xff]
  %v2032 = vld [vmem:[%s5 + $0x280] sm:$0xff]
  %v2033 = vld [vmem:[%s5 + $0x288] sm:$0xff]
  %v2034 = vld [vmem:[%s5 + $0x290] sm:$0xff]
  %v2035 = vld [vmem:[%s5 + $0x298] sm:$0xff]
  %v2036 = vld [vmem:[%s5 + $0x2a0] sm:$0xff]
  %v2037 = vld [vmem:[%s5 + $0x2a8] sm:$0xff]
  %v2038 = vld [vmem:[%s5 + $0x2b0] sm:$0xff]
  %v2039 = vld [vmem:[%s5 + $0x2b8] sm:$0xff]
  %v2040 = vld [vmem:[%s5 + $0x2c0] sm:$0xff]
  %v2041 = vld [vmem:[%s5 + $0x2c8] sm:$0xff]
  %v2042 = vld [vmem:[%s5 + $0x2d0] sm:$0xff]
  %v2043 = vld [vmem:[%s5 + $0x2d8] sm:$0xff]
  %v2044 = vld [vmem:[%s5 + $0x2e0] sm:$0xff]
  %v2045 = vld [vmem:[%s5 + $0x2e8] sm:$0xff]
  %v2046 = vld [vmem:[%s5 + $0x2f0] sm:$0xff]
  %v2047 = vld [vmem:[%s5 + $0x2f8] sm:$0xff]
  %v2048 = vld [vmem:[%s5 + $0x300] sm:$0xff]
  %v2049 = vld [vmem:[%s5 + $0x308] sm:$0xff]
  %v2050 = vld [vmem:[%s5 + $0x310] sm:$0xff]
  %v2051 = vld [vmem:[%s5 + $0x318] sm:$0xff]
  %v2052 = vld [vmem:[%s5 + $0x320] sm:$0xff]
  %v2053 = vld [vmem:[%s5 + $0x328] sm:$0xff]
  %v2054 = vld [vmem:[%s5 + $0x330] sm:$0xff]
  %v2055 = vld [vmem:[%s5 + $0x338] sm:$0xff]
  %v2056 = vld [vmem:[%s5 + $0x340] sm:$0xff]
  %v2057 = vld [vmem:[%s5 + $0x348] sm:$0xff]
  %v2058 = vld [vmem:[%s5 + $0x350] sm:$0xff]
  %v2059 = vld [vmem:[%s5 + $0x358] sm:$0xff]
  %v2060 = vld [vmem:[%s5 + $0x360] sm:$0xff]
  %v2061 = vld [vmem:[%s5 + $0x368] sm:$0xff]
  %v2062 = vld [vmem:[%s5 + $0x370] sm:$0xff]
  %v2063 = vld [vmem:[%s5 + $0x378] sm:$0xff]
  %v2064 = vld [vmem:[%s5 + $0x380] sm:$0xff]
  %v2065 = vld [vmem:[%s5 + $0x388] sm:$0xff]
  %v2066 = vld [vmem:[%s5 + $0x390] sm:$0xff]
  %v2067 = vld [vmem:[%s5 + $0x398] sm:$0xff]
  %v2068 = vld [vmem:[%s5 + $0x3a0] sm:$0xff]
  %v2069 = vld [vmem:[%s5 + $0x3a8] sm:$0xff]
  %v2070 = vld [vmem:[%s5 + $0x3b0] sm:$0xff]
  %v2071 = vld [vmem:[%s5 + $0x3b8] sm:$0xff]
  %v2072 = vld [vmem:[%s5 + $0x3c0] sm:$0xff]
  %v2073 = vld [vmem:[%s5 + $0x3c8] sm:$0xff]
  %v2074 = vld [vmem:[%s5 + $0x3d0] sm:$0xff]
  %v2075 = vld [vmem:[%s5 + $0x3d8] sm:$0xff]
  %v2076 = vld [vmem:[%s5 + $0x3e0] sm:$0xff]
  %v2077 = vld [vmem:[%s5 + $0x3e8] sm:$0xff]
  %v2078 = vld [vmem:[%s5 + $0x3f0] sm:$0xff]
  %v2079 = vld [vmem:[%s5 + $0x3f8] sm:$0xff]
  %v2208 = vunpack.c.l.b16 %v1952
  %v2209 = vunpack.c.h.b16 %v1952
  %v2210 = vunpack.c.l.b16 %v1953
  %v2211 = vunpack.c.h.b16 %v1953
  %v2212 = vunpack.c.l.b16 %v1954
  %v2213 = vunpack.c.h.b16 %v1954
  %v2214 = vunpack.c.l.b16 %v1955
  %v2215 = vunpack.c.h.b16 %v1955
  %v2216 = vunpack.c.l.b16 %v1956
  %v2217 = vunpack.c.h.b16 %v1956
  %v2218 = vunpack.c.l.b16 %v1957
  %v2219 = vunpack.c.h.b16 %v1957
  %v2220 = vunpack.c.l.b16 %v1958
  %v2221 = vunpack.c.h.b16 %v1958
  %v2222 = vunpack.c.l.b16 %v1959
  %v2223 = vunpack.c.h.b16 %v1959
  %v2224 = vunpack.c.l.b16 %v1960
  %v2225 = vunpack.c.h.b16 %v1960
  %v2226 = vunpack.c.l.b16 %v1961
  %v2227 = vunpack.c.h.b16 %v1961
  %v2228 = vunpack.c.l.b16 %v1962
  %v2229 = vunpack.c.h.b16 %v1962
  %v2230 = vunpack.c.l.b16 %v1963
  %v2231 = vunpack.c.h.b16 %v1963
  %v2232 = vunpack.c.l.b16 %v1964
  %v2233 = vunpack.c.h.b16 %v1964
  %v2234 = vunpack.c.l.b16 %v1965
  %v2235 = vunpack.c.h.b16 %v1965
  %v2236 = vunpack.c.l.b16 %v1966
  %v2237 = vunpack.c.h.b16 %v1966
  %v2238 = vunpack.c.l.b16 %v1967
  %v2239 = vunpack.c.h.b16 %v1967
  %v2240 = vunpack.c.l.b16 %v1968
  %v2241 = vunpack.c.h.b16 %v1968
  %v2242 = vunpack.c.l.b16 %v1969
  %v2243 = vunpack.c.h.b16 %v1969
  %v2244 = vunpack.c.l.b16 %v1970
  %v2245 = vunpack.c.h.b16 %v1970
  %v2246 = vunpack.c.l.b16 %v1971
  %v2247 = vunpack.c.h.b16 %v1971
  %v2248 = vunpack.c.l.b16 %v1972
  %v2249 = vunpack.c.h.b16 %v1972
  %v2250 = vunpack.c.l.b16 %v1973
  %v2251 = vunpack.c.h.b16 %v1973
  %v2252 = vunpack.c.l.b16 %v1974
  %v2253 = vunpack.c.h.b16 %v1974
  %v2254 = vunpack.c.l.b16 %v1975
  %v2255 = vunpack.c.h.b16 %v1975
  %v2256 = vunpack.c.l.b16 %v1976
  %v2257 = vunpack.c.h.b16 %v1976
  %v2258 = vunpack.c.l.b16 %v1977
  %v2259 = vunpack.c.h.b16 %v1977
  %v2260 = vunpack.c.l.b16 %v1978
  %v2261 = vunpack.c.h.b16 %v1978
  %v2262 = vunpack.c.l.b16 %v1979
  %v2263 = vunpack.c.h.b16 %v1979
  %v2264 = vunpack.c.l.b16 %v1980
  %v2265 = vunpack.c.h.b16 %v1980
  %v2266 = vunpack.c.l.b16 %v1981
  %v2267 = vunpack.c.h.b16 %v1981
  %v2268 = vunpack.c.l.b16 %v1982
  %v2269 = vunpack.c.h.b16 %v1982
  %v2270 = vunpack.c.l.b16 %v1983
  %v2271 = vunpack.c.h.b16 %v1983
  %v2272 = vunpack.c.l.b16 %v1984
  %v2273 = vunpack.c.h.b16 %v1984
  %v2274 = vunpack.c.l.b16 %v1985
  %v2275 = vunpack.c.h.b16 %v1985
  %v2276 = vunpack.c.l.b16 %v1986
  %v2277 = vunpack.c.h.b16 %v1986
  %v2278 = vunpack.c.l.b16 %v1987
  %v2279 = vunpack.c.h.b16 %v1987
  %v2280 = vunpack.c.l.b16 %v1988
  %v2281 = vunpack.c.h.b16 %v1988
  %v2282 = vunpack.c.l.b16 %v1989
  %v2283 = vunpack.c.h.b16 %v1989
  %v2284 = vunpack.c.l.b16 %v1990
  %v2285 = vunpack.c.h.b16 %v1990
  %v2286 = vunpack.c.l.b16 %v1991
  %v2287 = vunpack.c.h.b16 %v1991
  %v2288 = vunpack.c.l.b16 %v1992
  %v2289 = vunpack.c.h.b16 %v1992
  %v2290 = vunpack.c.l.b16 %v1993
  %v2291 = vunpack.c.h.b16 %v1993
  %v2292 = vunpack.c.l.b16 %v1994
  %v2293 = vunpack.c.h.b16 %v1994
  %v2294 = vunpack.c.l.b16 %v1995
  %v2295 = vunpack.c.h.b16 %v1995
  %v2296 = vunpack.c.l.b16 %v1996
  %v2297 = vunpack.c.h.b16 %v1996
  %v2298 = vunpack.c.l.b16 %v1997
  %v2299 = vunpack.c.h.b16 %v1997
  %v2300 = vunpack.c.l.b16 %v1998
  %v2301 = vunpack.c.h.b16 %v1998
  %v2302 = vunpack.c.l.b16 %v1999
  %v2303 = vunpack.c.h.b16 %v1999
  %v2304 = vunpack.c.l.b16 %v2000
  %v2305 = vunpack.c.h.b16 %v2000
  %v2306 = vunpack.c.l.b16 %v2001
  %v2307 = vunpack.c.h.b16 %v2001
  %v2308 = vunpack.c.l.b16 %v2002
  %v2309 = vunpack.c.h.b16 %v2002
  %v2310 = vunpack.c.l.b16 %v2003
  %v2311 = vunpack.c.h.b16 %v2003
  %v2312 = vunpack.c.l.b16 %v2004
  %v2313 = vunpack.c.h.b16 %v2004
  %v2314 = vunpack.c.l.b16 %v2005
  %v2315 = vunpack.c.h.b16 %v2005
  %v2316 = vunpack.c.l.b16 %v2006
  %v2317 = vunpack.c.h.b16 %v2006
  %v2318 = vunpack.c.l.b16 %v2007
  %v2319 = vunpack.c.h.b16 %v2007
  %v2320 = vunpack.c.l.b16 %v2008
  %v2321 = vunpack.c.h.b16 %v2008
  %v2322 = vunpack.c.l.b16 %v2009
  %v2323 = vunpack.c.h.b16 %v2009
  %v2324 = vunpack.c.l.b16 %v2010
  %v2325 = vunpack.c.h.b16 %v2010
  %v2326 = vunpack.c.l.b16 %v2011
  %v2327 = vunpack.c.h.b16 %v2011
  %v2328 = vunpack.c.l.b16 %v2012
  %v2329 = vunpack.c.h.b16 %v2012
  %v2330 = vunpack.c.l.b16 %v2013
  %v2331 = vunpack.c.h.b16 %v2013
  %v2332 = vunpack.c.l.b16 %v2014
  %v2333 = vunpack.c.h.b16 %v2014
  %v2334 = vunpack.c.l.b16 %v2015
  %v2335 = vunpack.c.h.b16 %v2015
  %v2336 = vunpack.c.l.b16 %v2016
  %v2337 = vunpack.c.h.b16 %v2016
  %v2338 = vunpack.c.l.b16 %v2017
  %v2339 = vunpack.c.h.b16 %v2017
  %v2340 = vunpack.c.l.b16 %v2018
  %v2341 = vunpack.c.h.b16 %v2018
  %v2342 = vunpack.c.l.b16 %v2019
  %v2343 = vunpack.c.h.b16 %v2019
  %v2344 = vunpack.c.l.b16 %v2020
  %v2345 = vunpack.c.h.b16 %v2020
  %v2346 = vunpack.c.l.b16 %v2021
  %v2347 = vunpack.c.h.b16 %v2021
  %v2348 = vunpack.c.l.b16 %v2022
  %v2349 = vunpack.c.h.b16 %v2022
  %v2350 = vunpack.c.l.b16 %v2023
  %v2351 = vunpack.c.h.b16 %v2023
  %v2352 = vunpack.c.l.b16 %v2024
  %v2353 = vunpack.c.h.b16 %v2024
  %v2354 = vunpack.c.l.b16 %v2025
  %v2355 = vunpack.c.h.b16 %v2025
  %v2356 = vunpack.c.l.b16 %v2026
  %v2357 = vunpack.c.h.b16 %v2026
  %v2358 = vunpack.c.l.b16 %v2027
  %v2359 = vunpack.c.h.b16 %v2027
  %v2360 = vunpack.c.l.b16 %v2028
  %v2361 = vunpack.c.h.b16 %v2028
  %v2362 = vunpack.c.l.b16 %v2029
  %v2363 = vunpack.c.h.b16 %v2029
  %v2364 = vunpack.c.l.b16 %v2030
  %v2365 = vunpack.c.h.b16 %v2030
  %v2366 = vunpack.c.l.b16 %v2031
  %v2367 = vunpack.c.h.b16 %v2031
  %v2368 = vunpack.c.l.b16 %v2032
  %v2369 = vunpack.c.h.b16 %v2032
  %v2370 = vunpack.c.l.b16 %v2033
  %v2371 = vunpack.c.h.b16 %v2033
  %v2372 = vunpack.c.l.b16 %v2034
  %v2373 = vunpack.c.h.b16 %v2034
  %v2374 = vunpack.c.l.b16 %v2035
  %v2375 = vunpack.c.h.b16 %v2035
  %v2376 = vunpack.c.l.b16 %v2036
  %v2377 = vunpack.c.h.b16 %v2036
  %v2378 = vunpack.c.l.b16 %v2037
  %v2379 = vunpack.c.h.b16 %v2037
  %v2380 = vunpack.c.l.b16 %v2038
  %v2381 = vunpack.c.h.b16 %v2038
  %v2382 = vunpack.c.l.b16 %v2039
  %v2383 = vunpack.c.h.b16 %v2039
  %v2384 = vunpack.c.l.b16 %v2040
  %v2385 = vunpack.c.h.b16 %v2040
  %v2386 = vunpack.c.l.b16 %v2041
  %v2387 = vunpack.c.h.b16 %v2041
  %v2388 = vunpack.c.l.b16 %v2042
  %v2389 = vunpack.c.h.b16 %v2042
  %v2390 = vunpack.c.l.b16 %v2043
  %v2391 = vunpack.c.h.b16 %v2043
  %v2392 = vunpack.c.l.b16 %v2044
  %v2393 = vunpack.c.h.b16 %v2044
  %v2394 = vunpack.c.l.b16 %v2045
  %v2395 = vunpack.c.h.b16 %v2045
  %v2396 = vunpack.c.l.b16 %v2046
  %v2397 = vunpack.c.h.b16 %v2046
  %v2398 = vunpack.c.l.b16 %v2047
  %v2399 = vunpack.c.h.b16 %v2047
  %v2400 = vunpack.c.l.b16 %v2048
  %v2401 = vunpack.c.h.b16 %v2048
  %v2402 = vunpack.c.l.b16 %v2049
  %v2403 = vunpack.c.h.b16 %v2049
  %v2404 = vunpack.c.l.b16 %v2050
  %v2405 = vunpack.c.h.b16 %v2050
  %v2406 = vunpack.c.l.b16 %v2051
  %v2407 = vunpack.c.h.b16 %v2051
  %v2408 = vunpack.c.l.b16 %v2052
  %v2409 = vunpack.c.h.b16 %v2052
  %v2410 = vunpack.c.l.b16 %v2053
  %v2411 = vunpack.c.h.b16 %v2053
  %v2412 = vunpack.c.l.b16 %v2054
  %v2413 = vunpack.c.h.b16 %v2054
  %v2414 = vunpack.c.l.b16 %v2055
  %v2415 = vunpack.c.h.b16 %v2055
  %v2416 = vunpack.c.l.b16 %v2056
  %v2417 = vunpack.c.h.b16 %v2056
  %v2418 = vunpack.c.l.b16 %v2057
  %v2419 = vunpack.c.h.b16 %v2057
  %v2420 = vunpack.c.l.b16 %v2058
  %v2421 = vunpack.c.h.b16 %v2058
  %v2422 = vunpack.c.l.b16 %v2059
  %v2423 = vunpack.c.h.b16 %v2059
  %v2424 = vunpack.c.l.b16 %v2060
  %v2425 = vunpack.c.h.b16 %v2060
  %v2426 = vunpack.c.l.b16 %v2061
  %v2427 = vunpack.c.h.b16 %v2061
  %v2428 = vunpack.c.l.b16 %v2062
  %v2429 = vunpack.c.h.b16 %v2062
  %v2430 = vunpack.c.l.b16 %v2063
  %v2431 = vunpack.c.h.b16 %v2063
  %v2432 = vunpack.c.l.b16 %v2064
  %v2433 = vunpack.c.h.b16 %v2064
  %v2434 = vunpack.c.l.b16 %v2065
  %v2435 = vunpack.c.h.b16 %v2065
  %v2436 = vunpack.c.l.b16 %v2066
  %v2437 = vunpack.c.h.b16 %v2066
  %v2438 = vunpack.c.l.b16 %v2067
  %v2439 = vunpack.c.h.b16 %v2067
  %v2440 = vunpack.c.l.b16 %v2068
  %v2441 = vunpack.c.h.b16 %v2068
  %v2442 = vunpack.c.l.b16 %v2069
  %v2443 = vunpack.c.h.b16 %v2069
  %v2444 = vunpack.c.l.b16 %v2070
  %v2445 = vunpack.c.h.b16 %v2070
  %v2446 = vunpack.c.l.b16 %v2071
  %v2447 = vunpack.c.h.b16 %v2071
  %v2448 = vunpack.c.l.b16 %v2072
  %v2449 = vunpack.c.h.b16 %v2072
  %v2450 = vunpack.c.l.b16 %v2073
  %v2451 = vunpack.c.h.b16 %v2073
  %v2452 = vunpack.c.l.b16 %v2074
  %v2453 = vunpack.c.h.b16 %v2074
  %v2454 = vunpack.c.l.b16 %v2075
  %v2455 = vunpack.c.h.b16 %v2075
  %v2456 = vunpack.c.l.b16 %v2076
  %v2457 = vunpack.c.h.b16 %v2076
  %v2458 = vunpack.c.l.b16 %v2077
  %v2459 = vunpack.c.h.b16 %v2077
  %v2460 = vunpack.c.l.b16 %v2078
  %v2461 = vunpack.c.h.b16 %v2078
  %v2462 = vunpack.c.l.b16 %v2079
  %v2463 = vunpack.c.h.b16 %v2079
  %v2464 = vpack.c.b16 %v2216, %v2208
  %v2465 = vpack.c.b16 %v2217, %v2209
  %v2466 = vpack.c.b16 %v2218, %v2210
  %v2467 = vpack.c.b16 %v2219, %v2211
  %v2468 = vpack.c.b16 %v2220, %v2212
  %v2469 = vpack.c.b16 %v2221, %v2213
  %v2470 = vpack.c.b16 %v2222, %v2214
  %v2471 = vpack.c.b16 %v2223, %v2215
  %v2472 = vpack.c.b16 %v2232, %v2224
  %v2473 = vpack.c.b16 %v2233, %v2225
  %v2474 = vpack.c.b16 %v2234, %v2226
  %v2475 = vpack.c.b16 %v2235, %v2227
  %v2476 = vpack.c.b16 %v2236, %v2228
  %v2477 = vpack.c.b16 %v2237, %v2229
  %v2478 = vpack.c.b16 %v2238, %v2230
  %v2479 = vpack.c.b16 %v2239, %v2231
  %v2480 = vpack.c.b16 %v2248, %v2240
  %v2481 = vpack.c.b16 %v2249, %v2241
  %v2482 = vpack.c.b16 %v2250, %v2242
  %v2483 = vpack.c.b16 %v2251, %v2243
  %v2484 = vpack.c.b16 %v2252, %v2244
  %v2485 = vpack.c.b16 %v2253, %v2245
  %v2486 = vpack.c.b16 %v2254, %v2246
  %v2487 = vpack.c.b16 %v2255, %v2247
  %v2488 = vpack.c.b16 %v2264, %v2256
  %v2489 = vpack.c.b16 %v2265, %v2257
  %v2490 = vpack.c.b16 %v2266, %v2258
  %v2491 = vpack.c.b16 %v2267, %v2259
  %v2492 = vpack.c.b16 %v2268, %v2260
  %v2493 = vpack.c.b16 %v2269, %v2261
  %v2494 = vpack.c.b16 %v2270, %v2262
  %v2495 = vpack.c.b16 %v2271, %v2263
  %v2496 = vpack.c.b16 %v2280, %v2272
  %v2497 = vpack.c.b16 %v2281, %v2273
  %v2498 = vpack.c.b16 %v2282, %v2274
  %v2499 = vpack.c.b16 %v2283, %v2275
  %v2500 = vpack.c.b16 %v2284, %v2276
  %v2501 = vpack.c.b16 %v2285, %v2277
  %v2502 = vpack.c.b16 %v2286, %v2278
  %v2503 = vpack.c.b16 %v2287, %v2279
  %v2504 = vpack.c.b16 %v2296, %v2288
  %v2505 = vpack.c.b16 %v2297, %v2289
  %v2506 = vpack.c.b16 %v2298, %v2290
  %v2507 = vpack.c.b16 %v2299, %v2291
  %v2508 = vpack.c.b16 %v2300, %v2292
  %v2509 = vpack.c.b16 %v2301, %v2293
  %v2510 = vpack.c.b16 %v2302, %v2294
  %v2511 = vpack.c.b16 %v2303, %v2295
  %v2512 = vpack.c.b16 %v2312, %v2304
  %v2513 = vpack.c.b16 %v2313, %v2305
  %v2514 = vpack.c.b16 %v2314, %v2306
  %v2515 = vpack.c.b16 %v2315, %v2307
  %v2516 = vpack.c.b16 %v2316, %v2308
  %v2517 = vpack.c.b16 %v2317, %v2309
  %v2518 = vpack.c.b16 %v2318, %v2310
  %v2519 = vpack.c.b16 %v2319, %v2311
  %v2520 = vpack.c.b16 %v2328, %v2320
  %v2521 = vpack.c.b16 %v2329, %v2321
  %v2522 = vpack.c.b16 %v2330, %v2322
  %v2523 = vpack.c.b16 %v2331, %v2323
  %v2524 = vpack.c.b16 %v2332, %v2324
  %v2525 = vpack.c.b16 %v2333, %v2325
  %v2526 = vpack.c.b16 %v2334, %v2326
  %v2527 = vpack.c.b16 %v2335, %v2327
  %v2528 = vpack.c.b16 %v2344, %v2336
  %v2529 = vpack.c.b16 %v2345, %v2337
  %v2530 = vpack.c.b16 %v2346, %v2338
  %v2531 = vpack.c.b16 %v2347, %v2339
  %v2532 = vpack.c.b16 %v2348, %v2340
  %v2533 = vpack.c.b16 %v2349, %v2341
  %v2534 = vpack.c.b16 %v2350, %v2342
  %v2535 = vpack.c.b16 %v2351, %v2343
  %v2536 = vpack.c.b16 %v2360, %v2352
  %v2537 = vpack.c.b16 %v2361, %v2353
  %v2538 = vpack.c.b16 %v2362, %v2354
  %v2539 = vpack.c.b16 %v2363, %v2355
  %v2540 = vpack.c.b16 %v2364, %v2356
  %v2541 = vpack.c.b16 %v2365, %v2357
  %v2542 = vpack.c.b16 %v2366, %v2358
  %v2543 = vpack.c.b16 %v2367, %v2359
  %v2544 = vpack.c.b16 %v2376, %v2368
  %v2545 = vpack.c.b16 %v2377, %v2369
  %v2546 = vpack.c.b16 %v2378, %v2370
  %v2547 = vpack.c.b16 %v2379, %v2371
  %v2548 = vpack.c.b16 %v2380, %v2372
  %v2549 = vpack.c.b16 %v2381, %v2373
  %v2550 = vpack.c.b16 %v2382, %v2374
  %v2551 = vpack.c.b16 %v2383, %v2375
  %v2552 = vpack.c.b16 %v2392, %v2384
  %v2553 = vpack.c.b16 %v2393, %v2385
  %v2554 = vpack.c.b16 %v2394, %v2386
  %v2555 = vpack.c.b16 %v2395, %v2387
  %v2556 = vpack.c.b16 %v2396, %v2388
  %v2557 = vpack.c.b16 %v2397, %v2389
  %v2558 = vpack.c.b16 %v2398, %v2390
  %v2559 = vpack.c.b16 %v2399, %v2391
  %v2560 = vpack.c.b16 %v2408, %v2400
  %v2561 = vpack.c.b16 %v2409, %v2401
  %v2562 = vpack.c.b16 %v2410, %v2402
  %v2563 = vpack.c.b16 %v2411, %v2403
  %v2564 = vpack.c.b16 %v2412, %v2404
  %v2565 = vpack.c.b16 %v2413, %v2405
  %v2566 = vpack.c.b16 %v2414, %v2406
  %v2567 = vpack.c.b16 %v2415, %v2407
  %v2568 = vpack.c.b16 %v2424, %v2416
  %v2569 = vpack.c.b16 %v2425, %v2417
  %v2570 = vpack.c.b16 %v2426, %v2418
  %v2571 = vpack.c.b16 %v2427, %v2419
  %v2572 = vpack.c.b16 %v2428, %v2420
  %v2573 = vpack.c.b16 %v2429, %v2421
  %v2574 = vpack.c.b16 %v2430, %v2422
  %v2575 = vpack.c.b16 %v2431, %v2423
  %v2576 = vpack.c.b16 %v2440, %v2432
  %v2577 = vpack.c.b16 %v2441, %v2433
  %v2578 = vpack.c.b16 %v2442, %v2434
  %v2579 = vpack.c.b16 %v2443, %v2435
  %v2580 = vpack.c.b16 %v2444, %v2436
  %v2581 = vpack.c.b16 %v2445, %v2437
  %v2582 = vpack.c.b16 %v2446, %v2438
  %v2583 = vpack.c.b16 %v2447, %v2439
  %v2584 = vpack.c.b16 %v2456, %v2448
  %v2585 = vpack.c.b16 %v2457, %v2449
  %v2586 = vpack.c.b16 %v2458, %v2450
  %v2587 = vpack.c.b16 %v2459, %v2451
  %v2588 = vpack.c.b16 %v2460, %v2452
  %v2589 = vpack.c.b16 %v2461, %v2453
  %v2590 = vpack.c.b16 %v2462, %v2454
  %v2591 = vpack.c.b16 %v2463, %v2455
  %2720 = vmatpush.bf16.msra.mxu0 %v2520
  %2721 = vmatpush.bf16.msra.mxu0 %v2512
  %2722 = vmatpush.bf16.msra.mxu0 %v2504
  %2723 = vmatpush.bf16.msra.mxu0 %v2496
  %2724 = vmatpush.bf16.msra.mxu0 %v2488
  %2725 = vmatpush.bf16.msra.mxu0 %v2480
  %2726 = vmatpush.bf16.msra.mxu0 %v2472
  %2727 = vmatpush.bf16.msra.mxu0 %v2464
  %2728 = vmatmul.bf16.gmra.mxu0 %v1950
  %v2729 = vpop.f32.mrf.mxu0
  %v2730 = vadd.f32 0.0, %v2729
  %v2731 = vpop.f32.mrf.mxu0
  %2732 = vdwg.mxu0
  %2733 = vmatpush.bf16.msra.mxu0 %v2584
  %2734 = vmatpush.bf16.msra.mxu0 %v2576
  %2735 = vmatpush.bf16.msra.mxu0 %v2568
  %2736 = vmatpush.bf16.msra.mxu0 %v2560
  %2737 = vmatpush.bf16.msra.mxu0 %v2552
  %2738 = vmatpush.bf16.msra.mxu0 %v2544
  %2739 = vmatpush.bf16.msra.mxu0 %v2536
  %2740 = vmatpush.bf16.msra.mxu0 %v2528
  %2741 = vmatmul.bf16.gmra.mxu0 %v1951
  %v2742 = vpop.f32.mrf.mxu0
  %v2743 = vadd.f32 %v2730, %v2742
  %v2744 = vpop.f32.mrf.mxu0
  %2745 = vdwg.mxu0
  %2746 = vmatpush.bf16.msra.mxu0 %v2521
  %2747 = vmatpush.bf16.msra.mxu0 %v2513
  %2748 = vmatpush.bf16.msra.mxu0 %v2505
  %2749 = vmatpush.bf16.msra.mxu0 %v2497
  %2750 = vmatpush.bf16.msra.mxu0 %v2489
  %2751 = vmatpush.bf16.msra.mxu0 %v2481
  %2752 = vmatpush.bf16.msra.mxu0 %v2473
  %2753 = vmatpush.bf16.msra.mxu0 %v2465
  %2754 = vmatmul.bf16.gmra.mxu0 %v1950
  %v2755 = vpop.f32.mrf.mxu0
  %v2756 = vadd.f32 0.0, %v2755
  %v2757 = vpop.f32.mrf.mxu0
  %2758 = vdwg.mxu0
  %2759 = vmatpush.bf16.msra.mxu0 %v2585
  %2760 = vmatpush.bf16.msra.mxu0 %v2577
  %2761 = vmatpush.bf16.msra.mxu0 %v2569
  %2762 = vmatpush.bf16.msra.mxu0 %v2561
  %2763 = vmatpush.bf16.msra.mxu0 %v2553
  %2764 = vmatpush.bf16.msra.mxu0 %v2545
  %2765 = vmatpush.bf16.msra.mxu0 %v2537
  %2766 = vmatpush.bf16.msra.mxu0 %v2529
  %2767 = vmatmul.bf16.gmra.mxu0 %v1951
  %v2768 = vpop.f32.mrf.mxu0
  %v2769 = vadd.f32 %v2756, %v2768
  %v2770 = vpop.f32.mrf.mxu0
  %2771 = vdwg.mxu0
  %2772 = vmatpush.bf16.msra.mxu0 %v2522
  %2773 = vmatpush.bf16.msra.mxu0 %v2514
  %2774 = vmatpush.bf16.msra.mxu0 %v2506
  %2775 = vmatpush.bf16.msra.mxu0 %v2498
  %2776 = vmatpush.bf16.msra.mxu0 %v2490
  %2777 = vmatpush.bf16.msra.mxu0 %v2482
  %2778 = vmatpush.bf16.msra.mxu0 %v2474
  %2779 = vmatpush.bf16.msra.mxu0 %v2466
  %2780 = vmatmul.bf16.gmra.mxu0 %v1950
  %v2781 = vpop.f32.mrf.mxu0
  %v2782 = vadd.f32 0.0, %v2781
  %v2783 = vpop.f32.mrf.mxu0
  %2784 = vdwg.mxu0
  %2785 = vmatpush.bf16.msra.mxu0 %v2586
  %2786 = vmatpush.bf16.msra.mxu0 %v2578
  %2787 = vmatpush.bf16.msra.mxu0 %v2570
  %2788 = vmatpush.bf16.msra.mxu0 %v2562
  %2789 = vmatpush.bf16.msra.mxu0 %v2554
  %2790 = vmatpush.bf16.msra.mxu0 %v2546
  %2791 = vmatpush.bf16.msra.mxu0 %v2538
  %2792 = vmatpush.bf16.msra.mxu0 %v2530
  %2793 = vmatmul.bf16.gmra.mxu0 %v1951
  %v2794 = vpop.f32.mrf.mxu0
  %v2795 = vadd.f32 %v2782, %v2794
  %v2796 = vpop.f32.mrf.mxu0
  %2797 = vdwg.mxu0
  %2798 = vmatpush.bf16.msra.mxu0 %v2523
  %2799 = vmatpush.bf16.msra.mxu0 %v2515
  %2800 = vmatpush.bf16.msra.mxu0 %v2507
  %2801 = vmatpush.bf16.msra.mxu0 %v2499
  %2802 = vmatpush.bf16.msra.mxu0 %v2491
  %2803 = vmatpush.bf16.msra.mxu0 %v2483
  %2804 = vmatpush.bf16.msra.mxu0 %v2475
  %2805 = vmatpush.bf16.msra.mxu0 %v2467
  %2806 = vmatmul.bf16.gmra.mxu0 %v1950
  %v2807 = vpop.f32.mrf.mxu0
  %v2808 = vadd.f32 0.0, %v2807
  %v2809 = vpop.f32.mrf.mxu0
  %2810 = vdwg.mxu0
  %2811 = vmatpush.bf16.msra.mxu0 %v2587
  %2812 = vmatpush.bf16.msra.mxu0 %v2579
  %2813 = vmatpush.bf16.msra.mxu0 %v2571
  %2814 = vmatpush.bf16.msra.mxu0 %v2563
  %2815 = vmatpush.bf16.msra.mxu0 %v2555
  %2816 = vmatpush.bf16.msra.mxu0 %v2547
  %2817 = vmatpush.bf16.msra.mxu0 %v2539
  %2818 = vmatpush.bf16.msra.mxu0 %v2531
  %2819 = vmatmul.bf16.gmra.mxu0 %v1951
  %v2820 = vpop.f32.mrf.mxu0
  %v2821 = vadd.f32 %v2808, %v2820
  %v2822 = vpop.f32.mrf.mxu0
  %2823 = vdwg.mxu0
  %2824 = vmatpush.bf16.msra.mxu0 %v2524
  %2825 = vmatpush.bf16.msra.mxu0 %v2516
  %2826 = vmatpush.bf16.msra.mxu0 %v2508
  %2827 = vmatpush.bf16.msra.mxu0 %v2500
  %2828 = vmatpush.bf16.msra.mxu0 %v2492
  %2829 = vmatpush.bf16.msra.mxu0 %v2484
  %2830 = vmatpush.bf16.msra.mxu0 %v2476
  %2831 = vmatpush.bf16.msra.mxu0 %v2468
  %2832 = vmatmul.bf16.gmra.mxu0 %v1950
  %v2833 = vpop.f32.mrf.mxu0
  %v2834 = vadd.f32 0.0, %v2833
  %v2835 = vpop.f32.mrf.mxu0
  %2836 = vdwg.mxu0
  %2837 = vmatpush.bf16.msra.mxu0 %v2588
  %2838 = vmatpush.bf16.msra.mxu0 %v2580
  %2839 = vmatpush.bf16.msra.mxu0 %v2572
  %2840 = vmatpush.bf16.msra.mxu0 %v2564
  %2841 = vmatpush.bf16.msra.mxu0 %v2556
  %2842 = vmatpush.bf16.msra.mxu0 %v2548
  %2843 = vmatpush.bf16.msra.mxu0 %v2540
  %2844 = vmatpush.bf16.msra.mxu0 %v2532
  %2845 = vmatmul.bf16.gmra.mxu0 %v1951
  %v2846 = vpop.f32.mrf.mxu0
  %v2847 = vadd.f32 %v2834, %v2846
  %v2848 = vpop.f32.mrf.mxu0
  %2849 = vdwg.mxu0
  %2850 = vmatpush.bf16.msra.mxu0 %v2525
  %2851 = vmatpush.bf16.msra.mxu0 %v2517
  %2852 = vmatpush.bf16.msra.mxu0 %v2509
  %2853 = vmatpush.bf16.msra.mxu0 %v2501
  %2854 = vmatpush.bf16.msra.mxu0 %v2493
  %2855 = vmatpush.bf16.msra.mxu0 %v2485
  %2856 = vmatpush.bf16.msra.mxu0 %v2477
  %2857 = vmatpush.bf16.msra.mxu0 %v2469
  %2858 = vmatmul.bf16.gmra.mxu0 %v1950
  %v2859 = vpop.f32.mrf.mxu0
  %v2860 = vadd.f32 0.0, %v2859
  %v2861 = vpop.f32.mrf.mxu0
  %2862 = vdwg.mxu0
  %2863 = vmatpush.bf16.msra.mxu0 %v2589
  %2864 = vmatpush.bf16.msra.mxu0 %v2581
  %2865 = vmatpush.bf16.msra.mxu0 %v2573
  %2866 = vmatpush.bf16.msra.mxu0 %v2565
  %2867 = vmatpush.bf16.msra.mxu0 %v2557
  %2868 = vmatpush.bf16.msra.mxu0 %v2549
  %2869 = vmatpush.bf16.msra.mxu0 %v2541
  %2870 = vmatpush.bf16.msra.mxu0 %v2533
  %2871 = vmatmul.bf16.gmra.mxu0 %v1951
  %v2872 = vpop.f32.mrf.mxu0
  %v2873 = vadd.f32 %v2860, %v2872
  %v2874 = vpop.f32.mrf.mxu0
  %2875 = vdwg.mxu0
  %2876 = vmatpush.bf16.msra.mxu0 %v2526
  %2877 = vmatpush.bf16.msra.mxu0 %v2518
  %2878 = vmatpush.bf16.msra.mxu0 %v2510
  %2879 = vmatpush.bf16.msra.mxu0 %v2502
  %2880 = vmatpush.bf16.msra.mxu0 %v2494
  %2881 = vmatpush.bf16.msra.mxu0 %v2486
  %2882 = vmatpush.bf16.msra.mxu0 %v2478
  %2883 = vmatpush.bf16.msra.mxu0 %v2470
  %2884 = vmatmul.bf16.gmra.mxu0 %v1950
  %v2885 = vpop.f32.mrf.mxu0
  %v2886 = vadd.f32 0.0, %v2885
  %v2887 = vpop.f32.mrf.mxu0
  %2888 = vdwg.mxu0
  %2889 = vmatpush.bf16.msra.mxu0 %v2590
  %2890 = vmatpush.bf16.msra.mxu0 %v2582
  %2891 = vmatpush.bf16.msra.mxu0 %v2574
  %2892 = vmatpush.bf16.msra.mxu0 %v2566
  %2893 = vmatpush.bf16.msra.mxu0 %v2558
  %2894 = vmatpush.bf16.msra.mxu0 %v2550
  %2895 = vmatpush.bf16.msra.mxu0 %v2542
  %2896 = vmatpush.bf16.msra.mxu0 %v2534
  %2897 = vmatmul.bf16.gmra.mxu0 %v1951
  %v2898 = vpop.f32.mrf.mxu0
  %v2899 = vadd.f32 %v2886, %v2898
  %v2900 = vpop.f32.mrf.mxu0
  %2901 = vdwg.mxu0
  %2902 = vmatpush.bf16.msra.mxu0 %v2527
  %2903 = vmatpush.bf16.msra.mxu0 %v2519
  %2904 = vmatpush.bf16.msra.mxu0 %v2511
  %2905 = vmatpush.bf16.msra.mxu0 %v2503
  %2906 = vmatpush.bf16.msra.mxu0 %v2495
  %2907 = vmatpush.bf16.msra.mxu0 %v2487
  %2908 = vmatpush.bf16.msra.mxu0 %v2479
  %2909 = vmatpush.bf16.msra.mxu0 %v2471
  %2910 = vmatmul.bf16.gmra.mxu0 %v1950
  %v2911 = vpop.f32.mrf.mxu0
  %v2912 = vadd.f32 0.0, %v2911
  %v2913 = vpop.f32.mrf.mxu0
  %2914 = vdwg.mxu0
  %2915 = vmatpush.bf16.msra.mxu0 %v2591
  %2916 = vmatpush.bf16.msra.mxu0 %v2583
  %2917 = vmatpush.bf16.msra.mxu0 %v2575
  %2918 = vmatpush.bf16.msra.mxu0 %v2567
  %2919 = vmatpush.bf16.msra.mxu0 %v2559
  %2920 = vmatpush.bf16.msra.mxu0 %v2551
  %2921 = vmatpush.bf16.msra.mxu0 %v2543
  %2922 = vmatpush.bf16.msra.mxu0 %v2535
  %2923 = vmatmul.bf16.gmra.mxu0 %v1951
  %v2924 = vpop.f32.mrf.mxu0
  %v2925 = vadd.f32 %v2912, %v2924
  %v2926 = vpop.f32.mrf.mxu0
  %2927 = vdwg.mxu0
  %s2928 = scalar_lea.vmem [#allocation2], 64
  %v2929 = vld [vmem:[%s2928] sm:$0xff]
  %v2930 = vld [vmem:[%s2928 + $0x8] sm:$0xff]
  %v2931 = vld [vmem:[%s2928 + $0x10] sm:$0xff]
  %v2932 = vld [vmem:[%s2928 + $0x18] sm:$0xff]
  %v2933 = vadd.f32 %v2929, %v2743
  %v2934 = vadd.f32 %v2930, %v2769
  %v2935 = vadd.f32 %v2931, %v2795
  %v2936 = vadd.f32 %v2932, %v2821
  %s2937 = scalar_lea.vmem [#allocation2], 384
  %v2938 = vld [vmem:[%s2937 + $0x20] sm:$0xff]
  %v2939 = vld [vmem:[%s2937 + $0x28] sm:$0xff]
  %v2940 = vld [vmem:[%s2937 + $0x30] sm:$0xff]
  %v2941 = vld [vmem:[%s2937 + $0x38] sm:$0xff]
  %v2942 = vadd.f32 %v2938, %v2847
  %v2943 = vadd.f32 %v2939, %v2873
  %v2944 = vadd.f32 %v2940, %v2899
  %v2945 = vadd.f32 %v2941, %v2925
  %v2946 = vxor.u32 %v2933, 2147483648
  %v2947 = vmul.f32 %v2946, 1.442695
  %v2948 = vpow.pop %v2947
  %v2949 = vadd.f32 %v2948, 1.0
  %v2950 = vrcp.pop %v2949
  %v2951 = vmul.f32 %v2949, %v2950
  %v2952 = vsub.f32 1.0, %v2951
  %v2953 = vmul.f32 %v2950, %v2952
  %v2954 = vadd.f32 %v2950, %v2953
  %vm2955 = vweird.f32 %v2949
  %vm2956 = vweird.f32 %v2950
  %vm2957 = vmor %vm2955, %vm2956
  %v2958 = vsel %vm2957, %v2950, %v2954
  %v2959 = vand.u32 2147483647, %v2949
  %vm2960 = vcmp.eq.f32.partialorder %v2959, 8.507059e+37
  %v2961 = vand.u32 %v2949, 2147483648
  %v2962 = vor.u32 1.1754944e-38, %v2961
  %v2963 = vsel %vm2960, %v2962, %v2958
  %v2964 = vmul.f32 1.0, %v2963
  %v2965 = vxor.u32 %v2934, 2147483648
  %v2966 = vmul.f32 %v2965, 1.442695
  %v2967 = vpow.pop %v2966
  %v2968 = vadd.f32 %v2967, 1.0
  %v2969 = vrcp.pop %v2968
  %v2970 = vmul.f32 %v2968, %v2969
  %v2971 = vsub.f32 1.0, %v2970
  %v2972 = vmul.f32 %v2969, %v2971
  %v2973 = vadd.f32 %v2969, %v2972
  %vm2974 = vweird.f32 %v2968
  %vm2975 = vweird.f32 %v2969
  %vm2976 = vmor %vm2974, %vm2975
  %v2977 = vsel %vm2976, %v2969, %v2973
  %v2978 = vand.u32 2147483647, %v2968
  %vm2979 = vcmp.eq.f32.partialorder %v2978, 8.507059e+37
  %v2980 = vand.u32 %v2968, 2147483648
  %v2981 = vor.u32 1.1754944e-38, %v2980
  %v2982 = vsel %vm2979, %v2981, %v2977
  %v2983 = vmul.f32 1.0, %v2982
  %v2984 = vtanh.pop %v2935
  %v2985 = vxor.u32 %v2936, 2147483648
  %v2986 = vmul.f32 %v2985, 1.442695
  %v2987 = vpow.pop %v2986
  %v2988 = vadd.f32 %v2987, 1.0
  %v2989 = vrcp.pop %v2988
  %v2990 = vmul.f32 %v2988, %v2989
  %v2991 = vsub.f32 1.0, %v2990
  %v2992 = vmul.f32 %v2989, %v2991
  %v2993 = vadd.f32 %v2989, %v2992
  %vm2994 = vweird.f32 %v2988
  %vm2995 = vweird.f32 %v2989
  %vm2996 = vmor %vm2994, %vm2995
  %v2997 = vsel %vm2996, %v2989, %v2993
  %v2998 = vand.u32 2147483647, %v2988
  %vm2999 = vcmp.eq.f32.partialorder %v2998, 8.507059e+37
  %v3000 = vand.u32 %v2988, 2147483648
  %v3001 = vor.u32 1.1754944e-38, %v3000
  %v3002 = vsel %vm2999, %v3001, %v2997
  %v3003 = vmul.f32 1.0, %v3002
  %v3004 = vmul.f32 %v2983, %v1881
  %v3005 = vmul.f32 %v2964, %v2984
  %v3006 = vadd.f32 %v3004, %v3005
  %v3007 = vtanh.pop %v3006
  %v3008 = vmul.f32 %v3003, %v3007
  %v3009 = vxor.u32 %v2942, 2147483648
  %v3010 = vmul.f32 %v3009, 1.442695
  %v3011 = vpow.pop %v3010
  %v3012 = vadd.f32 %v3011, 1.0
  %v3013 = vrcp.pop %v3012
  %v3014 = vmul.f32 %v3012, %v3013
  %v3015 = vsub.f32 1.0, %v3014
  %v3016 = vmul.f32 %v3013, %v3015
  %v3017 = vadd.f32 %v3013, %v3016
  %vm3018 = vweird.f32 %v3012
  %vm3019 = vweird.f32 %v3013
  %vm3020 = vmor %vm3018, %vm3019
  %v3021 = vsel %vm3020, %v3013, %v3017
  %v3022 = vand.u32 2147483647, %v3012
  %vm3023 = vcmp.eq.f32.partialorder %v3022, 8.507059e+37
  %v3024 = vand.u32 %v3012, 2147483648
  %v3025 = vor.u32 1.1754944e-38, %v3024
  %v3026 = vsel %vm3023, %v3025, %v3021
  %v3027 = vmul.f32 1.0, %v3026
  %v3028 = vxor.u32 %v2943, 2147483648
  %v3029 = vmul.f32 %v3028, 1.442695
  %v3030 = vpow.pop %v3029
  %v3031 = vadd.f32 %v3030, 1.0
  %v3032 = vrcp.pop %v3031
  %v3033 = vmul.f32 %v3031, %v3032
  %v3034 = vsub.f32 1.0, %v3033
  %v3035 = vmul.f32 %v3032, %v3034
  %v3036 = vadd.f32 %v3032, %v3035
  %vm3037 = vweird.f32 %v3031
  %vm3038 = vweird.f32 %v3032
  %vm3039 = vmor %vm3037, %vm3038
  %v3040 = vsel %vm3039, %v3032, %v3036
  %v3041 = vand.u32 2147483647, %v3031
  %vm3042 = vcmp.eq.f32.partialorder %v3041, 8.507059e+37
  %v3043 = vand.u32 %v3031, 2147483648
  %v3044 = vor.u32 1.1754944e-38, %v3043
  %v3045 = vsel %vm3042, %v3044, %v3040
  %v3046 = vmul.f32 1.0, %v3045
  %v3047 = vtanh.pop %v2944
  %v3048 = vxor.u32 %v2945, 2147483648
  %v3049 = vmul.f32 %v3048, 1.442695
  %v3050 = vpow.pop %v3049
  %v3051 = vadd.f32 %v3050, 1.0
  %v3052 = vrcp.pop %v3051
  %v3053 = vmul.f32 %v3051, %v3052
  %v3054 = vsub.f32 1.0, %v3053
  %v3055 = vmul.f32 %v3052, %v3054
  %v3056 = vadd.f32 %v3052, %v3055
  %vm3057 = vweird.f32 %v3051
  %vm3058 = vweird.f32 %v3052
  %vm3059 = vmor %vm3057, %vm3058
  %v3060 = vsel %vm3059, %v3052, %v3056
  %v3061 = vand.u32 2147483647, %v3051
  %vm3062 = vcmp.eq.f32.partialorder %v3061, 8.507059e+37
  %v3063 = vand.u32 %v3051, 2147483648
  %v3064 = vor.u32 1.1754944e-38, %v3063
  %v3065 = vsel %vm3062, %v3064, %v3060
  %v3066 = vmul.f32 1.0, %v3065
  %v3067 = vmul.f32 %v3046, %v1944
  %v3068 = vmul.f32 %v3027, %v3047
  %v3069 = vadd.f32 %v3067, %v3068
  %v3070 = vtanh.pop %v3069
  %v3071 = vmul.f32 %v3066, %v3070
  %s3072 = scalar_lea.vmem [#allocation3], 16
  %3073 = vst [vmem:[%s3072] sm:$0xff] %v3008
  %s3074 = scalar_lea.vmem [#allocation3], 96
  %3075 = vst [vmem:[%s3074 + $0x8] sm:$0xff] %v3071
  %v3076 = vpack.c.bf16 %v3008, %v3008
  %v3077 = vpack.c.bf16 %v3071, %v3071
  %v3078 = vld [vmem:[%s5] sm:$0xff]
  %v3079 = vld [vmem:[%s5 + $0x8] sm:$0xff]
  %v3080 = vld [vmem:[%s5 + $0x10] sm:$0xff]
  %v3081 = vld [vmem:[%s5 + $0x18] sm:$0xff]
  %v3082 = vld [vmem:[%s5 + $0x20] sm:$0xff]
  %v3083 = vld [vmem:[%s5 + $0x28] sm:$0xff]
  %v3084 = vld [vmem:[%s5 + $0x30] sm:$0xff]
  %v3085 = vld [vmem:[%s5 + $0x38] sm:$0xff]
  %v3086 = vld [vmem:[%s5 + $0x40] sm:$0xff]
  %v3087 = vld [vmem:[%s5 + $0x48] sm:$0xff]
  %v3088 = vld [vmem:[%s5 + $0x50] sm:$0xff]
  %v3089 = vld [vmem:[%s5 + $0x58] sm:$0xff]
  %v3090 = vld [vmem:[%s5 + $0x60] sm:$0xff]
  %v3091 = vld [vmem:[%s5 + $0x68] sm:$0xff]
  %v3092 = vld [vmem:[%s5 + $0x70] sm:$0xff]
  %v3093 = vld [vmem:[%s5 + $0x78] sm:$0xff]
  %v3094 = vld [vmem:[%s5 + $0x80] sm:$0xff]
  %v3095 = vld [vmem:[%s5 + $0x88] sm:$0xff]
  %v3096 = vld [vmem:[%s5 + $0x90] sm:$0xff]
  %v3097 = vld [vmem:[%s5 + $0x98] sm:$0xff]
  %v3098 = vld [vmem:[%s5 + $0xa0] sm:$0xff]
  %v3099 = vld [vmem:[%s5 + $0xa8] sm:$0xff]
  %v3100 = vld [vmem:[%s5 + $0xb0] sm:$0xff]
  %v3101 = vld [vmem:[%s5 + $0xb8] sm:$0xff]
  %v3102 = vld [vmem:[%s5 + $0xc0] sm:$0xff]
  %v3103 = vld [vmem:[%s5 + $0xc8] sm:$0xff]
  %v3104 = vld [vmem:[%s5 + $0xd0] sm:$0xff]
  %v3105 = vld [vmem:[%s5 + $0xd8] sm:$0xff]
  %v3106 = vld [vmem:[%s5 + $0xe0] sm:$0xff]
  %v3107 = vld [vmem:[%s5 + $0xe8] sm:$0xff]
  %v3108 = vld [vmem:[%s5 + $0xf0] sm:$0xff]
  %v3109 = vld [vmem:[%s5 + $0xf8] sm:$0xff]
  %v3110 = vld [vmem:[%s5 + $0x100] sm:$0xff]
  %v3111 = vld [vmem:[%s5 + $0x108] sm:$0xff]
  %v3112 = vld [vmem:[%s5 + $0x110] sm:$0xff]
  %v3113 = vld [vmem:[%s5 + $0x118] sm:$0xff]
  %v3114 = vld [vmem:[%s5 + $0x120] sm:$0xff]
  %v3115 = vld [vmem:[%s5 + $0x128] sm:$0xff]
  %v3116 = vld [vmem:[%s5 + $0x130] sm:$0xff]
  %v3117 = vld [vmem:[%s5 + $0x138] sm:$0xff]
  %v3118 = vld [vmem:[%s5 + $0x140] sm:$0xff]
  %v3119 = vld [vmem:[%s5 + $0x148] sm:$0xff]
  %v3120 = vld [vmem:[%s5 + $0x150] sm:$0xff]
  %v3121 = vld [vmem:[%s5 + $0x158] sm:$0xff]
  %v3122 = vld [vmem:[%s5 + $0x160] sm:$0xff]
  %v3123 = vld [vmem:[%s5 + $0x168] sm:$0xff]
  %v3124 = vld [vmem:[%s5 + $0x170] sm:$0xff]
  %v3125 = vld [vmem:[%s5 + $0x178] sm:$0xff]
  %v3126 = vld [vmem:[%s5 + $0x180] sm:$0xff]
  %v3127 = vld [vmem:[%s5 + $0x188] sm:$0xff]
  %v3128 = vld [vmem:[%s5 + $0x190] sm:$0xff]
  %v3129 = vld [vmem:[%s5 + $0x198] sm:$0xff]
  %v3130 = vld [vmem:[%s5 + $0x1a0] sm:$0xff]
  %v3131 = vld [vmem:[%s5 + $0x1a8] sm:$0xff]
  %v3132 = vld [vmem:[%s5 + $0x1b0] sm:$0xff]
  %v3133 = vld [vmem:[%s5 + $0x1b8] sm:$0xff]
  %v3134 = vld [vmem:[%s5 + $0x1c0] sm:$0xff]
  %v3135 = vld [vmem:[%s5 + $0x1c8] sm:$0xff]
  %v3136 = vld [vmem:[%s5 + $0x1d0] sm:$0xff]
  %v3137 = vld [vmem:[%s5 + $0x1d8] sm:$0xff]
  %v3138 = vld [vmem:[%s5 + $0x1e0] sm:$0xff]
  %v3139 = vld [vmem:[%s5 + $0x1e8] sm:$0xff]
  %v3140 = vld [vmem:[%s5 + $0x1f0] sm:$0xff]
  %v3141 = vld [vmem:[%s5 + $0x1f8] sm:$0xff]
  %v3142 = vld [vmem:[%s5 + $0x200] sm:$0xff]
  %v3143 = vld [vmem:[%s5 + $0x208] sm:$0xff]
  %v3144 = vld [vmem:[%s5 + $0x210] sm:$0xff]
  %v3145 = vld [vmem:[%s5 + $0x218] sm:$0xff]
  %v3146 = vld [vmem:[%s5 + $0x220] sm:$0xff]
  %v3147 = vld [vmem:[%s5 + $0x228] sm:$0xff]
  %v3148 = vld [vmem:[%s5 + $0x230] sm:$0xff]
  %v3149 = vld [vmem:[%s5 + $0x238] sm:$0xff]
  %v3150 = vld [vmem:[%s5 + $0x240] sm:$0xff]
  %v3151 = vld [vmem:[%s5 + $0x248] sm:$0xff]
  %v3152 = vld [vmem:[%s5 + $0x250] sm:$0xff]
  %v3153 = vld [vmem:[%s5 + $0x258] sm:$0xff]
  %v3154 = vld [vmem:[%s5 + $0x260] sm:$0xff]
  %v3155 = vld [vmem:[%s5 + $0x268] sm:$0xff]
  %v3156 = vld [vmem:[%s5 + $0x270] sm:$0xff]
  %v3157 = vld [vmem:[%s5 + $0x278] sm:$0xff]
  %v3158 = vld [vmem:[%s5 + $0x280] sm:$0xff]
  %v3159 = vld [vmem:[%s5 + $0x288] sm:$0xff]
  %v3160 = vld [vmem:[%s5 + $0x290] sm:$0xff]
  %v3161 = vld [vmem:[%s5 + $0x298] sm:$0xff]
  %v3162 = vld [vmem:[%s5 + $0x2a0] sm:$0xff]
  %v3163 = vld [vmem:[%s5 + $0x2a8] sm:$0xff]
  %v3164 = vld [vmem:[%s5 + $0x2b0] sm:$0xff]
  %v3165 = vld [vmem:[%s5 + $0x2b8] sm:$0xff]
  %v3166 = vld [vmem:[%s5 + $0x2c0] sm:$0xff]
  %v3167 = vld [vmem:[%s5 + $0x2c8] sm:$0xff]
  %v3168 = vld [vmem:[%s5 + $0x2d0] sm:$0xff]
  %v3169 = vld [vmem:[%s5 + $0x2d8] sm:$0xff]
  %v3170 = vld [vmem:[%s5 + $0x2e0] sm:$0xff]
  %v3171 = vld [vmem:[%s5 + $0x2e8] sm:$0xff]
  %v3172 = vld [vmem:[%s5 + $0x2f0] sm:$0xff]
  %v3173 = vld [vmem:[%s5 + $0x2f8] sm:$0xff]
  %v3174 = vld [vmem:[%s5 + $0x300] sm:$0xff]
  %v3175 = vld [vmem:[%s5 + $0x308] sm:$0xff]
  %v3176 = vld [vmem:[%s5 + $0x310] sm:$0xff]
  %v3177 = vld [vmem:[%s5 + $0x318] sm:$0xff]
  %v3178 = vld [vmem:[%s5 + $0x320] sm:$0xff]
  %v3179 = vld [vmem:[%s5 + $0x328] sm:$0xff]
  %v3180 = vld [vmem:[%s5 + $0x330] sm:$0xff]
  %v3181 = vld [vmem:[%s5 + $0x338] sm:$0xff]
  %v3182 = vld [vmem:[%s5 + $0x340] sm:$0xff]
  %v3183 = vld [vmem:[%s5 + $0x348] sm:$0xff]
  %v3184 = vld [vmem:[%s5 + $0x350] sm:$0xff]
  %v3185 = vld [vmem:[%s5 + $0x358] sm:$0xff]
  %v3186 = vld [vmem:[%s5 + $0x360] sm:$0xff]
  %v3187 = vld [vmem:[%s5 + $0x368] sm:$0xff]
  %v3188 = vld [vmem:[%s5 + $0x370] sm:$0xff]
  %v3189 = vld [vmem:[%s5 + $0x378] sm:$0xff]
  %v3190 = vld [vmem:[%s5 + $0x380] sm:$0xff]
  %v3191 = vld [vmem:[%s5 + $0x388] sm:$0xff]
  %v3192 = vld [vmem:[%s5 + $0x390] sm:$0xff]
  %v3193 = vld [vmem:[%s5 + $0x398] sm:$0xff]
  %v3194 = vld [vmem:[%s5 + $0x3a0] sm:$0xff]
  %v3195 = vld [vmem:[%s5 + $0x3a8] sm:$0xff]
  %v3196 = vld [vmem:[%s5 + $0x3b0] sm:$0xff]
  %v3197 = vld [vmem:[%s5 + $0x3b8] sm:$0xff]
  %v3198 = vld [vmem:[%s5 + $0x3c0] sm:$0xff]
  %v3199 = vld [vmem:[%s5 + $0x3c8] sm:$0xff]
  %v3200 = vld [vmem:[%s5 + $0x3d0] sm:$0xff]
  %v3201 = vld [vmem:[%s5 + $0x3d8] sm:$0xff]
  %v3202 = vld [vmem:[%s5 + $0x3e0] sm:$0xff]
  %v3203 = vld [vmem:[%s5 + $0x3e8] sm:$0xff]
  %v3204 = vld [vmem:[%s5 + $0x3f0] sm:$0xff]
  %v3205 = vld [vmem:[%s5 + $0x3f8] sm:$0xff]
  %v3334 = vunpack.c.l.b16 %v3078
  %v3335 = vunpack.c.h.b16 %v3078
  %v3336 = vunpack.c.l.b16 %v3079
  %v3337 = vunpack.c.h.b16 %v3079
  %v3338 = vunpack.c.l.b16 %v3080
  %v3339 = vunpack.c.h.b16 %v3080
  %v3340 = vunpack.c.l.b16 %v3081
  %v3341 = vunpack.c.h.b16 %v3081
  %v3342 = vunpack.c.l.b16 %v3082
  %v3343 = vunpack.c.h.b16 %v3082
  %v3344 = vunpack.c.l.b16 %v3083
  %v3345 = vunpack.c.h.b16 %v3083
  %v3346 = vunpack.c.l.b16 %v3084
  %v3347 = vunpack.c.h.b16 %v3084
  %v3348 = vunpack.c.l.b16 %v3085
  %v3349 = vunpack.c.h.b16 %v3085
  %v3350 = vunpack.c.l.b16 %v3086
  %v3351 = vunpack.c.h.b16 %v3086
  %v3352 = vunpack.c.l.b16 %v3087
  %v3353 = vunpack.c.h.b16 %v3087
  %v3354 = vunpack.c.l.b16 %v3088
  %v3355 = vunpack.c.h.b16 %v3088
  %v3356 = vunpack.c.l.b16 %v3089
  %v3357 = vunpack.c.h.b16 %v3089
  %v3358 = vunpack.c.l.b16 %v3090
  %v3359 = vunpack.c.h.b16 %v3090
  %v3360 = vunpack.c.l.b16 %v3091
  %v3361 = vunpack.c.h.b16 %v3091
  %v3362 = vunpack.c.l.b16 %v3092
  %v3363 = vunpack.c.h.b16 %v3092
  %v3364 = vunpack.c.l.b16 %v3093
  %v3365 = vunpack.c.h.b16 %v3093
  %v3366 = vunpack.c.l.b16 %v3094
  %v3367 = vunpack.c.h.b16 %v3094
  %v3368 = vunpack.c.l.b16 %v3095
  %v3369 = vunpack.c.h.b16 %v3095
  %v3370 = vunpack.c.l.b16 %v3096
  %v3371 = vunpack.c.h.b16 %v3096
  %v3372 = vunpack.c.l.b16 %v3097
  %v3373 = vunpack.c.h.b16 %v3097
  %v3374 = vunpack.c.l.b16 %v3098
  %v3375 = vunpack.c.h.b16 %v3098
  %v3376 = vunpack.c.l.b16 %v3099
  %v3377 = vunpack.c.h.b16 %v3099
  %v3378 = vunpack.c.l.b16 %v3100
  %v3379 = vunpack.c.h.b16 %v3100
  %v3380 = vunpack.c.l.b16 %v3101
  %v3381 = vunpack.c.h.b16 %v3101
  %v3382 = vunpack.c.l.b16 %v3102
  %v3383 = vunpack.c.h.b16 %v3102
  %v3384 = vunpack.c.l.b16 %v3103
  %v3385 = vunpack.c.h.b16 %v3103
  %v3386 = vunpack.c.l.b16 %v3104
  %v3387 = vunpack.c.h.b16 %v3104
  %v3388 = vunpack.c.l.b16 %v3105
  %v3389 = vunpack.c.h.b16 %v3105
  %v3390 = vunpack.c.l.b16 %v3106
  %v3391 = vunpack.c.h.b16 %v3106
  %v3392 = vunpack.c.l.b16 %v3107
  %v3393 = vunpack.c.h.b16 %v3107
  %v3394 = vunpack.c.l.b16 %v3108
  %v3395 = vunpack.c.h.b16 %v3108
  %v3396 = vunpack.c.l.b16 %v3109
  %v3397 = vunpack.c.h.b16 %v3109
  %v3398 = vunpack.c.l.b16 %v3110
  %v3399 = vunpack.c.h.b16 %v3110
  %v3400 = vunpack.c.l.b16 %v3111
  %v3401 = vunpack.c.h.b16 %v3111
  %v3402 = vunpack.c.l.b16 %v3112
  %v3403 = vunpack.c.h.b16 %v3112
  %v3404 = vunpack.c.l.b16 %v3113
  %v3405 = vunpack.c.h.b16 %v3113
  %v3406 = vunpack.c.l.b16 %v3114
  %v3407 = vunpack.c.h.b16 %v3114
  %v3408 = vunpack.c.l.b16 %v3115
  %v3409 = vunpack.c.h.b16 %v3115
  %v3410 = vunpack.c.l.b16 %v3116
  %v3411 = vunpack.c.h.b16 %v3116
  %v3412 = vunpack.c.l.b16 %v3117
  %v3413 = vunpack.c.h.b16 %v3117
  %v3414 = vunpack.c.l.b16 %v3118
  %v3415 = vunpack.c.h.b16 %v3118
  %v3416 = vunpack.c.l.b16 %v3119
  %v3417 = vunpack.c.h.b16 %v3119
  %v3418 = vunpack.c.l.b16 %v3120
  %v3419 = vunpack.c.h.b16 %v3120
  %v3420 = vunpack.c.l.b16 %v3121
  %v3421 = vunpack.c.h.b16 %v3121
  %v3422 = vunpack.c.l.b16 %v3122
  %v3423 = vunpack.c.h.b16 %v3122
  %v3424 = vunpack.c.l.b16 %v3123
  %v3425 = vunpack.c.h.b16 %v3123
  %v3426 = vunpack.c.l.b16 %v3124
  %v3427 = vunpack.c.h.b16 %v3124
  %v3428 = vunpack.c.l.b16 %v3125
  %v3429 = vunpack.c.h.b16 %v3125
  %v3430 = vunpack.c.l.b16 %v3126
  %v3431 = vunpack.c.h.b16 %v3126
  %v3432 = vunpack.c.l.b16 %v3127
  %v3433 = vunpack.c.h.b16 %v3127
  %v3434 = vunpack.c.l.b16 %v3128
  %v3435 = vunpack.c.h.b16 %v3128
  %v3436 = vunpack.c.l.b16 %v3129
  %v3437 = vunpack.c.h.b16 %v3129
  %v3438 = vunpack.c.l.b16 %v3130
  %v3439 = vunpack.c.h.b16 %v3130
  %v3440 = vunpack.c.l.b16 %v3131
  %v3441 = vunpack.c.h.b16 %v3131
  %v3442 = vunpack.c.l.b16 %v3132
  %v3443 = vunpack.c.h.b16 %v3132
  %v3444 = vunpack.c.l.b16 %v3133
  %v3445 = vunpack.c.h.b16 %v3133
  %v3446 = vunpack.c.l.b16 %v3134
  %v3447 = vunpack.c.h.b16 %v3134
  %v3448 = vunpack.c.l.b16 %v3135
  %v3449 = vunpack.c.h.b16 %v3135
  %v3450 = vunpack.c.l.b16 %v3136
  %v3451 = vunpack.c.h.b16 %v3136
  %v3452 = vunpack.c.l.b16 %v3137
  %v3453 = vunpack.c.h.b16 %v3137
  %v3454 = vunpack.c.l.b16 %v3138
  %v3455 = vunpack.c.h.b16 %v3138
  %v3456 = vunpack.c.l.b16 %v3139
  %v3457 = vunpack.c.h.b16 %v3139
  %v3458 = vunpack.c.l.b16 %v3140
  %v3459 = vunpack.c.h.b16 %v3140
  %v3460 = vunpack.c.l.b16 %v3141
  %v3461 = vunpack.c.h.b16 %v3141
  %v3462 = vunpack.c.l.b16 %v3142
  %v3463 = vunpack.c.h.b16 %v3142
  %v3464 = vunpack.c.l.b16 %v3143
  %v3465 = vunpack.c.h.b16 %v3143
  %v3466 = vunpack.c.l.b16 %v3144
  %v3467 = vunpack.c.h.b16 %v3144
  %v3468 = vunpack.c.l.b16 %v3145
  %v3469 = vunpack.c.h.b16 %v3145
  %v3470 = vunpack.c.l.b16 %v3146
  %v3471 = vunpack.c.h.b16 %v3146
  %v3472 = vunpack.c.l.b16 %v3147
  %v3473 = vunpack.c.h.b16 %v3147
  %v3474 = vunpack.c.l.b16 %v3148
  %v3475 = vunpack.c.h.b16 %v3148
  %v3476 = vunpack.c.l.b16 %v3149
  %v3477 = vunpack.c.h.b16 %v3149
  %v3478 = vunpack.c.l.b16 %v3150
  %v3479 = vunpack.c.h.b16 %v3150
  %v3480 = vunpack.c.l.b16 %v3151
  %v3481 = vunpack.c.h.b16 %v3151
  %v3482 = vunpack.c.l.b16 %v3152
  %v3483 = vunpack.c.h.b16 %v3152
  %v3484 = vunpack.c.l.b16 %v3153
  %v3485 = vunpack.c.h.b16 %v3153
  %v3486 = vunpack.c.l.b16 %v3154
  %v3487 = vunpack.c.h.b16 %v3154
  %v3488 = vunpack.c.l.b16 %v3155
  %v3489 = vunpack.c.h.b16 %v3155
  %v3490 = vunpack.c.l.b16 %v3156
  %v3491 = vunpack.c.h.b16 %v3156
  %v3492 = vunpack.c.l.b16 %v3157
  %v3493 = vunpack.c.h.b16 %v3157
  %v3494 = vunpack.c.l.b16 %v3158
  %v3495 = vunpack.c.h.b16 %v3158
  %v3496 = vunpack.c.l.b16 %v3159
  %v3497 = vunpack.c.h.b16 %v3159
  %v3498 = vunpack.c.l.b16 %v3160
  %v3499 = vunpack.c.h.b16 %v3160
  %v3500 = vunpack.c.l.b16 %v3161
  %v3501 = vunpack.c.h.b16 %v3161
  %v3502 = vunpack.c.l.b16 %v3162
  %v3503 = vunpack.c.h.b16 %v3162
  %v3504 = vunpack.c.l.b16 %v3163
  %v3505 = vunpack.c.h.b16 %v3163
  %v3506 = vunpack.c.l.b16 %v3164
  %v3507 = vunpack.c.h.b16 %v3164
  %v3508 = vunpack.c.l.b16 %v3165
  %v3509 = vunpack.c.h.b16 %v3165
  %v3510 = vunpack.c.l.b16 %v3166
  %v3511 = vunpack.c.h.b16 %v3166
  %v3512 = vunpack.c.l.b16 %v3167
  %v3513 = vunpack.c.h.b16 %v3167
  %v3514 = vunpack.c.l.b16 %v3168
  %v3515 = vunpack.c.h.b16 %v3168
  %v3516 = vunpack.c.l.b16 %v3169
  %v3517 = vunpack.c.h.b16 %v3169
  %v3518 = vunpack.c.l.b16 %v3170
  %v3519 = vunpack.c.h.b16 %v3170
  %v3520 = vunpack.c.l.b16 %v3171
  %v3521 = vunpack.c.h.b16 %v3171
  %v3522 = vunpack.c.l.b16 %v3172
  %v3523 = vunpack.c.h.b16 %v3172
  %v3524 = vunpack.c.l.b16 %v3173
  %v3525 = vunpack.c.h.b16 %v3173
  %v3526 = vunpack.c.l.b16 %v3174
  %v3527 = vunpack.c.h.b16 %v3174
  %v3528 = vunpack.c.l.b16 %v3175
  %v3529 = vunpack.c.h.b16 %v3175
  %v3530 = vunpack.c.l.b16 %v3176
  %v3531 = vunpack.c.h.b16 %v3176
  %v3532 = vunpack.c.l.b16 %v3177
  %v3533 = vunpack.c.h.b16 %v3177
  %v3534 = vunpack.c.l.b16 %v3178
  %v3535 = vunpack.c.h.b16 %v3178
  %v3536 = vunpack.c.l.b16 %v3179
  %v3537 = vunpack.c.h.b16 %v3179
  %v3538 = vunpack.c.l.b16 %v3180
  %v3539 = vunpack.c.h.b16 %v3180
  %v3540 = vunpack.c.l.b16 %v3181
  %v3541 = vunpack.c.h.b16 %v3181
  %v3542 = vunpack.c.l.b16 %v3182
  %v3543 = vunpack.c.h.b16 %v3182
  %v3544 = vunpack.c.l.b16 %v3183
  %v3545 = vunpack.c.h.b16 %v3183
  %v3546 = vunpack.c.l.b16 %v3184
  %v3547 = vunpack.c.h.b16 %v3184
  %v3548 = vunpack.c.l.b16 %v3185
  %v3549 = vunpack.c.h.b16 %v3185
  %v3550 = vunpack.c.l.b16 %v3186
  %v3551 = vunpack.c.h.b16 %v3186
  %v3552 = vunpack.c.l.b16 %v3187
  %v3553 = vunpack.c.h.b16 %v3187
  %v3554 = vunpack.c.l.b16 %v3188
  %v3555 = vunpack.c.h.b16 %v3188
  %v3556 = vunpack.c.l.b16 %v3189
  %v3557 = vunpack.c.h.b16 %v3189
  %v3558 = vunpack.c.l.b16 %v3190
  %v3559 = vunpack.c.h.b16 %v3190
  %v3560 = vunpack.c.l.b16 %v3191
  %v3561 = vunpack.c.h.b16 %v3191
  %v3562 = vunpack.c.l.b16 %v3192
  %v3563 = vunpack.c.h.b16 %v3192
  %v3564 = vunpack.c.l.b16 %v3193
  %v3565 = vunpack.c.h.b16 %v3193
  %v3566 = vunpack.c.l.b16 %v3194
  %v3567 = vunpack.c.h.b16 %v3194
  %v3568 = vunpack.c.l.b16 %v3195
  %v3569 = vunpack.c.h.b16 %v3195
  %v3570 = vunpack.c.l.b16 %v3196
  %v3571 = vunpack.c.h.b16 %v3196
  %v3572 = vunpack.c.l.b16 %v3197
  %v3573 = vunpack.c.h.b16 %v3197
  %v3574 = vunpack.c.l.b16 %v3198
  %v3575 = vunpack.c.h.b16 %v3198
  %v3576 = vunpack.c.l.b16 %v3199
  %v3577 = vunpack.c.h.b16 %v3199
  %v3578 = vunpack.c.l.b16 %v3200
  %v3579 = vunpack.c.h.b16 %v3200
  %v3580 = vunpack.c.l.b16 %v3201
  %v3581 = vunpack.c.h.b16 %v3201
  %v3582 = vunpack.c.l.b16 %v3202
  %v3583 = vunpack.c.h.b16 %v3202
  %v3584 = vunpack.c.l.b16 %v3203
  %v3585 = vunpack.c.h.b16 %v3203
  %v3586 = vunpack.c.l.b16 %v3204
  %v3587 = vunpack.c.h.b16 %v3204
  %v3588 = vunpack.c.l.b16 %v3205
  %v3589 = vunpack.c.h.b16 %v3205
  %v3590 = vpack.c.b16 %v3342, %v3334
  %v3591 = vpack.c.b16 %v3343, %v3335
  %v3592 = vpack.c.b16 %v3344, %v3336
  %v3593 = vpack.c.b16 %v3345, %v3337
  %v3594 = vpack.c.b16 %v3346, %v3338
  %v3595 = vpack.c.b16 %v3347, %v3339
  %v3596 = vpack.c.b16 %v3348, %v3340
  %v3597 = vpack.c.b16 %v3349, %v3341
  %v3598 = vpack.c.b16 %v3358, %v3350
  %v3599 = vpack.c.b16 %v3359, %v3351
  %v3600 = vpack.c.b16 %v3360, %v3352
  %v3601 = vpack.c.b16 %v3361, %v3353
  %v3602 = vpack.c.b16 %v3362, %v3354
  %v3603 = vpack.c.b16 %v3363, %v3355
  %v3604 = vpack.c.b16 %v3364, %v3356
  %v3605 = vpack.c.b16 %v3365, %v3357
  %v3606 = vpack.c.b16 %v3374, %v3366
  %v3607 = vpack.c.b16 %v3375, %v3367
  %v3608 = vpack.c.b16 %v3376, %v3368
  %v3609 = vpack.c.b16 %v3377, %v3369
  %v3610 = vpack.c.b16 %v3378, %v3370
  %v3611 = vpack.c.b16 %v3379, %v3371
  %v3612 = vpack.c.b16 %v3380, %v3372
  %v3613 = vpack.c.b16 %v3381, %v3373
  %v3614 = vpack.c.b16 %v3390, %v3382
  %v3615 = vpack.c.b16 %v3391, %v3383
  %v3616 = vpack.c.b16 %v3392, %v3384
  %v3617 = vpack.c.b16 %v3393, %v3385
  %v3618 = vpack.c.b16 %v3394, %v3386
  %v3619 = vpack.c.b16 %v3395, %v3387
  %v3620 = vpack.c.b16 %v3396, %v3388
  %v3621 = vpack.c.b16 %v3397, %v3389
  %v3622 = vpack.c.b16 %v3406, %v3398
  %v3623 = vpack.c.b16 %v3407, %v3399
  %v3624 = vpack.c.b16 %v3408, %v3400
  %v3625 = vpack.c.b16 %v3409, %v3401
  %v3626 = vpack.c.b16 %v3410, %v3402
  %v3627 = vpack.c.b16 %v3411, %v3403
  %v3628 = vpack.c.b16 %v3412, %v3404
  %v3629 = vpack.c.b16 %v3413, %v3405
  %v3630 = vpack.c.b16 %v3422, %v3414
  %v3631 = vpack.c.b16 %v3423, %v3415
  %v3632 = vpack.c.b16 %v3424, %v3416
  %v3633 = vpack.c.b16 %v3425, %v3417
  %v3634 = vpack.c.b16 %v3426, %v3418
  %v3635 = vpack.c.b16 %v3427, %v3419
  %v3636 = vpack.c.b16 %v3428, %v3420
  %v3637 = vpack.c.b16 %v3429, %v3421
  %v3638 = vpack.c.b16 %v3438, %v3430
  %v3639 = vpack.c.b16 %v3439, %v3431
  %v3640 = vpack.c.b16 %v3440, %v3432
  %v3641 = vpack.c.b16 %v3441, %v3433
  %v3642 = vpack.c.b16 %v3442, %v3434
  %v3643 = vpack.c.b16 %v3443, %v3435
  %v3644 = vpack.c.b16 %v3444, %v3436
  %v3645 = vpack.c.b16 %v3445, %v3437
  %v3646 = vpack.c.b16 %v3454, %v3446
  %v3647 = vpack.c.b16 %v3455, %v3447
  %v3648 = vpack.c.b16 %v3456, %v3448
  %v3649 = vpack.c.b16 %v3457, %v3449
  %v3650 = vpack.c.b16 %v3458, %v3450
  %v3651 = vpack.c.b16 %v3459, %v3451
  %v3652 = vpack.c.b16 %v3460, %v3452
  %v3653 = vpack.c.b16 %v3461, %v3453
  %v3654 = vpack.c.b16 %v3470, %v3462
  %v3655 = vpack.c.b16 %v3471, %v3463
  %v3656 = vpack.c.b16 %v3472, %v3464
  %v3657 = vpack.c.b16 %v3473, %v3465
  %v3658 = vpack.c.b16 %v3474, %v3466
  %v3659 = vpack.c.b16 %v3475, %v3467
  %v3660 = vpack.c.b16 %v3476, %v3468
  %v3661 = vpack.c.b16 %v3477, %v3469
  %v3662 = vpack.c.b16 %v3486, %v3478
  %v3663 = vpack.c.b16 %v3487, %v3479
  %v3664 = vpack.c.b16 %v3488, %v3480
  %v3665 = vpack.c.b16 %v3489, %v3481
  %v3666 = vpack.c.b16 %v3490, %v3482
  %v3667 = vpack.c.b16 %v3491, %v3483
  %v3668 = vpack.c.b16 %v3492, %v3484
  %v3669 = vpack.c.b16 %v3493, %v3485
  %v3670 = vpack.c.b16 %v3502, %v3494
  %v3671 = vpack.c.b16 %v3503, %v3495
  %v3672 = vpack.c.b16 %v3504, %v3496
  %v3673 = vpack.c.b16 %v3505, %v3497
  %v3674 = vpack.c.b16 %v3506, %v3498
  %v3675 = vpack.c.b16 %v3507, %v3499
  %v3676 = vpack.c.b16 %v3508, %v3500
  %v3677 = vpack.c.b16 %v3509, %v3501
  %v3678 = vpack.c.b16 %v3518, %v3510
  %v3679 = vpack.c.b16 %v3519, %v3511
  %v3680 = vpack.c.b16 %v3520, %v3512
  %v3681 = vpack.c.b16 %v3521, %v3513
  %v3682 = vpack.c.b16 %v3522, %v3514
  %v3683 = vpack.c.b16 %v3523, %v3515
  %v3684 = vpack.c.b16 %v3524, %v3516
  %v3685 = vpack.c.b16 %v3525, %v3517
  %v3686 = vpack.c.b16 %v3534, %v3526
  %v3687 = vpack.c.b16 %v3535, %v3527
  %v3688 = vpack.c.b16 %v3536, %v3528
  %v3689 = vpack.c.b16 %v3537, %v3529
  %v3690 = vpack.c.b16 %v3538, %v3530
  %v3691 = vpack.c.b16 %v3539, %v3531
  %v3692 = vpack.c.b16 %v3540, %v3532
  %v3693 = vpack.c.b16 %v3541, %v3533
  %v3694 = vpack.c.b16 %v3550, %v3542
  %v3695 = vpack.c.b16 %v3551, %v3543
  %v3696 = vpack.c.b16 %v3552, %v3544
  %v3697 = vpack.c.b16 %v3553, %v3545
  %v3698 = vpack.c.b16 %v3554, %v3546
  %v3699 = vpack.c.b16 %v3555, %v3547
  %v3700 = vpack.c.b16 %v3556, %v3548
  %v3701 = vpack.c.b16 %v3557, %v3549
  %v3702 = vpack.c.b16 %v3566, %v3558
  %v3703 = vpack.c.b16 %v3567, %v3559
  %v3704 = vpack.c.b16 %v3568, %v3560
  %v3705 = vpack.c.b16 %v3569, %v3561
  %v3706 = vpack.c.b16 %v3570, %v3562
  %v3707 = vpack.c.b16 %v3571, %v3563
  %v3708 = vpack.c.b16 %v3572, %v3564
  %v3709 = vpack.c.b16 %v3573, %v3565
  %v3710 = vpack.c.b16 %v3582, %v3574
  %v3711 = vpack.c.b16 %v3583, %v3575
  %v3712 = vpack.c.b16 %v3584, %v3576
  %v3713 = vpack.c.b16 %v3585, %v3577
  %v3714 = vpack.c.b16 %v3586, %v3578
  %v3715 = vpack.c.b16 %v3587, %v3579
  %v3716 = vpack.c.b16 %v3588, %v3580
  %v3717 = vpack.c.b16 %v3589, %v3581
  %3846 = vmatpush.bf16.msra.mxu0 %v3646
  %3847 = vmatpush.bf16.msra.mxu0 %v3638
  %3848 = vmatpush.bf16.msra.mxu0 %v3630
  %3849 = vmatpush.bf16.msra.mxu0 %v3622
  %3850 = vmatpush.bf16.msra.mxu0 %v3614
  %3851 = vmatpush.bf16.msra.mxu0 %v3606
  %3852 = vmatpush.bf16.msra.mxu0 %v3598
  %3853 = vmatpush.bf16.msra.mxu0 %v3590
  %3854 = vmatmul.bf16.gmra.mxu0 %v3076
  %v3855 = vpop.f32.mrf.mxu0
  %v3856 = vadd.f32 0.0, %v3855
  %v3857 = vpop.f32.mrf.mxu0
  %3858 = vdwg.mxu0
  %3859 = vmatpush.bf16.msra.mxu0 %v3710
  %3860 = vmatpush.bf16.msra.mxu0 %v3702
  %3861 = vmatpush.bf16.msra.mxu0 %v3694
  %3862 = vmatpush.bf16.msra.mxu0 %v3686
  %3863 = vmatpush.bf16.msra.mxu0 %v3678
  %3864 = vmatpush.bf16.msra.mxu0 %v3670
  %3865 = vmatpush.bf16.msra.mxu0 %v3662
  %3866 = vmatpush.bf16.msra.mxu0 %v3654
  %3867 = vmatmul.bf16.gmra.mxu0 %v3077
  %v3868 = vpop.f32.mrf.mxu0
  %v3869 = vadd.f32 %v3856, %v3868
  %v3870 = vpop.f32.mrf.mxu0
  %3871 = vdwg.mxu0
  %3872 = vmatpush.bf16.msra.mxu0 %v3647
  %3873 = vmatpush.bf16.msra.mxu0 %v3639
  %3874 = vmatpush.bf16.msra.mxu0 %v3631
  %3875 = vmatpush.bf16.msra.mxu0 %v3623
  %3876 = vmatpush.bf16.msra.mxu0 %v3615
  %3877 = vmatpush.bf16.msra.mxu0 %v3607
  %3878 = vmatpush.bf16.msra.mxu0 %v3599
  %3879 = vmatpush.bf16.msra.mxu0 %v3591
  %3880 = vmatmul.bf16.gmra.mxu0 %v3076
  %v3881 = vpop.f32.mrf.mxu0
  %v3882 = vadd.f32 0.0, %v3881
  %v3883 = vpop.f32.mrf.mxu0
  %3884 = vdwg.mxu0
  %3885 = vmatpush.bf16.msra.mxu0 %v3711
  %3886 = vmatpush.bf16.msra.mxu0 %v3703
  %3887 = vmatpush.bf16.msra.mxu0 %v3695
  %3888 = vmatpush.bf16.msra.mxu0 %v3687
  %3889 = vmatpush.bf16.msra.mxu0 %v3679
  %3890 = vmatpush.bf16.msra.mxu0 %v3671
  %3891 = vmatpush.bf16.msra.mxu0 %v3663
  %3892 = vmatpush.bf16.msra.mxu0 %v3655
  %3893 = vmatmul.bf16.gmra.mxu0 %v3077
  %v3894 = vpop.f32.mrf.mxu0
  %v3895 = vadd.f32 %v3882, %v3894
  %v3896 = vpop.f32.mrf.mxu0
  %3897 = vdwg.mxu0
  %3898 = vmatpush.bf16.msra.mxu0 %v3648
  %3899 = vmatpush.bf16.msra.mxu0 %v3640
  %3900 = vmatpush.bf16.msra.mxu0 %v3632
  %3901 = vmatpush.bf16.msra.mxu0 %v3624
  %3902 = vmatpush.bf16.msra.mxu0 %v3616
  %3903 = vmatpush.bf16.msra.mxu0 %v3608
  %3904 = vmatpush.bf16.msra.mxu0 %v3600
  %3905 = vmatpush.bf16.msra.mxu0 %v3592
  %3906 = vmatmul.bf16.gmra.mxu0 %v3076
  %v3907 = vpop.f32.mrf.mxu0
  %v3908 = vadd.f32 0.0, %v3907
  %v3909 = vpop.f32.mrf.mxu0
  %3910 = vdwg.mxu0
  %3911 = vmatpush.bf16.msra.mxu0 %v3712
  %3912 = vmatpush.bf16.msra.mxu0 %v3704
  %3913 = vmatpush.bf16.msra.mxu0 %v3696
  %3914 = vmatpush.bf16.msra.mxu0 %v3688
  %3915 = vmatpush.bf16.msra.mxu0 %v3680
  %3916 = vmatpush.bf16.msra.mxu0 %v3672
  %3917 = vmatpush.bf16.msra.mxu0 %v3664
  %3918 = vmatpush.bf16.msra.mxu0 %v3656
  %3919 = vmatmul.bf16.gmra.mxu0 %v3077
  %v3920 = vpop.f32.mrf.mxu0
  %v3921 = vadd.f32 %v3908, %v3920
  %v3922 = vpop.f32.mrf.mxu0
  %3923 = vdwg.mxu0
  %3924 = vmatpush.bf16.msra.mxu0 %v3649
  %3925 = vmatpush.bf16.msra.mxu0 %v3641
  %3926 = vmatpush.bf16.msra.mxu0 %v3633
  %3927 = vmatpush.bf16.msra.mxu0 %v3625
  %3928 = vmatpush.bf16.msra.mxu0 %v3617
  %3929 = vmatpush.bf16.msra.mxu0 %v3609
  %3930 = vmatpush.bf16.msra.mxu0 %v3601
  %3931 = vmatpush.bf16.msra.mxu0 %v3593
  %3932 = vmatmul.bf16.gmra.mxu0 %v3076
  %v3933 = vpop.f32.mrf.mxu0
  %v3934 = vadd.f32 0.0, %v3933
  %v3935 = vpop.f32.mrf.mxu0
  %3936 = vdwg.mxu0
  %3937 = vmatpush.bf16.msra.mxu0 %v3713
  %3938 = vmatpush.bf16.msra.mxu0 %v3705
  %3939 = vmatpush.bf16.msra.mxu0 %v3697
  %3940 = vmatpush.bf16.msra.mxu0 %v3689
  %3941 = vmatpush.bf16.msra.mxu0 %v3681
  %3942 = vmatpush.bf16.msra.mxu0 %v3673
  %3943 = vmatpush.bf16.msra.mxu0 %v3665
  %3944 = vmatpush.bf16.msra.mxu0 %v3657
  %3945 = vmatmul.bf16.gmra.mxu0 %v3077
  %v3946 = vpop.f32.mrf.mxu0
  %v3947 = vadd.f32 %v3934, %v3946
  %v3948 = vpop.f32.mrf.mxu0
  %3949 = vdwg.mxu0
  %3950 = vmatpush.bf16.msra.mxu0 %v3650
  %3951 = vmatpush.bf16.msra.mxu0 %v3642
  %3952 = vmatpush.bf16.msra.mxu0 %v3634
  %3953 = vmatpush.bf16.msra.mxu0 %v3626
  %3954 = vmatpush.bf16.msra.mxu0 %v3618
  %3955 = vmatpush.bf16.msra.mxu0 %v3610
  %3956 = vmatpush.bf16.msra.mxu0 %v3602
  %3957 = vmatpush.bf16.msra.mxu0 %v3594
  %3958 = vmatmul.bf16.gmra.mxu0 %v3076
  %v3959 = vpop.f32.mrf.mxu0
  %v3960 = vadd.f32 0.0, %v3959
  %v3961 = vpop.f32.mrf.mxu0
  %3962 = vdwg.mxu0
  %3963 = vmatpush.bf16.msra.mxu0 %v3714
  %3964 = vmatpush.bf16.msra.mxu0 %v3706
  %3965 = vmatpush.bf16.msra.mxu0 %v3698
  %3966 = vmatpush.bf16.msra.mxu0 %v3690
  %3967 = vmatpush.bf16.msra.mxu0 %v3682
  %3968 = vmatpush.bf16.msra.mxu0 %v3674
  %3969 = vmatpush.bf16.msra.mxu0 %v3666
  %3970 = vmatpush.bf16.msra.mxu0 %v3658
  %3971 = vmatmul.bf16.gmra.mxu0 %v3077
  %v3972 = vpop.f32.mrf.mxu0
  %v3973 = vadd.f32 %v3960, %v3972
  %v3974 = vpop.f32.mrf.mxu0
  %3975 = vdwg.mxu0
  %3976 = vmatpush.bf16.msra.mxu0 %v3651
  %3977 = vmatpush.bf16.msra.mxu0 %v3643
  %3978 = vmatpush.bf16.msra.mxu0 %v3635
  %3979 = vmatpush.bf16.msra.mxu0 %v3627
  %3980 = vmatpush.bf16.msra.mxu0 %v3619
  %3981 = vmatpush.bf16.msra.mxu0 %v3611
  %3982 = vmatpush.bf16.msra.mxu0 %v3603
  %3983 = vmatpush.bf16.msra.mxu0 %v3595
  %3984 = vmatmul.bf16.gmra.mxu0 %v3076
  %v3985 = vpop.f32.mrf.mxu0
  %v3986 = vadd.f32 0.0, %v3985
  %v3987 = vpop.f32.mrf.mxu0
  %3988 = vdwg.mxu0
  %3989 = vmatpush.bf16.msra.mxu0 %v3715
  %3990 = vmatpush.bf16.msra.mxu0 %v3707
  %3991 = vmatpush.bf16.msra.mxu0 %v3699
  %3992 = vmatpush.bf16.msra.mxu0 %v3691
  %3993 = vmatpush.bf16.msra.mxu0 %v3683
  %3994 = vmatpush.bf16.msra.mxu0 %v3675
  %3995 = vmatpush.bf16.msra.mxu0 %v3667
  %3996 = vmatpush.bf16.msra.mxu0 %v3659
  %3997 = vmatmul.bf16.gmra.mxu0 %v3077
  %v3998 = vpop.f32.mrf.mxu0
  %v3999 = vadd.f32 %v3986, %v3998
  %v4000 = vpop.f32.mrf.mxu0
  %4001 = vdwg.mxu0
  %4002 = vmatpush.bf16.msra.mxu0 %v3652
  %4003 = vmatpush.bf16.msra.mxu0 %v3644
  %4004 = vmatpush.bf16.msra.mxu0 %v3636
  %4005 = vmatpush.bf16.msra.mxu0 %v3628
  %4006 = vmatpush.bf16.msra.mxu0 %v3620
  %4007 = vmatpush.bf16.msra.mxu0 %v3612
  %4008 = vmatpush.bf16.msra.mxu0 %v3604
  %4009 = vmatpush.bf16.msra.mxu0 %v3596
  %4010 = vmatmul.bf16.gmra.mxu0 %v3076
  %v4011 = vpop.f32.mrf.mxu0
  %v4012 = vadd.f32 0.0, %v4011
  %v4013 = vpop.f32.mrf.mxu0
  %4014 = vdwg.mxu0
  %4015 = vmatpush.bf16.msra.mxu0 %v3716
  %4016 = vmatpush.bf16.msra.mxu0 %v3708
  %4017 = vmatpush.bf16.msra.mxu0 %v3700
  %4018 = vmatpush.bf16.msra.mxu0 %v3692
  %4019 = vmatpush.bf16.msra.mxu0 %v3684
  %4020 = vmatpush.bf16.msra.mxu0 %v3676
  %4021 = vmatpush.bf16.msra.mxu0 %v3668
  %4022 = vmatpush.bf16.msra.mxu0 %v3660
  %4023 = vmatmul.bf16.gmra.mxu0 %v3077
  %v4024 = vpop.f32.mrf.mxu0
  %v4025 = vadd.f32 %v4012, %v4024
  %v4026 = vpop.f32.mrf.mxu0
  %4027 = vdwg.mxu0
  %4028 = vmatpush.bf16.msra.mxu0 %v3653
  %4029 = vmatpush.bf16.msra.mxu0 %v3645
  %4030 = vmatpush.bf16.msra.mxu0 %v3637
  %4031 = vmatpush.bf16.msra.mxu0 %v3629
  %4032 = vmatpush.bf16.msra.mxu0 %v3621
  %4033 = vmatpush.bf16.msra.mxu0 %v3613
  %4034 = vmatpush.bf16.msra.mxu0 %v3605
  %4035 = vmatpush.bf16.msra.mxu0 %v3597
  %4036 = vmatmul.bf16.gmra.mxu0 %v3076
  %v4037 = vpop.f32.mrf.mxu0
  %v4038 = vadd.f32 0.0, %v4037
  %v4039 = vpop.f32.mrf.mxu0
  %4040 = vdwg.mxu0
  %4041 = vmatpush.bf16.msra.mxu0 %v3717
  %4042 = vmatpush.bf16.msra.mxu0 %v3709
  %4043 = vmatpush.bf16.msra.mxu0 %v3701
  %4044 = vmatpush.bf16.msra.mxu0 %v3693
  %4045 = vmatpush.bf16.msra.mxu0 %v3685
  %4046 = vmatpush.bf16.msra.mxu0 %v3677
  %4047 = vmatpush.bf16.msra.mxu0 %v3669
  %4048 = vmatpush.bf16.msra.mxu0 %v3661
  %4049 = vmatmul.bf16.gmra.mxu0 %v3077
  %v4050 = vpop.f32.mrf.mxu0
  %v4051 = vadd.f32 %v4038, %v4050
  %v4052 = vpop.f32.mrf.mxu0
  %4053 = vdwg.mxu0
  %s4054 = scalar_lea.vmem [#allocation2], 128
  %v4055 = vld [vmem:[%s4054] sm:$0xff]
  %v4056 = vld [vmem:[%s4054 + $0x8] sm:$0xff]
  %v4057 = vld [vmem:[%s4054 + $0x10] sm:$0xff]
  %v4058 = vld [vmem:[%s4054 + $0x18] sm:$0xff]
  %v4059 = vadd.f32 %v4055, %v3869
  %v4060 = vadd.f32 %v4056, %v3895
  %v4061 = vadd.f32 %v4057, %v3921
  %v4062 = vadd.f32 %v4058, %v3947
  %s4063 = scalar_lea.vmem [#allocation2], 320
  %v4064 = vld [vmem:[%s4063 + $0x20] sm:$0xff]
  %v4065 = vld [vmem:[%s4063 + $0x28] sm:$0xff]
  %v4066 = vld [vmem:[%s4063 + $0x30] sm:$0xff]
  %v4067 = vld [vmem:[%s4063 + $0x38] sm:$0xff]
  %v4068 = vadd.f32 %v4064, %v3973
  %v4069 = vadd.f32 %v4065, %v3999
  %v4070 = vadd.f32 %v4066, %v4025
  %v4071 = vadd.f32 %v4067, %v4051
  %v4072 = vxor.u32 %v4059, 2147483648
  %v4073 = vmul.f32 %v4072, 1.442695
  %v4074 = vpow.pop %v4073
  %v4075 = vadd.f32 %v4074, 1.0
  %v4076 = vrcp.pop %v4075
  %v4077 = vmul.f32 %v4075, %v4076
  %v4078 = vsub.f32 1.0, %v4077
  %v4079 = vmul.f32 %v4076, %v4078
  %v4080 = vadd.f32 %v4076, %v4079
  %vm4081 = vweird.f32 %v4075
  %vm4082 = vweird.f32 %v4076
  %vm4083 = vmor %vm4081, %vm4082
  %v4084 = vsel %vm4083, %v4076, %v4080
  %v4085 = vand.u32 2147483647, %v4075
  %vm4086 = vcmp.eq.f32.partialorder %v4085, 8.507059e+37
  %v4087 = vand.u32 %v4075, 2147483648
  %v4088 = vor.u32 1.1754944e-38, %v4087
  %v4089 = vsel %vm4086, %v4088, %v4084
  %v4090 = vmul.f32 1.0, %v4089
  %v4091 = vxor.u32 %v4060, 2147483648
  %v4092 = vmul.f32 %v4091, 1.442695
  %v4093 = vpow.pop %v4092
  %v4094 = vadd.f32 %v4093, 1.0
  %v4095 = vrcp.pop %v4094
  %v4096 = vmul.f32 %v4094, %v4095
  %v4097 = vsub.f32 1.0, %v4096
  %v4098 = vmul.f32 %v4095, %v4097
  %v4099 = vadd.f32 %v4095, %v4098
  %vm4100 = vweird.f32 %v4094
  %vm4101 = vweird.f32 %v4095
  %vm4102 = vmor %vm4100, %vm4101
  %v4103 = vsel %vm4102, %v4095, %v4099
  %v4104 = vand.u32 2147483647, %v4094
  %vm4105 = vcmp.eq.f32.partialorder %v4104, 8.507059e+37
  %v4106 = vand.u32 %v4094, 2147483648
  %v4107 = vor.u32 1.1754944e-38, %v4106
  %v4108 = vsel %vm4105, %v4107, %v4103
  %v4109 = vmul.f32 1.0, %v4108
  %v4110 = vtanh.pop %v4061
  %v4111 = vxor.u32 %v4062, 2147483648
  %v4112 = vmul.f32 %v4111, 1.442695
  %v4113 = vpow.pop %v4112
  %v4114 = vadd.f32 %v4113, 1.0
  %v4115 = vrcp.pop %v4114
  %v4116 = vmul.f32 %v4114, %v4115
  %v4117 = vsub.f32 1.0, %v4116
  %v4118 = vmul.f32 %v4115, %v4117
  %v4119 = vadd.f32 %v4115, %v4118
  %vm4120 = vweird.f32 %v4114
  %vm4121 = vweird.f32 %v4115
  %vm4122 = vmor %vm4120, %vm4121
  %v4123 = vsel %vm4122, %v4115, %v4119
  %v4124 = vand.u32 2147483647, %v4114
  %vm4125 = vcmp.eq.f32.partialorder %v4124, 8.507059e+37
  %v4126 = vand.u32 %v4114, 2147483648
  %v4127 = vor.u32 1.1754944e-38, %v4126
  %v4128 = vsel %vm4125, %v4127, %v4123
  %v4129 = vmul.f32 1.0, %v4128
  %v4130 = vmul.f32 %v4109, %v3006
  %v4131 = vmul.f32 %v4090, %v4110
  %v4132 = vadd.f32 %v4130, %v4131
  %v4133 = vtanh.pop %v4132
  %v4134 = vmul.f32 %v4129, %v4133
  %v4135 = vxor.u32 %v4068, 2147483648
  %v4136 = vmul.f32 %v4135, 1.442695
  %v4137 = vpow.pop %v4136
  %v4138 = vadd.f32 %v4137, 1.0
  %v4139 = vrcp.pop %v4138
  %v4140 = vmul.f32 %v4138, %v4139
  %v4141 = vsub.f32 1.0, %v4140
  %v4142 = vmul.f32 %v4139, %v4141
  %v4143 = vadd.f32 %v4139, %v4142
  %vm4144 = vweird.f32 %v4138
  %vm4145 = vweird.f32 %v4139
  %vm4146 = vmor %vm4144, %vm4145
  %v4147 = vsel %vm4146, %v4139, %v4143
  %v4148 = vand.u32 2147483647, %v4138
  %vm4149 = vcmp.eq.f32.partialorder %v4148, 8.507059e+37
  %v4150 = vand.u32 %v4138, 2147483648
  %v4151 = vor.u32 1.1754944e-38, %v4150
  %v4152 = vsel %vm4149, %v4151, %v4147
  %v4153 = vmul.f32 1.0, %v4152
  %v4154 = vxor.u32 %v4069, 2147483648
  %v4155 = vmul.f32 %v4154, 1.442695
  %v4156 = vpow.pop %v4155
  %v4157 = vadd.f32 %v4156, 1.0
  %v4158 = vrcp.pop %v4157
  %v4159 = vmul.f32 %v4157, %v4158
  %v4160 = vsub.f32 1.0, %v4159
  %v4161 = vmul.f32 %v4158, %v4160
  %v4162 = vadd.f32 %v4158, %v4161
  %vm4163 = vweird.f32 %v4157
  %vm4164 = vweird.f32 %v4158
  %vm4165 = vmor %vm4163, %vm4164
  %v4166 = vsel %vm4165, %v4158, %v4162
  %v4167 = vand.u32 2147483647, %v4157
  %vm4168 = vcmp.eq.f32.partialorder %v4167, 8.507059e+37
  %v4169 = vand.u32 %v4157, 2147483648
  %v4170 = vor.u32 1.1754944e-38, %v4169
  %v4171 = vsel %vm4168, %v4170, %v4166
  %v4172 = vmul.f32 1.0, %v4171
  %v4173 = vtanh.pop %v4070
  %v4174 = vxor.u32 %v4071, 2147483648
  %v4175 = vmul.f32 %v4174, 1.442695
  %v4176 = vpow.pop %v4175
  %v4177 = vadd.f32 %v4176, 1.0
  %v4178 = vrcp.pop %v4177
  %v4179 = vmul.f32 %v4177, %v4178
  %v4180 = vsub.f32 1.0, %v4179
  %v4181 = vmul.f32 %v4178, %v4180
  %v4182 = vadd.f32 %v4178, %v4181
  %vm4183 = vweird.f32 %v4177
  %vm4184 = vweird.f32 %v4178
  %vm4185 = vmor %vm4183, %vm4184
  %v4186 = vsel %vm4185, %v4178, %v4182
  %v4187 = vand.u32 2147483647, %v4177
  %vm4188 = vcmp.eq.f32.partialorder %v4187, 8.507059e+37
  %v4189 = vand.u32 %v4177, 2147483648
  %v4190 = vor.u32 1.1754944e-38, %v4189
  %v4191 = vsel %vm4188, %v4190, %v4186
  %v4192 = vmul.f32 1.0, %v4191
  %v4193 = vmul.f32 %v4172, %v3069
  %v4194 = vmul.f32 %v4153, %v4173
  %v4195 = vadd.f32 %v4193, %v4194
  %v4196 = vtanh.pop %v4195
  %v4197 = vmul.f32 %v4192, %v4196
  %s4198 = scalar_lea.vmem [#allocation3], 32
  %4199 = vst [vmem:[%s4198] sm:$0xff] %v4134
  %s4200 = scalar_lea.vmem [#allocation3], 80
  %4201 = vst [vmem:[%s4200 + $0x8] sm:$0xff] %v4197
  %v4202 = vpack.c.bf16 %v4134, %v4134
  %v4203 = vpack.c.bf16 %v4197, %v4197
  %v4204 = vld [vmem:[%s5] sm:$0xff]
  %v4205 = vld [vmem:[%s5 + $0x8] sm:$0xff]
  %v4206 = vld [vmem:[%s5 + $0x10] sm:$0xff]
  %v4207 = vld [vmem:[%s5 + $0x18] sm:$0xff]
  %v4208 = vld [vmem:[%s5 + $0x20] sm:$0xff]
  %v4209 = vld [vmem:[%s5 + $0x28] sm:$0xff]
  %v4210 = vld [vmem:[%s5 + $0x30] sm:$0xff]
  %v4211 = vld [vmem:[%s5 + $0x38] sm:$0xff]
  %v4212 = vld [vmem:[%s5 + $0x40] sm:$0xff]
  %v4213 = vld [vmem:[%s5 + $0x48] sm:$0xff]
  %v4214 = vld [vmem:[%s5 + $0x50] sm:$0xff]
  %v4215 = vld [vmem:[%s5 + $0x58] sm:$0xff]
  %v4216 = vld [vmem:[%s5 + $0x60] sm:$0xff]
  %v4217 = vld [vmem:[%s5 + $0x68] sm:$0xff]
  %v4218 = vld [vmem:[%s5 + $0x70] sm:$0xff]
  %v4219 = vld [vmem:[%s5 + $0x78] sm:$0xff]
  %v4220 = vld [vmem:[%s5 + $0x80] sm:$0xff]
  %v4221 = vld [vmem:[%s5 + $0x88] sm:$0xff]
  %v4222 = vld [vmem:[%s5 + $0x90] sm:$0xff]
  %v4223 = vld [vmem:[%s5 + $0x98] sm:$0xff]
  %v4224 = vld [vmem:[%s5 + $0xa0] sm:$0xff]
  %v4225 = vld [vmem:[%s5 + $0xa8] sm:$0xff]
  %v4226 = vld [vmem:[%s5 + $0xb0] sm:$0xff]
  %v4227 = vld [vmem:[%s5 + $0xb8] sm:$0xff]
  %v4228 = vld [vmem:[%s5 + $0xc0] sm:$0xff]
  %v4229 = vld [vmem:[%s5 + $0xc8] sm:$0xff]
  %v4230 = vld [vmem:[%s5 + $0xd0] sm:$0xff]
  %v4231 = vld [vmem:[%s5 + $0xd8] sm:$0xff]
  %v4232 = vld [vmem:[%s5 + $0xe0] sm:$0xff]
  %v4233 = vld [vmem:[%s5 + $0xe8] sm:$0xff]
  %v4234 = vld [vmem:[%s5 + $0xf0] sm:$0xff]
  %v4235 = vld [vmem:[%s5 + $0xf8] sm:$0xff]
  %v4236 = vld [vmem:[%s5 + $0x100] sm:$0xff]
  %v4237 = vld [vmem:[%s5 + $0x108] sm:$0xff]
  %v4238 = vld [vmem:[%s5 + $0x110] sm:$0xff]
  %v4239 = vld [vmem:[%s5 + $0x118] sm:$0xff]
  %v4240 = vld [vmem:[%s5 + $0x120] sm:$0xff]
  %v4241 = vld [vmem:[%s5 + $0x128] sm:$0xff]
  %v4242 = vld [vmem:[%s5 + $0x130] sm:$0xff]
  %v4243 = vld [vmem:[%s5 + $0x138] sm:$0xff]
  %v4244 = vld [vmem:[%s5 + $0x140] sm:$0xff]
  %v4245 = vld [vmem:[%s5 + $0x148] sm:$0xff]
  %v4246 = vld [vmem:[%s5 + $0x150] sm:$0xff]
  %v4247 = vld [vmem:[%s5 + $0x158] sm:$0xff]
  %v4248 = vld [vmem:[%s5 + $0x160] sm:$0xff]
  %v4249 = vld [vmem:[%s5 + $0x168] sm:$0xff]
  %v4250 = vld [vmem:[%s5 + $0x170] sm:$0xff]
  %v4251 = vld [vmem:[%s5 + $0x178] sm:$0xff]
  %v4252 = vld [vmem:[%s5 + $0x180] sm:$0xff]
  %v4253 = vld [vmem:[%s5 + $0x188] sm:$0xff]
  %v4254 = vld [vmem:[%s5 + $0x190] sm:$0xff]
  %v4255 = vld [vmem:[%s5 + $0x198] sm:$0xff]
  %v4256 = vld [vmem:[%s5 + $0x1a0] sm:$0xff]
  %v4257 = vld [vmem:[%s5 + $0x1a8] sm:$0xff]
  %v4258 = vld [vmem:[%s5 + $0x1b0] sm:$0xff]
  %v4259 = vld [vmem:[%s5 + $0x1b8] sm:$0xff]
  %v4260 = vld [vmem:[%s5 + $0x1c0] sm:$0xff]
  %v4261 = vld [vmem:[%s5 + $0x1c8] sm:$0xff]
  %v4262 = vld [vmem:[%s5 + $0x1d0] sm:$0xff]
  %v4263 = vld [vmem:[%s5 + $0x1d8] sm:$0xff]
  %v4264 = vld [vmem:[%s5 + $0x1e0] sm:$0xff]
  %v4265 = vld [vmem:[%s5 + $0x1e8] sm:$0xff]
  %v4266 = vld [vmem:[%s5 + $0x1f0] sm:$0xff]
  %v4267 = vld [vmem:[%s5 + $0x1f8] sm:$0xff]
  %v4268 = vld [vmem:[%s5 + $0x200] sm:$0xff]
  %v4269 = vld [vmem:[%s5 + $0x208] sm:$0xff]
  %v4270 = vld [vmem:[%s5 + $0x210] sm:$0xff]
  %v4271 = vld [vmem:[%s5 + $0x218] sm:$0xff]
  %v4272 = vld [vmem:[%s5 + $0x220] sm:$0xff]
  %v4273 = vld [vmem:[%s5 + $0x228] sm:$0xff]
  %v4274 = vld [vmem:[%s5 + $0x230] sm:$0xff]
  %v4275 = vld [vmem:[%s5 + $0x238] sm:$0xff]
  %v4276 = vld [vmem:[%s5 + $0x240] sm:$0xff]
  %v4277 = vld [vmem:[%s5 + $0x248] sm:$0xff]
  %v4278 = vld [vmem:[%s5 + $0x250] sm:$0xff]
  %v4279 = vld [vmem:[%s5 + $0x258] sm:$0xff]
  %v4280 = vld [vmem:[%s5 + $0x260] sm:$0xff]
  %v4281 = vld [vmem:[%s5 + $0x268] sm:$0xff]
  %v4282 = vld [vmem:[%s5 + $0x270] sm:$0xff]
  %v4283 = vld [vmem:[%s5 + $0x278] sm:$0xff]
  %v4284 = vld [vmem:[%s5 + $0x280] sm:$0xff]
  %v4285 = vld [vmem:[%s5 + $0x288] sm:$0xff]
  %v4286 = vld [vmem:[%s5 + $0x290] sm:$0xff]
  %v4287 = vld [vmem:[%s5 + $0x298] sm:$0xff]
  %v4288 = vld [vmem:[%s5 + $0x2a0] sm:$0xff]
  %v4289 = vld [vmem:[%s5 + $0x2a8] sm:$0xff]
  %v4290 = vld [vmem:[%s5 + $0x2b0] sm:$0xff]
  %v4291 = vld [vmem:[%s5 + $0x2b8] sm:$0xff]
  %v4292 = vld [vmem:[%s5 + $0x2c0] sm:$0xff]
  %v4293 = vld [vmem:[%s5 + $0x2c8] sm:$0xff]
  %v4294 = vld [vmem:[%s5 + $0x2d0] sm:$0xff]
  %v4295 = vld [vmem:[%s5 + $0x2d8] sm:$0xff]
  %v4296 = vld [vmem:[%s5 + $0x2e0] sm:$0xff]
  %v4297 = vld [vmem:[%s5 + $0x2e8] sm:$0xff]
  %v4298 = vld [vmem:[%s5 + $0x2f0] sm:$0xff]
  %v4299 = vld [vmem:[%s5 + $0x2f8] sm:$0xff]
  %v4300 = vld [vmem:[%s5 + $0x300] sm:$0xff]
  %v4301 = vld [vmem:[%s5 + $0x308] sm:$0xff]
  %v4302 = vld [vmem:[%s5 + $0x310] sm:$0xff]
  %v4303 = vld [vmem:[%s5 + $0x318] sm:$0xff]
  %v4304 = vld [vmem:[%s5 + $0x320] sm:$0xff]
  %v4305 = vld [vmem:[%s5 + $0x328] sm:$0xff]
  %v4306 = vld [vmem:[%s5 + $0x330] sm:$0xff]
  %v4307 = vld [vmem:[%s5 + $0x338] sm:$0xff]
  %v4308 = vld [vmem:[%s5 + $0x340] sm:$0xff]
  %v4309 = vld [vmem:[%s5 + $0x348] sm:$0xff]
  %v4310 = vld [vmem:[%s5 + $0x350] sm:$0xff]
  %v4311 = vld [vmem:[%s5 + $0x358] sm:$0xff]
  %v4312 = vld [vmem:[%s5 + $0x360] sm:$0xff]
  %v4313 = vld [vmem:[%s5 + $0x368] sm:$0xff]
  %v4314 = vld [vmem:[%s5 + $0x370] sm:$0xff]
  %v4315 = vld [vmem:[%s5 + $0x378] sm:$0xff]
  %v4316 = vld [vmem:[%s5 + $0x380] sm:$0xff]
  %v4317 = vld [vmem:[%s5 + $0x388] sm:$0xff]
  %v4318 = vld [vmem:[%s5 + $0x390] sm:$0xff]
  %v4319 = vld [vmem:[%s5 + $0x398] sm:$0xff]
  %v4320 = vld [vmem:[%s5 + $0x3a0] sm:$0xff]
  %v4321 = vld [vmem:[%s5 + $0x3a8] sm:$0xff]
  %v4322 = vld [vmem:[%s5 + $0x3b0] sm:$0xff]
  %v4323 = vld [vmem:[%s5 + $0x3b8] sm:$0xff]
  %v4324 = vld [vmem:[%s5 + $0x3c0] sm:$0xff]
  %v4325 = vld [vmem:[%s5 + $0x3c8] sm:$0xff]
  %v4326 = vld [vmem:[%s5 + $0x3d0] sm:$0xff]
  %v4327 = vld [vmem:[%s5 + $0x3d8] sm:$0xff]
  %v4328 = vld [vmem:[%s5 + $0x3e0] sm:$0xff]
  %v4329 = vld [vmem:[%s5 + $0x3e8] sm:$0xff]
  %v4330 = vld [vmem:[%s5 + $0x3f0] sm:$0xff]
  %v4331 = vld [vmem:[%s5 + $0x3f8] sm:$0xff]
  %v4460 = vunpack.c.l.b16 %v4204
  %v4461 = vunpack.c.h.b16 %v4204
  %v4462 = vunpack.c.l.b16 %v4205
  %v4463 = vunpack.c.h.b16 %v4205
  %v4464 = vunpack.c.l.b16 %v4206
  %v4465 = vunpack.c.h.b16 %v4206
  %v4466 = vunpack.c.l.b16 %v4207
  %v4467 = vunpack.c.h.b16 %v4207
  %v4468 = vunpack.c.l.b16 %v4208
  %v4469 = vunpack.c.h.b16 %v4208
  %v4470 = vunpack.c.l.b16 %v4209
  %v4471 = vunpack.c.h.b16 %v4209
  %v4472 = vunpack.c.l.b16 %v4210
  %v4473 = vunpack.c.h.b16 %v4210
  %v4474 = vunpack.c.l.b16 %v4211
  %v4475 = vunpack.c.h.b16 %v4211
  %v4476 = vunpack.c.l.b16 %v4212
  %v4477 = vunpack.c.h.b16 %v4212
  %v4478 = vunpack.c.l.b16 %v4213
  %v4479 = vunpack.c.h.b16 %v4213
  %v4480 = vunpack.c.l.b16 %v4214
  %v4481 = vunpack.c.h.b16 %v4214
  %v4482 = vunpack.c.l.b16 %v4215
  %v4483 = vunpack.c.h.b16 %v4215
  %v4484 = vunpack.c.l.b16 %v4216
  %v4485 = vunpack.c.h.b16 %v4216
  %v4486 = vunpack.c.l.b16 %v4217
  %v4487 = vunpack.c.h.b16 %v4217
  %v4488 = vunpack.c.l.b16 %v4218
  %v4489 = vunpack.c.h.b16 %v4218
  %v4490 = vunpack.c.l.b16 %v4219
  %v4491 = vunpack.c.h.b16 %v4219
  %v4492 = vunpack.c.l.b16 %v4220
  %v4493 = vunpack.c.h.b16 %v4220
  %v4494 = vunpack.c.l.b16 %v4221
  %v4495 = vunpack.c.h.b16 %v4221
  %v4496 = vunpack.c.l.b16 %v4222
  %v4497 = vunpack.c.h.b16 %v4222
  %v4498 = vunpack.c.l.b16 %v4223
  %v4499 = vunpack.c.h.b16 %v4223
  %v4500 = vunpack.c.l.b16 %v4224
  %v4501 = vunpack.c.h.b16 %v4224
  %v4502 = vunpack.c.l.b16 %v4225
  %v4503 = vunpack.c.h.b16 %v4225
  %v4504 = vunpack.c.l.b16 %v4226
  %v4505 = vunpack.c.h.b16 %v4226
  %v4506 = vunpack.c.l.b16 %v4227
  %v4507 = vunpack.c.h.b16 %v4227
  %v4508 = vunpack.c.l.b16 %v4228
  %v4509 = vunpack.c.h.b16 %v4228
  %v4510 = vunpack.c.l.b16 %v4229
  %v4511 = vunpack.c.h.b16 %v4229
  %v4512 = vunpack.c.l.b16 %v4230
  %v4513 = vunpack.c.h.b16 %v4230
  %v4514 = vunpack.c.l.b16 %v4231
  %v4515 = vunpack.c.h.b16 %v4231
  %v4516 = vunpack.c.l.b16 %v4232
  %v4517 = vunpack.c.h.b16 %v4232
  %v4518 = vunpack.c.l.b16 %v4233
  %v4519 = vunpack.c.h.b16 %v4233
  %v4520 = vunpack.c.l.b16 %v4234
  %v4521 = vunpack.c.h.b16 %v4234
  %v4522 = vunpack.c.l.b16 %v4235
  %v4523 = vunpack.c.h.b16 %v4235
  %v4524 = vunpack.c.l.b16 %v4236
  %v4525 = vunpack.c.h.b16 %v4236
  %v4526 = vunpack.c.l.b16 %v4237
  %v4527 = vunpack.c.h.b16 %v4237
  %v4528 = vunpack.c.l.b16 %v4238
  %v4529 = vunpack.c.h.b16 %v4238
  %v4530 = vunpack.c.l.b16 %v4239
  %v4531 = vunpack.c.h.b16 %v4239
  %v4532 = vunpack.c.l.b16 %v4240
  %v4533 = vunpack.c.h.b16 %v4240
  %v4534 = vunpack.c.l.b16 %v4241
  %v4535 = vunpack.c.h.b16 %v4241
  %v4536 = vunpack.c.l.b16 %v4242
  %v4537 = vunpack.c.h.b16 %v4242
  %v4538 = vunpack.c.l.b16 %v4243
  %v4539 = vunpack.c.h.b16 %v4243
  %v4540 = vunpack.c.l.b16 %v4244
  %v4541 = vunpack.c.h.b16 %v4244
  %v4542 = vunpack.c.l.b16 %v4245
  %v4543 = vunpack.c.h.b16 %v4245
  %v4544 = vunpack.c.l.b16 %v4246
  %v4545 = vunpack.c.h.b16 %v4246
  %v4546 = vunpack.c.l.b16 %v4247
  %v4547 = vunpack.c.h.b16 %v4247
  %v4548 = vunpack.c.l.b16 %v4248
  %v4549 = vunpack.c.h.b16 %v4248
  %v4550 = vunpack.c.l.b16 %v4249
  %v4551 = vunpack.c.h.b16 %v4249
  %v4552 = vunpack.c.l.b16 %v4250
  %v4553 = vunpack.c.h.b16 %v4250
  %v4554 = vunpack.c.l.b16 %v4251
  %v4555 = vunpack.c.h.b16 %v4251
  %v4556 = vunpack.c.l.b16 %v4252
  %v4557 = vunpack.c.h.b16 %v4252
  %v4558 = vunpack.c.l.b16 %v4253
  %v4559 = vunpack.c.h.b16 %v4253
  %v4560 = vunpack.c.l.b16 %v4254
  %v4561 = vunpack.c.h.b16 %v4254
  %v4562 = vunpack.c.l.b16 %v4255
  %v4563 = vunpack.c.h.b16 %v4255
  %v4564 = vunpack.c.l.b16 %v4256
  %v4565 = vunpack.c.h.b16 %v4256
  %v4566 = vunpack.c.l.b16 %v4257
  %v4567 = vunpack.c.h.b16 %v4257
  %v4568 = vunpack.c.l.b16 %v4258
  %v4569 = vunpack.c.h.b16 %v4258
  %v4570 = vunpack.c.l.b16 %v4259
  %v4571 = vunpack.c.h.b16 %v4259
  %v4572 = vunpack.c.l.b16 %v4260
  %v4573 = vunpack.c.h.b16 %v4260
  %v4574 = vunpack.c.l.b16 %v4261
  %v4575 = vunpack.c.h.b16 %v4261
  %v4576 = vunpack.c.l.b16 %v4262
  %v4577 = vunpack.c.h.b16 %v4262
  %v4578 = vunpack.c.l.b16 %v4263
  %v4579 = vunpack.c.h.b16 %v4263
  %v4580 = vunpack.c.l.b16 %v4264
  %v4581 = vunpack.c.h.b16 %v4264
  %v4582 = vunpack.c.l.b16 %v4265
  %v4583 = vunpack.c.h.b16 %v4265
  %v4584 = vunpack.c.l.b16 %v4266
  %v4585 = vunpack.c.h.b16 %v4266
  %v4586 = vunpack.c.l.b16 %v4267
  %v4587 = vunpack.c.h.b16 %v4267
  %v4588 = vunpack.c.l.b16 %v4268
  %v4589 = vunpack.c.h.b16 %v4268
  %v4590 = vunpack.c.l.b16 %v4269
  %v4591 = vunpack.c.h.b16 %v4269
  %v4592 = vunpack.c.l.b16 %v4270
  %v4593 = vunpack.c.h.b16 %v4270
  %v4594 = vunpack.c.l.b16 %v4271
  %v4595 = vunpack.c.h.b16 %v4271
  %v4596 = vunpack.c.l.b16 %v4272
  %v4597 = vunpack.c.h.b16 %v4272
  %v4598 = vunpack.c.l.b16 %v4273
  %v4599 = vunpack.c.h.b16 %v4273
  %v4600 = vunpack.c.l.b16 %v4274
  %v4601 = vunpack.c.h.b16 %v4274
  %v4602 = vunpack.c.l.b16 %v4275
  %v4603 = vunpack.c.h.b16 %v4275
  %v4604 = vunpack.c.l.b16 %v4276
  %v4605 = vunpack.c.h.b16 %v4276
  %v4606 = vunpack.c.l.b16 %v4277
  %v4607 = vunpack.c.h.b16 %v4277
  %v4608 = vunpack.c.l.b16 %v4278
  %v4609 = vunpack.c.h.b16 %v4278
  %v4610 = vunpack.c.l.b16 %v4279
  %v4611 = vunpack.c.h.b16 %v4279
  %v4612 = vunpack.c.l.b16 %v4280
  %v4613 = vunpack.c.h.b16 %v4280
  %v4614 = vunpack.c.l.b16 %v4281
  %v4615 = vunpack.c.h.b16 %v4281
  %v4616 = vunpack.c.l.b16 %v4282
  %v4617 = vunpack.c.h.b16 %v4282
  %v4618 = vunpack.c.l.b16 %v4283
  %v4619 = vunpack.c.h.b16 %v4283
  %v4620 = vunpack.c.l.b16 %v4284
  %v4621 = vunpack.c.h.b16 %v4284
  %v4622 = vunpack.c.l.b16 %v4285
  %v4623 = vunpack.c.h.b16 %v4285
  %v4624 = vunpack.c.l.b16 %v4286
  %v4625 = vunpack.c.h.b16 %v4286
  %v4626 = vunpack.c.l.b16 %v4287
  %v4627 = vunpack.c.h.b16 %v4287
  %v4628 = vunpack.c.l.b16 %v4288
  %v4629 = vunpack.c.h.b16 %v4288
  %v4630 = vunpack.c.l.b16 %v4289
  %v4631 = vunpack.c.h.b16 %v4289
  %v4632 = vunpack.c.l.b16 %v4290
  %v4633 = vunpack.c.h.b16 %v4290
  %v4634 = vunpack.c.l.b16 %v4291
  %v4635 = vunpack.c.h.b16 %v4291
  %v4636 = vunpack.c.l.b16 %v4292
  %v4637 = vunpack.c.h.b16 %v4292
  %v4638 = vunpack.c.l.b16 %v4293
  %v4639 = vunpack.c.h.b16 %v4293
  %v4640 = vunpack.c.l.b16 %v4294
  %v4641 = vunpack.c.h.b16 %v4294
  %v4642 = vunpack.c.l.b16 %v4295
  %v4643 = vunpack.c.h.b16 %v4295
  %v4644 = vunpack.c.l.b16 %v4296
  %v4645 = vunpack.c.h.b16 %v4296
  %v4646 = vunpack.c.l.b16 %v4297
  %v4647 = vunpack.c.h.b16 %v4297
  %v4648 = vunpack.c.l.b16 %v4298
  %v4649 = vunpack.c.h.b16 %v4298
  %v4650 = vunpack.c.l.b16 %v4299
  %v4651 = vunpack.c.h.b16 %v4299
  %v4652 = vunpack.c.l.b16 %v4300
  %v4653 = vunpack.c.h.b16 %v4300
  %v4654 = vunpack.c.l.b16 %v4301
  %v4655 = vunpack.c.h.b16 %v4301
  %v4656 = vunpack.c.l.b16 %v4302
  %v4657 = vunpack.c.h.b16 %v4302
  %v4658 = vunpack.c.l.b16 %v4303
  %v4659 = vunpack.c.h.b16 %v4303
  %v4660 = vunpack.c.l.b16 %v4304
  %v4661 = vunpack.c.h.b16 %v4304
  %v4662 = vunpack.c.l.b16 %v4305
  %v4663 = vunpack.c.h.b16 %v4305
  %v4664 = vunpack.c.l.b16 %v4306
  %v4665 = vunpack.c.h.b16 %v4306
  %v4666 = vunpack.c.l.b16 %v4307
  %v4667 = vunpack.c.h.b16 %v4307
  %v4668 = vunpack.c.l.b16 %v4308
  %v4669 = vunpack.c.h.b16 %v4308
  %v4670 = vunpack.c.l.b16 %v4309
  %v4671 = vunpack.c.h.b16 %v4309
  %v4672 = vunpack.c.l.b16 %v4310
  %v4673 = vunpack.c.h.b16 %v4310
  %v4674 = vunpack.c.l.b16 %v4311
  %v4675 = vunpack.c.h.b16 %v4311
  %v4676 = vunpack.c.l.b16 %v4312
  %v4677 = vunpack.c.h.b16 %v4312
  %v4678 = vunpack.c.l.b16 %v4313
  %v4679 = vunpack.c.h.b16 %v4313
  %v4680 = vunpack.c.l.b16 %v4314
  %v4681 = vunpack.c.h.b16 %v4314
  %v4682 = vunpack.c.l.b16 %v4315
  %v4683 = vunpack.c.h.b16 %v4315
  %v4684 = vunpack.c.l.b16 %v4316
  %v4685 = vunpack.c.h.b16 %v4316
  %v4686 = vunpack.c.l.b16 %v4317
  %v4687 = vunpack.c.h.b16 %v4317
  %v4688 = vunpack.c.l.b16 %v4318
  %v4689 = vunpack.c.h.b16 %v4318
  %v4690 = vunpack.c.l.b16 %v4319
  %v4691 = vunpack.c.h.b16 %v4319
  %v4692 = vunpack.c.l.b16 %v4320
  %v4693 = vunpack.c.h.b16 %v4320
  %v4694 = vunpack.c.l.b16 %v4321
  %v4695 = vunpack.c.h.b16 %v4321
  %v4696 = vunpack.c.l.b16 %v4322
  %v4697 = vunpack.c.h.b16 %v4322
  %v4698 = vunpack.c.l.b16 %v4323
  %v4699 = vunpack.c.h.b16 %v4323
  %v4700 = vunpack.c.l.b16 %v4324
  %v4701 = vunpack.c.h.b16 %v4324
  %v4702 = vunpack.c.l.b16 %v4325
  %v4703 = vunpack.c.h.b16 %v4325
  %v4704 = vunpack.c.l.b16 %v4326
  %v4705 = vunpack.c.h.b16 %v4326
  %v4706 = vunpack.c.l.b16 %v4327
  %v4707 = vunpack.c.h.b16 %v4327
  %v4708 = vunpack.c.l.b16 %v4328
  %v4709 = vunpack.c.h.b16 %v4328
  %v4710 = vunpack.c.l.b16 %v4329
  %v4711 = vunpack.c.h.b16 %v4329
  %v4712 = vunpack.c.l.b16 %v4330
  %v4713 = vunpack.c.h.b16 %v4330
  %v4714 = vunpack.c.l.b16 %v4331
  %v4715 = vunpack.c.h.b16 %v4331
  %v4716 = vpack.c.b16 %v4468, %v4460
  %v4717 = vpack.c.b16 %v4469, %v4461
  %v4718 = vpack.c.b16 %v4470, %v4462
  %v4719 = vpack.c.b16 %v4471, %v4463
  %v4720 = vpack.c.b16 %v4472, %v4464
  %v4721 = vpack.c.b16 %v4473, %v4465
  %v4722 = vpack.c.b16 %v4474, %v4466
  %v4723 = vpack.c.b16 %v4475, %v4467
  %v4724 = vpack.c.b16 %v4484, %v4476
  %v4725 = vpack.c.b16 %v4485, %v4477
  %v4726 = vpack.c.b16 %v4486, %v4478
  %v4727 = vpack.c.b16 %v4487, %v4479
  %v4728 = vpack.c.b16 %v4488, %v4480
  %v4729 = vpack.c.b16 %v4489, %v4481
  %v4730 = vpack.c.b16 %v4490, %v4482
  %v4731 = vpack.c.b16 %v4491, %v4483
  %v4732 = vpack.c.b16 %v4500, %v4492
  %v4733 = vpack.c.b16 %v4501, %v4493
  %v4734 = vpack.c.b16 %v4502, %v4494
  %v4735 = vpack.c.b16 %v4503, %v4495
  %v4736 = vpack.c.b16 %v4504, %v4496
  %v4737 = vpack.c.b16 %v4505, %v4497
  %v4738 = vpack.c.b16 %v4506, %v4498
  %v4739 = vpack.c.b16 %v4507, %v4499
  %v4740 = vpack.c.b16 %v4516, %v4508
  %v4741 = vpack.c.b16 %v4517, %v4509
  %v4742 = vpack.c.b16 %v4518, %v4510
  %v4743 = vpack.c.b16 %v4519, %v4511
  %v4744 = vpack.c.b16 %v4520, %v4512
  %v4745 = vpack.c.b16 %v4521, %v4513
  %v4746 = vpack.c.b16 %v4522, %v4514
  %v4747 = vpack.c.b16 %v4523, %v4515
  %v4748 = vpack.c.b16 %v4532, %v4524
  %v4749 = vpack.c.b16 %v4533, %v4525
  %v4750 = vpack.c.b16 %v4534, %v4526
  %v4751 = vpack.c.b16 %v4535, %v4527
  %v4752 = vpack.c.b16 %v4536, %v4528
  %v4753 = vpack.c.b16 %v4537, %v4529
  %v4754 = vpack.c.b16 %v4538, %v4530
  %v4755 = vpack.c.b16 %v4539, %v4531
  %v4756 = vpack.c.b16 %v4548, %v4540
  %v4757 = vpack.c.b16 %v4549, %v4541
  %v4758 = vpack.c.b16 %v4550, %v4542
  %v4759 = vpack.c.b16 %v4551, %v4543
  %v4760 = vpack.c.b16 %v4552, %v4544
  %v4761 = vpack.c.b16 %v4553, %v4545
  %v4762 = vpack.c.b16 %v4554, %v4546
  %v4763 = vpack.c.b16 %v4555, %v4547
  %v4764 = vpack.c.b16 %v4564, %v4556
  %v4765 = vpack.c.b16 %v4565, %v4557
  %v4766 = vpack.c.b16 %v4566, %v4558
  %v4767 = vpack.c.b16 %v4567, %v4559
  %v4768 = vpack.c.b16 %v4568, %v4560
  %v4769 = vpack.c.b16 %v4569, %v4561
  %v4770 = vpack.c.b16 %v4570, %v4562
  %v4771 = vpack.c.b16 %v4571, %v4563
  %v4772 = vpack.c.b16 %v4580, %v4572
  %v4773 = vpack.c.b16 %v4581, %v4573
  %v4774 = vpack.c.b16 %v4582, %v4574
  %v4775 = vpack.c.b16 %v4583, %v4575
  %v4776 = vpack.c.b16 %v4584, %v4576
  %v4777 = vpack.c.b16 %v4585, %v4577
  %v4778 = vpack.c.b16 %v4586, %v4578
  %v4779 = vpack.c.b16 %v4587, %v4579
  %v4780 = vpack.c.b16 %v4596, %v4588
  %v4781 = vpack.c.b16 %v4597, %v4589
  %v4782 = vpack.c.b16 %v4598, %v4590
  %v4783 = vpack.c.b16 %v4599, %v4591
  %v4784 = vpack.c.b16 %v4600, %v4592
  %v4785 = vpack.c.b16 %v4601, %v4593
  %v4786 = vpack.c.b16 %v4602, %v4594
  %v4787 = vpack.c.b16 %v4603, %v4595
  %v4788 = vpack.c.b16 %v4612, %v4604
  %v4789 = vpack.c.b16 %v4613, %v4605
  %v4790 = vpack.c.b16 %v4614, %v4606
  %v4791 = vpack.c.b16 %v4615, %v4607
  %v4792 = vpack.c.b16 %v4616, %v4608
  %v4793 = vpack.c.b16 %v4617, %v4609
  %v4794 = vpack.c.b16 %v4618, %v4610
  %v4795 = vpack.c.b16 %v4619, %v4611
  %v4796 = vpack.c.b16 %v4628, %v4620
  %v4797 = vpack.c.b16 %v4629, %v4621
  %v4798 = vpack.c.b16 %v4630, %v4622
  %v4799 = vpack.c.b16 %v4631, %v4623
  %v4800 = vpack.c.b16 %v4632, %v4624
  %v4801 = vpack.c.b16 %v4633, %v4625
  %v4802 = vpack.c.b16 %v4634, %v4626
  %v4803 = vpack.c.b16 %v4635, %v4627
  %v4804 = vpack.c.b16 %v4644, %v4636
  %v4805 = vpack.c.b16 %v4645, %v4637
  %v4806 = vpack.c.b16 %v4646, %v4638
  %v4807 = vpack.c.b16 %v4647, %v4639
  %v4808 = vpack.c.b16 %v4648, %v4640
  %v4809 = vpack.c.b16 %v4649, %v4641
  %v4810 = vpack.c.b16 %v4650, %v4642
  %v4811 = vpack.c.b16 %v4651, %v4643
  %v4812 = vpack.c.b16 %v4660, %v4652
  %v4813 = vpack.c.b16 %v4661, %v4653
  %v4814 = vpack.c.b16 %v4662, %v4654
  %v4815 = vpack.c.b16 %v4663, %v4655
  %v4816 = vpack.c.b16 %v4664, %v4656
  %v4817 = vpack.c.b16 %v4665, %v4657
  %v4818 = vpack.c.b16 %v4666, %v4658
  %v4819 = vpack.c.b16 %v4667, %v4659
  %v4820 = vpack.c.b16 %v4676, %v4668
  %v4821 = vpack.c.b16 %v4677, %v4669
  %v4822 = vpack.c.b16 %v4678, %v4670
  %v4823 = vpack.c.b16 %v4679, %v4671
  %v4824 = vpack.c.b16 %v4680, %v4672
  %v4825 = vpack.c.b16 %v4681, %v4673
  %v4826 = vpack.c.b16 %v4682, %v4674
  %v4827 = vpack.c.b16 %v4683, %v4675
  %v4828 = vpack.c.b16 %v4692, %v4684
  %v4829 = vpack.c.b16 %v4693, %v4685
  %v4830 = vpack.c.b16 %v4694, %v4686
  %v4831 = vpack.c.b16 %v4695, %v4687
  %v4832 = vpack.c.b16 %v4696, %v4688
  %v4833 = vpack.c.b16 %v4697, %v4689
  %v4834 = vpack.c.b16 %v4698, %v4690
  %v4835 = vpack.c.b16 %v4699, %v4691
  %v4836 = vpack.c.b16 %v4708, %v4700
  %v4837 = vpack.c.b16 %v4709, %v4701
  %v4838 = vpack.c.b16 %v4710, %v4702
  %v4839 = vpack.c.b16 %v4711, %v4703
  %v4840 = vpack.c.b16 %v4712, %v4704
  %v4841 = vpack.c.b16 %v4713, %v4705
  %v4842 = vpack.c.b16 %v4714, %v4706
  %v4843 = vpack.c.b16 %v4715, %v4707
  %4972 = vmatpush.bf16.msra.mxu0 %v4772
  %4973 = vmatpush.bf16.msra.mxu0 %v4764
  %4974 = vmatpush.bf16.msra.mxu0 %v4756
  %4975 = vmatpush.bf16.msra.mxu0 %v4748
  %4976 = vmatpush.bf16.msra.mxu0 %v4740
  %4977 = vmatpush.bf16.msra.mxu0 %v4732
  %4978 = vmatpush.bf16.msra.mxu0 %v4724
  %4979 = vmatpush.bf16.msra.mxu0 %v4716
  %4980 = vmatmul.bf16.gmra.mxu0 %v4202
  %v4981 = vpop.f32.mrf.mxu0
  %v4982 = vadd.f32 0.0, %v4981
  %v4983 = vpop.f32.mrf.mxu0
  %4984 = vdwg.mxu0
  %4985 = vmatpush.bf16.msra.mxu0 %v4836
  %4986 = vmatpush.bf16.msra.mxu0 %v4828
  %4987 = vmatpush.bf16.msra.mxu0 %v4820
  %4988 = vmatpush.bf16.msra.mxu0 %v4812
  %4989 = vmatpush.bf16.msra.mxu0 %v4804
  %4990 = vmatpush.bf16.msra.mxu0 %v4796
  %4991 = vmatpush.bf16.msra.mxu0 %v4788
  %4992 = vmatpush.bf16.msra.mxu0 %v4780
  %4993 = vmatmul.bf16.gmra.mxu0 %v4203
  %v4994 = vpop.f32.mrf.mxu0
  %v4995 = vadd.f32 %v4982, %v4994
  %v4996 = vpop.f32.mrf.mxu0
  %4997 = vdwg.mxu0
  %4998 = vmatpush.bf16.msra.mxu0 %v4773
  %4999 = vmatpush.bf16.msra.mxu0 %v4765
  %5000 = vmatpush.bf16.msra.mxu0 %v4757
  %5001 = vmatpush.bf16.msra.mxu0 %v4749
  %5002 = vmatpush.bf16.msra.mxu0 %v4741
  %5003 = vmatpush.bf16.msra.mxu0 %v4733
  %5004 = vmatpush.bf16.msra.mxu0 %v4725
  %5005 = vmatpush.bf16.msra.mxu0 %v4717
  %5006 = vmatmul.bf16.gmra.mxu0 %v4202
  %v5007 = vpop.f32.mrf.mxu0
  %v5008 = vadd.f32 0.0, %v5007
  %v5009 = vpop.f32.mrf.mxu0
  %5010 = vdwg.mxu0
  %5011 = vmatpush.bf16.msra.mxu0 %v4837
  %5012 = vmatpush.bf16.msra.mxu0 %v4829
  %5013 = vmatpush.bf16.msra.mxu0 %v4821
  %5014 = vmatpush.bf16.msra.mxu0 %v4813
  %5015 = vmatpush.bf16.msra.mxu0 %v4805
  %5016 = vmatpush.bf16.msra.mxu0 %v4797
  %5017 = vmatpush.bf16.msra.mxu0 %v4789
  %5018 = vmatpush.bf16.msra.mxu0 %v4781
  %5019 = vmatmul.bf16.gmra.mxu0 %v4203
  %v5020 = vpop.f32.mrf.mxu0
  %v5021 = vadd.f32 %v5008, %v5020
  %v5022 = vpop.f32.mrf.mxu0
  %5023 = vdwg.mxu0
  %5024 = vmatpush.bf16.msra.mxu0 %v4774
  %5025 = vmatpush.bf16.msra.mxu0 %v4766
  %5026 = vmatpush.bf16.msra.mxu0 %v4758
  %5027 = vmatpush.bf16.msra.mxu0 %v4750
  %5028 = vmatpush.bf16.msra.mxu0 %v4742
  %5029 = vmatpush.bf16.msra.mxu0 %v4734
  %5030 = vmatpush.bf16.msra.mxu0 %v4726
  %5031 = vmatpush.bf16.msra.mxu0 %v4718
  %5032 = vmatmul.bf16.gmra.mxu0 %v4202
  %v5033 = vpop.f32.mrf.mxu0
  %v5034 = vadd.f32 0.0, %v5033
  %v5035 = vpop.f32.mrf.mxu0
  %5036 = vdwg.mxu0
  %5037 = vmatpush.bf16.msra.mxu0 %v4838
  %5038 = vmatpush.bf16.msra.mxu0 %v4830
  %5039 = vmatpush.bf16.msra.mxu0 %v4822
  %5040 = vmatpush.bf16.msra.mxu0 %v4814
  %5041 = vmatpush.bf16.msra.mxu0 %v4806
  %5042 = vmatpush.bf16.msra.mxu0 %v4798
  %5043 = vmatpush.bf16.msra.mxu0 %v4790
  %5044 = vmatpush.bf16.msra.mxu0 %v4782
  %5045 = vmatmul.bf16.gmra.mxu0 %v4203
  %v5046 = vpop.f32.mrf.mxu0
  %v5047 = vadd.f32 %v5034, %v5046
  %v5048 = vpop.f32.mrf.mxu0
  %5049 = vdwg.mxu0
  %5050 = vmatpush.bf16.msra.mxu0 %v4775
  %5051 = vmatpush.bf16.msra.mxu0 %v4767
  %5052 = vmatpush.bf16.msra.mxu0 %v4759
  %5053 = vmatpush.bf16.msra.mxu0 %v4751
  %5054 = vmatpush.bf16.msra.mxu0 %v4743
  %5055 = vmatpush.bf16.msra.mxu0 %v4735
  %5056 = vmatpush.bf16.msra.mxu0 %v4727
  %5057 = vmatpush.bf16.msra.mxu0 %v4719
  %5058 = vmatmul.bf16.gmra.mxu0 %v4202
  %v5059 = vpop.f32.mrf.mxu0
  %v5060 = vadd.f32 0.0, %v5059
  %v5061 = vpop.f32.mrf.mxu0
  %5062 = vdwg.mxu0
  %5063 = vmatpush.bf16.msra.mxu0 %v4839
  %5064 = vmatpush.bf16.msra.mxu0 %v4831
  %5065 = vmatpush.bf16.msra.mxu0 %v4823
  %5066 = vmatpush.bf16.msra.mxu0 %v4815
  %5067 = vmatpush.bf16.msra.mxu0 %v4807
  %5068 = vmatpush.bf16.msra.mxu0 %v4799
  %5069 = vmatpush.bf16.msra.mxu0 %v4791
  %5070 = vmatpush.bf16.msra.mxu0 %v4783
  %5071 = vmatmul.bf16.gmra.mxu0 %v4203
  %v5072 = vpop.f32.mrf.mxu0
  %v5073 = vadd.f32 %v5060, %v5072
  %v5074 = vpop.f32.mrf.mxu0
  %5075 = vdwg.mxu0
  %5076 = vmatpush.bf16.msra.mxu0 %v4776
  %5077 = vmatpush.bf16.msra.mxu0 %v4768
  %5078 = vmatpush.bf16.msra.mxu0 %v4760
  %5079 = vmatpush.bf16.msra.mxu0 %v4752
  %5080 = vmatpush.bf16.msra.mxu0 %v4744
  %5081 = vmatpush.bf16.msra.mxu0 %v4736
  %5082 = vmatpush.bf16.msra.mxu0 %v4728
  %5083 = vmatpush.bf16.msra.mxu0 %v4720
  %5084 = vmatmul.bf16.gmra.mxu0 %v4202
  %v5085 = vpop.f32.mrf.mxu0
  %v5086 = vadd.f32 0.0, %v5085
  %v5087 = vpop.f32.mrf.mxu0
  %5088 = vdwg.mxu0
  %5089 = vmatpush.bf16.msra.mxu0 %v4840
  %5090 = vmatpush.bf16.msra.mxu0 %v4832
  %5091 = vmatpush.bf16.msra.mxu0 %v4824
  %5092 = vmatpush.bf16.msra.mxu0 %v4816
  %5093 = vmatpush.bf16.msra.mxu0 %v4808
  %5094 = vmatpush.bf16.msra.mxu0 %v4800
  %5095 = vmatpush.bf16.msra.mxu0 %v4792
  %5096 = vmatpush.bf16.msra.mxu0 %v4784
  %5097 = vmatmul.bf16.gmra.mxu0 %v4203
  %v5098 = vpop.f32.mrf.mxu0
  %v5099 = vadd.f32 %v5086, %v5098
  %v5100 = vpop.f32.mrf.mxu0
  %5101 = vdwg.mxu0
  %5102 = vmatpush.bf16.msra.mxu0 %v4777
  %5103 = vmatpush.bf16.msra.mxu0 %v4769
  %5104 = vmatpush.bf16.msra.mxu0 %v4761
  %5105 = vmatpush.bf16.msra.mxu0 %v4753
  %5106 = vmatpush.bf16.msra.mxu0 %v4745
  %5107 = vmatpush.bf16.msra.mxu0 %v4737
  %5108 = vmatpush.bf16.msra.mxu0 %v4729
  %5109 = vmatpush.bf16.msra.mxu0 %v4721
  %5110 = vmatmul.bf16.gmra.mxu0 %v4202
  %v5111 = vpop.f32.mrf.mxu0
  %v5112 = vadd.f32 0.0, %v5111
  %v5113 = vpop.f32.mrf.mxu0
  %5114 = vdwg.mxu0
  %5115 = vmatpush.bf16.msra.mxu0 %v4841
  %5116 = vmatpush.bf16.msra.mxu0 %v4833
  %5117 = vmatpush.bf16.msra.mxu0 %v4825
  %5118 = vmatpush.bf16.msra.mxu0 %v4817
  %5119 = vmatpush.bf16.msra.mxu0 %v4809
  %5120 = vmatpush.bf16.msra.mxu0 %v4801
  %5121 = vmatpush.bf16.msra.mxu0 %v4793
  %5122 = vmatpush.bf16.msra.mxu0 %v4785
  %5123 = vmatmul.bf16.gmra.mxu0 %v4203
  %v5124 = vpop.f32.mrf.mxu0
  %v5125 = vadd.f32 %v5112, %v5124
  %v5126 = vpop.f32.mrf.mxu0
  %5127 = vdwg.mxu0
  %5128 = vmatpush.bf16.msra.mxu0 %v4778
  %5129 = vmatpush.bf16.msra.mxu0 %v4770
  %5130 = vmatpush.bf16.msra.mxu0 %v4762
  %5131 = vmatpush.bf16.msra.mxu0 %v4754
  %5132 = vmatpush.bf16.msra.mxu0 %v4746
  %5133 = vmatpush.bf16.msra.mxu0 %v4738
  %5134 = vmatpush.bf16.msra.mxu0 %v4730
  %5135 = vmatpush.bf16.msra.mxu0 %v4722
  %5136 = vmatmul.bf16.gmra.mxu0 %v4202
  %v5137 = vpop.f32.mrf.mxu0
  %v5138 = vadd.f32 0.0, %v5137
  %v5139 = vpop.f32.mrf.mxu0
  %5140 = vdwg.mxu0
  %5141 = vmatpush.bf16.msra.mxu0 %v4842
  %5142 = vmatpush.bf16.msra.mxu0 %v4834
  %5143 = vmatpush.bf16.msra.mxu0 %v4826
  %5144 = vmatpush.bf16.msra.mxu0 %v4818
  %5145 = vmatpush.bf16.msra.mxu0 %v4810
  %5146 = vmatpush.bf16.msra.mxu0 %v4802
  %5147 = vmatpush.bf16.msra.mxu0 %v4794
  %5148 = vmatpush.bf16.msra.mxu0 %v4786
  %5149 = vmatmul.bf16.gmra.mxu0 %v4203
  %v5150 = vpop.f32.mrf.mxu0
  %v5151 = vadd.f32 %v5138, %v5150
  %v5152 = vpop.f32.mrf.mxu0
  %5153 = vdwg.mxu0
  %5154 = vmatpush.bf16.msra.mxu0 %v4779
  %5155 = vmatpush.bf16.msra.mxu0 %v4771
  %5156 = vmatpush.bf16.msra.mxu0 %v4763
  %5157 = vmatpush.bf16.msra.mxu0 %v4755
  %5158 = vmatpush.bf16.msra.mxu0 %v4747
  %5159 = vmatpush.bf16.msra.mxu0 %v4739
  %5160 = vmatpush.bf16.msra.mxu0 %v4731
  %5161 = vmatpush.bf16.msra.mxu0 %v4723
  %5162 = vmatmul.bf16.gmra.mxu0 %v4202
  %v5163 = vpop.f32.mrf.mxu0
  %v5164 = vadd.f32 0.0, %v5163
  %v5165 = vpop.f32.mrf.mxu0
  %5166 = vdwg.mxu0
  %5167 = vmatpush.bf16.msra.mxu0 %v4843
  %5168 = vmatpush.bf16.msra.mxu0 %v4835
  %5169 = vmatpush.bf16.msra.mxu0 %v4827
  %5170 = vmatpush.bf16.msra.mxu0 %v4819
  %5171 = vmatpush.bf16.msra.mxu0 %v4811
  %5172 = vmatpush.bf16.msra.mxu0 %v4803
  %5173 = vmatpush.bf16.msra.mxu0 %v4795
  %5174 = vmatpush.bf16.msra.mxu0 %v4787
  %5175 = vmatmul.bf16.gmra.mxu0 %v4203
  %v5176 = vpop.f32.mrf.mxu0
  %v5177 = vadd.f32 %v5164, %v5176
  %v5178 = vpop.f32.mrf.mxu0
  %5179 = vdwg.mxu0
  %s5180 = scalar_lea.vmem [#allocation2], 192
  %v5181 = vld [vmem:[%s5180] sm:$0xff]
  %v5182 = vld [vmem:[%s5180 + $0x8] sm:$0xff]
  %v5183 = vld [vmem:[%s5180 + $0x10] sm:$0xff]
  %v5184 = vld [vmem:[%s5180 + $0x18] sm:$0xff]
  %v5185 = vadd.f32 %v5181, %v4995
  %v5186 = vadd.f32 %v5182, %v5021
  %v5187 = vadd.f32 %v5183, %v5047
  %v5188 = vadd.f32 %v5184, %v5073
  %s5189 = scalar_lea.vmem [#allocation2], 256
  %v5190 = vld [vmem:[%s5189 + $0x20] sm:$0xff]
  %v5191 = vld [vmem:[%s5189 + $0x28] sm:$0xff]
  %v5192 = vld [vmem:[%s5189 + $0x30] sm:$0xff]
  %v5193 = vld [vmem:[%s5189 + $0x38] sm:$0xff]
  %v5194 = vadd.f32 %v5190, %v5099
  %v5195 = vadd.f32 %v5191, %v5125
  %v5196 = vadd.f32 %v5192, %v5151
  %v5197 = vadd.f32 %v5193, %v5177
  %v5198 = vxor.u32 %v5185, 2147483648
  %v5199 = vmul.f32 %v5198, 1.442695
  %v5200 = vpow.pop %v5199
  %v5201 = vadd.f32 %v5200, 1.0
  %v5202 = vrcp.pop %v5201
  %v5203 = vmul.f32 %v5201, %v5202
  %v5204 = vsub.f32 1.0, %v5203
  %v5205 = vmul.f32 %v5202, %v5204
  %v5206 = vadd.f32 %v5202, %v5205
  %vm5207 = vweird.f32 %v5201
  %vm5208 = vweird.f32 %v5202
  %vm5209 = vmor %vm5207, %vm5208
  %v5210 = vsel %vm5209, %v5202, %v5206
  %v5211 = vand.u32 2147483647, %v5201
  %vm5212 = vcmp.eq.f32.partialorder %v5211, 8.507059e+37
  %v5213 = vand.u32 %v5201, 2147483648
  %v5214 = vor.u32 1.1754944e-38, %v5213
  %v5215 = vsel %vm5212, %v5214, %v5210
  %v5216 = vmul.f32 1.0, %v5215
  %v5217 = vxor.u32 %v5186, 2147483648
  %v5218 = vmul.f32 %v5217, 1.442695
  %v5219 = vpow.pop %v5218
  %v5220 = vadd.f32 %v5219, 1.0
  %v5221 = vrcp.pop %v5220
  %v5222 = vmul.f32 %v5220, %v5221
  %v5223 = vsub.f32 1.0, %v5222
  %v5224 = vmul.f32 %v5221, %v5223
  %v5225 = vadd.f32 %v5221, %v5224
  %vm5226 = vweird.f32 %v5220
  %vm5227 = vweird.f32 %v5221
  %vm5228 = vmor %vm5226, %vm5227
  %v5229 = vsel %vm5228, %v5221, %v5225
  %v5230 = vand.u32 2147483647, %v5220
  %vm5231 = vcmp.eq.f32.partialorder %v5230, 8.507059e+37
  %v5232 = vand.u32 %v5220, 2147483648
  %v5233 = vor.u32 1.1754944e-38, %v5232
  %v5234 = vsel %vm5231, %v5233, %v5229
  %v5235 = vmul.f32 1.0, %v5234
  %v5236 = vtanh.pop %v5187
  %v5237 = vxor.u32 %v5188, 2147483648
  %v5238 = vmul.f32 %v5237, 1.442695
  %v5239 = vpow.pop %v5238
  %v5240 = vadd.f32 %v5239, 1.0
  %v5241 = vrcp.pop %v5240
  %v5242 = vmul.f32 %v5240, %v5241
  %v5243 = vsub.f32 1.0, %v5242
  %v5244 = vmul.f32 %v5241, %v5243
  %v5245 = vadd.f32 %v5241, %v5244
  %vm5246 = vweird.f32 %v5240
  %vm5247 = vweird.f32 %v5241
  %vm5248 = vmor %vm5246, %vm5247
  %v5249 = vsel %vm5248, %v5241, %v5245
  %v5250 = vand.u32 2147483647, %v5240
  %vm5251 = vcmp.eq.f32.partialorder %v5250, 8.507059e+37
  %v5252 = vand.u32 %v5240, 2147483648
  %v5253 = vor.u32 1.1754944e-38, %v5252
  %v5254 = vsel %vm5251, %v5253, %v5249
  %v5255 = vmul.f32 1.0, %v5254
  %v5256 = vmul.f32 %v5235, %v4132
  %v5257 = vmul.f32 %v5216, %v5236
  %v5258 = vadd.f32 %v5256, %v5257
  %v5259 = vtanh.pop %v5258
  %v5260 = vmul.f32 %v5255, %v5259
  %v5261 = vxor.u32 %v5194, 2147483648
  %v5262 = vmul.f32 %v5261, 1.442695
  %v5263 = vpow.pop %v5262
  %v5264 = vadd.f32 %v5263, 1.0
  %v5265 = vrcp.pop %v5264
  %v5266 = vmul.f32 %v5264, %v5265
  %v5267 = vsub.f32 1.0, %v5266
  %v5268 = vmul.f32 %v5265, %v5267
  %v5269 = vadd.f32 %v5265, %v5268
  %vm5270 = vweird.f32 %v5264
  %vm5271 = vweird.f32 %v5265
  %vm5272 = vmor %vm5270, %vm5271
  %v5273 = vsel %vm5272, %v5265, %v5269
  %v5274 = vand.u32 2147483647, %v5264
  %vm5275 = vcmp.eq.f32.partialorder %v5274, 8.507059e+37
  %v5276 = vand.u32 %v5264, 2147483648
  %v5277 = vor.u32 1.1754944e-38, %v5276
  %v5278 = vsel %vm5275, %v5277, %v5273
  %v5279 = vmul.f32 1.0, %v5278
  %v5280 = vxor.u32 %v5195, 2147483648
  %v5281 = vmul.f32 %v5280, 1.442695
  %v5282 = vpow.pop %v5281
  %v5283 = vadd.f32 %v5282, 1.0
  %v5284 = vrcp.pop %v5283
  %v5285 = vmul.f32 %v5283, %v5284
  %v5286 = vsub.f32 1.0, %v5285
  %v5287 = vmul.f32 %v5284, %v5286
  %v5288 = vadd.f32 %v5284, %v5287
  %vm5289 = vweird.f32 %v5283
  %vm5290 = vweird.f32 %v5284
  %vm5291 = vmor %vm5289, %vm5290
  %v5292 = vsel %vm5291, %v5284, %v5288
  %v5293 = vand.u32 2147483647, %v5283
  %vm5294 = vcmp.eq.f32.partialorder %v5293, 8.507059e+37
  %v5295 = vand.u32 %v5283, 2147483648
  %v5296 = vor.u32 1.1754944e-38, %v5295
  %v5297 = vsel %vm5294, %v5296, %v5292
  %v5298 = vmul.f32 1.0, %v5297
  %v5299 = vtanh.pop %v5196
  %v5300 = vxor.u32 %v5197, 2147483648
  %v5301 = vmul.f32 %v5300, 1.442695
  %v5302 = vpow.pop %v5301
  %v5303 = vadd.f32 %v5302, 1.0
  %v5304 = vrcp.pop %v5303
  %v5305 = vmul.f32 %v5303, %v5304
  %v5306 = vsub.f32 1.0, %v5305
  %v5307 = vmul.f32 %v5304, %v5306
  %v5308 = vadd.f32 %v5304, %v5307
  %vm5309 = vweird.f32 %v5303
  %vm5310 = vweird.f32 %v5304
  %vm5311 = vmor %vm5309, %vm5310
  %v5312 = vsel %vm5311, %v5304, %v5308
  %v5313 = vand.u32 2147483647, %v5303
  %vm5314 = vcmp.eq.f32.partialorder %v5313, 8.507059e+37
  %v5315 = vand.u32 %v5303, 2147483648
  %v5316 = vor.u32 1.1754944e-38, %v5315
  %v5317 = vsel %vm5314, %v5316, %v5312
  %v5318 = vmul.f32 1.0, %v5317
  %v5319 = vmul.f32 %v5298, %v4195
  %v5320 = vmul.f32 %v5279, %v5299
  %v5321 = vadd.f32 %v5319, %v5320
  %v5322 = vtanh.pop %v5321
  %v5323 = vmul.f32 %v5318, %v5322
  %s5324 = scalar_lea.vmem [#allocation3], 48
  %5325 = vst [vmem:[%s5324] sm:$0xff] %v5260
  %s5326 = scalar_lea.vmem [#allocation3], 64
  %5327 = vst [vmem:[%s5326 + $0x8] sm:$0xff] %v5323
  %v5328 = vpack.c.bf16 %v5260, %v5260
  %v5329 = vpack.c.bf16 %v5323, %v5323
  %v5330 = vld [vmem:[%s5] sm:$0xff]
  %v5331 = vld [vmem:[%s5 + $0x8] sm:$0xff]
  %v5332 = vld [vmem:[%s5 + $0x10] sm:$0xff]
  %v5333 = vld [vmem:[%s5 + $0x18] sm:$0xff]
  %v5334 = vld [vmem:[%s5 + $0x20] sm:$0xff]
  %v5335 = vld [vmem:[%s5 + $0x28] sm:$0xff]
  %v5336 = vld [vmem:[%s5 + $0x30] sm:$0xff]
  %v5337 = vld [vmem:[%s5 + $0x38] sm:$0xff]
  %v5338 = vld [vmem:[%s5 + $0x40] sm:$0xff]
  %v5339 = vld [vmem:[%s5 + $0x48] sm:$0xff]
  %v5340 = vld [vmem:[%s5 + $0x50] sm:$0xff]
  %v5341 = vld [vmem:[%s5 + $0x58] sm:$0xff]
  %v5342 = vld [vmem:[%s5 + $0x60] sm:$0xff]
  %v5343 = vld [vmem:[%s5 + $0x68] sm:$0xff]
  %v5344 = vld [vmem:[%s5 + $0x70] sm:$0xff]
  %v5345 = vld [vmem:[%s5 + $0x78] sm:$0xff]
  %v5346 = vld [vmem:[%s5 + $0x80] sm:$0xff]
  %v5347 = vld [vmem:[%s5 + $0x88] sm:$0xff]
  %v5348 = vld [vmem:[%s5 + $0x90] sm:$0xff]
  %v5349 = vld [vmem:[%s5 + $0x98] sm:$0xff]
  %v5350 = vld [vmem:[%s5 + $0xa0] sm:$0xff]
  %v5351 = vld [vmem:[%s5 + $0xa8] sm:$0xff]
  %v5352 = vld [vmem:[%s5 + $0xb0] sm:$0xff]
  %v5353 = vld [vmem:[%s5 + $0xb8] sm:$0xff]
  %v5354 = vld [vmem:[%s5 + $0xc0] sm:$0xff]
  %v5355 = vld [vmem:[%s5 + $0xc8] sm:$0xff]
  %v5356 = vld [vmem:[%s5 + $0xd0] sm:$0xff]
  %v5357 = vld [vmem:[%s5 + $0xd8] sm:$0xff]
  %v5358 = vld [vmem:[%s5 + $0xe0] sm:$0xff]
  %v5359 = vld [vmem:[%s5 + $0xe8] sm:$0xff]
  %v5360 = vld [vmem:[%s5 + $0xf0] sm:$0xff]
  %v5361 = vld [vmem:[%s5 + $0xf8] sm:$0xff]
  %v5362 = vld [vmem:[%s5 + $0x100] sm:$0xff]
  %v5363 = vld [vmem:[%s5 + $0x108] sm:$0xff]
  %v5364 = vld [vmem:[%s5 + $0x110] sm:$0xff]
  %v5365 = vld [vmem:[%s5 + $0x118] sm:$0xff]
  %v5366 = vld [vmem:[%s5 + $0x120] sm:$0xff]
  %v5367 = vld [vmem:[%s5 + $0x128] sm:$0xff]
  %v5368 = vld [vmem:[%s5 + $0x130] sm:$0xff]
  %v5369 = vld [vmem:[%s5 + $0x138] sm:$0xff]
  %v5370 = vld [vmem:[%s5 + $0x140] sm:$0xff]
  %v5371 = vld [vmem:[%s5 + $0x148] sm:$0xff]
  %v5372 = vld [vmem:[%s5 + $0x150] sm:$0xff]
  %v5373 = vld [vmem:[%s5 + $0x158] sm:$0xff]
  %v5374 = vld [vmem:[%s5 + $0x160] sm:$0xff]
  %v5375 = vld [vmem:[%s5 + $0x168] sm:$0xff]
  %v5376 = vld [vmem:[%s5 + $0x170] sm:$0xff]
  %v5377 = vld [vmem:[%s5 + $0x178] sm:$0xff]
  %v5378 = vld [vmem:[%s5 + $0x180] sm:$0xff]
  %v5379 = vld [vmem:[%s5 + $0x188] sm:$0xff]
  %v5380 = vld [vmem:[%s5 + $0x190] sm:$0xff]
  %v5381 = vld [vmem:[%s5 + $0x198] sm:$0xff]
  %v5382 = vld [vmem:[%s5 + $0x1a0] sm:$0xff]
  %v5383 = vld [vmem:[%s5 + $0x1a8] sm:$0xff]
  %v5384 = vld [vmem:[%s5 + $0x1b0] sm:$0xff]
  %v5385 = vld [vmem:[%s5 + $0x1b8] sm:$0xff]
  %v5386 = vld [vmem:[%s5 + $0x1c0] sm:$0xff]
  %v5387 = vld [vmem:[%s5 + $0x1c8] sm:$0xff]
  %v5388 = vld [vmem:[%s5 + $0x1d0] sm:$0xff]
  %v5389 = vld [vmem:[%s5 + $0x1d8] sm:$0xff]
  %v5390 = vld [vmem:[%s5 + $0x1e0] sm:$0xff]
  %v5391 = vld [vmem:[%s5 + $0x1e8] sm:$0xff]
  %v5392 = vld [vmem:[%s5 + $0x1f0] sm:$0xff]
  %v5393 = vld [vmem:[%s5 + $0x1f8] sm:$0xff]
  %v5394 = vld [vmem:[%s5 + $0x200] sm:$0xff]
  %v5395 = vld [vmem:[%s5 + $0x208] sm:$0xff]
  %v5396 = vld [vmem:[%s5 + $0x210] sm:$0xff]
  %v5397 = vld [vmem:[%s5 + $0x218] sm:$0xff]
  %v5398 = vld [vmem:[%s5 + $0x220] sm:$0xff]
  %v5399 = vld [vmem:[%s5 + $0x228] sm:$0xff]
  %v5400 = vld [vmem:[%s5 + $0x230] sm:$0xff]
  %v5401 = vld [vmem:[%s5 + $0x238] sm:$0xff]
  %v5402 = vld [vmem:[%s5 + $0x240] sm:$0xff]
  %v5403 = vld [vmem:[%s5 + $0x248] sm:$0xff]
  %v5404 = vld [vmem:[%s5 + $0x250] sm:$0xff]
  %v5405 = vld [vmem:[%s5 + $0x258] sm:$0xff]
  %v5406 = vld [vmem:[%s5 + $0x260] sm:$0xff]
  %v5407 = vld [vmem:[%s5 + $0x268] sm:$0xff]
  %v5408 = vld [vmem:[%s5 + $0x270] sm:$0xff]
  %v5409 = vld [vmem:[%s5 + $0x278] sm:$0xff]
  %v5410 = vld [vmem:[%s5 + $0x280] sm:$0xff]
  %v5411 = vld [vmem:[%s5 + $0x288] sm:$0xff]
  %v5412 = vld [vmem:[%s5 + $0x290] sm:$0xff]
  %v5413 = vld [vmem:[%s5 + $0x298] sm:$0xff]
  %v5414 = vld [vmem:[%s5 + $0x2a0] sm:$0xff]
  %v5415 = vld [vmem:[%s5 + $0x2a8] sm:$0xff]
  %v5416 = vld [vmem:[%s5 + $0x2b0] sm:$0xff]
  %v5417 = vld [vmem:[%s5 + $0x2b8] sm:$0xff]
  %v5418 = vld [vmem:[%s5 + $0x2c0] sm:$0xff]
  %v5419 = vld [vmem:[%s5 + $0x2c8] sm:$0xff]
  %v5420 = vld [vmem:[%s5 + $0x2d0] sm:$0xff]
  %v5421 = vld [vmem:[%s5 + $0x2d8] sm:$0xff]
  %v5422 = vld [vmem:[%s5 + $0x2e0] sm:$0xff]
  %v5423 = vld [vmem:[%s5 + $0x2e8] sm:$0xff]
  %v5424 = vld [vmem:[%s5 + $0x2f0] sm:$0xff]
  %v5425 = vld [vmem:[%s5 + $0x2f8] sm:$0xff]
  %v5426 = vld [vmem:[%s5 + $0x300] sm:$0xff]
  %v5427 = vld [vmem:[%s5 + $0x308] sm:$0xff]
  %v5428 = vld [vmem:[%s5 + $0x310] sm:$0xff]
  %v5429 = vld [vmem:[%s5 + $0x318] sm:$0xff]
  %v5430 = vld [vmem:[%s5 + $0x320] sm:$0xff]
  %v5431 = vld [vmem:[%s5 + $0x328] sm:$0xff]
  %v5432 = vld [vmem:[%s5 + $0x330] sm:$0xff]
  %v5433 = vld [vmem:[%s5 + $0x338] sm:$0xff]
  %v5434 = vld [vmem:[%s5 + $0x340] sm:$0xff]
  %v5435 = vld [vmem:[%s5 + $0x348] sm:$0xff]
  %v5436 = vld [vmem:[%s5 + $0x350] sm:$0xff]
  %v5437 = vld [vmem:[%s5 + $0x358] sm:$0xff]
  %v5438 = vld [vmem:[%s5 + $0x360] sm:$0xff]
  %v5439 = vld [vmem:[%s5 + $0x368] sm:$0xff]
  %v5440 = vld [vmem:[%s5 + $0x370] sm:$0xff]
  %v5441 = vld [vmem:[%s5 + $0x378] sm:$0xff]
  %v5442 = vld [vmem:[%s5 + $0x380] sm:$0xff]
  %v5443 = vld [vmem:[%s5 + $0x388] sm:$0xff]
  %v5444 = vld [vmem:[%s5 + $0x390] sm:$0xff]
  %v5445 = vld [vmem:[%s5 + $0x398] sm:$0xff]
  %v5446 = vld [vmem:[%s5 + $0x3a0] sm:$0xff]
  %v5447 = vld [vmem:[%s5 + $0x3a8] sm:$0xff]
  %v5448 = vld [vmem:[%s5 + $0x3b0] sm:$0xff]
  %v5449 = vld [vmem:[%s5 + $0x3b8] sm:$0xff]
  %v5450 = vld [vmem:[%s5 + $0x3c0] sm:$0xff]
  %v5451 = vld [vmem:[%s5 + $0x3c8] sm:$0xff]
  %v5452 = vld [vmem:[%s5 + $0x3d0] sm:$0xff]
  %v5453 = vld [vmem:[%s5 + $0x3d8] sm:$0xff]
  %v5454 = vld [vmem:[%s5 + $0x3e0] sm:$0xff]
  %v5455 = vld [vmem:[%s5 + $0x3e8] sm:$0xff]
  %v5456 = vld [vmem:[%s5 + $0x3f0] sm:$0xff]
  %v5457 = vld [vmem:[%s5 + $0x3f8] sm:$0xff]
  %v5586 = vunpack.c.l.b16 %v5330
  %v5587 = vunpack.c.h.b16 %v5330
  %v5588 = vunpack.c.l.b16 %v5331
  %v5589 = vunpack.c.h.b16 %v5331
  %v5590 = vunpack.c.l.b16 %v5332
  %v5591 = vunpack.c.h.b16 %v5332
  %v5592 = vunpack.c.l.b16 %v5333
  %v5593 = vunpack.c.h.b16 %v5333
  %v5594 = vunpack.c.l.b16 %v5334
  %v5595 = vunpack.c.h.b16 %v5334
  %v5596 = vunpack.c.l.b16 %v5335
  %v5597 = vunpack.c.h.b16 %v5335
  %v5598 = vunpack.c.l.b16 %v5336
  %v5599 = vunpack.c.h.b16 %v5336
  %v5600 = vunpack.c.l.b16 %v5337
  %v5601 = vunpack.c.h.b16 %v5337
  %v5602 = vunpack.c.l.b16 %v5338
  %v5603 = vunpack.c.h.b16 %v5338
  %v5604 = vunpack.c.l.b16 %v5339
  %v5605 = vunpack.c.h.b16 %v5339
  %v5606 = vunpack.c.l.b16 %v5340
  %v5607 = vunpack.c.h.b16 %v5340
  %v5608 = vunpack.c.l.b16 %v5341
  %v5609 = vunpack.c.h.b16 %v5341
  %v5610 = vunpack.c.l.b16 %v5342
  %v5611 = vunpack.c.h.b16 %v5342
  %v5612 = vunpack.c.l.b16 %v5343
  %v5613 = vunpack.c.h.b16 %v5343
  %v5614 = vunpack.c.l.b16 %v5344
  %v5615 = vunpack.c.h.b16 %v5344
  %v5616 = vunpack.c.l.b16 %v5345
  %v5617 = vunpack.c.h.b16 %v5345
  %v5618 = vunpack.c.l.b16 %v5346
  %v5619 = vunpack.c.h.b16 %v5346
  %v5620 = vunpack.c.l.b16 %v5347
  %v5621 = vunpack.c.h.b16 %v5347
  %v5622 = vunpack.c.l.b16 %v5348
  %v5623 = vunpack.c.h.b16 %v5348
  %v5624 = vunpack.c.l.b16 %v5349
  %v5625 = vunpack.c.h.b16 %v5349
  %v5626 = vunpack.c.l.b16 %v5350
  %v5627 = vunpack.c.h.b16 %v5350
  %v5628 = vunpack.c.l.b16 %v5351
  %v5629 = vunpack.c.h.b16 %v5351
  %v5630 = vunpack.c.l.b16 %v5352
  %v5631 = vunpack.c.h.b16 %v5352
  %v5632 = vunpack.c.l.b16 %v5353
  %v5633 = vunpack.c.h.b16 %v5353
  %v5634 = vunpack.c.l.b16 %v5354
  %v5635 = vunpack.c.h.b16 %v5354
  %v5636 = vunpack.c.l.b16 %v5355
  %v5637 = vunpack.c.h.b16 %v5355
  %v5638 = vunpack.c.l.b16 %v5356
  %v5639 = vunpack.c.h.b16 %v5356
  %v5640 = vunpack.c.l.b16 %v5357
  %v5641 = vunpack.c.h.b16 %v5357
  %v5642 = vunpack.c.l.b16 %v5358
  %v5643 = vunpack.c.h.b16 %v5358
  %v5644 = vunpack.c.l.b16 %v5359
  %v5645 = vunpack.c.h.b16 %v5359
  %v5646 = vunpack.c.l.b16 %v5360
  %v5647 = vunpack.c.h.b16 %v5360
  %v5648 = vunpack.c.l.b16 %v5361
  %v5649 = vunpack.c.h.b16 %v5361
  %v5650 = vunpack.c.l.b16 %v5362
  %v5651 = vunpack.c.h.b16 %v5362
  %v5652 = vunpack.c.l.b16 %v5363
  %v5653 = vunpack.c.h.b16 %v5363
  %v5654 = vunpack.c.l.b16 %v5364
  %v5655 = vunpack.c.h.b16 %v5364
  %v5656 = vunpack.c.l.b16 %v5365
  %v5657 = vunpack.c.h.b16 %v5365
  %v5658 = vunpack.c.l.b16 %v5366
  %v5659 = vunpack.c.h.b16 %v5366
  %v5660 = vunpack.c.l.b16 %v5367
  %v5661 = vunpack.c.h.b16 %v5367
  %v5662 = vunpack.c.l.b16 %v5368
  %v5663 = vunpack.c.h.b16 %v5368
  %v5664 = vunpack.c.l.b16 %v5369
  %v5665 = vunpack.c.h.b16 %v5369
  %v5666 = vunpack.c.l.b16 %v5370
  %v5667 = vunpack.c.h.b16 %v5370
  %v5668 = vunpack.c.l.b16 %v5371
  %v5669 = vunpack.c.h.b16 %v5371
  %v5670 = vunpack.c.l.b16 %v5372
  %v5671 = vunpack.c.h.b16 %v5372
  %v5672 = vunpack.c.l.b16 %v5373
  %v5673 = vunpack.c.h.b16 %v5373
  %v5674 = vunpack.c.l.b16 %v5374
  %v5675 = vunpack.c.h.b16 %v5374
  %v5676 = vunpack.c.l.b16 %v5375
  %v5677 = vunpack.c.h.b16 %v5375
  %v5678 = vunpack.c.l.b16 %v5376
  %v5679 = vunpack.c.h.b16 %v5376
  %v5680 = vunpack.c.l.b16 %v5377
  %v5681 = vunpack.c.h.b16 %v5377
  %v5682 = vunpack.c.l.b16 %v5378
  %v5683 = vunpack.c.h.b16 %v5378
  %v5684 = vunpack.c.l.b16 %v5379
  %v5685 = vunpack.c.h.b16 %v5379
  %v5686 = vunpack.c.l.b16 %v5380
  %v5687 = vunpack.c.h.b16 %v5380
  %v5688 = vunpack.c.l.b16 %v5381
  %v5689 = vunpack.c.h.b16 %v5381
  %v5690 = vunpack.c.l.b16 %v5382
  %v5691 = vunpack.c.h.b16 %v5382
  %v5692 = vunpack.c.l.b16 %v5383
  %v5693 = vunpack.c.h.b16 %v5383
  %v5694 = vunpack.c.l.b16 %v5384
  %v5695 = vunpack.c.h.b16 %v5384
  %v5696 = vunpack.c.l.b16 %v5385
  %v5697 = vunpack.c.h.b16 %v5385
  %v5698 = vunpack.c.l.b16 %v5386
  %v5699 = vunpack.c.h.b16 %v5386
  %v5700 = vunpack.c.l.b16 %v5387
  %v5701 = vunpack.c.h.b16 %v5387
  %v5702 = vunpack.c.l.b16 %v5388
  %v5703 = vunpack.c.h.b16 %v5388
  %v5704 = vunpack.c.l.b16 %v5389
  %v5705 = vunpack.c.h.b16 %v5389
  %v5706 = vunpack.c.l.b16 %v5390
  %v5707 = vunpack.c.h.b16 %v5390
  %v5708 = vunpack.c.l.b16 %v5391
  %v5709 = vunpack.c.h.b16 %v5391
  %v5710 = vunpack.c.l.b16 %v5392
  %v5711 = vunpack.c.h.b16 %v5392
  %v5712 = vunpack.c.l.b16 %v5393
  %v5713 = vunpack.c.h.b16 %v5393
  %v5714 = vunpack.c.l.b16 %v5394
  %v5715 = vunpack.c.h.b16 %v5394
  %v5716 = vunpack.c.l.b16 %v5395
  %v5717 = vunpack.c.h.b16 %v5395
  %v5718 = vunpack.c.l.b16 %v5396
  %v5719 = vunpack.c.h.b16 %v5396
  %v5720 = vunpack.c.l.b16 %v5397
  %v5721 = vunpack.c.h.b16 %v5397
  %v5722 = vunpack.c.l.b16 %v5398
  %v5723 = vunpack.c.h.b16 %v5398
  %v5724 = vunpack.c.l.b16 %v5399
  %v5725 = vunpack.c.h.b16 %v5399
  %v5726 = vunpack.c.l.b16 %v5400
  %v5727 = vunpack.c.h.b16 %v5400
  %v5728 = vunpack.c.l.b16 %v5401
  %v5729 = vunpack.c.h.b16 %v5401
  %v5730 = vunpack.c.l.b16 %v5402
  %v5731 = vunpack.c.h.b16 %v5402
  %v5732 = vunpack.c.l.b16 %v5403
  %v5733 = vunpack.c.h.b16 %v5403
  %v5734 = vunpack.c.l.b16 %v5404
  %v5735 = vunpack.c.h.b16 %v5404
  %v5736 = vunpack.c.l.b16 %v5405
  %v5737 = vunpack.c.h.b16 %v5405
  %v5738 = vunpack.c.l.b16 %v5406
  %v5739 = vunpack.c.h.b16 %v5406
  %v5740 = vunpack.c.l.b16 %v5407
  %v5741 = vunpack.c.h.b16 %v5407
  %v5742 = vunpack.c.l.b16 %v5408
  %v5743 = vunpack.c.h.b16 %v5408
  %v5744 = vunpack.c.l.b16 %v5409
  %v5745 = vunpack.c.h.b16 %v5409
  %v5746 = vunpack.c.l.b16 %v5410
  %v5747 = vunpack.c.h.b16 %v5410
  %v5748 = vunpack.c.l.b16 %v5411
  %v5749 = vunpack.c.h.b16 %v5411
  %v5750 = vunpack.c.l.b16 %v5412
  %v5751 = vunpack.c.h.b16 %v5412
  %v5752 = vunpack.c.l.b16 %v5413
  %v5753 = vunpack.c.h.b16 %v5413
  %v5754 = vunpack.c.l.b16 %v5414
  %v5755 = vunpack.c.h.b16 %v5414
  %v5756 = vunpack.c.l.b16 %v5415
  %v5757 = vunpack.c.h.b16 %v5415
  %v5758 = vunpack.c.l.b16 %v5416
  %v5759 = vunpack.c.h.b16 %v5416
  %v5760 = vunpack.c.l.b16 %v5417
  %v5761 = vunpack.c.h.b16 %v5417
  %v5762 = vunpack.c.l.b16 %v5418
  %v5763 = vunpack.c.h.b16 %v5418
  %v5764 = vunpack.c.l.b16 %v5419
  %v5765 = vunpack.c.h.b16 %v5419
  %v5766 = vunpack.c.l.b16 %v5420
  %v5767 = vunpack.c.h.b16 %v5420
  %v5768 = vunpack.c.l.b16 %v5421
  %v5769 = vunpack.c.h.b16 %v5421
  %v5770 = vunpack.c.l.b16 %v5422
  %v5771 = vunpack.c.h.b16 %v5422
  %v5772 = vunpack.c.l.b16 %v5423
  %v5773 = vunpack.c.h.b16 %v5423
  %v5774 = vunpack.c.l.b16 %v5424
  %v5775 = vunpack.c.h.b16 %v5424
  %v5776 = vunpack.c.l.b16 %v5425
  %v5777 = vunpack.c.h.b16 %v5425
  %v5778 = vunpack.c.l.b16 %v5426
  %v5779 = vunpack.c.h.b16 %v5426
  %v5780 = vunpack.c.l.b16 %v5427
  %v5781 = vunpack.c.h.b16 %v5427
  %v5782 = vunpack.c.l.b16 %v5428
  %v5783 = vunpack.c.h.b16 %v5428
  %v5784 = vunpack.c.l.b16 %v5429
  %v5785 = vunpack.c.h.b16 %v5429
  %v5786 = vunpack.c.l.b16 %v5430
  %v5787 = vunpack.c.h.b16 %v5430
  %v5788 = vunpack.c.l.b16 %v5431
  %v5789 = vunpack.c.h.b16 %v5431
  %v5790 = vunpack.c.l.b16 %v5432
  %v5791 = vunpack.c.h.b16 %v5432
  %v5792 = vunpack.c.l.b16 %v5433
  %v5793 = vunpack.c.h.b16 %v5433
  %v5794 = vunpack.c.l.b16 %v5434
  %v5795 = vunpack.c.h.b16 %v5434
  %v5796 = vunpack.c.l.b16 %v5435
  %v5797 = vunpack.c.h.b16 %v5435
  %v5798 = vunpack.c.l.b16 %v5436
  %v5799 = vunpack.c.h.b16 %v5436
  %v5800 = vunpack.c.l.b16 %v5437
  %v5801 = vunpack.c.h.b16 %v5437
  %v5802 = vunpack.c.l.b16 %v5438
  %v5803 = vunpack.c.h.b16 %v5438
  %v5804 = vunpack.c.l.b16 %v5439
  %v5805 = vunpack.c.h.b16 %v5439
  %v5806 = vunpack.c.l.b16 %v5440
  %v5807 = vunpack.c.h.b16 %v5440
  %v5808 = vunpack.c.l.b16 %v5441
  %v5809 = vunpack.c.h.b16 %v5441
  %v5810 = vunpack.c.l.b16 %v5442
  %v5811 = vunpack.c.h.b16 %v5442
  %v5812 = vunpack.c.l.b16 %v5443
  %v5813 = vunpack.c.h.b16 %v5443
  %v5814 = vunpack.c.l.b16 %v5444
  %v5815 = vunpack.c.h.b16 %v5444
  %v5816 = vunpack.c.l.b16 %v5445
  %v5817 = vunpack.c.h.b16 %v5445
  %v5818 = vunpack.c.l.b16 %v5446
  %v5819 = vunpack.c.h.b16 %v5446
  %v5820 = vunpack.c.l.b16 %v5447
  %v5821 = vunpack.c.h.b16 %v5447
  %v5822 = vunpack.c.l.b16 %v5448
  %v5823 = vunpack.c.h.b16 %v5448
  %v5824 = vunpack.c.l.b16 %v5449
  %v5825 = vunpack.c.h.b16 %v5449
  %v5826 = vunpack.c.l.b16 %v5450
  %v5827 = vunpack.c.h.b16 %v5450
  %v5828 = vunpack.c.l.b16 %v5451
  %v5829 = vunpack.c.h.b16 %v5451
  %v5830 = vunpack.c.l.b16 %v5452
  %v5831 = vunpack.c.h.b16 %v5452
  %v5832 = vunpack.c.l.b16 %v5453
  %v5833 = vunpack.c.h.b16 %v5453
  %v5834 = vunpack.c.l.b16 %v5454
  %v5835 = vunpack.c.h.b16 %v5454
  %v5836 = vunpack.c.l.b16 %v5455
  %v5837 = vunpack.c.h.b16 %v5455
  %v5838 = vunpack.c.l.b16 %v5456
  %v5839 = vunpack.c.h.b16 %v5456
  %v5840 = vunpack.c.l.b16 %v5457
  %v5841 = vunpack.c.h.b16 %v5457
  %v5842 = vpack.c.b16 %v5594, %v5586
  %v5843 = vpack.c.b16 %v5595, %v5587
  %v5844 = vpack.c.b16 %v5596, %v5588
  %v5845 = vpack.c.b16 %v5597, %v5589
  %v5846 = vpack.c.b16 %v5598, %v5590
  %v5847 = vpack.c.b16 %v5599, %v5591
  %v5848 = vpack.c.b16 %v5600, %v5592
  %v5849 = vpack.c.b16 %v5601, %v5593
  %v5850 = vpack.c.b16 %v5610, %v5602
  %v5851 = vpack.c.b16 %v5611, %v5603
  %v5852 = vpack.c.b16 %v5612, %v5604
  %v5853 = vpack.c.b16 %v5613, %v5605
  %v5854 = vpack.c.b16 %v5614, %v5606
  %v5855 = vpack.c.b16 %v5615, %v5607
  %v5856 = vpack.c.b16 %v5616, %v5608
  %v5857 = vpack.c.b16 %v5617, %v5609
  %v5858 = vpack.c.b16 %v5626, %v5618
  %v5859 = vpack.c.b16 %v5627, %v5619
  %v5860 = vpack.c.b16 %v5628, %v5620
  %v5861 = vpack.c.b16 %v5629, %v5621
  %v5862 = vpack.c.b16 %v5630, %v5622
  %v5863 = vpack.c.b16 %v5631, %v5623
  %v5864 = vpack.c.b16 %v5632, %v5624
  %v5865 = vpack.c.b16 %v5633, %v5625
  %v5866 = vpack.c.b16 %v5642, %v5634
  %v5867 = vpack.c.b16 %v5643, %v5635
  %v5868 = vpack.c.b16 %v5644, %v5636
  %v5869 = vpack.c.b16 %v5645, %v5637
  %v5870 = vpack.c.b16 %v5646, %v5638
  %v5871 = vpack.c.b16 %v5647, %v5639
  %v5872 = vpack.c.b16 %v5648, %v5640
  %v5873 = vpack.c.b16 %v5649, %v5641
  %v5874 = vpack.c.b16 %v5658, %v5650
  %v5875 = vpack.c.b16 %v5659, %v5651
  %v5876 = vpack.c.b16 %v5660, %v5652
  %v5877 = vpack.c.b16 %v5661, %v5653
  %v5878 = vpack.c.b16 %v5662, %v5654
  %v5879 = vpack.c.b16 %v5663, %v5655
  %v5880 = vpack.c.b16 %v5664, %v5656
  %v5881 = vpack.c.b16 %v5665, %v5657
  %v5882 = vpack.c.b16 %v5674, %v5666
  %v5883 = vpack.c.b16 %v5675, %v5667
  %v5884 = vpack.c.b16 %v5676, %v5668
  %v5885 = vpack.c.b16 %v5677, %v5669
  %v5886 = vpack.c.b16 %v5678, %v5670
  %v5887 = vpack.c.b16 %v5679, %v5671
  %v5888 = vpack.c.b16 %v5680, %v5672
  %v5889 = vpack.c.b16 %v5681, %v5673
  %v5890 = vpack.c.b16 %v5690, %v5682
  %v5891 = vpack.c.b16 %v5691, %v5683
  %v5892 = vpack.c.b16 %v5692, %v5684
  %v5893 = vpack.c.b16 %v5693, %v5685
  %v5894 = vpack.c.b16 %v5694, %v5686
  %v5895 = vpack.c.b16 %v5695, %v5687
  %v5896 = vpack.c.b16 %v5696, %v5688
  %v5897 = vpack.c.b16 %v5697, %v5689
  %v5898 = vpack.c.b16 %v5706, %v5698
  %v5899 = vpack.c.b16 %v5707, %v5699
  %v5900 = vpack.c.b16 %v5708, %v5700
  %v5901 = vpack.c.b16 %v5709, %v5701
  %v5902 = vpack.c.b16 %v5710, %v5702
  %v5903 = vpack.c.b16 %v5711, %v5703
  %v5904 = vpack.c.b16 %v5712, %v5704
  %v5905 = vpack.c.b16 %v5713, %v5705
  %v5906 = vpack.c.b16 %v5722, %v5714
  %v5907 = vpack.c.b16 %v5723, %v5715
  %v5908 = vpack.c.b16 %v5724, %v5716
  %v5909 = vpack.c.b16 %v5725, %v5717
  %v5910 = vpack.c.b16 %v5726, %v5718
  %v5911 = vpack.c.b16 %v5727, %v5719
  %v5912 = vpack.c.b16 %v5728, %v5720
  %v5913 = vpack.c.b16 %v5729, %v5721
  %v5914 = vpack.c.b16 %v5738, %v5730
  %v5915 = vpack.c.b16 %v5739, %v5731
  %v5916 = vpack.c.b16 %v5740, %v5732
  %v5917 = vpack.c.b16 %v5741, %v5733
  %v5918 = vpack.c.b16 %v5742, %v5734
  %v5919 = vpack.c.b16 %v5743, %v5735
  %v5920 = vpack.c.b16 %v5744, %v5736
  %v5921 = vpack.c.b16 %v5745, %v5737
  %v5922 = vpack.c.b16 %v5754, %v5746
  %v5923 = vpack.c.b16 %v5755, %v5747
  %v5924 = vpack.c.b16 %v5756, %v5748
  %v5925 = vpack.c.b16 %v5757, %v5749
  %v5926 = vpack.c.b16 %v5758, %v5750
  %v5927 = vpack.c.b16 %v5759, %v5751
  %v5928 = vpack.c.b16 %v5760, %v5752
  %v5929 = vpack.c.b16 %v5761, %v5753
  %v5930 = vpack.c.b16 %v5770, %v5762
  %v5931 = vpack.c.b16 %v5771, %v5763
  %v5932 = vpack.c.b16 %v5772, %v5764
  %v5933 = vpack.c.b16 %v5773, %v5765
  %v5934 = vpack.c.b16 %v5774, %v5766
  %v5935 = vpack.c.b16 %v5775, %v5767
  %v5936 = vpack.c.b16 %v5776, %v5768
  %v5937 = vpack.c.b16 %v5777, %v5769
  %v5938 = vpack.c.b16 %v5786, %v5778
  %v5939 = vpack.c.b16 %v5787, %v5779
  %v5940 = vpack.c.b16 %v5788, %v5780
  %v5941 = vpack.c.b16 %v5789, %v5781
  %v5942 = vpack.c.b16 %v5790, %v5782
  %v5943 = vpack.c.b16 %v5791, %v5783
  %v5944 = vpack.c.b16 %v5792, %v5784
  %v5945 = vpack.c.b16 %v5793, %v5785
  %v5946 = vpack.c.b16 %v5802, %v5794
  %v5947 = vpack.c.b16 %v5803, %v5795
  %v5948 = vpack.c.b16 %v5804, %v5796
  %v5949 = vpack.c.b16 %v5805, %v5797
  %v5950 = vpack.c.b16 %v5806, %v5798
  %v5951 = vpack.c.b16 %v5807, %v5799
  %v5952 = vpack.c.b16 %v5808, %v5800
  %v5953 = vpack.c.b16 %v5809, %v5801
  %v5954 = vpack.c.b16 %v5818, %v5810
  %v5955 = vpack.c.b16 %v5819, %v5811
  %v5956 = vpack.c.b16 %v5820, %v5812
  %v5957 = vpack.c.b16 %v5821, %v5813
  %v5958 = vpack.c.b16 %v5822, %v5814
  %v5959 = vpack.c.b16 %v5823, %v5815
  %v5960 = vpack.c.b16 %v5824, %v5816
  %v5961 = vpack.c.b16 %v5825, %v5817
  %v5962 = vpack.c.b16 %v5834, %v5826
  %v5963 = vpack.c.b16 %v5835, %v5827
  %v5964 = vpack.c.b16 %v5836, %v5828
  %v5965 = vpack.c.b16 %v5837, %v5829
  %v5966 = vpack.c.b16 %v5838, %v5830
  %v5967 = vpack.c.b16 %v5839, %v5831
  %v5968 = vpack.c.b16 %v5840, %v5832
  %v5969 = vpack.c.b16 %v5841, %v5833
  %6098 = vmatpush.bf16.msra.mxu0 %v5898
  %6099 = vmatpush.bf16.msra.mxu0 %v5890
  %6100 = vmatpush.bf16.msra.mxu0 %v5882
  %6101 = vmatpush.bf16.msra.mxu0 %v5874
  %6102 = vmatpush.bf16.msra.mxu0 %v5866
  %6103 = vmatpush.bf16.msra.mxu0 %v5858
  %6104 = vmatpush.bf16.msra.mxu0 %v5850
  %6105 = vmatpush.bf16.msra.mxu0 %v5842
  %6106 = vmatmul.bf16.gmra.mxu0 %v5328
  %v6107 = vpop.f32.mrf.mxu0
  %v6108 = vadd.f32 0.0, %v6107
  %v6109 = vpop.f32.mrf.mxu0
  %6110 = vdwg.mxu0
  %6111 = vmatpush.bf16.msra.mxu0 %v5962
  %6112 = vmatpush.bf16.msra.mxu0 %v5954
  %6113 = vmatpush.bf16.msra.mxu0 %v5946
  %6114 = vmatpush.bf16.msra.mxu0 %v5938
  %6115 = vmatpush.bf16.msra.mxu0 %v5930
  %6116 = vmatpush.bf16.msra.mxu0 %v5922
  %6117 = vmatpush.bf16.msra.mxu0 %v5914
  %6118 = vmatpush.bf16.msra.mxu0 %v5906
  %6119 = vmatmul.bf16.gmra.mxu0 %v5329
  %v6120 = vpop.f32.mrf.mxu0
  %v6121 = vadd.f32 %v6108, %v6120
  %v6122 = vpop.f32.mrf.mxu0
  %6123 = vdwg.mxu0
  %6124 = vmatpush.bf16.msra.mxu0 %v5899
  %6125 = vmatpush.bf16.msra.mxu0 %v5891
  %6126 = vmatpush.bf16.msra.mxu0 %v5883
  %6127 = vmatpush.bf16.msra.mxu0 %v5875
  %6128 = vmatpush.bf16.msra.mxu0 %v5867
  %6129 = vmatpush.bf16.msra.mxu0 %v5859
  %6130 = vmatpush.bf16.msra.mxu0 %v5851
  %6131 = vmatpush.bf16.msra.mxu0 %v5843
  %6132 = vmatmul.bf16.gmra.mxu0 %v5328
  %v6133 = vpop.f32.mrf.mxu0
  %v6134 = vadd.f32 0.0, %v6133
  %v6135 = vpop.f32.mrf.mxu0
  %6136 = vdwg.mxu0
  %6137 = vmatpush.bf16.msra.mxu0 %v5963
  %6138 = vmatpush.bf16.msra.mxu0 %v5955
  %6139 = vmatpush.bf16.msra.mxu0 %v5947
  %6140 = vmatpush.bf16.msra.mxu0 %v5939
  %6141 = vmatpush.bf16.msra.mxu0 %v5931
  %6142 = vmatpush.bf16.msra.mxu0 %v5923
  %6143 = vmatpush.bf16.msra.mxu0 %v5915
  %6144 = vmatpush.bf16.msra.mxu0 %v5907
  %6145 = vmatmul.bf16.gmra.mxu0 %v5329
  %v6146 = vpop.f32.mrf.mxu0
  %v6147 = vadd.f32 %v6134, %v6146
  %v6148 = vpop.f32.mrf.mxu0
  %6149 = vdwg.mxu0
  %6150 = vmatpush.bf16.msra.mxu0 %v5900
  %6151 = vmatpush.bf16.msra.mxu0 %v5892
  %6152 = vmatpush.bf16.msra.mxu0 %v5884
  %6153 = vmatpush.bf16.msra.mxu0 %v5876
  %6154 = vmatpush.bf16.msra.mxu0 %v5868
  %6155 = vmatpush.bf16.msra.mxu0 %v5860
  %6156 = vmatpush.bf16.msra.mxu0 %v5852
  %6157 = vmatpush.bf16.msra.mxu0 %v5844
  %6158 = vmatmul.bf16.gmra.mxu0 %v5328
  %v6159 = vpop.f32.mrf.mxu0
  %v6160 = vadd.f32 0.0, %v6159
  %v6161 = vpop.f32.mrf.mxu0
  %6162 = vdwg.mxu0
  %6163 = vmatpush.bf16.msra.mxu0 %v5964
  %6164 = vmatpush.bf16.msra.mxu0 %v5956
  %6165 = vmatpush.bf16.msra.mxu0 %v5948
  %6166 = vmatpush.bf16.msra.mxu0 %v5940
  %6167 = vmatpush.bf16.msra.mxu0 %v5932
  %6168 = vmatpush.bf16.msra.mxu0 %v5924
  %6169 = vmatpush.bf16.msra.mxu0 %v5916
  %6170 = vmatpush.bf16.msra.mxu0 %v5908
  %6171 = vmatmul.bf16.gmra.mxu0 %v5329
  %v6172 = vpop.f32.mrf.mxu0
  %v6173 = vadd.f32 %v6160, %v6172
  %v6174 = vpop.f32.mrf.mxu0
  %6175 = vdwg.mxu0
  %6176 = vmatpush.bf16.msra.mxu0 %v5901
  %6177 = vmatpush.bf16.msra.mxu0 %v5893
  %6178 = vmatpush.bf16.msra.mxu0 %v5885
  %6179 = vmatpush.bf16.msra.mxu0 %v5877
  %6180 = vmatpush.bf16.msra.mxu0 %v5869
  %6181 = vmatpush.bf16.msra.mxu0 %v5861
  %6182 = vmatpush.bf16.msra.mxu0 %v5853
  %6183 = vmatpush.bf16.msra.mxu0 %v5845
  %6184 = vmatmul.bf16.gmra.mxu0 %v5328
  %v6185 = vpop.f32.mrf.mxu0
  %v6186 = vadd.f32 0.0, %v6185
  %v6187 = vpop.f32.mrf.mxu0
  %6188 = vdwg.mxu0
  %6189 = vmatpush.bf16.msra.mxu0 %v5965
  %6190 = vmatpush.bf16.msra.mxu0 %v5957
  %6191 = vmatpush.bf16.msra.mxu0 %v5949
  %6192 = vmatpush.bf16.msra.mxu0 %v5941
  %6193 = vmatpush.bf16.msra.mxu0 %v5933
  %6194 = vmatpush.bf16.msra.mxu0 %v5925
  %6195 = vmatpush.bf16.msra.mxu0 %v5917
  %6196 = vmatpush.bf16.msra.mxu0 %v5909
  %6197 = vmatmul.bf16.gmra.mxu0 %v5329
  %v6198 = vpop.f32.mrf.mxu0
  %v6199 = vadd.f32 %v6186, %v6198
  %v6200 = vpop.f32.mrf.mxu0
  %6201 = vdwg.mxu0
  %6202 = vmatpush.bf16.msra.mxu0 %v5902
  %6203 = vmatpush.bf16.msra.mxu0 %v5894
  %6204 = vmatpush.bf16.msra.mxu0 %v5886
  %6205 = vmatpush.bf16.msra.mxu0 %v5878
  %6206 = vmatpush.bf16.msra.mxu0 %v5870
  %6207 = vmatpush.bf16.msra.mxu0 %v5862
  %6208 = vmatpush.bf16.msra.mxu0 %v5854
  %6209 = vmatpush.bf16.msra.mxu0 %v5846
  %6210 = vmatmul.bf16.gmra.mxu0 %v5328
  %v6211 = vpop.f32.mrf.mxu0
  %v6212 = vadd.f32 0.0, %v6211
  %v6213 = vpop.f32.mrf.mxu0
  %6214 = vdwg.mxu0
  %6215 = vmatpush.bf16.msra.mxu0 %v5966
  %6216 = vmatpush.bf16.msra.mxu0 %v5958
  %6217 = vmatpush.bf16.msra.mxu0 %v5950
  %6218 = vmatpush.bf16.msra.mxu0 %v5942
  %6219 = vmatpush.bf16.msra.mxu0 %v5934
  %6220 = vmatpush.bf16.msra.mxu0 %v5926
  %6221 = vmatpush.bf16.msra.mxu0 %v5918
  %6222 = vmatpush.bf16.msra.mxu0 %v5910
  %6223 = vmatmul.bf16.gmra.mxu0 %v5329
  %v6224 = vpop.f32.mrf.mxu0
  %v6225 = vadd.f32 %v6212, %v6224
  %v6226 = vpop.f32.mrf.mxu0
  %6227 = vdwg.mxu0
  %6228 = vmatpush.bf16.msra.mxu0 %v5903
  %6229 = vmatpush.bf16.msra.mxu0 %v5895
  %6230 = vmatpush.bf16.msra.mxu0 %v5887
  %6231 = vmatpush.bf16.msra.mxu0 %v5879
  %6232 = vmatpush.bf16.msra.mxu0 %v5871
  %6233 = vmatpush.bf16.msra.mxu0 %v5863
  %6234 = vmatpush.bf16.msra.mxu0 %v5855
  %6235 = vmatpush.bf16.msra.mxu0 %v5847
  %6236 = vmatmul.bf16.gmra.mxu0 %v5328
  %v6237 = vpop.f32.mrf.mxu0
  %v6238 = vadd.f32 0.0, %v6237
  %v6239 = vpop.f32.mrf.mxu0
  %6240 = vdwg.mxu0
  %6241 = vmatpush.bf16.msra.mxu0 %v5967
  %6242 = vmatpush.bf16.msra.mxu0 %v5959
  %6243 = vmatpush.bf16.msra.mxu0 %v5951
  %6244 = vmatpush.bf16.msra.mxu0 %v5943
  %6245 = vmatpush.bf16.msra.mxu0 %v5935
  %6246 = vmatpush.bf16.msra.mxu0 %v5927
  %6247 = vmatpush.bf16.msra.mxu0 %v5919
  %6248 = vmatpush.bf16.msra.mxu0 %v5911
  %6249 = vmatmul.bf16.gmra.mxu0 %v5329
  %v6250 = vpop.f32.mrf.mxu0
  %v6251 = vadd.f32 %v6238, %v6250
  %v6252 = vpop.f32.mrf.mxu0
  %6253 = vdwg.mxu0
  %6254 = vmatpush.bf16.msra.mxu0 %v5904
  %6255 = vmatpush.bf16.msra.mxu0 %v5896
  %6256 = vmatpush.bf16.msra.mxu0 %v5888
  %6257 = vmatpush.bf16.msra.mxu0 %v5880
  %6258 = vmatpush.bf16.msra.mxu0 %v5872
  %6259 = vmatpush.bf16.msra.mxu0 %v5864
  %6260 = vmatpush.bf16.msra.mxu0 %v5856
  %6261 = vmatpush.bf16.msra.mxu0 %v5848
  %6262 = vmatmul.bf16.gmra.mxu0 %v5328
  %v6263 = vpop.f32.mrf.mxu0
  %v6264 = vadd.f32 0.0, %v6263
  %v6265 = vpop.f32.mrf.mxu0
  %6266 = vdwg.mxu0
  %6267 = vmatpush.bf16.msra.mxu0 %v5968
  %6268 = vmatpush.bf16.msra.mxu0 %v5960
  %6269 = vmatpush.bf16.msra.mxu0 %v5952
  %6270 = vmatpush.bf16.msra.mxu0 %v5944
  %6271 = vmatpush.bf16.msra.mxu0 %v5936
  %6272 = vmatpush.bf16.msra.mxu0 %v5928
  %6273 = vmatpush.bf16.msra.mxu0 %v5920
  %6274 = vmatpush.bf16.msra.mxu0 %v5912
  %6275 = vmatmul.bf16.gmra.mxu0 %v5329
  %v6276 = vpop.f32.mrf.mxu0
  %v6277 = vadd.f32 %v6264, %v6276
  %v6278 = vpop.f32.mrf.mxu0
  %6279 = vdwg.mxu0
  %6280 = vmatpush.bf16.msra.mxu0 %v5905
  %6281 = vmatpush.bf16.msra.mxu0 %v5897
  %6282 = vmatpush.bf16.msra.mxu0 %v5889
  %6283 = vmatpush.bf16.msra.mxu0 %v5881
  %6284 = vmatpush.bf16.msra.mxu0 %v5873
  %6285 = vmatpush.bf16.msra.mxu0 %v5865
  %6286 = vmatpush.bf16.msra.mxu0 %v5857
  %6287 = vmatpush.bf16.msra.mxu0 %v5849
  %6288 = vmatmul.bf16.gmra.mxu0 %v5328
  %v6289 = vpop.f32.mrf.mxu0
  %v6290 = vadd.f32 0.0, %v6289
  %v6291 = vpop.f32.mrf.mxu0
  %6292 = vdwg.mxu0
  %6293 = vmatpush.bf16.msra.mxu0 %v5969
  %6294 = vmatpush.bf16.msra.mxu0 %v5961
  %6295 = vmatpush.bf16.msra.mxu0 %v5953
  %6296 = vmatpush.bf16.msra.mxu0 %v5945
  %6297 = vmatpush.bf16.msra.mxu0 %v5937
  %6298 = vmatpush.bf16.msra.mxu0 %v5929
  %6299 = vmatpush.bf16.msra.mxu0 %v5921
  %6300 = vmatpush.bf16.msra.mxu0 %v5913
  %6301 = vmatmul.bf16.gmra.mxu0 %v5329
  %v6302 = vpop.f32.mrf.mxu0
  %v6303 = vadd.f32 %v6290, %v6302
  %v6304 = vpop.f32.mrf.mxu0
  %6305 = vdwg.mxu0
  %v6306 = vld [vmem:[%s5189] sm:$0xff]
  %v6307 = vld [vmem:[%s5189 + $0x8] sm:$0xff]
  %v6308 = vld [vmem:[%s5189 + $0x10] sm:$0xff]
  %v6309 = vld [vmem:[%s5189 + $0x18] sm:$0xff]
  %v6310 = vadd.f32 %v6306, %v6121
  %v6311 = vadd.f32 %v6307, %v6147
  %v6312 = vadd.f32 %v6308, %v6173
  %v6313 = vadd.f32 %v6309, %v6199
  %v6314 = vld [vmem:[%s5180 + $0x20] sm:$0xff]
  %v6315 = vld [vmem:[%s5180 + $0x28] sm:$0xff]
  %v6316 = vld [vmem:[%s5180 + $0x30] sm:$0xff]
  %v6317 = vld [vmem:[%s5180 + $0x38] sm:$0xff]
  %v6318 = vadd.f32 %v6314, %v6225
  %v6319 = vadd.f32 %v6315, %v6251
  %v6320 = vadd.f32 %v6316, %v6277
  %v6321 = vadd.f32 %v6317, %v6303
  %v6322 = vxor.u32 %v6310, 2147483648
  %v6323 = vmul.f32 %v6322, 1.442695
  %v6324 = vpow.pop %v6323
  %v6325 = vadd.f32 %v6324, 1.0
  %v6326 = vrcp.pop %v6325
  %v6327 = vmul.f32 %v6325, %v6326
  %v6328 = vsub.f32 1.0, %v6327
  %v6329 = vmul.f32 %v6326, %v6328
  %v6330 = vadd.f32 %v6326, %v6329
  %vm6331 = vweird.f32 %v6325
  %vm6332 = vweird.f32 %v6326
  %vm6333 = vmor %vm6331, %vm6332
  %v6334 = vsel %vm6333, %v6326, %v6330
  %v6335 = vand.u32 2147483647, %v6325
  %vm6336 = vcmp.eq.f32.partialorder %v6335, 8.507059e+37
  %v6337 = vand.u32 %v6325, 2147483648
  %v6338 = vor.u32 1.1754944e-38, %v6337
  %v6339 = vsel %vm6336, %v6338, %v6334
  %v6340 = vmul.f32 1.0, %v6339
  %v6341 = vxor.u32 %v6311, 2147483648
  %v6342 = vmul.f32 %v6341, 1.442695
  %v6343 = vpow.pop %v6342
  %v6344 = vadd.f32 %v6343, 1.0
  %v6345 = vrcp.pop %v6344
  %v6346 = vmul.f32 %v6344, %v6345
  %v6347 = vsub.f32 1.0, %v6346
  %v6348 = vmul.f32 %v6345, %v6347
  %v6349 = vadd.f32 %v6345, %v6348
  %vm6350 = vweird.f32 %v6344
  %vm6351 = vweird.f32 %v6345
  %vm6352 = vmor %vm6350, %vm6351
  %v6353 = vsel %vm6352, %v6345, %v6349
  %v6354 = vand.u32 2147483647, %v6344
  %vm6355 = vcmp.eq.f32.partialorder %v6354, 8.507059e+37
  %v6356 = vand.u32 %v6344, 2147483648
  %v6357 = vor.u32 1.1754944e-38, %v6356
  %v6358 = vsel %vm6355, %v6357, %v6353
  %v6359 = vmul.f32 1.0, %v6358
  %v6360 = vtanh.pop %v6312
  %v6361 = vxor.u32 %v6313, 2147483648
  %v6362 = vmul.f32 %v6361, 1.442695
  %v6363 = vpow.pop %v6362
  %v6364 = vadd.f32 %v6363, 1.0
  %v6365 = vrcp.pop %v6364
  %v6366 = vmul.f32 %v6364, %v6365
  %v6367 = vsub.f32 1.0, %v6366
  %v6368 = vmul.f32 %v6365, %v6367
  %v6369 = vadd.f32 %v6365, %v6368
  %vm6370 = vweird.f32 %v6364
  %vm6371 = vweird.f32 %v6365
  %vm6372 = vmor %vm6370, %vm6371
  %v6373 = vsel %vm6372, %v6365, %v6369
  %v6374 = vand.u32 2147483647, %v6364
  %vm6375 = vcmp.eq.f32.partialorder %v6374, 8.507059e+37
  %v6376 = vand.u32 %v6364, 2147483648
  %v6377 = vor.u32 1.1754944e-38, %v6376
  %v6378 = vsel %vm6375, %v6377, %v6373
  %v6379 = vmul.f32 1.0, %v6378
  %v6380 = vmul.f32 %v6359, %v5258
  %v6381 = vmul.f32 %v6340, %v6360
  %v6382 = vadd.f32 %v6380, %v6381
  %v6383 = vtanh.pop %v6382
  %v6384 = vmul.f32 %v6379, %v6383
  %v6385 = vxor.u32 %v6318, 2147483648
  %v6386 = vmul.f32 %v6385, 1.442695
  %v6387 = vpow.pop %v6386
  %v6388 = vadd.f32 %v6387, 1.0
  %v6389 = vrcp.pop %v6388
  %v6390 = vmul.f32 %v6388, %v6389
  %v6391 = vsub.f32 1.0, %v6390
  %v6392 = vmul.f32 %v6389, %v6391
  %v6393 = vadd.f32 %v6389, %v6392
  %vm6394 = vweird.f32 %v6388
  %vm6395 = vweird.f32 %v6389
  %vm6396 = vmor %vm6394, %vm6395
  %v6397 = vsel %vm6396, %v6389, %v6393
  %v6398 = vand.u32 2147483647, %v6388
  %vm6399 = vcmp.eq.f32.partialorder %v6398, 8.507059e+37
  %v6400 = vand.u32 %v6388, 2147483648
  %v6401 = vor.u32 1.1754944e-38, %v6400
  %v6402 = vsel %vm6399, %v6401, %v6397
  %v6403 = vmul.f32 1.0, %v6402
  %v6404 = vxor.u32 %v6319, 2147483648
  %v6405 = vmul.f32 %v6404, 1.442695
  %v6406 = vpow.pop %v6405
  %v6407 = vadd.f32 %v6406, 1.0
  %v6408 = vrcp.pop %v6407
  %v6409 = vmul.f32 %v6407, %v6408
  %v6410 = vsub.f32 1.0, %v6409
  %v6411 = vmul.f32 %v6408, %v6410
  %v6412 = vadd.f32 %v6408, %v6411
  %vm6413 = vweird.f32 %v6407
  %vm6414 = vweird.f32 %v6408
  %vm6415 = vmor %vm6413, %vm6414
  %v6416 = vsel %vm6415, %v6408, %v6412
  %v6417 = vand.u32 2147483647, %v6407
  %vm6418 = vcmp.eq.f32.partialorder %v6417, 8.507059e+37
  %v6419 = vand.u32 %v6407, 2147483648
  %v6420 = vor.u32 1.1754944e-38, %v6419
  %v6421 = vsel %vm6418, %v6420, %v6416
  %v6422 = vmul.f32 1.0, %v6421
  %v6423 = vtanh.pop %v6320
  %v6424 = vxor.u32 %v6321, 2147483648
  %v6425 = vmul.f32 %v6424, 1.442695
  %v6426 = vpow.pop %v6425
  %v6427 = vadd.f32 %v6426, 1.0
  %v6428 = vrcp.pop %v6427
  %v6429 = vmul.f32 %v6427, %v6428
  %v6430 = vsub.f32 1.0, %v6429
  %v6431 = vmul.f32 %v6428, %v6430
  %v6432 = vadd.f32 %v6428, %v6431
  %vm6433 = vweird.f32 %v6427
  %vm6434 = vweird.f32 %v6428
  %vm6435 = vmor %vm6433, %vm6434
  %v6436 = vsel %vm6435, %v6428, %v6432
  %v6437 = vand.u32 2147483647, %v6427
  %vm6438 = vcmp.eq.f32.partialorder %v6437, 8.507059e+37
  %v6439 = vand.u32 %v6427, 2147483648
  %v6440 = vor.u32 1.1754944e-38, %v6439
  %v6441 = vsel %vm6438, %v6440, %v6436
  %v6442 = vmul.f32 1.0, %v6441
  %v6443 = vmul.f32 %v6422, %v5321
  %v6444 = vmul.f32 %v6403, %v6423
  %v6445 = vadd.f32 %v6443, %v6444
  %v6446 = vtanh.pop %v6445
  %v6447 = vmul.f32 %v6442, %v6446
  %6448 = vst [vmem:[%s5326] sm:$0xff] %v6384
  %6449 = vst [vmem:[%s5324 + $0x8] sm:$0xff] %v6447
  %v6450 = vpack.c.bf16 %v6384, %v6384
  %v6451 = vpack.c.bf16 %v6447, %v6447
  %v6452 = vld [vmem:[%s5] sm:$0xff]
  %v6453 = vld [vmem:[%s5 + $0x8] sm:$0xff]
  %v6454 = vld [vmem:[%s5 + $0x10] sm:$0xff]
  %v6455 = vld [vmem:[%s5 + $0x18] sm:$0xff]
  %v6456 = vld [vmem:[%s5 + $0x20] sm:$0xff]
  %v6457 = vld [vmem:[%s5 + $0x28] sm:$0xff]
  %v6458 = vld [vmem:[%s5 + $0x30] sm:$0xff]
  %v6459 = vld [vmem:[%s5 + $0x38] sm:$0xff]
  %v6460 = vld [vmem:[%s5 + $0x40] sm:$0xff]
  %v6461 = vld [vmem:[%s5 + $0x48] sm:$0xff]
  %v6462 = vld [vmem:[%s5 + $0x50] sm:$0xff]
  %v6463 = vld [vmem:[%s5 + $0x58] sm:$0xff]
  %v6464 = vld [vmem:[%s5 + $0x60] sm:$0xff]
  %v6465 = vld [vmem:[%s5 + $0x68] sm:$0xff]
  %v6466 = vld [vmem:[%s5 + $0x70] sm:$0xff]
  %v6467 = vld [vmem:[%s5 + $0x78] sm:$0xff]
  %v6468 = vld [vmem:[%s5 + $0x80] sm:$0xff]
  %v6469 = vld [vmem:[%s5 + $0x88] sm:$0xff]
  %v6470 = vld [vmem:[%s5 + $0x90] sm:$0xff]
  %v6471 = vld [vmem:[%s5 + $0x98] sm:$0xff]
  %v6472 = vld [vmem:[%s5 + $0xa0] sm:$0xff]
  %v6473 = vld [vmem:[%s5 + $0xa8] sm:$0xff]
  %v6474 = vld [vmem:[%s5 + $0xb0] sm:$0xff]
  %v6475 = vld [vmem:[%s5 + $0xb8] sm:$0xff]
  %v6476 = vld [vmem:[%s5 + $0xc0] sm:$0xff]
  %v6477 = vld [vmem:[%s5 + $0xc8] sm:$0xff]
  %v6478 = vld [vmem:[%s5 + $0xd0] sm:$0xff]
  %v6479 = vld [vmem:[%s5 + $0xd8] sm:$0xff]
  %v6480 = vld [vmem:[%s5 + $0xe0] sm:$0xff]
  %v6481 = vld [vmem:[%s5 + $0xe8] sm:$0xff]
  %v6482 = vld [vmem:[%s5 + $0xf0] sm:$0xff]
  %v6483 = vld [vmem:[%s5 + $0xf8] sm:$0xff]
  %v6484 = vld [vmem:[%s5 + $0x100] sm:$0xff]
  %v6485 = vld [vmem:[%s5 + $0x108] sm:$0xff]
  %v6486 = vld [vmem:[%s5 + $0x110] sm:$0xff]
  %v6487 = vld [vmem:[%s5 + $0x118] sm:$0xff]
  %v6488 = vld [vmem:[%s5 + $0x120] sm:$0xff]
  %v6489 = vld [vmem:[%s5 + $0x128] sm:$0xff]
  %v6490 = vld [vmem:[%s5 + $0x130] sm:$0xff]
  %v6491 = vld [vmem:[%s5 + $0x138] sm:$0xff]
  %v6492 = vld [vmem:[%s5 + $0x140] sm:$0xff]
  %v6493 = vld [vmem:[%s5 + $0x148] sm:$0xff]
  %v6494 = vld [vmem:[%s5 + $0x150] sm:$0xff]
  %v6495 = vld [vmem:[%s5 + $0x158] sm:$0xff]
  %v6496 = vld [vmem:[%s5 + $0x160] sm:$0xff]
  %v6497 = vld [vmem:[%s5 + $0x168] sm:$0xff]
  %v6498 = vld [vmem:[%s5 + $0x170] sm:$0xff]
  %v6499 = vld [vmem:[%s5 + $0x178] sm:$0xff]
  %v6500 = vld [vmem:[%s5 + $0x180] sm:$0xff]
  %v6501 = vld [vmem:[%s5 + $0x188] sm:$0xff]
  %v6502 = vld [vmem:[%s5 + $0x190] sm:$0xff]
  %v6503 = vld [vmem:[%s5 + $0x198] sm:$0xff]
  %v6504 = vld [vmem:[%s5 + $0x1a0] sm:$0xff]
  %v6505 = vld [vmem:[%s5 + $0x1a8] sm:$0xff]
  %v6506 = vld [vmem:[%s5 + $0x1b0] sm:$0xff]
  %v6507 = vld [vmem:[%s5 + $0x1b8] sm:$0xff]
  %v6508 = vld [vmem:[%s5 + $0x1c0] sm:$0xff]
  %v6509 = vld [vmem:[%s5 + $0x1c8] sm:$0xff]
  %v6510 = vld [vmem:[%s5 + $0x1d0] sm:$0xff]
  %v6511 = vld [vmem:[%s5 + $0x1d8] sm:$0xff]
  %v6512 = vld [vmem:[%s5 + $0x1e0] sm:$0xff]
  %v6513 = vld [vmem:[%s5 + $0x1e8] sm:$0xff]
  %v6514 = vld [vmem:[%s5 + $0x1f0] sm:$0xff]
  %v6515 = vld [vmem:[%s5 + $0x1f8] sm:$0xff]
  %v6516 = vld [vmem:[%s5 + $0x200] sm:$0xff]
  %v6517 = vld [vmem:[%s5 + $0x208] sm:$0xff]
  %v6518 = vld [vmem:[%s5 + $0x210] sm:$0xff]
  %v6519 = vld [vmem:[%s5 + $0x218] sm:$0xff]
  %v6520 = vld [vmem:[%s5 + $0x220] sm:$0xff]
  %v6521 = vld [vmem:[%s5 + $0x228] sm:$0xff]
  %v6522 = vld [vmem:[%s5 + $0x230] sm:$0xff]
  %v6523 = vld [vmem:[%s5 + $0x238] sm:$0xff]
  %v6524 = vld [vmem:[%s5 + $0x240] sm:$0xff]
  %v6525 = vld [vmem:[%s5 + $0x248] sm:$0xff]
  %v6526 = vld [vmem:[%s5 + $0x250] sm:$0xff]
  %v6527 = vld [vmem:[%s5 + $0x258] sm:$0xff]
  %v6528 = vld [vmem:[%s5 + $0x260] sm:$0xff]
  %v6529 = vld [vmem:[%s5 + $0x268] sm:$0xff]
  %v6530 = vld [vmem:[%s5 + $0x270] sm:$0xff]
  %v6531 = vld [vmem:[%s5 + $0x278] sm:$0xff]
  %v6532 = vld [vmem:[%s5 + $0x280] sm:$0xff]
  %v6533 = vld [vmem:[%s5 + $0x288] sm:$0xff]
  %v6534 = vld [vmem:[%s5 + $0x290] sm:$0xff]
  %v6535 = vld [vmem:[%s5 + $0x298] sm:$0xff]
  %v6536 = vld [vmem:[%s5 + $0x2a0] sm:$0xff]
  %v6537 = vld [vmem:[%s5 + $0x2a8] sm:$0xff]
  %v6538 = vld [vmem:[%s5 + $0x2b0] sm:$0xff]
  %v6539 = vld [vmem:[%s5 + $0x2b8] sm:$0xff]
  %v6540 = vld [vmem:[%s5 + $0x2c0] sm:$0xff]
  %v6541 = vld [vmem:[%s5 + $0x2c8] sm:$0xff]
  %v6542 = vld [vmem:[%s5 + $0x2d0] sm:$0xff]
  %v6543 = vld [vmem:[%s5 + $0x2d8] sm:$0xff]
  %v6544 = vld [vmem:[%s5 + $0x2e0] sm:$0xff]
  %v6545 = vld [vmem:[%s5 + $0x2e8] sm:$0xff]
  %v6546 = vld [vmem:[%s5 + $0x2f0] sm:$0xff]
  %v6547 = vld [vmem:[%s5 + $0x2f8] sm:$0xff]
  %v6548 = vld [vmem:[%s5 + $0x300] sm:$0xff]
  %v6549 = vld [vmem:[%s5 + $0x308] sm:$0xff]
  %v6550 = vld [vmem:[%s5 + $0x310] sm:$0xff]
  %v6551 = vld [vmem:[%s5 + $0x318] sm:$0xff]
  %v6552 = vld [vmem:[%s5 + $0x320] sm:$0xff]
  %v6553 = vld [vmem:[%s5 + $0x328] sm:$0xff]
  %v6554 = vld [vmem:[%s5 + $0x330] sm:$0xff]
  %v6555 = vld [vmem:[%s5 + $0x338] sm:$0xff]
  %v6556 = vld [vmem:[%s5 + $0x340] sm:$0xff]
  %v6557 = vld [vmem:[%s5 + $0x348] sm:$0xff]
  %v6558 = vld [vmem:[%s5 + $0x350] sm:$0xff]
  %v6559 = vld [vmem:[%s5 + $0x358] sm:$0xff]
  %v6560 = vld [vmem:[%s5 + $0x360] sm:$0xff]
  %v6561 = vld [vmem:[%s5 + $0x368] sm:$0xff]
  %v6562 = vld [vmem:[%s5 + $0x370] sm:$0xff]
  %v6563 = vld [vmem:[%s5 + $0x378] sm:$0xff]
  %v6564 = vld [vmem:[%s5 + $0x380] sm:$0xff]
  %v6565 = vld [vmem:[%s5 + $0x388] sm:$0xff]
  %v6566 = vld [vmem:[%s5 + $0x390] sm:$0xff]
  %v6567 = vld [vmem:[%s5 + $0x398] sm:$0xff]
  %v6568 = vld [vmem:[%s5 + $0x3a0] sm:$0xff]
  %v6569 = vld [vmem:[%s5 + $0x3a8] sm:$0xff]
  %v6570 = vld [vmem:[%s5 + $0x3b0] sm:$0xff]
  %v6571 = vld [vmem:[%s5 + $0x3b8] sm:$0xff]
  %v6572 = vld [vmem:[%s5 + $0x3c0] sm:$0xff]
  %v6573 = vld [vmem:[%s5 + $0x3c8] sm:$0xff]
  %v6574 = vld [vmem:[%s5 + $0x3d0] sm:$0xff]
  %v6575 = vld [vmem:[%s5 + $0x3d8] sm:$0xff]
  %v6576 = vld [vmem:[%s5 + $0x3e0] sm:$0xff]
  %v6577 = vld [vmem:[%s5 + $0x3e8] sm:$0xff]
  %v6578 = vld [vmem:[%s5 + $0x3f0] sm:$0xff]
  %v6579 = vld [vmem:[%s5 + $0x3f8] sm:$0xff]
  %v6708 = vunpack.c.l.b16 %v6452
  %v6709 = vunpack.c.h.b16 %v6452
  %v6710 = vunpack.c.l.b16 %v6453
  %v6711 = vunpack.c.h.b16 %v6453
  %v6712 = vunpack.c.l.b16 %v6454
  %v6713 = vunpack.c.h.b16 %v6454
  %v6714 = vunpack.c.l.b16 %v6455
  %v6715 = vunpack.c.h.b16 %v6455
  %v6716 = vunpack.c.l.b16 %v6456
  %v6717 = vunpack.c.h.b16 %v6456
  %v6718 = vunpack.c.l.b16 %v6457
  %v6719 = vunpack.c.h.b16 %v6457
  %v6720 = vunpack.c.l.b16 %v6458
  %v6721 = vunpack.c.h.b16 %v6458
  %v6722 = vunpack.c.l.b16 %v6459
  %v6723 = vunpack.c.h.b16 %v6459
  %v6724 = vunpack.c.l.b16 %v6460
  %v6725 = vunpack.c.h.b16 %v6460
  %v6726 = vunpack.c.l.b16 %v6461
  %v6727 = vunpack.c.h.b16 %v6461
  %v6728 = vunpack.c.l.b16 %v6462
  %v6729 = vunpack.c.h.b16 %v6462
  %v6730 = vunpack.c.l.b16 %v6463
  %v6731 = vunpack.c.h.b16 %v6463
  %v6732 = vunpack.c.l.b16 %v6464
  %v6733 = vunpack.c.h.b16 %v6464
  %v6734 = vunpack.c.l.b16 %v6465
  %v6735 = vunpack.c.h.b16 %v6465
  %v6736 = vunpack.c.l.b16 %v6466
  %v6737 = vunpack.c.h.b16 %v6466
  %v6738 = vunpack.c.l.b16 %v6467
  %v6739 = vunpack.c.h.b16 %v6467
  %v6740 = vunpack.c.l.b16 %v6468
  %v6741 = vunpack.c.h.b16 %v6468
  %v6742 = vunpack.c.l.b16 %v6469
  %v6743 = vunpack.c.h.b16 %v6469
  %v6744 = vunpack.c.l.b16 %v6470
  %v6745 = vunpack.c.h.b16 %v6470
  %v6746 = vunpack.c.l.b16 %v6471
  %v6747 = vunpack.c.h.b16 %v6471
  %v6748 = vunpack.c.l.b16 %v6472
  %v6749 = vunpack.c.h.b16 %v6472
  %v6750 = vunpack.c.l.b16 %v6473
  %v6751 = vunpack.c.h.b16 %v6473
  %v6752 = vunpack.c.l.b16 %v6474
  %v6753 = vunpack.c.h.b16 %v6474
  %v6754 = vunpack.c.l.b16 %v6475
  %v6755 = vunpack.c.h.b16 %v6475
  %v6756 = vunpack.c.l.b16 %v6476
  %v6757 = vunpack.c.h.b16 %v6476
  %v6758 = vunpack.c.l.b16 %v6477
  %v6759 = vunpack.c.h.b16 %v6477
  %v6760 = vunpack.c.l.b16 %v6478
  %v6761 = vunpack.c.h.b16 %v6478
  %v6762 = vunpack.c.l.b16 %v6479
  %v6763 = vunpack.c.h.b16 %v6479
  %v6764 = vunpack.c.l.b16 %v6480
  %v6765 = vunpack.c.h.b16 %v6480
  %v6766 = vunpack.c.l.b16 %v6481
  %v6767 = vunpack.c.h.b16 %v6481
  %v6768 = vunpack.c.l.b16 %v6482
  %v6769 = vunpack.c.h.b16 %v6482
  %v6770 = vunpack.c.l.b16 %v6483
  %v6771 = vunpack.c.h.b16 %v6483
  %v6772 = vunpack.c.l.b16 %v6484
  %v6773 = vunpack.c.h.b16 %v6484
  %v6774 = vunpack.c.l.b16 %v6485
  %v6775 = vunpack.c.h.b16 %v6485
  %v6776 = vunpack.c.l.b16 %v6486
  %v6777 = vunpack.c.h.b16 %v6486
  %v6778 = vunpack.c.l.b16 %v6487
  %v6779 = vunpack.c.h.b16 %v6487
  %v6780 = vunpack.c.l.b16 %v6488
  %v6781 = vunpack.c.h.b16 %v6488
  %v6782 = vunpack.c.l.b16 %v6489
  %v6783 = vunpack.c.h.b16 %v6489
  %v6784 = vunpack.c.l.b16 %v6490
  %v6785 = vunpack.c.h.b16 %v6490
  %v6786 = vunpack.c.l.b16 %v6491
  %v6787 = vunpack.c.h.b16 %v6491
  %v6788 = vunpack.c.l.b16 %v6492
  %v6789 = vunpack.c.h.b16 %v6492
  %v6790 = vunpack.c.l.b16 %v6493
  %v6791 = vunpack.c.h.b16 %v6493
  %v6792 = vunpack.c.l.b16 %v6494
  %v6793 = vunpack.c.h.b16 %v6494
  %v6794 = vunpack.c.l.b16 %v6495
  %v6795 = vunpack.c.h.b16 %v6495
  %v6796 = vunpack.c.l.b16 %v6496
  %v6797 = vunpack.c.h.b16 %v6496
  %v6798 = vunpack.c.l.b16 %v6497
  %v6799 = vunpack.c.h.b16 %v6497
  %v6800 = vunpack.c.l.b16 %v6498
  %v6801 = vunpack.c.h.b16 %v6498
  %v6802 = vunpack.c.l.b16 %v6499
  %v6803 = vunpack.c.h.b16 %v6499
  %v6804 = vunpack.c.l.b16 %v6500
  %v6805 = vunpack.c.h.b16 %v6500
  %v6806 = vunpack.c.l.b16 %v6501
  %v6807 = vunpack.c.h.b16 %v6501
  %v6808 = vunpack.c.l.b16 %v6502
  %v6809 = vunpack.c.h.b16 %v6502
  %v6810 = vunpack.c.l.b16 %v6503
  %v6811 = vunpack.c.h.b16 %v6503
  %v6812 = vunpack.c.l.b16 %v6504
  %v6813 = vunpack.c.h.b16 %v6504
  %v6814 = vunpack.c.l.b16 %v6505
  %v6815 = vunpack.c.h.b16 %v6505
  %v6816 = vunpack.c.l.b16 %v6506
  %v6817 = vunpack.c.h.b16 %v6506
  %v6818 = vunpack.c.l.b16 %v6507
  %v6819 = vunpack.c.h.b16 %v6507
  %v6820 = vunpack.c.l.b16 %v6508
  %v6821 = vunpack.c.h.b16 %v6508
  %v6822 = vunpack.c.l.b16 %v6509
  %v6823 = vunpack.c.h.b16 %v6509
  %v6824 = vunpack.c.l.b16 %v6510
  %v6825 = vunpack.c.h.b16 %v6510
  %v6826 = vunpack.c.l.b16 %v6511
  %v6827 = vunpack.c.h.b16 %v6511
  %v6828 = vunpack.c.l.b16 %v6512
  %v6829 = vunpack.c.h.b16 %v6512
  %v6830 = vunpack.c.l.b16 %v6513
  %v6831 = vunpack.c.h.b16 %v6513
  %v6832 = vunpack.c.l.b16 %v6514
  %v6833 = vunpack.c.h.b16 %v6514
  %v6834 = vunpack.c.l.b16 %v6515
  %v6835 = vunpack.c.h.b16 %v6515
  %v6836 = vunpack.c.l.b16 %v6516
  %v6837 = vunpack.c.h.b16 %v6516
  %v6838 = vunpack.c.l.b16 %v6517
  %v6839 = vunpack.c.h.b16 %v6517
  %v6840 = vunpack.c.l.b16 %v6518
  %v6841 = vunpack.c.h.b16 %v6518
  %v6842 = vunpack.c.l.b16 %v6519
  %v6843 = vunpack.c.h.b16 %v6519
  %v6844 = vunpack.c.l.b16 %v6520
  %v6845 = vunpack.c.h.b16 %v6520
  %v6846 = vunpack.c.l.b16 %v6521
  %v6847 = vunpack.c.h.b16 %v6521
  %v6848 = vunpack.c.l.b16 %v6522
  %v6849 = vunpack.c.h.b16 %v6522
  %v6850 = vunpack.c.l.b16 %v6523
  %v6851 = vunpack.c.h.b16 %v6523
  %v6852 = vunpack.c.l.b16 %v6524
  %v6853 = vunpack.c.h.b16 %v6524
  %v6854 = vunpack.c.l.b16 %v6525
  %v6855 = vunpack.c.h.b16 %v6525
  %v6856 = vunpack.c.l.b16 %v6526
  %v6857 = vunpack.c.h.b16 %v6526
  %v6858 = vunpack.c.l.b16 %v6527
  %v6859 = vunpack.c.h.b16 %v6527
  %v6860 = vunpack.c.l.b16 %v6528
  %v6861 = vunpack.c.h.b16 %v6528
  %v6862 = vunpack.c.l.b16 %v6529
  %v6863 = vunpack.c.h.b16 %v6529
  %v6864 = vunpack.c.l.b16 %v6530
  %v6865 = vunpack.c.h.b16 %v6530
  %v6866 = vunpack.c.l.b16 %v6531
  %v6867 = vunpack.c.h.b16 %v6531
  %v6868 = vunpack.c.l.b16 %v6532
  %v6869 = vunpack.c.h.b16 %v6532
  %v6870 = vunpack.c.l.b16 %v6533
  %v6871 = vunpack.c.h.b16 %v6533
  %v6872 = vunpack.c.l.b16 %v6534
  %v6873 = vunpack.c.h.b16 %v6534
  %v6874 = vunpack.c.l.b16 %v6535
  %v6875 = vunpack.c.h.b16 %v6535
  %v6876 = vunpack.c.l.b16 %v6536
  %v6877 = vunpack.c.h.b16 %v6536
  %v6878 = vunpack.c.l.b16 %v6537
  %v6879 = vunpack.c.h.b16 %v6537
  %v6880 = vunpack.c.l.b16 %v6538
  %v6881 = vunpack.c.h.b16 %v6538
  %v6882 = vunpack.c.l.b16 %v6539
  %v6883 = vunpack.c.h.b16 %v6539
  %v6884 = vunpack.c.l.b16 %v6540
  %v6885 = vunpack.c.h.b16 %v6540
  %v6886 = vunpack.c.l.b16 %v6541
  %v6887 = vunpack.c.h.b16 %v6541
  %v6888 = vunpack.c.l.b16 %v6542
  %v6889 = vunpack.c.h.b16 %v6542
  %v6890 = vunpack.c.l.b16 %v6543
  %v6891 = vunpack.c.h.b16 %v6543
  %v6892 = vunpack.c.l.b16 %v6544
  %v6893 = vunpack.c.h.b16 %v6544
  %v6894 = vunpack.c.l.b16 %v6545
  %v6895 = vunpack.c.h.b16 %v6545
  %v6896 = vunpack.c.l.b16 %v6546
  %v6897 = vunpack.c.h.b16 %v6546
  %v6898 = vunpack.c.l.b16 %v6547
  %v6899 = vunpack.c.h.b16 %v6547
  %v6900 = vunpack.c.l.b16 %v6548
  %v6901 = vunpack.c.h.b16 %v6548
  %v6902 = vunpack.c.l.b16 %v6549
  %v6903 = vunpack.c.h.b16 %v6549
  %v6904 = vunpack.c.l.b16 %v6550
  %v6905 = vunpack.c.h.b16 %v6550
  %v6906 = vunpack.c.l.b16 %v6551
  %v6907 = vunpack.c.h.b16 %v6551
  %v6908 = vunpack.c.l.b16 %v6552
  %v6909 = vunpack.c.h.b16 %v6552
  %v6910 = vunpack.c.l.b16 %v6553
  %v6911 = vunpack.c.h.b16 %v6553
  %v6912 = vunpack.c.l.b16 %v6554
  %v6913 = vunpack.c.h.b16 %v6554
  %v6914 = vunpack.c.l.b16 %v6555
  %v6915 = vunpack.c.h.b16 %v6555
  %v6916 = vunpack.c.l.b16 %v6556
  %v6917 = vunpack.c.h.b16 %v6556
  %v6918 = vunpack.c.l.b16 %v6557
  %v6919 = vunpack.c.h.b16 %v6557
  %v6920 = vunpack.c.l.b16 %v6558
  %v6921 = vunpack.c.h.b16 %v6558
  %v6922 = vunpack.c.l.b16 %v6559
  %v6923 = vunpack.c.h.b16 %v6559
  %v6924 = vunpack.c.l.b16 %v6560
  %v6925 = vunpack.c.h.b16 %v6560
  %v6926 = vunpack.c.l.b16 %v6561
  %v6927 = vunpack.c.h.b16 %v6561
  %v6928 = vunpack.c.l.b16 %v6562
  %v6929 = vunpack.c.h.b16 %v6562
  %v6930 = vunpack.c.l.b16 %v6563
  %v6931 = vunpack.c.h.b16 %v6563
  %v6932 = vunpack.c.l.b16 %v6564
  %v6933 = vunpack.c.h.b16 %v6564
  %v6934 = vunpack.c.l.b16 %v6565
  %v6935 = vunpack.c.h.b16 %v6565
  %v6936 = vunpack.c.l.b16 %v6566
  %v6937 = vunpack.c.h.b16 %v6566
  %v6938 = vunpack.c.l.b16 %v6567
  %v6939 = vunpack.c.h.b16 %v6567
  %v6940 = vunpack.c.l.b16 %v6568
  %v6941 = vunpack.c.h.b16 %v6568
  %v6942 = vunpack.c.l.b16 %v6569
  %v6943 = vunpack.c.h.b16 %v6569
  %v6944 = vunpack.c.l.b16 %v6570
  %v6945 = vunpack.c.h.b16 %v6570
  %v6946 = vunpack.c.l.b16 %v6571
  %v6947 = vunpack.c.h.b16 %v6571
  %v6948 = vunpack.c.l.b16 %v6572
  %v6949 = vunpack.c.h.b16 %v6572
  %v6950 = vunpack.c.l.b16 %v6573
  %v6951 = vunpack.c.h.b16 %v6573
  %v6952 = vunpack.c.l.b16 %v6574
  %v6953 = vunpack.c.h.b16 %v6574
  %v6954 = vunpack.c.l.b16 %v6575
  %v6955 = vunpack.c.h.b16 %v6575
  %v6956 = vunpack.c.l.b16 %v6576
  %v6957 = vunpack.c.h.b16 %v6576
  %v6958 = vunpack.c.l.b16 %v6577
  %v6959 = vunpack.c.h.b16 %v6577
  %v6960 = vunpack.c.l.b16 %v6578
  %v6961 = vunpack.c.h.b16 %v6578
  %v6962 = vunpack.c.l.b16 %v6579
  %v6963 = vunpack.c.h.b16 %v6579
  %v6964 = vpack.c.b16 %v6716, %v6708
  %v6965 = vpack.c.b16 %v6717, %v6709
  %v6966 = vpack.c.b16 %v6718, %v6710
  %v6967 = vpack.c.b16 %v6719, %v6711
  %v6968 = vpack.c.b16 %v6720, %v6712
  %v6969 = vpack.c.b16 %v6721, %v6713
  %v6970 = vpack.c.b16 %v6722, %v6714
  %v6971 = vpack.c.b16 %v6723, %v6715
  %v6972 = vpack.c.b16 %v6732, %v6724
  %v6973 = vpack.c.b16 %v6733, %v6725
  %v6974 = vpack.c.b16 %v6734, %v6726
  %v6975 = vpack.c.b16 %v6735, %v6727
  %v6976 = vpack.c.b16 %v6736, %v6728
  %v6977 = vpack.c.b16 %v6737, %v6729
  %v6978 = vpack.c.b16 %v6738, %v6730
  %v6979 = vpack.c.b16 %v6739, %v6731
  %v6980 = vpack.c.b16 %v6748, %v6740
  %v6981 = vpack.c.b16 %v6749, %v6741
  %v6982 = vpack.c.b16 %v6750, %v6742
  %v6983 = vpack.c.b16 %v6751, %v6743
  %v6984 = vpack.c.b16 %v6752, %v6744
  %v6985 = vpack.c.b16 %v6753, %v6745
  %v6986 = vpack.c.b16 %v6754, %v6746
  %v6987 = vpack.c.b16 %v6755, %v6747
  %v6988 = vpack.c.b16 %v6764, %v6756
  %v6989 = vpack.c.b16 %v6765, %v6757
  %v6990 = vpack.c.b16 %v6766, %v6758
  %v6991 = vpack.c.b16 %v6767, %v6759
  %v6992 = vpack.c.b16 %v6768, %v6760
  %v6993 = vpack.c.b16 %v6769, %v6761
  %v6994 = vpack.c.b16 %v6770, %v6762
  %v6995 = vpack.c.b16 %v6771, %v6763
  %v6996 = vpack.c.b16 %v6780, %v6772
  %v6997 = vpack.c.b16 %v6781, %v6773
  %v6998 = vpack.c.b16 %v6782, %v6774
  %v6999 = vpack.c.b16 %v6783, %v6775
  %v7000 = vpack.c.b16 %v6784, %v6776
  %v7001 = vpack.c.b16 %v6785, %v6777
  %v7002 = vpack.c.b16 %v6786, %v6778
  %v7003 = vpack.c.b16 %v6787, %v6779
  %v7004 = vpack.c.b16 %v6796, %v6788
  %v7005 = vpack.c.b16 %v6797, %v6789
  %v7006 = vpack.c.b16 %v6798, %v6790
  %v7007 = vpack.c.b16 %v6799, %v6791
  %v7008 = vpack.c.b16 %v6800, %v6792
  %v7009 = vpack.c.b16 %v6801, %v6793
  %v7010 = vpack.c.b16 %v6802, %v6794
  %v7011 = vpack.c.b16 %v6803, %v6795
  %v7012 = vpack.c.b16 %v6812, %v6804
  %v7013 = vpack.c.b16 %v6813, %v6805
  %v7014 = vpack.c.b16 %v6814, %v6806
  %v7015 = vpack.c.b16 %v6815, %v6807
  %v7016 = vpack.c.b16 %v6816, %v6808
  %v7017 = vpack.c.b16 %v6817, %v6809
  %v7018 = vpack.c.b16 %v6818, %v6810
  %v7019 = vpack.c.b16 %v6819, %v6811
  %v7020 = vpack.c.b16 %v6828, %v6820
  %v7021 = vpack.c.b16 %v6829, %v6821
  %v7022 = vpack.c.b16 %v6830, %v6822
  %v7023 = vpack.c.b16 %v6831, %v6823
  %v7024 = vpack.c.b16 %v6832, %v6824
  %v7025 = vpack.c.b16 %v6833, %v6825
  %v7026 = vpack.c.b16 %v6834, %v6826
  %v7027 = vpack.c.b16 %v6835, %v6827
  %v7028 = vpack.c.b16 %v6844, %v6836
  %v7029 = vpack.c.b16 %v6845, %v6837
  %v7030 = vpack.c.b16 %v6846, %v6838
  %v7031 = vpack.c.b16 %v6847, %v6839
  %v7032 = vpack.c.b16 %v6848, %v6840
  %v7033 = vpack.c.b16 %v6849, %v6841
  %v7034 = vpack.c.b16 %v6850, %v6842
  %v7035 = vpack.c.b16 %v6851, %v6843
  %v7036 = vpack.c.b16 %v6860, %v6852
  %v7037 = vpack.c.b16 %v6861, %v6853
  %v7038 = vpack.c.b16 %v6862, %v6854
  %v7039 = vpack.c.b16 %v6863, %v6855
  %v7040 = vpack.c.b16 %v6864, %v6856
  %v7041 = vpack.c.b16 %v6865, %v6857
  %v7042 = vpack.c.b16 %v6866, %v6858
  %v7043 = vpack.c.b16 %v6867, %v6859
  %v7044 = vpack.c.b16 %v6876, %v6868
  %v7045 = vpack.c.b16 %v6877, %v6869
  %v7046 = vpack.c.b16 %v6878, %v6870
  %v7047 = vpack.c.b16 %v6879, %v6871
  %v7048 = vpack.c.b16 %v6880, %v6872
  %v7049 = vpack.c.b16 %v6881, %v6873
  %v7050 = vpack.c.b16 %v6882, %v6874
  %v7051 = vpack.c.b16 %v6883, %v6875
  %v7052 = vpack.c.b16 %v6892, %v6884
  %v7053 = vpack.c.b16 %v6893, %v6885
  %v7054 = vpack.c.b16 %v6894, %v6886
  %v7055 = vpack.c.b16 %v6895, %v6887
  %v7056 = vpack.c.b16 %v6896, %v6888
  %v7057 = vpack.c.b16 %v6897, %v6889
  %v7058 = vpack.c.b16 %v6898, %v6890
  %v7059 = vpack.c.b16 %v6899, %v6891
  %v7060 = vpack.c.b16 %v6908, %v6900
  %v7061 = vpack.c.b16 %v6909, %v6901
  %v7062 = vpack.c.b16 %v6910, %v6902
  %v7063 = vpack.c.b16 %v6911, %v6903
  %v7064 = vpack.c.b16 %v6912, %v6904
  %v7065 = vpack.c.b16 %v6913, %v6905
  %v7066 = vpack.c.b16 %v6914, %v6906
  %v7067 = vpack.c.b16 %v6915, %v6907
  %v7068 = vpack.c.b16 %v6924, %v6916
  %v7069 = vpack.c.b16 %v6925, %v6917
  %v7070 = vpack.c.b16 %v6926, %v6918
  %v7071 = vpack.c.b16 %v6927, %v6919
  %v7072 = vpack.c.b16 %v6928, %v6920
  %v7073 = vpack.c.b16 %v6929, %v6921
  %v7074 = vpack.c.b16 %v6930, %v6922
  %v7075 = vpack.c.b16 %v6931, %v6923
  %v7076 = vpack.c.b16 %v6940, %v6932
  %v7077 = vpack.c.b16 %v6941, %v6933
  %v7078 = vpack.c.b16 %v6942, %v6934
  %v7079 = vpack.c.b16 %v6943, %v6935
  %v7080 = vpack.c.b16 %v6944, %v6936
  %v7081 = vpack.c.b16 %v6945, %v6937
  %v7082 = vpack.c.b16 %v6946, %v6938
  %v7083 = vpack.c.b16 %v6947, %v6939
  %v7084 = vpack.c.b16 %v6956, %v6948
  %v7085 = vpack.c.b16 %v6957, %v6949
  %v7086 = vpack.c.b16 %v6958, %v6950
  %v7087 = vpack.c.b16 %v6959, %v6951
  %v7088 = vpack.c.b16 %v6960, %v6952
  %v7089 = vpack.c.b16 %v6961, %v6953
  %v7090 = vpack.c.b16 %v6962, %v6954
  %v7091 = vpack.c.b16 %v6963, %v6955
  %7220 = vmatpush.bf16.msra.mxu0 %v7020
  %7221 = vmatpush.bf16.msra.mxu0 %v7012
  %7222 = vmatpush.bf16.msra.mxu0 %v7004
  %7223 = vmatpush.bf16.msra.mxu0 %v6996
  %7224 = vmatpush.bf16.msra.mxu0 %v6988
  %7225 = vmatpush.bf16.msra.mxu0 %v6980
  %7226 = vmatpush.bf16.msra.mxu0 %v6972
  %7227 = vmatpush.bf16.msra.mxu0 %v6964
  %7228 = vmatmul.bf16.gmra.mxu0 %v6450
  %v7229 = vpop.f32.mrf.mxu0
  %v7230 = vadd.f32 0.0, %v7229
  %v7231 = vpop.f32.mrf.mxu0
  %7232 = vdwg.mxu0
  %7233 = vmatpush.bf16.msra.mxu0 %v7084
  %7234 = vmatpush.bf16.msra.mxu0 %v7076
  %7235 = vmatpush.bf16.msra.mxu0 %v7068
  %7236 = vmatpush.bf16.msra.mxu0 %v7060
  %7237 = vmatpush.bf16.msra.mxu0 %v7052
  %7238 = vmatpush.bf16.msra.mxu0 %v7044
  %7239 = vmatpush.bf16.msra.mxu0 %v7036
  %7240 = vmatpush.bf16.msra.mxu0 %v7028
  %7241 = vmatmul.bf16.gmra.mxu0 %v6451
  %v7242 = vpop.f32.mrf.mxu0
  %v7243 = vadd.f32 %v7230, %v7242
  %v7244 = vpop.f32.mrf.mxu0
  %7245 = vdwg.mxu0
  %7246 = vmatpush.bf16.msra.mxu0 %v7021
  %7247 = vmatpush.bf16.msra.mxu0 %v7013
  %7248 = vmatpush.bf16.msra.mxu0 %v7005
  %7249 = vmatpush.bf16.msra.mxu0 %v6997
  %7250 = vmatpush.bf16.msra.mxu0 %v6989
  %7251 = vmatpush.bf16.msra.mxu0 %v6981
  %7252 = vmatpush.bf16.msra.mxu0 %v6973
  %7253 = vmatpush.bf16.msra.mxu0 %v6965
  %7254 = vmatmul.bf16.gmra.mxu0 %v6450
  %v7255 = vpop.f32.mrf.mxu0
  %v7256 = vadd.f32 0.0, %v7255
  %v7257 = vpop.f32.mrf.mxu0
  %7258 = vdwg.mxu0
  %7259 = vmatpush.bf16.msra.mxu0 %v7085
  %7260 = vmatpush.bf16.msra.mxu0 %v7077
  %7261 = vmatpush.bf16.msra.mxu0 %v7069
  %7262 = vmatpush.bf16.msra.mxu0 %v7061
  %7263 = vmatpush.bf16.msra.mxu0 %v7053
  %7264 = vmatpush.bf16.msra.mxu0 %v7045
  %7265 = vmatpush.bf16.msra.mxu0 %v7037
  %7266 = vmatpush.bf16.msra.mxu0 %v7029
  %7267 = vmatmul.bf16.gmra.mxu0 %v6451
  %v7268 = vpop.f32.mrf.mxu0
  %v7269 = vadd.f32 %v7256, %v7268
  %v7270 = vpop.f32.mrf.mxu0
  %7271 = vdwg.mxu0
  %7272 = vmatpush.bf16.msra.mxu0 %v7022
  %7273 = vmatpush.bf16.msra.mxu0 %v7014
  %7274 = vmatpush.bf16.msra.mxu0 %v7006
  %7275 = vmatpush.bf16.msra.mxu0 %v6998
  %7276 = vmatpush.bf16.msra.mxu0 %v6990
  %7277 = vmatpush.bf16.msra.mxu0 %v6982
  %7278 = vmatpush.bf16.msra.mxu0 %v6974
  %7279 = vmatpush.bf16.msra.mxu0 %v6966
  %7280 = vmatmul.bf16.gmra.mxu0 %v6450
  %v7281 = vpop.f32.mrf.mxu0
  %v7282 = vadd.f32 0.0, %v7281
  %v7283 = vpop.f32.mrf.mxu0
  %7284 = vdwg.mxu0
  %7285 = vmatpush.bf16.msra.mxu0 %v7086
  %7286 = vmatpush.bf16.msra.mxu0 %v7078
  %7287 = vmatpush.bf16.msra.mxu0 %v7070
  %7288 = vmatpush.bf16.msra.mxu0 %v7062
  %7289 = vmatpush.bf16.msra.mxu0 %v7054
  %7290 = vmatpush.bf16.msra.mxu0 %v7046
  %7291 = vmatpush.bf16.msra.mxu0 %v7038
  %7292 = vmatpush.bf16.msra.mxu0 %v7030
  %7293 = vmatmul.bf16.gmra.mxu0 %v6451
  %v7294 = vpop.f32.mrf.mxu0
  %v7295 = vadd.f32 %v7282, %v7294
  %v7296 = vpop.f32.mrf.mxu0
  %7297 = vdwg.mxu0
  %7298 = vmatpush.bf16.msra.mxu0 %v7023
  %7299 = vmatpush.bf16.msra.mxu0 %v7015
  %7300 = vmatpush.bf16.msra.mxu0 %v7007
  %7301 = vmatpush.bf16.msra.mxu0 %v6999
  %7302 = vmatpush.bf16.msra.mxu0 %v6991
  %7303 = vmatpush.bf16.msra.mxu0 %v6983
  %7304 = vmatpush.bf16.msra.mxu0 %v6975
  %7305 = vmatpush.bf16.msra.mxu0 %v6967
  %7306 = vmatmul.bf16.gmra.mxu0 %v6450
  %v7307 = vpop.f32.mrf.mxu0
  %v7308 = vadd.f32 0.0, %v7307
  %v7309 = vpop.f32.mrf.mxu0
  %7310 = vdwg.mxu0
  %7311 = vmatpush.bf16.msra.mxu0 %v7087
  %7312 = vmatpush.bf16.msra.mxu0 %v7079
  %7313 = vmatpush.bf16.msra.mxu0 %v7071
  %7314 = vmatpush.bf16.msra.mxu0 %v7063
  %7315 = vmatpush.bf16.msra.mxu0 %v7055
  %7316 = vmatpush.bf16.msra.mxu0 %v7047
  %7317 = vmatpush.bf16.msra.mxu0 %v7039
  %7318 = vmatpush.bf16.msra.mxu0 %v7031
  %7319 = vmatmul.bf16.gmra.mxu0 %v6451
  %v7320 = vpop.f32.mrf.mxu0
  %v7321 = vadd.f32 %v7308, %v7320
  %v7322 = vpop.f32.mrf.mxu0
  %7323 = vdwg.mxu0
  %7324 = vmatpush.bf16.msra.mxu0 %v7024
  %7325 = vmatpush.bf16.msra.mxu0 %v7016
  %7326 = vmatpush.bf16.msra.mxu0 %v7008
  %7327 = vmatpush.bf16.msra.mxu0 %v7000
  %7328 = vmatpush.bf16.msra.mxu0 %v6992
  %7329 = vmatpush.bf16.msra.mxu0 %v6984
  %7330 = vmatpush.bf16.msra.mxu0 %v6976
  %7331 = vmatpush.bf16.msra.mxu0 %v6968
  %7332 = vmatmul.bf16.gmra.mxu0 %v6450
  %v7333 = vpop.f32.mrf.mxu0
  %v7334 = vadd.f32 0.0, %v7333
  %v7335 = vpop.f32.mrf.mxu0
  %7336 = vdwg.mxu0
  %7337 = vmatpush.bf16.msra.mxu0 %v7088
  %7338 = vmatpush.bf16.msra.mxu0 %v7080
  %7339 = vmatpush.bf16.msra.mxu0 %v7072
  %7340 = vmatpush.bf16.msra.mxu0 %v7064
  %7341 = vmatpush.bf16.msra.mxu0 %v7056
  %7342 = vmatpush.bf16.msra.mxu0 %v7048
  %7343 = vmatpush.bf16.msra.mxu0 %v7040
  %7344 = vmatpush.bf16.msra.mxu0 %v7032
  %7345 = vmatmul.bf16.gmra.mxu0 %v6451
  %v7346 = vpop.f32.mrf.mxu0
  %v7347 = vadd.f32 %v7334, %v7346
  %v7348 = vpop.f32.mrf.mxu0
  %7349 = vdwg.mxu0
  %7350 = vmatpush.bf16.msra.mxu0 %v7025
  %7351 = vmatpush.bf16.msra.mxu0 %v7017
  %7352 = vmatpush.bf16.msra.mxu0 %v7009
  %7353 = vmatpush.bf16.msra.mxu0 %v7001
  %7354 = vmatpush.bf16.msra.mxu0 %v6993
  %7355 = vmatpush.bf16.msra.mxu0 %v6985
  %7356 = vmatpush.bf16.msra.mxu0 %v6977
  %7357 = vmatpush.bf16.msra.mxu0 %v6969
  %7358 = vmatmul.bf16.gmra.mxu0 %v6450
  %v7359 = vpop.f32.mrf.mxu0
  %v7360 = vadd.f32 0.0, %v7359
  %v7361 = vpop.f32.mrf.mxu0
  %7362 = vdwg.mxu0
  %7363 = vmatpush.bf16.msra.mxu0 %v7089
  %7364 = vmatpush.bf16.msra.mxu0 %v7081
  %7365 = vmatpush.bf16.msra.mxu0 %v7073
  %7366 = vmatpush.bf16.msra.mxu0 %v7065
  %7367 = vmatpush.bf16.msra.mxu0 %v7057
  %7368 = vmatpush.bf16.msra.mxu0 %v7049
  %7369 = vmatpush.bf16.msra.mxu0 %v7041
  %7370 = vmatpush.bf16.msra.mxu0 %v7033
  %7371 = vmatmul.bf16.gmra.mxu0 %v6451
  %v7372 = vpop.f32.mrf.mxu0
  %v7373 = vadd.f32 %v7360, %v7372
  %v7374 = vpop.f32.mrf.mxu0
  %7375 = vdwg.mxu0
  %7376 = vmatpush.bf16.msra.mxu0 %v7026
  %7377 = vmatpush.bf16.msra.mxu0 %v7018
  %7378 = vmatpush.bf16.msra.mxu0 %v7010
  %7379 = vmatpush.bf16.msra.mxu0 %v7002
  %7380 = vmatpush.bf16.msra.mxu0 %v6994
  %7381 = vmatpush.bf16.msra.mxu0 %v6986
  %7382 = vmatpush.bf16.msra.mxu0 %v6978
  %7383 = vmatpush.bf16.msra.mxu0 %v6970
  %7384 = vmatmul.bf16.gmra.mxu0 %v6450
  %v7385 = vpop.f32.mrf.mxu0
  %v7386 = vadd.f32 0.0, %v7385
  %v7387 = vpop.f32.mrf.mxu0
  %7388 = vdwg.mxu0
  %7389 = vmatpush.bf16.msra.mxu0 %v7090
  %7390 = vmatpush.bf16.msra.mxu0 %v7082
  %7391 = vmatpush.bf16.msra.mxu0 %v7074
  %7392 = vmatpush.bf16.msra.mxu0 %v7066
  %7393 = vmatpush.bf16.msra.mxu0 %v7058
  %7394 = vmatpush.bf16.msra.mxu0 %v7050
  %7395 = vmatpush.bf16.msra.mxu0 %v7042
  %7396 = vmatpush.bf16.msra.mxu0 %v7034
  %7397 = vmatmul.bf16.gmra.mxu0 %v6451
  %v7398 = vpop.f32.mrf.mxu0
  %v7399 = vadd.f32 %v7386, %v7398
  %v7400 = vpop.f32.mrf.mxu0
  %7401 = vdwg.mxu0
  %7402 = vmatpush.bf16.msra.mxu0 %v7027
  %7403 = vmatpush.bf16.msra.mxu0 %v7019
  %7404 = vmatpush.bf16.msra.mxu0 %v7011
  %7405 = vmatpush.bf16.msra.mxu0 %v7003
  %7406 = vmatpush.bf16.msra.mxu0 %v6995
  %7407 = vmatpush.bf16.msra.mxu0 %v6987
  %7408 = vmatpush.bf16.msra.mxu0 %v6979
  %7409 = vmatpush.bf16.msra.mxu0 %v6971
  %7410 = vmatmul.bf16.gmra.mxu0 %v6450
  %v7411 = vpop.f32.mrf.mxu0
  %v7412 = vadd.f32 0.0, %v7411
  %v7413 = vpop.f32.mrf.mxu0
  %7414 = vdwg.mxu0
  %7415 = vmatpush.bf16.msra.mxu0 %v7091
  %7416 = vmatpush.bf16.msra.mxu0 %v7083
  %7417 = vmatpush.bf16.msra.mxu0 %v7075
  %7418 = vmatpush.bf16.msra.mxu0 %v7067
  %7419 = vmatpush.bf16.msra.mxu0 %v7059
  %7420 = vmatpush.bf16.msra.mxu0 %v7051
  %7421 = vmatpush.bf16.msra.mxu0 %v7043
  %7422 = vmatpush.bf16.msra.mxu0 %v7035
  %7423 = vmatmul.bf16.gmra.mxu0 %v6451
  %v7424 = vpop.f32.mrf.mxu0
  %v7425 = vadd.f32 %v7412, %v7424
  %v7426 = vpop.f32.mrf.mxu0
  %7427 = vdwg.mxu0
  %v7428 = vld [vmem:[%s4063] sm:$0xff]
  %v7429 = vld [vmem:[%s4063 + $0x8] sm:$0xff]
  %v7430 = vld [vmem:[%s4063 + $0x10] sm:$0xff]
  %v7431 = vld [vmem:[%s4063 + $0x18] sm:$0xff]
  %v7432 = vadd.f32 %v7428, %v7243
  %v7433 = vadd.f32 %v7429, %v7269
  %v7434 = vadd.f32 %v7430, %v7295
  %v7435 = vadd.f32 %v7431, %v7321
  %v7436 = vld [vmem:[%s4054 + $0x20] sm:$0xff]
  %v7437 = vld [vmem:[%s4054 + $0x28] sm:$0xff]
  %v7438 = vld [vmem:[%s4054 + $0x30] sm:$0xff]
  %v7439 = vld [vmem:[%s4054 + $0x38] sm:$0xff]
  %v7440 = vadd.f32 %v7436, %v7347
  %v7441 = vadd.f32 %v7437, %v7373
  %v7442 = vadd.f32 %v7438, %v7399
  %v7443 = vadd.f32 %v7439, %v7425
  %v7444 = vxor.u32 %v7432, 2147483648
  %v7445 = vmul.f32 %v7444, 1.442695
  %v7446 = vpow.pop %v7445
  %v7447 = vadd.f32 %v7446, 1.0
  %v7448 = vrcp.pop %v7447
  %v7449 = vmul.f32 %v7447, %v7448
  %v7450 = vsub.f32 1.0, %v7449
  %v7451 = vmul.f32 %v7448, %v7450
  %v7452 = vadd.f32 %v7448, %v7451
  %vm7453 = vweird.f32 %v7447
  %vm7454 = vweird.f32 %v7448
  %vm7455 = vmor %vm7453, %vm7454
  %v7456 = vsel %vm7455, %v7448, %v7452
  %v7457 = vand.u32 2147483647, %v7447
  %vm7458 = vcmp.eq.f32.partialorder %v7457, 8.507059e+37
  %v7459 = vand.u32 %v7447, 2147483648
  %v7460 = vor.u32 1.1754944e-38, %v7459
  %v7461 = vsel %vm7458, %v7460, %v7456
  %v7462 = vmul.f32 1.0, %v7461
  %v7463 = vxor.u32 %v7433, 2147483648
  %v7464 = vmul.f32 %v7463, 1.442695
  %v7465 = vpow.pop %v7464
  %v7466 = vadd.f32 %v7465, 1.0
  %v7467 = vrcp.pop %v7466
  %v7468 = vmul.f32 %v7466, %v7467
  %v7469 = vsub.f32 1.0, %v7468
  %v7470 = vmul.f32 %v7467, %v7469
  %v7471 = vadd.f32 %v7467, %v7470
  %vm7472 = vweird.f32 %v7466
  %vm7473 = vweird.f32 %v7467
  %vm7474 = vmor %vm7472, %vm7473
  %v7475 = vsel %vm7474, %v7467, %v7471
  %v7476 = vand.u32 2147483647, %v7466
  %vm7477 = vcmp.eq.f32.partialorder %v7476, 8.507059e+37
  %v7478 = vand.u32 %v7466, 2147483648
  %v7479 = vor.u32 1.1754944e-38, %v7478
  %v7480 = vsel %vm7477, %v7479, %v7475
  %v7481 = vmul.f32 1.0, %v7480
  %v7482 = vtanh.pop %v7434
  %v7483 = vxor.u32 %v7435, 2147483648
  %v7484 = vmul.f32 %v7483, 1.442695
  %v7485 = vpow.pop %v7484
  %v7486 = vadd.f32 %v7485, 1.0
  %v7487 = vrcp.pop %v7486
  %v7488 = vmul.f32 %v7486, %v7487
  %v7489 = vsub.f32 1.0, %v7488
  %v7490 = vmul.f32 %v7487, %v7489
  %v7491 = vadd.f32 %v7487, %v7490
  %vm7492 = vweird.f32 %v7486
  %vm7493 = vweird.f32 %v7487
  %vm7494 = vmor %vm7492, %vm7493
  %v7495 = vsel %vm7494, %v7487, %v7491
  %v7496 = vand.u32 2147483647, %v7486
  %vm7497 = vcmp.eq.f32.partialorder %v7496, 8.507059e+37
  %v7498 = vand.u32 %v7486, 2147483648
  %v7499 = vor.u32 1.1754944e-38, %v7498
  %v7500 = vsel %vm7497, %v7499, %v7495
  %v7501 = vmul.f32 1.0, %v7500
  %v7502 = vmul.f32 %v7481, %v6382
  %v7503 = vmul.f32 %v7462, %v7482
  %v7504 = vadd.f32 %v7502, %v7503
  %v7505 = vtanh.pop %v7504
  %v7506 = vmul.f32 %v7501, %v7505
  %v7507 = vxor.u32 %v7440, 2147483648
  %v7508 = vmul.f32 %v7507, 1.442695
  %v7509 = vpow.pop %v7508
  %v7510 = vadd.f32 %v7509, 1.0
  %v7511 = vrcp.pop %v7510
  %v7512 = vmul.f32 %v7510, %v7511
  %v7513 = vsub.f32 1.0, %v7512
  %v7514 = vmul.f32 %v7511, %v7513
  %v7515 = vadd.f32 %v7511, %v7514
  %vm7516 = vweird.f32 %v7510
  %vm7517 = vweird.f32 %v7511
  %vm7518 = vmor %vm7516, %vm7517
  %v7519 = vsel %vm7518, %v7511, %v7515
  %v7520 = vand.u32 2147483647, %v7510
  %vm7521 = vcmp.eq.f32.partialorder %v7520, 8.507059e+37
  %v7522 = vand.u32 %v7510, 2147483648
  %v7523 = vor.u32 1.1754944e-38, %v7522
  %v7524 = vsel %vm7521, %v7523, %v7519
  %v7525 = vmul.f32 1.0, %v7524
  %v7526 = vxor.u32 %v7441, 2147483648
  %v7527 = vmul.f32 %v7526, 1.442695
  %v7528 = vpow.pop %v7527
  %v7529 = vadd.f32 %v7528, 1.0
  %v7530 = vrcp.pop %v7529
  %v7531 = vmul.f32 %v7529, %v7530
  %v7532 = vsub.f32 1.0, %v7531
  %v7533 = vmul.f32 %v7530, %v7532
  %v7534 = vadd.f32 %v7530, %v7533
  %vm7535 = vweird.f32 %v7529
  %vm7536 = vweird.f32 %v7530
  %vm7537 = vmor %vm7535, %vm7536
  %v7538 = vsel %vm7537, %v7530, %v7534
  %v7539 = vand.u32 2147483647, %v7529
  %vm7540 = vcmp.eq.f32.partialorder %v7539, 8.507059e+37
  %v7541 = vand.u32 %v7529, 2147483648
  %v7542 = vor.u32 1.1754944e-38, %v7541
  %v7543 = vsel %vm7540, %v7542, %v7538
  %v7544 = vmul.f32 1.0, %v7543
  %v7545 = vtanh.pop %v7442
  %v7546 = vxor.u32 %v7443, 2147483648
  %v7547 = vmul.f32 %v7546, 1.442695
  %v7548 = vpow.pop %v7547
  %v7549 = vadd.f32 %v7548, 1.0
  %v7550 = vrcp.pop %v7549
  %v7551 = vmul.f32 %v7549, %v7550
  %v7552 = vsub.f32 1.0, %v7551
  %v7553 = vmul.f32 %v7550, %v7552
  %v7554 = vadd.f32 %v7550, %v7553
  %vm7555 = vweird.f32 %v7549
  %vm7556 = vweird.f32 %v7550
  %vm7557 = vmor %vm7555, %vm7556
  %v7558 = vsel %vm7557, %v7550, %v7554
  %v7559 = vand.u32 2147483647, %v7549
  %vm7560 = vcmp.eq.f32.partialorder %v7559, 8.507059e+37
  %v7561 = vand.u32 %v7549, 2147483648
  %v7562 = vor.u32 1.1754944e-38, %v7561
  %v7563 = vsel %vm7560, %v7562, %v7558
  %v7564 = vmul.f32 1.0, %v7563
  %v7565 = vmul.f32 %v7544, %v6445
  %v7566 = vmul.f32 %v7525, %v7545
  %v7567 = vadd.f32 %v7565, %v7566
  %v7568 = vtanh.pop %v7567
  %v7569 = vmul.f32 %v7564, %v7568
  %7570 = vst [vmem:[%s4200] sm:$0xff] %v7506
  %7571 = vst [vmem:[%s4198 + $0x8] sm:$0xff] %v7569
  %v7572 = vpack.c.bf16 %v7506, %v7506
  %v7573 = vpack.c.bf16 %v7569, %v7569
  %v7574 = vld [vmem:[%s5] sm:$0xff]
  %v7575 = vld [vmem:[%s5 + $0x8] sm:$0xff]
  %v7576 = vld [vmem:[%s5 + $0x10] sm:$0xff]
  %v7577 = vld [vmem:[%s5 + $0x18] sm:$0xff]
  %v7578 = vld [vmem:[%s5 + $0x20] sm:$0xff]
  %v7579 = vld [vmem:[%s5 + $0x28] sm:$0xff]
  %v7580 = vld [vmem:[%s5 + $0x30] sm:$0xff]
  %v7581 = vld [vmem:[%s5 + $0x38] sm:$0xff]
  %v7582 = vld [vmem:[%s5 + $0x40] sm:$0xff]
  %v7583 = vld [vmem:[%s5 + $0x48] sm:$0xff]
  %v7584 = vld [vmem:[%s5 + $0x50] sm:$0xff]
  %v7585 = vld [vmem:[%s5 + $0x58] sm:$0xff]
  %v7586 = vld [vmem:[%s5 + $0x60] sm:$0xff]
  %v7587 = vld [vmem:[%s5 + $0x68] sm:$0xff]
  %v7588 = vld [vmem:[%s5 + $0x70] sm:$0xff]
  %v7589 = vld [vmem:[%s5 + $0x78] sm:$0xff]
  %v7590 = vld [vmem:[%s5 + $0x80] sm:$0xff]
  %v7591 = vld [vmem:[%s5 + $0x88] sm:$0xff]
  %v7592 = vld [vmem:[%s5 + $0x90] sm:$0xff]
  %v7593 = vld [vmem:[%s5 + $0x98] sm:$0xff]
  %v7594 = vld [vmem:[%s5 + $0xa0] sm:$0xff]
  %v7595 = vld [vmem:[%s5 + $0xa8] sm:$0xff]
  %v7596 = vld [vmem:[%s5 + $0xb0] sm:$0xff]
  %v7597 = vld [vmem:[%s5 + $0xb8] sm:$0xff]
  %v7598 = vld [vmem:[%s5 + $0xc0] sm:$0xff]
  %v7599 = vld [vmem:[%s5 + $0xc8] sm:$0xff]
  %v7600 = vld [vmem:[%s5 + $0xd0] sm:$0xff]
  %v7601 = vld [vmem:[%s5 + $0xd8] sm:$0xff]
  %v7602 = vld [vmem:[%s5 + $0xe0] sm:$0xff]
  %v7603 = vld [vmem:[%s5 + $0xe8] sm:$0xff]
  %v7604 = vld [vmem:[%s5 + $0xf0] sm:$0xff]
  %v7605 = vld [vmem:[%s5 + $0xf8] sm:$0xff]
  %v7606 = vld [vmem:[%s5 + $0x100] sm:$0xff]
  %v7607 = vld [vmem:[%s5 + $0x108] sm:$0xff]
  %v7608 = vld [vmem:[%s5 + $0x110] sm:$0xff]
  %v7609 = vld [vmem:[%s5 + $0x118] sm:$0xff]
  %v7610 = vld [vmem:[%s5 + $0x120] sm:$0xff]
  %v7611 = vld [vmem:[%s5 + $0x128] sm:$0xff]
  %v7612 = vld [vmem:[%s5 + $0x130] sm:$0xff]
  %v7613 = vld [vmem:[%s5 + $0x138] sm:$0xff]
  %v7614 = vld [vmem:[%s5 + $0x140] sm:$0xff]
  %v7615 = vld [vmem:[%s5 + $0x148] sm:$0xff]
  %v7616 = vld [vmem:[%s5 + $0x150] sm:$0xff]
  %v7617 = vld [vmem:[%s5 + $0x158] sm:$0xff]
  %v7618 = vld [vmem:[%s5 + $0x160] sm:$0xff]
  %v7619 = vld [vmem:[%s5 + $0x168] sm:$0xff]
  %v7620 = vld [vmem:[%s5 + $0x170] sm:$0xff]
  %v7621 = vld [vmem:[%s5 + $0x178] sm:$0xff]
  %v7622 = vld [vmem:[%s5 + $0x180] sm:$0xff]
  %v7623 = vld [vmem:[%s5 + $0x188] sm:$0xff]
  %v7624 = vld [vmem:[%s5 + $0x190] sm:$0xff]
  %v7625 = vld [vmem:[%s5 + $0x198] sm:$0xff]
  %v7626 = vld [vmem:[%s5 + $0x1a0] sm:$0xff]
  %v7627 = vld [vmem:[%s5 + $0x1a8] sm:$0xff]
  %v7628 = vld [vmem:[%s5 + $0x1b0] sm:$0xff]
  %v7629 = vld [vmem:[%s5 + $0x1b8] sm:$0xff]
  %v7630 = vld [vmem:[%s5 + $0x1c0] sm:$0xff]
  %v7631 = vld [vmem:[%s5 + $0x1c8] sm:$0xff]
  %v7632 = vld [vmem:[%s5 + $0x1d0] sm:$0xff]
  %v7633 = vld [vmem:[%s5 + $0x1d8] sm:$0xff]
  %v7634 = vld [vmem:[%s5 + $0x1e0] sm:$0xff]
  %v7635 = vld [vmem:[%s5 + $0x1e8] sm:$0xff]
  %v7636 = vld [vmem:[%s5 + $0x1f0] sm:$0xff]
  %v7637 = vld [vmem:[%s5 + $0x1f8] sm:$0xff]
  %v7638 = vld [vmem:[%s5 + $0x200] sm:$0xff]
  %v7639 = vld [vmem:[%s5 + $0x208] sm:$0xff]
  %v7640 = vld [vmem:[%s5 + $0x210] sm:$0xff]
  %v7641 = vld [vmem:[%s5 + $0x218] sm:$0xff]
  %v7642 = vld [vmem:[%s5 + $0x220] sm:$0xff]
  %v7643 = vld [vmem:[%s5 + $0x228] sm:$0xff]
  %v7644 = vld [vmem:[%s5 + $0x230] sm:$0xff]
  %v7645 = vld [vmem:[%s5 + $0x238] sm:$0xff]
  %v7646 = vld [vmem:[%s5 + $0x240] sm:$0xff]
  %v7647 = vld [vmem:[%s5 + $0x248] sm:$0xff]
  %v7648 = vld [vmem:[%s5 + $0x250] sm:$0xff]
  %v7649 = vld [vmem:[%s5 + $0x258] sm:$0xff]
  %v7650 = vld [vmem:[%s5 + $0x260] sm:$0xff]
  %v7651 = vld [vmem:[%s5 + $0x268] sm:$0xff]
  %v7652 = vld [vmem:[%s5 + $0x270] sm:$0xff]
  %v7653 = vld [vmem:[%s5 + $0x278] sm:$0xff]
  %v7654 = vld [vmem:[%s5 + $0x280] sm:$0xff]
  %v7655 = vld [vmem:[%s5 + $0x288] sm:$0xff]
  %v7656 = vld [vmem:[%s5 + $0x290] sm:$0xff]
  %v7657 = vld [vmem:[%s5 + $0x298] sm:$0xff]
  %v7658 = vld [vmem:[%s5 + $0x2a0] sm:$0xff]
  %v7659 = vld [vmem:[%s5 + $0x2a8] sm:$0xff]
  %v7660 = vld [vmem:[%s5 + $0x2b0] sm:$0xff]
  %v7661 = vld [vmem:[%s5 + $0x2b8] sm:$0xff]
  %v7662 = vld [vmem:[%s5 + $0x2c0] sm:$0xff]
  %v7663 = vld [vmem:[%s5 + $0x2c8] sm:$0xff]
  %v7664 = vld [vmem:[%s5 + $0x2d0] sm:$0xff]
  %v7665 = vld [vmem:[%s5 + $0x2d8] sm:$0xff]
  %v7666 = vld [vmem:[%s5 + $0x2e0] sm:$0xff]
  %v7667 = vld [vmem:[%s5 + $0x2e8] sm:$0xff]
  %v7668 = vld [vmem:[%s5 + $0x2f0] sm:$0xff]
  %v7669 = vld [vmem:[%s5 + $0x2f8] sm:$0xff]
  %v7670 = vld [vmem:[%s5 + $0x300] sm:$0xff]
  %v7671 = vld [vmem:[%s5 + $0x308] sm:$0xff]
  %v7672 = vld [vmem:[%s5 + $0x310] sm:$0xff]
  %v7673 = vld [vmem:[%s5 + $0x318] sm:$0xff]
  %v7674 = vld [vmem:[%s5 + $0x320] sm:$0xff]
  %v7675 = vld [vmem:[%s5 + $0x328] sm:$0xff]
  %v7676 = vld [vmem:[%s5 + $0x330] sm:$0xff]
  %v7677 = vld [vmem:[%s5 + $0x338] sm:$0xff]
  %v7678 = vld [vmem:[%s5 + $0x340] sm:$0xff]
  %v7679 = vld [vmem:[%s5 + $0x348] sm:$0xff]
  %v7680 = vld [vmem:[%s5 + $0x350] sm:$0xff]
  %v7681 = vld [vmem:[%s5 + $0x358] sm:$0xff]
  %v7682 = vld [vmem:[%s5 + $0x360] sm:$0xff]
  %v7683 = vld [vmem:[%s5 + $0x368] sm:$0xff]
  %v7684 = vld [vmem:[%s5 + $0x370] sm:$0xff]
  %v7685 = vld [vmem:[%s5 + $0x378] sm:$0xff]
  %v7686 = vld [vmem:[%s5 + $0x380] sm:$0xff]
  %v7687 = vld [vmem:[%s5 + $0x388] sm:$0xff]
  %v7688 = vld [vmem:[%s5 + $0x390] sm:$0xff]
  %v7689 = vld [vmem:[%s5 + $0x398] sm:$0xff]
  %v7690 = vld [vmem:[%s5 + $0x3a0] sm:$0xff]
  %v7691 = vld [vmem:[%s5 + $0x3a8] sm:$0xff]
  %v7692 = vld [vmem:[%s5 + $0x3b0] sm:$0xff]
  %v7693 = vld [vmem:[%s5 + $0x3b8] sm:$0xff]
  %v7694 = vld [vmem:[%s5 + $0x3c0] sm:$0xff]
  %v7695 = vld [vmem:[%s5 + $0x3c8] sm:$0xff]
  %v7696 = vld [vmem:[%s5 + $0x3d0] sm:$0xff]
  %v7697 = vld [vmem:[%s5 + $0x3d8] sm:$0xff]
  %v7698 = vld [vmem:[%s5 + $0x3e0] sm:$0xff]
  %v7699 = vld [vmem:[%s5 + $0x3e8] sm:$0xff]
  %v7700 = vld [vmem:[%s5 + $0x3f0] sm:$0xff]
  %v7701 = vld [vmem:[%s5 + $0x3f8] sm:$0xff]
  %v7830 = vunpack.c.l.b16 %v7574
  %v7831 = vunpack.c.h.b16 %v7574
  %v7832 = vunpack.c.l.b16 %v7575
  %v7833 = vunpack.c.h.b16 %v7575
  %v7834 = vunpack.c.l.b16 %v7576
  %v7835 = vunpack.c.h.b16 %v7576
  %v7836 = vunpack.c.l.b16 %v7577
  %v7837 = vunpack.c.h.b16 %v7577
  %v7838 = vunpack.c.l.b16 %v7578
  %v7839 = vunpack.c.h.b16 %v7578
  %v7840 = vunpack.c.l.b16 %v7579
  %v7841 = vunpack.c.h.b16 %v7579
  %v7842 = vunpack.c.l.b16 %v7580
  %v7843 = vunpack.c.h.b16 %v7580
  %v7844 = vunpack.c.l.b16 %v7581
  %v7845 = vunpack.c.h.b16 %v7581
  %v7846 = vunpack.c.l.b16 %v7582
  %v7847 = vunpack.c.h.b16 %v7582
  %v7848 = vunpack.c.l.b16 %v7583
  %v7849 = vunpack.c.h.b16 %v7583
  %v7850 = vunpack.c.l.b16 %v7584
  %v7851 = vunpack.c.h.b16 %v7584
  %v7852 = vunpack.c.l.b16 %v7585
  %v7853 = vunpack.c.h.b16 %v7585
  %v7854 = vunpack.c.l.b16 %v7586
  %v7855 = vunpack.c.h.b16 %v7586
  %v7856 = vunpack.c.l.b16 %v7587
  %v7857 = vunpack.c.h.b16 %v7587
  %v7858 = vunpack.c.l.b16 %v7588
  %v7859 = vunpack.c.h.b16 %v7588
  %v7860 = vunpack.c.l.b16 %v7589
  %v7861 = vunpack.c.h.b16 %v7589
  %v7862 = vunpack.c.l.b16 %v7590
  %v7863 = vunpack.c.h.b16 %v7590
  %v7864 = vunpack.c.l.b16 %v7591
  %v7865 = vunpack.c.h.b16 %v7591
  %v7866 = vunpack.c.l.b16 %v7592
  %v7867 = vunpack.c.h.b16 %v7592
  %v7868 = vunpack.c.l.b16 %v7593
  %v7869 = vunpack.c.h.b16 %v7593
  %v7870 = vunpack.c.l.b16 %v7594
  %v7871 = vunpack.c.h.b16 %v7594
  %v7872 = vunpack.c.l.b16 %v7595
  %v7873 = vunpack.c.h.b16 %v7595
  %v7874 = vunpack.c.l.b16 %v7596
  %v7875 = vunpack.c.h.b16 %v7596
  %v7876 = vunpack.c.l.b16 %v7597
  %v7877 = vunpack.c.h.b16 %v7597
  %v7878 = vunpack.c.l.b16 %v7598
  %v7879 = vunpack.c.h.b16 %v7598
  %v7880 = vunpack.c.l.b16 %v7599
  %v7881 = vunpack.c.h.b16 %v7599
  %v7882 = vunpack.c.l.b16 %v7600
  %v7883 = vunpack.c.h.b16 %v7600
  %v7884 = vunpack.c.l.b16 %v7601
  %v7885 = vunpack.c.h.b16 %v7601
  %v7886 = vunpack.c.l.b16 %v7602
  %v7887 = vunpack.c.h.b16 %v7602
  %v7888 = vunpack.c.l.b16 %v7603
  %v7889 = vunpack.c.h.b16 %v7603
  %v7890 = vunpack.c.l.b16 %v7604
  %v7891 = vunpack.c.h.b16 %v7604
  %v7892 = vunpack.c.l.b16 %v7605
  %v7893 = vunpack.c.h.b16 %v7605
  %v7894 = vunpack.c.l.b16 %v7606
  %v7895 = vunpack.c.h.b16 %v7606
  %v7896 = vunpack.c.l.b16 %v7607
  %v7897 = vunpack.c.h.b16 %v7607
  %v7898 = vunpack.c.l.b16 %v7608
  %v7899 = vunpack.c.h.b16 %v7608
  %v7900 = vunpack.c.l.b16 %v7609
  %v7901 = vunpack.c.h.b16 %v7609
  %v7902 = vunpack.c.l.b16 %v7610
  %v7903 = vunpack.c.h.b16 %v7610
  %v7904 = vunpack.c.l.b16 %v7611
  %v7905 = vunpack.c.h.b16 %v7611
  %v7906 = vunpack.c.l.b16 %v7612
  %v7907 = vunpack.c.h.b16 %v7612
  %v7908 = vunpack.c.l.b16 %v7613
  %v7909 = vunpack.c.h.b16 %v7613
  %v7910 = vunpack.c.l.b16 %v7614
  %v7911 = vunpack.c.h.b16 %v7614
  %v7912 = vunpack.c.l.b16 %v7615
  %v7913 = vunpack.c.h.b16 %v7615
  %v7914 = vunpack.c.l.b16 %v7616
  %v7915 = vunpack.c.h.b16 %v7616
  %v7916 = vunpack.c.l.b16 %v7617
  %v7917 = vunpack.c.h.b16 %v7617
  %v7918 = vunpack.c.l.b16 %v7618
  %v7919 = vunpack.c.h.b16 %v7618
  %v7920 = vunpack.c.l.b16 %v7619
  %v7921 = vunpack.c.h.b16 %v7619
  %v7922 = vunpack.c.l.b16 %v7620
  %v7923 = vunpack.c.h.b16 %v7620
  %v7924 = vunpack.c.l.b16 %v7621
  %v7925 = vunpack.c.h.b16 %v7621
  %v7926 = vunpack.c.l.b16 %v7622
  %v7927 = vunpack.c.h.b16 %v7622
  %v7928 = vunpack.c.l.b16 %v7623
  %v7929 = vunpack.c.h.b16 %v7623
  %v7930 = vunpack.c.l.b16 %v7624
  %v7931 = vunpack.c.h.b16 %v7624
  %v7932 = vunpack.c.l.b16 %v7625
  %v7933 = vunpack.c.h.b16 %v7625
  %v7934 = vunpack.c.l.b16 %v7626
  %v7935 = vunpack.c.h.b16 %v7626
  %v7936 = vunpack.c.l.b16 %v7627
  %v7937 = vunpack.c.h.b16 %v7627
  %v7938 = vunpack.c.l.b16 %v7628
  %v7939 = vunpack.c.h.b16 %v7628
  %v7940 = vunpack.c.l.b16 %v7629
  %v7941 = vunpack.c.h.b16 %v7629
  %v7942 = vunpack.c.l.b16 %v7630
  %v7943 = vunpack.c.h.b16 %v7630
  %v7944 = vunpack.c.l.b16 %v7631
  %v7945 = vunpack.c.h.b16 %v7631
  %v7946 = vunpack.c.l.b16 %v7632
  %v7947 = vunpack.c.h.b16 %v7632
  %v7948 = vunpack.c.l.b16 %v7633
  %v7949 = vunpack.c.h.b16 %v7633
  %v7950 = vunpack.c.l.b16 %v7634
  %v7951 = vunpack.c.h.b16 %v7634
  %v7952 = vunpack.c.l.b16 %v7635
  %v7953 = vunpack.c.h.b16 %v7635
  %v7954 = vunpack.c.l.b16 %v7636
  %v7955 = vunpack.c.h.b16 %v7636
  %v7956 = vunpack.c.l.b16 %v7637
  %v7957 = vunpack.c.h.b16 %v7637
  %v7958 = vunpack.c.l.b16 %v7638
  %v7959 = vunpack.c.h.b16 %v7638
  %v7960 = vunpack.c.l.b16 %v7639
  %v7961 = vunpack.c.h.b16 %v7639
  %v7962 = vunpack.c.l.b16 %v7640
  %v7963 = vunpack.c.h.b16 %v7640
  %v7964 = vunpack.c.l.b16 %v7641
  %v7965 = vunpack.c.h.b16 %v7641
  %v7966 = vunpack.c.l.b16 %v7642
  %v7967 = vunpack.c.h.b16 %v7642
  %v7968 = vunpack.c.l.b16 %v7643
  %v7969 = vunpack.c.h.b16 %v7643
  %v7970 = vunpack.c.l.b16 %v7644
  %v7971 = vunpack.c.h.b16 %v7644
  %v7972 = vunpack.c.l.b16 %v7645
  %v7973 = vunpack.c.h.b16 %v7645
  %v7974 = vunpack.c.l.b16 %v7646
  %v7975 = vunpack.c.h.b16 %v7646
  %v7976 = vunpack.c.l.b16 %v7647
  %v7977 = vunpack.c.h.b16 %v7647
  %v7978 = vunpack.c.l.b16 %v7648
  %v7979 = vunpack.c.h.b16 %v7648
  %v7980 = vunpack.c.l.b16 %v7649
  %v7981 = vunpack.c.h.b16 %v7649
  %v7982 = vunpack.c.l.b16 %v7650
  %v7983 = vunpack.c.h.b16 %v7650
  %v7984 = vunpack.c.l.b16 %v7651
  %v7985 = vunpack.c.h.b16 %v7651
  %v7986 = vunpack.c.l.b16 %v7652
  %v7987 = vunpack.c.h.b16 %v7652
  %v7988 = vunpack.c.l.b16 %v7653
  %v7989 = vunpack.c.h.b16 %v7653
  %v7990 = vunpack.c.l.b16 %v7654
  %v7991 = vunpack.c.h.b16 %v7654
  %v7992 = vunpack.c.l.b16 %v7655
  %v7993 = vunpack.c.h.b16 %v7655
  %v7994 = vunpack.c.l.b16 %v7656
  %v7995 = vunpack.c.h.b16 %v7656
  %v7996 = vunpack.c.l.b16 %v7657
  %v7997 = vunpack.c.h.b16 %v7657
  %v7998 = vunpack.c.l.b16 %v7658
  %v7999 = vunpack.c.h.b16 %v7658
  %v8000 = vunpack.c.l.b16 %v7659
  %v8001 = vunpack.c.h.b16 %v7659
  %v8002 = vunpack.c.l.b16 %v7660
  %v8003 = vunpack.c.h.b16 %v7660
  %v8004 = vunpack.c.l.b16 %v7661
  %v8005 = vunpack.c.h.b16 %v7661
  %v8006 = vunpack.c.l.b16 %v7662
  %v8007 = vunpack.c.h.b16 %v7662
  %v8008 = vunpack.c.l.b16 %v7663
  %v8009 = vunpack.c.h.b16 %v7663
  %v8010 = vunpack.c.l.b16 %v7664
  %v8011 = vunpack.c.h.b16 %v7664
  %v8012 = vunpack.c.l.b16 %v7665
  %v8013 = vunpack.c.h.b16 %v7665
  %v8014 = vunpack.c.l.b16 %v7666
  %v8015 = vunpack.c.h.b16 %v7666
  %v8016 = vunpack.c.l.b16 %v7667
  %v8017 = vunpack.c.h.b16 %v7667
  %v8018 = vunpack.c.l.b16 %v7668
  %v8019 = vunpack.c.h.b16 %v7668
  %v8020 = vunpack.c.l.b16 %v7669
  %v8021 = vunpack.c.h.b16 %v7669
  %v8022 = vunpack.c.l.b16 %v7670
  %v8023 = vunpack.c.h.b16 %v7670
  %v8024 = vunpack.c.l.b16 %v7671
  %v8025 = vunpack.c.h.b16 %v7671
  %v8026 = vunpack.c.l.b16 %v7672
  %v8027 = vunpack.c.h.b16 %v7672
  %v8028 = vunpack.c.l.b16 %v7673
  %v8029 = vunpack.c.h.b16 %v7673
  %v8030 = vunpack.c.l.b16 %v7674
  %v8031 = vunpack.c.h.b16 %v7674
  %v8032 = vunpack.c.l.b16 %v7675
  %v8033 = vunpack.c.h.b16 %v7675
  %v8034 = vunpack.c.l.b16 %v7676
  %v8035 = vunpack.c.h.b16 %v7676
  %v8036 = vunpack.c.l.b16 %v7677
  %v8037 = vunpack.c.h.b16 %v7677
  %v8038 = vunpack.c.l.b16 %v7678
  %v8039 = vunpack.c.h.b16 %v7678
  %v8040 = vunpack.c.l.b16 %v7679
  %v8041 = vunpack.c.h.b16 %v7679
  %v8042 = vunpack.c.l.b16 %v7680
  %v8043 = vunpack.c.h.b16 %v7680
  %v8044 = vunpack.c.l.b16 %v7681
  %v8045 = vunpack.c.h.b16 %v7681
  %v8046 = vunpack.c.l.b16 %v7682
  %v8047 = vunpack.c.h.b16 %v7682
  %v8048 = vunpack.c.l.b16 %v7683
  %v8049 = vunpack.c.h.b16 %v7683
  %v8050 = vunpack.c.l.b16 %v7684
  %v8051 = vunpack.c.h.b16 %v7684
  %v8052 = vunpack.c.l.b16 %v7685
  %v8053 = vunpack.c.h.b16 %v7685
  %v8054 = vunpack.c.l.b16 %v7686
  %v8055 = vunpack.c.h.b16 %v7686
  %v8056 = vunpack.c.l.b16 %v7687
  %v8057 = vunpack.c.h.b16 %v7687
  %v8058 = vunpack.c.l.b16 %v7688
  %v8059 = vunpack.c.h.b16 %v7688
  %v8060 = vunpack.c.l.b16 %v7689
  %v8061 = vunpack.c.h.b16 %v7689
  %v8062 = vunpack.c.l.b16 %v7690
  %v8063 = vunpack.c.h.b16 %v7690
  %v8064 = vunpack.c.l.b16 %v7691
  %v8065 = vunpack.c.h.b16 %v7691
  %v8066 = vunpack.c.l.b16 %v7692
  %v8067 = vunpack.c.h.b16 %v7692
  %v8068 = vunpack.c.l.b16 %v7693
  %v8069 = vunpack.c.h.b16 %v7693
  %v8070 = vunpack.c.l.b16 %v7694
  %v8071 = vunpack.c.h.b16 %v7694
  %v8072 = vunpack.c.l.b16 %v7695
  %v8073 = vunpack.c.h.b16 %v7695
  %v8074 = vunpack.c.l.b16 %v7696
  %v8075 = vunpack.c.h.b16 %v7696
  %v8076 = vunpack.c.l.b16 %v7697
  %v8077 = vunpack.c.h.b16 %v7697
  %v8078 = vunpack.c.l.b16 %v7698
  %v8079 = vunpack.c.h.b16 %v7698
  %v8080 = vunpack.c.l.b16 %v7699
  %v8081 = vunpack.c.h.b16 %v7699
  %v8082 = vunpack.c.l.b16 %v7700
  %v8083 = vunpack.c.h.b16 %v7700
  %v8084 = vunpack.c.l.b16 %v7701
  %v8085 = vunpack.c.h.b16 %v7701
  %v8086 = vpack.c.b16 %v7838, %v7830
  %v8087 = vpack.c.b16 %v7839, %v7831
  %v8088 = vpack.c.b16 %v7840, %v7832
  %v8089 = vpack.c.b16 %v7841, %v7833
  %v8090 = vpack.c.b16 %v7842, %v7834
  %v8091 = vpack.c.b16 %v7843, %v7835
  %v8092 = vpack.c.b16 %v7844, %v7836
  %v8093 = vpack.c.b16 %v7845, %v7837
  %v8094 = vpack.c.b16 %v7854, %v7846
  %v8095 = vpack.c.b16 %v7855, %v7847
  %v8096 = vpack.c.b16 %v7856, %v7848
  %v8097 = vpack.c.b16 %v7857, %v7849
  %v8098 = vpack.c.b16 %v7858, %v7850
  %v8099 = vpack.c.b16 %v7859, %v7851
  %v8100 = vpack.c.b16 %v7860, %v7852
  %v8101 = vpack.c.b16 %v7861, %v7853
  %v8102 = vpack.c.b16 %v7870, %v7862
  %v8103 = vpack.c.b16 %v7871, %v7863
  %v8104 = vpack.c.b16 %v7872, %v7864
  %v8105 = vpack.c.b16 %v7873, %v7865
  %v8106 = vpack.c.b16 %v7874, %v7866
  %v8107 = vpack.c.b16 %v7875, %v7867
  %v8108 = vpack.c.b16 %v7876, %v7868
  %v8109 = vpack.c.b16 %v7877, %v7869
  %v8110 = vpack.c.b16 %v7886, %v7878
  %v8111 = vpack.c.b16 %v7887, %v7879
  %v8112 = vpack.c.b16 %v7888, %v7880
  %v8113 = vpack.c.b16 %v7889, %v7881
  %v8114 = vpack.c.b16 %v7890, %v7882
  %v8115 = vpack.c.b16 %v7891, %v7883
  %v8116 = vpack.c.b16 %v7892, %v7884
  %v8117 = vpack.c.b16 %v7893, %v7885
  %v8118 = vpack.c.b16 %v7902, %v7894
  %v8119 = vpack.c.b16 %v7903, %v7895
  %v8120 = vpack.c.b16 %v7904, %v7896
  %v8121 = vpack.c.b16 %v7905, %v7897
  %v8122 = vpack.c.b16 %v7906, %v7898
  %v8123 = vpack.c.b16 %v7907, %v7899
  %v8124 = vpack.c.b16 %v7908, %v7900
  %v8125 = vpack.c.b16 %v7909, %v7901
  %v8126 = vpack.c.b16 %v7918, %v7910
  %v8127 = vpack.c.b16 %v7919, %v7911
  %v8128 = vpack.c.b16 %v7920, %v7912
  %v8129 = vpack.c.b16 %v7921, %v7913
  %v8130 = vpack.c.b16 %v7922, %v7914
  %v8131 = vpack.c.b16 %v7923, %v7915
  %v8132 = vpack.c.b16 %v7924, %v7916
  %v8133 = vpack.c.b16 %v7925, %v7917
  %v8134 = vpack.c.b16 %v7934, %v7926
  %v8135 = vpack.c.b16 %v7935, %v7927
  %v8136 = vpack.c.b16 %v7936, %v7928
  %v8137 = vpack.c.b16 %v7937, %v7929
  %v8138 = vpack.c.b16 %v7938, %v7930
  %v8139 = vpack.c.b16 %v7939, %v7931
  %v8140 = vpack.c.b16 %v7940, %v7932
  %v8141 = vpack.c.b16 %v7941, %v7933
  %v8142 = vpack.c.b16 %v7950, %v7942
  %v8143 = vpack.c.b16 %v7951, %v7943
  %v8144 = vpack.c.b16 %v7952, %v7944
  %v8145 = vpack.c.b16 %v7953, %v7945
  %v8146 = vpack.c.b16 %v7954, %v7946
  %v8147 = vpack.c.b16 %v7955, %v7947
  %v8148 = vpack.c.b16 %v7956, %v7948
  %v8149 = vpack.c.b16 %v7957, %v7949
  %v8150 = vpack.c.b16 %v7966, %v7958
  %v8151 = vpack.c.b16 %v7967, %v7959
  %v8152 = vpack.c.b16 %v7968, %v7960
  %v8153 = vpack.c.b16 %v7969, %v7961
  %v8154 = vpack.c.b16 %v7970, %v7962
  %v8155 = vpack.c.b16 %v7971, %v7963
  %v8156 = vpack.c.b16 %v7972, %v7964
  %v8157 = vpack.c.b16 %v7973, %v7965
  %v8158 = vpack.c.b16 %v7982, %v7974
  %v8159 = vpack.c.b16 %v7983, %v7975
  %v8160 = vpack.c.b16 %v7984, %v7976
  %v8161 = vpack.c.b16 %v7985, %v7977
  %v8162 = vpack.c.b16 %v7986, %v7978
  %v8163 = vpack.c.b16 %v7987, %v7979
  %v8164 = vpack.c.b16 %v7988, %v7980
  %v8165 = vpack.c.b16 %v7989, %v7981
  %v8166 = vpack.c.b16 %v7998, %v7990
  %v8167 = vpack.c.b16 %v7999, %v7991
  %v8168 = vpack.c.b16 %v8000, %v7992
  %v8169 = vpack.c.b16 %v8001, %v7993
  %v8170 = vpack.c.b16 %v8002, %v7994
  %v8171 = vpack.c.b16 %v8003, %v7995
  %v8172 = vpack.c.b16 %v8004, %v7996
  %v8173 = vpack.c.b16 %v8005, %v7997
  %v8174 = vpack.c.b16 %v8014, %v8006
  %v8175 = vpack.c.b16 %v8015, %v8007
  %v8176 = vpack.c.b16 %v8016, %v8008
  %v8177 = vpack.c.b16 %v8017, %v8009
  %v8178 = vpack.c.b16 %v8018, %v8010
  %v8179 = vpack.c.b16 %v8019, %v8011
  %v8180 = vpack.c.b16 %v8020, %v8012
  %v8181 = vpack.c.b16 %v8021, %v8013
  %v8182 = vpack.c.b16 %v8030, %v8022
  %v8183 = vpack.c.b16 %v8031, %v8023
  %v8184 = vpack.c.b16 %v8032, %v8024
  %v8185 = vpack.c.b16 %v8033, %v8025
  %v8186 = vpack.c.b16 %v8034, %v8026
  %v8187 = vpack.c.b16 %v8035, %v8027
  %v8188 = vpack.c.b16 %v8036, %v8028
  %v8189 = vpack.c.b16 %v8037, %v8029
  %v8190 = vpack.c.b16 %v8046, %v8038
  %v8191 = vpack.c.b16 %v8047, %v8039
  %v8192 = vpack.c.b16 %v8048, %v8040
  %v8193 = vpack.c.b16 %v8049, %v8041
  %v8194 = vpack.c.b16 %v8050, %v8042
  %v8195 = vpack.c.b16 %v8051, %v8043
  %v8196 = vpack.c.b16 %v8052, %v8044
  %v8197 = vpack.c.b16 %v8053, %v8045
  %v8198 = vpack.c.b16 %v8062, %v8054
  %v8199 = vpack.c.b16 %v8063, %v8055
  %v8200 = vpack.c.b16 %v8064, %v8056
  %v8201 = vpack.c.b16 %v8065, %v8057
  %v8202 = vpack.c.b16 %v8066, %v8058
  %v8203 = vpack.c.b16 %v8067, %v8059
  %v8204 = vpack.c.b16 %v8068, %v8060
  %v8205 = vpack.c.b16 %v8069, %v8061
  %v8206 = vpack.c.b16 %v8078, %v8070
  %v8207 = vpack.c.b16 %v8079, %v8071
  %v8208 = vpack.c.b16 %v8080, %v8072
  %v8209 = vpack.c.b16 %v8081, %v8073
  %v8210 = vpack.c.b16 %v8082, %v8074
  %v8211 = vpack.c.b16 %v8083, %v8075
  %v8212 = vpack.c.b16 %v8084, %v8076
  %v8213 = vpack.c.b16 %v8085, %v8077
  %8342 = vmatpush.bf16.msra.mxu0 %v8142
  %8343 = vmatpush.bf16.msra.mxu0 %v8134
  %8344 = vmatpush.bf16.msra.mxu0 %v8126
  %8345 = vmatpush.bf16.msra.mxu0 %v8118
  %8346 = vmatpush.bf16.msra.mxu0 %v8110
  %8347 = vmatpush.bf16.msra.mxu0 %v8102
  %8348 = vmatpush.bf16.msra.mxu0 %v8094
  %8349 = vmatpush.bf16.msra.mxu0 %v8086
  %8350 = vmatmul.bf16.gmra.mxu0 %v7572
  %v8351 = vpop.f32.mrf.mxu0
  %v8352 = vadd.f32 0.0, %v8351
  %v8353 = vpop.f32.mrf.mxu0
  %8354 = vdwg.mxu0
  %8355 = vmatpush.bf16.msra.mxu0 %v8206
  %8356 = vmatpush.bf16.msra.mxu0 %v8198
  %8357 = vmatpush.bf16.msra.mxu0 %v8190
  %8358 = vmatpush.bf16.msra.mxu0 %v8182
  %8359 = vmatpush.bf16.msra.mxu0 %v8174
  %8360 = vmatpush.bf16.msra.mxu0 %v8166
  %8361 = vmatpush.bf16.msra.mxu0 %v8158
  %8362 = vmatpush.bf16.msra.mxu0 %v8150
  %8363 = vmatmul.bf16.gmra.mxu0 %v7573
  %v8364 = vpop.f32.mrf.mxu0
  %v8365 = vadd.f32 %v8352, %v8364
  %v8366 = vpop.f32.mrf.mxu0
  %8367 = vdwg.mxu0
  %8368 = vmatpush.bf16.msra.mxu0 %v8143
  %8369 = vmatpush.bf16.msra.mxu0 %v8135
  %8370 = vmatpush.bf16.msra.mxu0 %v8127
  %8371 = vmatpush.bf16.msra.mxu0 %v8119
  %8372 = vmatpush.bf16.msra.mxu0 %v8111
  %8373 = vmatpush.bf16.msra.mxu0 %v8103
  %8374 = vmatpush.bf16.msra.mxu0 %v8095
  %8375 = vmatpush.bf16.msra.mxu0 %v8087
  %8376 = vmatmul.bf16.gmra.mxu0 %v7572
  %v8377 = vpop.f32.mrf.mxu0
  %v8378 = vadd.f32 0.0, %v8377
  %v8379 = vpop.f32.mrf.mxu0
  %8380 = vdwg.mxu0
  %8381 = vmatpush.bf16.msra.mxu0 %v8207
  %8382 = vmatpush.bf16.msra.mxu0 %v8199
  %8383 = vmatpush.bf16.msra.mxu0 %v8191
  %8384 = vmatpush.bf16.msra.mxu0 %v8183
  %8385 = vmatpush.bf16.msra.mxu0 %v8175
  %8386 = vmatpush.bf16.msra.mxu0 %v8167
  %8387 = vmatpush.bf16.msra.mxu0 %v8159
  %8388 = vmatpush.bf16.msra.mxu0 %v8151
  %8389 = vmatmul.bf16.gmra.mxu0 %v7573
  %v8390 = vpop.f32.mrf.mxu0
  %v8391 = vadd.f32 %v8378, %v8390
  %v8392 = vpop.f32.mrf.mxu0
  %8393 = vdwg.mxu0
  %8394 = vmatpush.bf16.msra.mxu0 %v8144
  %8395 = vmatpush.bf16.msra.mxu0 %v8136
  %8396 = vmatpush.bf16.msra.mxu0 %v8128
  %8397 = vmatpush.bf16.msra.mxu0 %v8120
  %8398 = vmatpush.bf16.msra.mxu0 %v8112
  %8399 = vmatpush.bf16.msra.mxu0 %v8104
  %8400 = vmatpush.bf16.msra.mxu0 %v8096
  %8401 = vmatpush.bf16.msra.mxu0 %v8088
  %8402 = vmatmul.bf16.gmra.mxu0 %v7572
  %v8403 = vpop.f32.mrf.mxu0
  %v8404 = vadd.f32 0.0, %v8403
  %v8405 = vpop.f32.mrf.mxu0
  %8406 = vdwg.mxu0
  %8407 = vmatpush.bf16.msra.mxu0 %v8208
  %8408 = vmatpush.bf16.msra.mxu0 %v8200
  %8409 = vmatpush.bf16.msra.mxu0 %v8192
  %8410 = vmatpush.bf16.msra.mxu0 %v8184
  %8411 = vmatpush.bf16.msra.mxu0 %v8176
  %8412 = vmatpush.bf16.msra.mxu0 %v8168
  %8413 = vmatpush.bf16.msra.mxu0 %v8160
  %8414 = vmatpush.bf16.msra.mxu0 %v8152
  %8415 = vmatmul.bf16.gmra.mxu0 %v7573
  %v8416 = vpop.f32.mrf.mxu0
  %v8417 = vadd.f32 %v8404, %v8416
  %v8418 = vpop.f32.mrf.mxu0
  %8419 = vdwg.mxu0
  %8420 = vmatpush.bf16.msra.mxu0 %v8145
  %8421 = vmatpush.bf16.msra.mxu0 %v8137
  %8422 = vmatpush.bf16.msra.mxu0 %v8129
  %8423 = vmatpush.bf16.msra.mxu0 %v8121
  %8424 = vmatpush.bf16.msra.mxu0 %v8113
  %8425 = vmatpush.bf16.msra.mxu0 %v8105
  %8426 = vmatpush.bf16.msra.mxu0 %v8097
  %8427 = vmatpush.bf16.msra.mxu0 %v8089
  %8428 = vmatmul.bf16.gmra.mxu0 %v7572
  %v8429 = vpop.f32.mrf.mxu0
  %v8430 = vadd.f32 0.0, %v8429
  %v8431 = vpop.f32.mrf.mxu0
  %8432 = vdwg.mxu0
  %8433 = vmatpush.bf16.msra.mxu0 %v8209
  %8434 = vmatpush.bf16.msra.mxu0 %v8201
  %8435 = vmatpush.bf16.msra.mxu0 %v8193
  %8436 = vmatpush.bf16.msra.mxu0 %v8185
  %8437 = vmatpush.bf16.msra.mxu0 %v8177
  %8438 = vmatpush.bf16.msra.mxu0 %v8169
  %8439 = vmatpush.bf16.msra.mxu0 %v8161
  %8440 = vmatpush.bf16.msra.mxu0 %v8153
  %8441 = vmatmul.bf16.gmra.mxu0 %v7573
  %v8442 = vpop.f32.mrf.mxu0
  %v8443 = vadd.f32 %v8430, %v8442
  %v8444 = vpop.f32.mrf.mxu0
  %8445 = vdwg.mxu0
  %8446 = vmatpush.bf16.msra.mxu0 %v8146
  %8447 = vmatpush.bf16.msra.mxu0 %v8138
  %8448 = vmatpush.bf16.msra.mxu0 %v8130
  %8449 = vmatpush.bf16.msra.mxu0 %v8122
  %8450 = vmatpush.bf16.msra.mxu0 %v8114
  %8451 = vmatpush.bf16.msra.mxu0 %v8106
  %8452 = vmatpush.bf16.msra.mxu0 %v8098
  %8453 = vmatpush.bf16.msra.mxu0 %v8090
  %8454 = vmatmul.bf16.gmra.mxu0 %v7572
  %v8455 = vpop.f32.mrf.mxu0
  %v8456 = vadd.f32 0.0, %v8455
  %v8457 = vpop.f32.mrf.mxu0
  %8458 = vdwg.mxu0
  %8459 = vmatpush.bf16.msra.mxu0 %v8210
  %8460 = vmatpush.bf16.msra.mxu0 %v8202
  %8461 = vmatpush.bf16.msra.mxu0 %v8194
  %8462 = vmatpush.bf16.msra.mxu0 %v8186
  %8463 = vmatpush.bf16.msra.mxu0 %v8178
  %8464 = vmatpush.bf16.msra.mxu0 %v8170
  %8465 = vmatpush.bf16.msra.mxu0 %v8162
  %8466 = vmatpush.bf16.msra.mxu0 %v8154
  %8467 = vmatmul.bf16.gmra.mxu0 %v7573
  %v8468 = vpop.f32.mrf.mxu0
  %v8469 = vadd.f32 %v8456, %v8468
  %v8470 = vpop.f32.mrf.mxu0
  %8471 = vdwg.mxu0
  %8472 = vmatpush.bf16.msra.mxu0 %v8147
  %8473 = vmatpush.bf16.msra.mxu0 %v8139
  %8474 = vmatpush.bf16.msra.mxu0 %v8131
  %8475 = vmatpush.bf16.msra.mxu0 %v8123
  %8476 = vmatpush.bf16.msra.mxu0 %v8115
  %8477 = vmatpush.bf16.msra.mxu0 %v8107
  %8478 = vmatpush.bf16.msra.mxu0 %v8099
  %8479 = vmatpush.bf16.msra.mxu0 %v8091
  %8480 = vmatmul.bf16.gmra.mxu0 %v7572
  %v8481 = vpop.f32.mrf.mxu0
  %v8482 = vadd.f32 0.0, %v8481
  %v8483 = vpop.f32.mrf.mxu0
  %8484 = vdwg.mxu0
  %8485 = vmatpush.bf16.msra.mxu0 %v8211
  %8486 = vmatpush.bf16.msra.mxu0 %v8203
  %8487 = vmatpush.bf16.msra.mxu0 %v8195
  %8488 = vmatpush.bf16.msra.mxu0 %v8187
  %8489 = vmatpush.bf16.msra.mxu0 %v8179
  %8490 = vmatpush.bf16.msra.mxu0 %v8171
  %8491 = vmatpush.bf16.msra.mxu0 %v8163
  %8492 = vmatpush.bf16.msra.mxu0 %v8155
  %8493 = vmatmul.bf16.gmra.mxu0 %v7573
  %v8494 = vpop.f32.mrf.mxu0
  %v8495 = vadd.f32 %v8482, %v8494
  %v8496 = vpop.f32.mrf.mxu0
  %8497 = vdwg.mxu0
  %8498 = vmatpush.bf16.msra.mxu0 %v8148
  %8499 = vmatpush.bf16.msra.mxu0 %v8140
  %8500 = vmatpush.bf16.msra.mxu0 %v8132
  %8501 = vmatpush.bf16.msra.mxu0 %v8124
  %8502 = vmatpush.bf16.msra.mxu0 %v8116
  %8503 = vmatpush.bf16.msra.mxu0 %v8108
  %8504 = vmatpush.bf16.msra.mxu0 %v8100
  %8505 = vmatpush.bf16.msra.mxu0 %v8092
  %8506 = vmatmul.bf16.gmra.mxu0 %v7572
  %v8507 = vpop.f32.mrf.mxu0
  %v8508 = vadd.f32 0.0, %v8507
  %v8509 = vpop.f32.mrf.mxu0
  %8510 = vdwg.mxu0
  %8511 = vmatpush.bf16.msra.mxu0 %v8212
  %8512 = vmatpush.bf16.msra.mxu0 %v8204
  %8513 = vmatpush.bf16.msra.mxu0 %v8196
  %8514 = vmatpush.bf16.msra.mxu0 %v8188
  %8515 = vmatpush.bf16.msra.mxu0 %v8180
  %8516 = vmatpush.bf16.msra.mxu0 %v8172
  %8517 = vmatpush.bf16.msra.mxu0 %v8164
  %8518 = vmatpush.bf16.msra.mxu0 %v8156
  %8519 = vmatmul.bf16.gmra.mxu0 %v7573
  %v8520 = vpop.f32.mrf.mxu0
  %v8521 = vadd.f32 %v8508, %v8520
  %v8522 = vpop.f32.mrf.mxu0
  %8523 = vdwg.mxu0
  %8524 = vmatpush.bf16.msra.mxu0 %v8149
  %8525 = vmatpush.bf16.msra.mxu0 %v8141
  %8526 = vmatpush.bf16.msra.mxu0 %v8133
  %8527 = vmatpush.bf16.msra.mxu0 %v8125
  %8528 = vmatpush.bf16.msra.mxu0 %v8117
  %8529 = vmatpush.bf16.msra.mxu0 %v8109
  %8530 = vmatpush.bf16.msra.mxu0 %v8101
  %8531 = vmatpush.bf16.msra.mxu0 %v8093
  %8532 = vmatmul.bf16.gmra.mxu0 %v7572
  %v8533 = vpop.f32.mrf.mxu0
  %v8534 = vadd.f32 0.0, %v8533
  %v8535 = vpop.f32.mrf.mxu0
  %8536 = vdwg.mxu0
  %8537 = vmatpush.bf16.msra.mxu0 %v8213
  %8538 = vmatpush.bf16.msra.mxu0 %v8205
  %8539 = vmatpush.bf16.msra.mxu0 %v8197
  %8540 = vmatpush.bf16.msra.mxu0 %v8189
  %8541 = vmatpush.bf16.msra.mxu0 %v8181
  %8542 = vmatpush.bf16.msra.mxu0 %v8173
  %8543 = vmatpush.bf16.msra.mxu0 %v8165
  %8544 = vmatpush.bf16.msra.mxu0 %v8157
  %8545 = vmatmul.bf16.gmra.mxu0 %v7573
  %v8546 = vpop.f32.mrf.mxu0
  %v8547 = vadd.f32 %v8534, %v8546
  %v8548 = vpop.f32.mrf.mxu0
  %8549 = vdwg.mxu0
  %v8550 = vld [vmem:[%s2937] sm:$0xff]
  %v8551 = vld [vmem:[%s2937 + $0x8] sm:$0xff]
  %v8552 = vld [vmem:[%s2937 + $0x10] sm:$0xff]
  %v8553 = vld [vmem:[%s2937 + $0x18] sm:$0xff]
  %v8554 = vadd.f32 %v8550, %v8365
  %v8555 = vadd.f32 %v8551, %v8391
  %v8556 = vadd.f32 %v8552, %v8417
  %v8557 = vadd.f32 %v8553, %v8443
  %v8558 = vld [vmem:[%s2928 + $0x20] sm:$0xff]
  %v8559 = vld [vmem:[%s2928 + $0x28] sm:$0xff]
  %v8560 = vld [vmem:[%s2928 + $0x30] sm:$0xff]
  %v8561 = vld [vmem:[%s2928 + $0x38] sm:$0xff]
  %v8562 = vadd.f32 %v8558, %v8469
  %v8563 = vadd.f32 %v8559, %v8495
  %v8564 = vadd.f32 %v8560, %v8521
  %v8565 = vadd.f32 %v8561, %v8547
  %v8566 = vxor.u32 %v8554, 2147483648
  %v8567 = vmul.f32 %v8566, 1.442695
  %v8568 = vpow.pop %v8567
  %v8569 = vadd.f32 %v8568, 1.0
  %v8570 = vrcp.pop %v8569
  %v8571 = vmul.f32 %v8569, %v8570
  %v8572 = vsub.f32 1.0, %v8571
  %v8573 = vmul.f32 %v8570, %v8572
  %v8574 = vadd.f32 %v8570, %v8573
  %vm8575 = vweird.f32 %v8569
  %vm8576 = vweird.f32 %v8570
  %vm8577 = vmor %vm8575, %vm8576
  %v8578 = vsel %vm8577, %v8570, %v8574
  %v8579 = vand.u32 2147483647, %v8569
  %vm8580 = vcmp.eq.f32.partialorder %v8579, 8.507059e+37
  %v8581 = vand.u32 %v8569, 2147483648
  %v8582 = vor.u32 1.1754944e-38, %v8581
  %v8583 = vsel %vm8580, %v8582, %v8578
  %v8584 = vmul.f32 1.0, %v8583
  %v8585 = vxor.u32 %v8555, 2147483648
  %v8586 = vmul.f32 %v8585, 1.442695
  %v8587 = vpow.pop %v8586
  %v8588 = vadd.f32 %v8587, 1.0
  %v8589 = vrcp.pop %v8588
  %v8590 = vmul.f32 %v8588, %v8589
  %v8591 = vsub.f32 1.0, %v8590
  %v8592 = vmul.f32 %v8589, %v8591
  %v8593 = vadd.f32 %v8589, %v8592
  %vm8594 = vweird.f32 %v8588
  %vm8595 = vweird.f32 %v8589
  %vm8596 = vmor %vm8594, %vm8595
  %v8597 = vsel %vm8596, %v8589, %v8593
  %v8598 = vand.u32 2147483647, %v8588
  %vm8599 = vcmp.eq.f32.partialorder %v8598, 8.507059e+37
  %v8600 = vand.u32 %v8588, 2147483648
  %v8601 = vor.u32 1.1754944e-38, %v8600
  %v8602 = vsel %vm8599, %v8601, %v8597
  %v8603 = vmul.f32 1.0, %v8602
  %v8604 = vtanh.pop %v8556
  %v8605 = vxor.u32 %v8557, 2147483648
  %v8606 = vmul.f32 %v8605, 1.442695
  %v8607 = vpow.pop %v8606
  %v8608 = vadd.f32 %v8607, 1.0
  %v8609 = vrcp.pop %v8608
  %v8610 = vmul.f32 %v8608, %v8609
  %v8611 = vsub.f32 1.0, %v8610
  %v8612 = vmul.f32 %v8609, %v8611
  %v8613 = vadd.f32 %v8609, %v8612
  %vm8614 = vweird.f32 %v8608
  %vm8615 = vweird.f32 %v8609
  %vm8616 = vmor %vm8614, %vm8615
  %v8617 = vsel %vm8616, %v8609, %v8613
  %v8618 = vand.u32 2147483647, %v8608
  %vm8619 = vcmp.eq.f32.partialorder %v8618, 8.507059e+37
  %v8620 = vand.u32 %v8608, 2147483648
  %v8621 = vor.u32 1.1754944e-38, %v8620
  %v8622 = vsel %vm8619, %v8621, %v8617
  %v8623 = vmul.f32 1.0, %v8622
  %v8624 = vmul.f32 %v8603, %v7504
  %v8625 = vmul.f32 %v8584, %v8604
  %v8626 = vadd.f32 %v8624, %v8625
  %v8627 = vtanh.pop %v8626
  %v8628 = vmul.f32 %v8623, %v8627
  %v8629 = vxor.u32 %v8562, 2147483648
  %v8630 = vmul.f32 %v8629, 1.442695
  %v8631 = vpow.pop %v8630
  %v8632 = vadd.f32 %v8631, 1.0
  %v8633 = vrcp.pop %v8632
  %v8634 = vmul.f32 %v8632, %v8633
  %v8635 = vsub.f32 1.0, %v8634
  %v8636 = vmul.f32 %v8633, %v8635
  %v8637 = vadd.f32 %v8633, %v8636
  %vm8638 = vweird.f32 %v8632
  %vm8639 = vweird.f32 %v8633
  %vm8640 = vmor %vm8638, %vm8639
  %v8641 = vsel %vm8640, %v8633, %v8637
  %v8642 = vand.u32 2147483647, %v8632
  %vm8643 = vcmp.eq.f32.partialorder %v8642, 8.507059e+37
  %v8644 = vand.u32 %v8632, 2147483648
  %v8645 = vor.u32 1.1754944e-38, %v8644
  %v8646 = vsel %vm8643, %v8645, %v8641
  %v8647 = vmul.f32 1.0, %v8646
  %v8648 = vxor.u32 %v8563, 2147483648
  %v8649 = vmul.f32 %v8648, 1.442695
  %v8650 = vpow.pop %v8649
  %v8651 = vadd.f32 %v8650, 1.0
  %v8652 = vrcp.pop %v8651
  %v8653 = vmul.f32 %v8651, %v8652
  %v8654 = vsub.f32 1.0, %v8653
  %v8655 = vmul.f32 %v8652, %v8654
  %v8656 = vadd.f32 %v8652, %v8655
  %vm8657 = vweird.f32 %v8651
  %vm8658 = vweird.f32 %v8652
  %vm8659 = vmor %vm8657, %vm8658
  %v8660 = vsel %vm8659, %v8652, %v8656
  %v8661 = vand.u32 2147483647, %v8651
  %vm8662 = vcmp.eq.f32.partialorder %v8661, 8.507059e+37
  %v8663 = vand.u32 %v8651, 2147483648
  %v8664 = vor.u32 1.1754944e-38, %v8663
  %v8665 = vsel %vm8662, %v8664, %v8660
  %v8666 = vmul.f32 1.0, %v8665
  %v8667 = vtanh.pop %v8564
  %v8668 = vxor.u32 %v8565, 2147483648
  %v8669 = vmul.f32 %v8668, 1.442695
  %v8670 = vpow.pop %v8669
  %v8671 = vadd.f32 %v8670, 1.0
  %v8672 = vrcp.pop %v8671
  %v8673 = vmul.f32 %v8671, %v8672
  %v8674 = vsub.f32 1.0, %v8673
  %v8675 = vmul.f32 %v8672, %v8674
  %v8676 = vadd.f32 %v8672, %v8675
  %vm8677 = vweird.f32 %v8671
  %vm8678 = vweird.f32 %v8672
  %vm8679 = vmor %vm8677, %vm8678
  %v8680 = vsel %vm8679, %v8672, %v8676
  %v8681 = vand.u32 2147483647, %v8671
  %vm8682 = vcmp.eq.f32.partialorder %v8681, 8.507059e+37
  %v8683 = vand.u32 %v8671, 2147483648
  %v8684 = vor.u32 1.1754944e-38, %v8683
  %v8685 = vsel %vm8682, %v8684, %v8680
  %v8686 = vmul.f32 1.0, %v8685
  %v8687 = vmul.f32 %v8666, %v7567
  %v8688 = vmul.f32 %v8647, %v8667
  %v8689 = vadd.f32 %v8687, %v8688
  %v8690 = vtanh.pop %v8689
  %v8691 = vmul.f32 %v8686, %v8690
  %8692 = vst [vmem:[%s3074] sm:$0xff] %v8628
  %8693 = vst [vmem:[%s3072 + $0x8] sm:$0xff] %v8691
  %v8694 = vpack.c.bf16 %v8628, %v8628
  %v8695 = vpack.c.bf16 %v8691, %v8691
  %v8696 = vld [vmem:[%s5] sm:$0xff]
  %v8697 = vld [vmem:[%s5 + $0x8] sm:$0xff]
  %v8698 = vld [vmem:[%s5 + $0x10] sm:$0xff]
  %v8699 = vld [vmem:[%s5 + $0x18] sm:$0xff]
  %v8700 = vld [vmem:[%s5 + $0x20] sm:$0xff]
  %v8701 = vld [vmem:[%s5 + $0x28] sm:$0xff]
  %v8702 = vld [vmem:[%s5 + $0x30] sm:$0xff]
  %v8703 = vld [vmem:[%s5 + $0x38] sm:$0xff]
  %v8704 = vld [vmem:[%s5 + $0x40] sm:$0xff]
  %v8705 = vld [vmem:[%s5 + $0x48] sm:$0xff]
  %v8706 = vld [vmem:[%s5 + $0x50] sm:$0xff]
  %v8707 = vld [vmem:[%s5 + $0x58] sm:$0xff]
  %v8708 = vld [vmem:[%s5 + $0x60] sm:$0xff]
  %v8709 = vld [vmem:[%s5 + $0x68] sm:$0xff]
  %v8710 = vld [vmem:[%s5 + $0x70] sm:$0xff]
  %v8711 = vld [vmem:[%s5 + $0x78] sm:$0xff]
  %v8712 = vld [vmem:[%s5 + $0x80] sm:$0xff]
  %v8713 = vld [vmem:[%s5 + $0x88] sm:$0xff]
  %v8714 = vld [vmem:[%s5 + $0x90] sm:$0xff]
  %v8715 = vld [vmem:[%s5 + $0x98] sm:$0xff]
  %v8716 = vld [vmem:[%s5 + $0xa0] sm:$0xff]
  %v8717 = vld [vmem:[%s5 + $0xa8] sm:$0xff]
  %v8718 = vld [vmem:[%s5 + $0xb0] sm:$0xff]
  %v8719 = vld [vmem:[%s5 + $0xb8] sm:$0xff]
  %v8720 = vld [vmem:[%s5 + $0xc0] sm:$0xff]
  %v8721 = vld [vmem:[%s5 + $0xc8] sm:$0xff]
  %v8722 = vld [vmem:[%s5 + $0xd0] sm:$0xff]
  %v8723 = vld [vmem:[%s5 + $0xd8] sm:$0xff]
  %v8724 = vld [vmem:[%s5 + $0xe0] sm:$0xff]
  %v8725 = vld [vmem:[%s5 + $0xe8] sm:$0xff]
  %v8726 = vld [vmem:[%s5 + $0xf0] sm:$0xff]
  %v8727 = vld [vmem:[%s5 + $0xf8] sm:$0xff]
  %v8728 = vld [vmem:[%s5 + $0x100] sm:$0xff]
  %v8729 = vld [vmem:[%s5 + $0x108] sm:$0xff]
  %v8730 = vld [vmem:[%s5 + $0x110] sm:$0xff]
  %v8731 = vld [vmem:[%s5 + $0x118] sm:$0xff]
  %v8732 = vld [vmem:[%s5 + $0x120] sm:$0xff]
  %v8733 = vld [vmem:[%s5 + $0x128] sm:$0xff]
  %v8734 = vld [vmem:[%s5 + $0x130] sm:$0xff]
  %v8735 = vld [vmem:[%s5 + $0x138] sm:$0xff]
  %v8736 = vld [vmem:[%s5 + $0x140] sm:$0xff]
  %v8737 = vld [vmem:[%s5 + $0x148] sm:$0xff]
  %v8738 = vld [vmem:[%s5 + $0x150] sm:$0xff]
  %v8739 = vld [vmem:[%s5 + $0x158] sm:$0xff]
  %v8740 = vld [vmem:[%s5 + $0x160] sm:$0xff]
  %v8741 = vld [vmem:[%s5 + $0x168] sm:$0xff]
  %v8742 = vld [vmem:[%s5 + $0x170] sm:$0xff]
  %v8743 = vld [vmem:[%s5 + $0x178] sm:$0xff]
  %v8744 = vld [vmem:[%s5 + $0x180] sm:$0xff]
  %v8745 = vld [vmem:[%s5 + $0x188] sm:$0xff]
  %v8746 = vld [vmem:[%s5 + $0x190] sm:$0xff]
  %v8747 = vld [vmem:[%s5 + $0x198] sm:$0xff]
  %v8748 = vld [vmem:[%s5 + $0x1a0] sm:$0xff]
  %v8749 = vld [vmem:[%s5 + $0x1a8] sm:$0xff]
  %v8750 = vld [vmem:[%s5 + $0x1b0] sm:$0xff]
  %v8751 = vld [vmem:[%s5 + $0x1b8] sm:$0xff]
  %v8752 = vld [vmem:[%s5 + $0x1c0] sm:$0xff]
  %v8753 = vld [vmem:[%s5 + $0x1c8] sm:$0xff]
  %v8754 = vld [vmem:[%s5 + $0x1d0] sm:$0xff]
  %v8755 = vld [vmem:[%s5 + $0x1d8] sm:$0xff]
  %v8756 = vld [vmem:[%s5 + $0x1e0] sm:$0xff]
  %v8757 = vld [vmem:[%s5 + $0x1e8] sm:$0xff]
  %v8758 = vld [vmem:[%s5 + $0x1f0] sm:$0xff]
  %v8759 = vld [vmem:[%s5 + $0x1f8] sm:$0xff]
  %v8760 = vld [vmem:[%s5 + $0x200] sm:$0xff]
  %v8761 = vld [vmem:[%s5 + $0x208] sm:$0xff]
  %v8762 = vld [vmem:[%s5 + $0x210] sm:$0xff]
  %v8763 = vld [vmem:[%s5 + $0x218] sm:$0xff]
  %v8764 = vld [vmem:[%s5 + $0x220] sm:$0xff]
  %v8765 = vld [vmem:[%s5 + $0x228] sm:$0xff]
  %v8766 = vld [vmem:[%s5 + $0x230] sm:$0xff]
  %v8767 = vld [vmem:[%s5 + $0x238] sm:$0xff]
  %v8768 = vld [vmem:[%s5 + $0x240] sm:$0xff]
  %v8769 = vld [vmem:[%s5 + $0x248] sm:$0xff]
  %v8770 = vld [vmem:[%s5 + $0x250] sm:$0xff]
  %v8771 = vld [vmem:[%s5 + $0x258] sm:$0xff]
  %v8772 = vld [vmem:[%s5 + $0x260] sm:$0xff]
  %v8773 = vld [vmem:[%s5 + $0x268] sm:$0xff]
  %v8774 = vld [vmem:[%s5 + $0x270] sm:$0xff]
  %v8775 = vld [vmem:[%s5 + $0x278] sm:$0xff]
  %v8776 = vld [vmem:[%s5 + $0x280] sm:$0xff]
  %v8777 = vld [vmem:[%s5 + $0x288] sm:$0xff]
  %v8778 = vld [vmem:[%s5 + $0x290] sm:$0xff]
  %v8779 = vld [vmem:[%s5 + $0x298] sm:$0xff]
  %v8780 = vld [vmem:[%s5 + $0x2a0] sm:$0xff]
  %v8781 = vld [vmem:[%s5 + $0x2a8] sm:$0xff]
  %v8782 = vld [vmem:[%s5 + $0x2b0] sm:$0xff]
  %v8783 = vld [vmem:[%s5 + $0x2b8] sm:$0xff]
  %v8784 = vld [vmem:[%s5 + $0x2c0] sm:$0xff]
  %v8785 = vld [vmem:[%s5 + $0x2c8] sm:$0xff]
  %v8786 = vld [vmem:[%s5 + $0x2d0] sm:$0xff]
  %v8787 = vld [vmem:[%s5 + $0x2d8] sm:$0xff]
  %v8788 = vld [vmem:[%s5 + $0x2e0] sm:$0xff]
  %v8789 = vld [vmem:[%s5 + $0x2e8] sm:$0xff]
  %v8790 = vld [vmem:[%s5 + $0x2f0] sm:$0xff]
  %v8791 = vld [vmem:[%s5 + $0x2f8] sm:$0xff]
  %v8792 = vld [vmem:[%s5 + $0x300] sm:$0xff]
  %v8793 = vld [vmem:[%s5 + $0x308] sm:$0xff]
  %v8794 = vld [vmem:[%s5 + $0x310] sm:$0xff]
  %v8795 = vld [vmem:[%s5 + $0x318] sm:$0xff]
  %v8796 = vld [vmem:[%s5 + $0x320] sm:$0xff]
  %v8797 = vld [vmem:[%s5 + $0x328] sm:$0xff]
  %v8798 = vld [vmem:[%s5 + $0x330] sm:$0xff]
  %v8799 = vld [vmem:[%s5 + $0x338] sm:$0xff]
  %v8800 = vld [vmem:[%s5 + $0x340] sm:$0xff]
  %v8801 = vld [vmem:[%s5 + $0x348] sm:$0xff]
  %v8802 = vld [vmem:[%s5 + $0x350] sm:$0xff]
  %v8803 = vld [vmem:[%s5 + $0x358] sm:$0xff]
  %v8804 = vld [vmem:[%s5 + $0x360] sm:$0xff]
  %v8805 = vld [vmem:[%s5 + $0x368] sm:$0xff]
  %v8806 = vld [vmem:[%s5 + $0x370] sm:$0xff]
  %v8807 = vld [vmem:[%s5 + $0x378] sm:$0xff]
  %v8808 = vld [vmem:[%s5 + $0x380] sm:$0xff]
  %v8809 = vld [vmem:[%s5 + $0x388] sm:$0xff]
  %v8810 = vld [vmem:[%s5 + $0x390] sm:$0xff]
  %v8811 = vld [vmem:[%s5 + $0x398] sm:$0xff]
  %v8812 = vld [vmem:[%s5 + $0x3a0] sm:$0xff]
  %v8813 = vld [vmem:[%s5 + $0x3a8] sm:$0xff]
  %v8814 = vld [vmem:[%s5 + $0x3b0] sm:$0xff]
  %v8815 = vld [vmem:[%s5 + $0x3b8] sm:$0xff]
  %v8816 = vld [vmem:[%s5 + $0x3c0] sm:$0xff]
  %v8817 = vld [vmem:[%s5 + $0x3c8] sm:$0xff]
  %v8818 = vld [vmem:[%s5 + $0x3d0] sm:$0xff]
  %v8819 = vld [vmem:[%s5 + $0x3d8] sm:$0xff]
  %v8820 = vld [vmem:[%s5 + $0x3e0] sm:$0xff]
  %v8821 = vld [vmem:[%s5 + $0x3e8] sm:$0xff]
  %v8822 = vld [vmem:[%s5 + $0x3f0] sm:$0xff]
  %v8823 = vld [vmem:[%s5 + $0x3f8] sm:$0xff]
  %v8952 = vunpack.c.l.b16 %v8696
  %v8953 = vunpack.c.h.b16 %v8696
  %v8954 = vunpack.c.l.b16 %v8697
  %v8955 = vunpack.c.h.b16 %v8697
  %v8956 = vunpack.c.l.b16 %v8698
  %v8957 = vunpack.c.h.b16 %v8698
  %v8958 = vunpack.c.l.b16 %v8699
  %v8959 = vunpack.c.h.b16 %v8699
  %v8960 = vunpack.c.l.b16 %v8700
  %v8961 = vunpack.c.h.b16 %v8700
  %v8962 = vunpack.c.l.b16 %v8701
  %v8963 = vunpack.c.h.b16 %v8701
  %v8964 = vunpack.c.l.b16 %v8702
  %v8965 = vunpack.c.h.b16 %v8702
  %v8966 = vunpack.c.l.b16 %v8703
  %v8967 = vunpack.c.h.b16 %v8703
  %v8968 = vunpack.c.l.b16 %v8704
  %v8969 = vunpack.c.h.b16 %v8704
  %v8970 = vunpack.c.l.b16 %v8705
  %v8971 = vunpack.c.h.b16 %v8705
  %v8972 = vunpack.c.l.b16 %v8706
  %v8973 = vunpack.c.h.b16 %v8706
  %v8974 = vunpack.c.l.b16 %v8707
  %v8975 = vunpack.c.h.b16 %v8707
  %v8976 = vunpack.c.l.b16 %v8708
  %v8977 = vunpack.c.h.b16 %v8708
  %v8978 = vunpack.c.l.b16 %v8709
  %v8979 = vunpack.c.h.b16 %v8709
  %v8980 = vunpack.c.l.b16 %v8710
  %v8981 = vunpack.c.h.b16 %v8710
  %v8982 = vunpack.c.l.b16 %v8711
  %v8983 = vunpack.c.h.b16 %v8711
  %v8984 = vunpack.c.l.b16 %v8712
  %v8985 = vunpack.c.h.b16 %v8712
  %v8986 = vunpack.c.l.b16 %v8713
  %v8987 = vunpack.c.h.b16 %v8713
  %v8988 = vunpack.c.l.b16 %v8714
  %v8989 = vunpack.c.h.b16 %v8714
  %v8990 = vunpack.c.l.b16 %v8715
  %v8991 = vunpack.c.h.b16 %v8715
  %v8992 = vunpack.c.l.b16 %v8716
  %v8993 = vunpack.c.h.b16 %v8716
  %v8994 = vunpack.c.l.b16 %v8717
  %v8995 = vunpack.c.h.b16 %v8717
  %v8996 = vunpack.c.l.b16 %v8718
  %v8997 = vunpack.c.h.b16 %v8718
  %v8998 = vunpack.c.l.b16 %v8719
  %v8999 = vunpack.c.h.b16 %v8719
  %v9000 = vunpack.c.l.b16 %v8720
  %v9001 = vunpack.c.h.b16 %v8720
  %v9002 = vunpack.c.l.b16 %v8721
  %v9003 = vunpack.c.h.b16 %v8721
  %v9004 = vunpack.c.l.b16 %v8722
  %v9005 = vunpack.c.h.b16 %v8722
  %v9006 = vunpack.c.l.b16 %v8723
  %v9007 = vunpack.c.h.b16 %v8723
  %v9008 = vunpack.c.l.b16 %v8724
  %v9009 = vunpack.c.h.b16 %v8724
  %v9010 = vunpack.c.l.b16 %v8725
  %v9011 = vunpack.c.h.b16 %v8725
  %v9012 = vunpack.c.l.b16 %v8726
  %v9013 = vunpack.c.h.b16 %v8726
  %v9014 = vunpack.c.l.b16 %v8727
  %v9015 = vunpack.c.h.b16 %v8727
  %v9016 = vunpack.c.l.b16 %v8728
  %v9017 = vunpack.c.h.b16 %v8728
  %v9018 = vunpack.c.l.b16 %v8729
  %v9019 = vunpack.c.h.b16 %v8729
  %v9020 = vunpack.c.l.b16 %v8730
  %v9021 = vunpack.c.h.b16 %v8730
  %v9022 = vunpack.c.l.b16 %v8731
  %v9023 = vunpack.c.h.b16 %v8731
  %v9024 = vunpack.c.l.b16 %v8732
  %v9025 = vunpack.c.h.b16 %v8732
  %v9026 = vunpack.c.l.b16 %v8733
  %v9027 = vunpack.c.h.b16 %v8733
  %v9028 = vunpack.c.l.b16 %v8734
  %v9029 = vunpack.c.h.b16 %v8734
  %v9030 = vunpack.c.l.b16 %v8735
  %v9031 = vunpack.c.h.b16 %v8735
  %v9032 = vunpack.c.l.b16 %v8736
  %v9033 = vunpack.c.h.b16 %v8736
  %v9034 = vunpack.c.l.b16 %v8737
  %v9035 = vunpack.c.h.b16 %v8737
  %v9036 = vunpack.c.l.b16 %v8738
  %v9037 = vunpack.c.h.b16 %v8738
  %v9038 = vunpack.c.l.b16 %v8739
  %v9039 = vunpack.c.h.b16 %v8739
  %v9040 = vunpack.c.l.b16 %v8740
  %v9041 = vunpack.c.h.b16 %v8740
  %v9042 = vunpack.c.l.b16 %v8741
  %v9043 = vunpack.c.h.b16 %v8741
  %v9044 = vunpack.c.l.b16 %v8742
  %v9045 = vunpack.c.h.b16 %v8742
  %v9046 = vunpack.c.l.b16 %v8743
  %v9047 = vunpack.c.h.b16 %v8743
  %v9048 = vunpack.c.l.b16 %v8744
  %v9049 = vunpack.c.h.b16 %v8744
  %v9050 = vunpack.c.l.b16 %v8745
  %v9051 = vunpack.c.h.b16 %v8745
  %v9052 = vunpack.c.l.b16 %v8746
  %v9053 = vunpack.c.h.b16 %v8746
  %v9054 = vunpack.c.l.b16 %v8747
  %v9055 = vunpack.c.h.b16 %v8747
  %v9056 = vunpack.c.l.b16 %v8748
  %v9057 = vunpack.c.h.b16 %v8748
  %v9058 = vunpack.c.l.b16 %v8749
  %v9059 = vunpack.c.h.b16 %v8749
  %v9060 = vunpack.c.l.b16 %v8750
  %v9061 = vunpack.c.h.b16 %v8750
  %v9062 = vunpack.c.l.b16 %v8751
  %v9063 = vunpack.c.h.b16 %v8751
  %v9064 = vunpack.c.l.b16 %v8752
  %v9065 = vunpack.c.h.b16 %v8752
  %v9066 = vunpack.c.l.b16 %v8753
  %v9067 = vunpack.c.h.b16 %v8753
  %v9068 = vunpack.c.l.b16 %v8754
  %v9069 = vunpack.c.h.b16 %v8754
  %v9070 = vunpack.c.l.b16 %v8755
  %v9071 = vunpack.c.h.b16 %v8755
  %v9072 = vunpack.c.l.b16 %v8756
  %v9073 = vunpack.c.h.b16 %v8756
  %v9074 = vunpack.c.l.b16 %v8757
  %v9075 = vunpack.c.h.b16 %v8757
  %v9076 = vunpack.c.l.b16 %v8758
  %v9077 = vunpack.c.h.b16 %v8758
  %v9078 = vunpack.c.l.b16 %v8759
  %v9079 = vunpack.c.h.b16 %v8759
  %v9080 = vunpack.c.l.b16 %v8760
  %v9081 = vunpack.c.h.b16 %v8760
  %v9082 = vunpack.c.l.b16 %v8761
  %v9083 = vunpack.c.h.b16 %v8761
  %v9084 = vunpack.c.l.b16 %v8762
  %v9085 = vunpack.c.h.b16 %v8762
  %v9086 = vunpack.c.l.b16 %v8763
  %v9087 = vunpack.c.h.b16 %v8763
  %v9088 = vunpack.c.l.b16 %v8764
  %v9089 = vunpack.c.h.b16 %v8764
  %v9090 = vunpack.c.l.b16 %v8765
  %v9091 = vunpack.c.h.b16 %v8765
  %v9092 = vunpack.c.l.b16 %v8766
  %v9093 = vunpack.c.h.b16 %v8766
  %v9094 = vunpack.c.l.b16 %v8767
  %v9095 = vunpack.c.h.b16 %v8767
  %v9096 = vunpack.c.l.b16 %v8768
  %v9097 = vunpack.c.h.b16 %v8768
  %v9098 = vunpack.c.l.b16 %v8769
  %v9099 = vunpack.c.h.b16 %v8769
  %v9100 = vunpack.c.l.b16 %v8770
  %v9101 = vunpack.c.h.b16 %v8770
  %v9102 = vunpack.c.l.b16 %v8771
  %v9103 = vunpack.c.h.b16 %v8771
  %v9104 = vunpack.c.l.b16 %v8772
  %v9105 = vunpack.c.h.b16 %v8772
  %v9106 = vunpack.c.l.b16 %v8773
  %v9107 = vunpack.c.h.b16 %v8773
  %v9108 = vunpack.c.l.b16 %v8774
  %v9109 = vunpack.c.h.b16 %v8774
  %v9110 = vunpack.c.l.b16 %v8775
  %v9111 = vunpack.c.h.b16 %v8775
  %v9112 = vunpack.c.l.b16 %v8776
  %v9113 = vunpack.c.h.b16 %v8776
  %v9114 = vunpack.c.l.b16 %v8777
  %v9115 = vunpack.c.h.b16 %v8777
  %v9116 = vunpack.c.l.b16 %v8778
  %v9117 = vunpack.c.h.b16 %v8778
  %v9118 = vunpack.c.l.b16 %v8779
  %v9119 = vunpack.c.h.b16 %v8779
  %v9120 = vunpack.c.l.b16 %v8780
  %v9121 = vunpack.c.h.b16 %v8780
  %v9122 = vunpack.c.l.b16 %v8781
  %v9123 = vunpack.c.h.b16 %v8781
  %v9124 = vunpack.c.l.b16 %v8782
  %v9125 = vunpack.c.h.b16 %v8782
  %v9126 = vunpack.c.l.b16 %v8783
  %v9127 = vunpack.c.h.b16 %v8783
  %v9128 = vunpack.c.l.b16 %v8784
  %v9129 = vunpack.c.h.b16 %v8784
  %v9130 = vunpack.c.l.b16 %v8785
  %v9131 = vunpack.c.h.b16 %v8785
  %v9132 = vunpack.c.l.b16 %v8786
  %v9133 = vunpack.c.h.b16 %v8786
  %v9134 = vunpack.c.l.b16 %v8787
  %v9135 = vunpack.c.h.b16 %v8787
  %v9136 = vunpack.c.l.b16 %v8788
  %v9137 = vunpack.c.h.b16 %v8788
  %v9138 = vunpack.c.l.b16 %v8789
  %v9139 = vunpack.c.h.b16 %v8789
  %v9140 = vunpack.c.l.b16 %v8790
  %v9141 = vunpack.c.h.b16 %v8790
  %v9142 = vunpack.c.l.b16 %v8791
  %v9143 = vunpack.c.h.b16 %v8791
  %v9144 = vunpack.c.l.b16 %v8792
  %v9145 = vunpack.c.h.b16 %v8792
  %v9146 = vunpack.c.l.b16 %v8793
  %v9147 = vunpack.c.h.b16 %v8793
  %v9148 = vunpack.c.l.b16 %v8794
  %v9149 = vunpack.c.h.b16 %v8794
  %v9150 = vunpack.c.l.b16 %v8795
  %v9151 = vunpack.c.h.b16 %v8795
  %v9152 = vunpack.c.l.b16 %v8796
  %v9153 = vunpack.c.h.b16 %v8796
  %v9154 = vunpack.c.l.b16 %v8797
  %v9155 = vunpack.c.h.b16 %v8797
  %v9156 = vunpack.c.l.b16 %v8798
  %v9157 = vunpack.c.h.b16 %v8798
  %v9158 = vunpack.c.l.b16 %v8799
  %v9159 = vunpack.c.h.b16 %v8799
  %v9160 = vunpack.c.l.b16 %v8800
  %v9161 = vunpack.c.h.b16 %v8800
  %v9162 = vunpack.c.l.b16 %v8801
  %v9163 = vunpack.c.h.b16 %v8801
  %v9164 = vunpack.c.l.b16 %v8802
  %v9165 = vunpack.c.h.b16 %v8802
  %v9166 = vunpack.c.l.b16 %v8803
  %v9167 = vunpack.c.h.b16 %v8803
  %v9168 = vunpack.c.l.b16 %v8804
  %v9169 = vunpack.c.h.b16 %v8804
  %v9170 = vunpack.c.l.b16 %v8805
  %v9171 = vunpack.c.h.b16 %v8805
  %v9172 = vunpack.c.l.b16 %v8806
  %v9173 = vunpack.c.h.b16 %v8806
  %v9174 = vunpack.c.l.b16 %v8807
  %v9175 = vunpack.c.h.b16 %v8807
  %v9176 = vunpack.c.l.b16 %v8808
  %v9177 = vunpack.c.h.b16 %v8808
  %v9178 = vunpack.c.l.b16 %v8809
  %v9179 = vunpack.c.h.b16 %v8809
  %v9180 = vunpack.c.l.b16 %v8810
  %v9181 = vunpack.c.h.b16 %v8810
  %v9182 = vunpack.c.l.b16 %v8811
  %v9183 = vunpack.c.h.b16 %v8811
  %v9184 = vunpack.c.l.b16 %v8812
  %v9185 = vunpack.c.h.b16 %v8812
  %v9186 = vunpack.c.l.b16 %v8813
  %v9187 = vunpack.c.h.b16 %v8813
  %v9188 = vunpack.c.l.b16 %v8814
  %v9189 = vunpack.c.h.b16 %v8814
  %v9190 = vunpack.c.l.b16 %v8815
  %v9191 = vunpack.c.h.b16 %v8815
  %v9192 = vunpack.c.l.b16 %v8816
  %v9193 = vunpack.c.h.b16 %v8816
  %v9194 = vunpack.c.l.b16 %v8817
  %v9195 = vunpack.c.h.b16 %v8817
  %v9196 = vunpack.c.l.b16 %v8818
  %v9197 = vunpack.c.h.b16 %v8818
  %v9198 = vunpack.c.l.b16 %v8819
  %v9199 = vunpack.c.h.b16 %v8819
  %v9200 = vunpack.c.l.b16 %v8820
  %v9201 = vunpack.c.h.b16 %v8820
  %v9202 = vunpack.c.l.b16 %v8821
  %v9203 = vunpack.c.h.b16 %v8821
  %v9204 = vunpack.c.l.b16 %v8822
  %v9205 = vunpack.c.h.b16 %v8822
  %v9206 = vunpack.c.l.b16 %v8823
  %v9207 = vunpack.c.h.b16 %v8823
  %v9208 = vpack.c.b16 %v8960, %v8952
  %v9209 = vpack.c.b16 %v8961, %v8953
  %v9210 = vpack.c.b16 %v8962, %v8954
  %v9211 = vpack.c.b16 %v8963, %v8955
  %v9212 = vpack.c.b16 %v8964, %v8956
  %v9213 = vpack.c.b16 %v8965, %v8957
  %v9214 = vpack.c.b16 %v8966, %v8958
  %v9215 = vpack.c.b16 %v8967, %v8959
  %v9216 = vpack.c.b16 %v8976, %v8968
  %v9217 = vpack.c.b16 %v8977, %v8969
  %v9218 = vpack.c.b16 %v8978, %v8970
  %v9219 = vpack.c.b16 %v8979, %v8971
  %v9220 = vpack.c.b16 %v8980, %v8972
  %v9221 = vpack.c.b16 %v8981, %v8973
  %v9222 = vpack.c.b16 %v8982, %v8974
  %v9223 = vpack.c.b16 %v8983, %v8975
  %v9224 = vpack.c.b16 %v8992, %v8984
  %v9225 = vpack.c.b16 %v8993, %v8985
  %v9226 = vpack.c.b16 %v8994, %v8986
  %v9227 = vpack.c.b16 %v8995, %v8987
  %v9228 = vpack.c.b16 %v8996, %v8988
  %v9229 = vpack.c.b16 %v8997, %v8989
  %v9230 = vpack.c.b16 %v8998, %v8990
  %v9231 = vpack.c.b16 %v8999, %v8991
  %v9232 = vpack.c.b16 %v9008, %v9000
  %v9233 = vpack.c.b16 %v9009, %v9001
  %v9234 = vpack.c.b16 %v9010, %v9002
  %v9235 = vpack.c.b16 %v9011, %v9003
  %v9236 = vpack.c.b16 %v9012, %v9004
  %v9237 = vpack.c.b16 %v9013, %v9005
  %v9238 = vpack.c.b16 %v9014, %v9006
  %v9239 = vpack.c.b16 %v9015, %v9007
  %v9240 = vpack.c.b16 %v9024, %v9016
  %v9241 = vpack.c.b16 %v9025, %v9017
  %v9242 = vpack.c.b16 %v9026, %v9018
  %v9243 = vpack.c.b16 %v9027, %v9019
  %v9244 = vpack.c.b16 %v9028, %v9020
  %v9245 = vpack.c.b16 %v9029, %v9021
  %v9246 = vpack.c.b16 %v9030, %v9022
  %v9247 = vpack.c.b16 %v9031, %v9023
  %v9248 = vpack.c.b16 %v9040, %v9032
  %v9249 = vpack.c.b16 %v9041, %v9033
  %v9250 = vpack.c.b16 %v9042, %v9034
  %v9251 = vpack.c.b16 %v9043, %v9035
  %v9252 = vpack.c.b16 %v9044, %v9036
  %v9253 = vpack.c.b16 %v9045, %v9037
  %v9254 = vpack.c.b16 %v9046, %v9038
  %v9255 = vpack.c.b16 %v9047, %v9039
  %v9256 = vpack.c.b16 %v9056, %v9048
  %v9257 = vpack.c.b16 %v9057, %v9049
  %v9258 = vpack.c.b16 %v9058, %v9050
  %v9259 = vpack.c.b16 %v9059, %v9051
  %v9260 = vpack.c.b16 %v9060, %v9052
  %v9261 = vpack.c.b16 %v9061, %v9053
  %v9262 = vpack.c.b16 %v9062, %v9054
  %v9263 = vpack.c.b16 %v9063, %v9055
  %v9264 = vpack.c.b16 %v9072, %v9064
  %v9265 = vpack.c.b16 %v9073, %v9065
  %v9266 = vpack.c.b16 %v9074, %v9066
  %v9267 = vpack.c.b16 %v9075, %v9067
  %v9268 = vpack.c.b16 %v9076, %v9068
  %v9269 = vpack.c.b16 %v9077, %v9069
  %v9270 = vpack.c.b16 %v9078, %v9070
  %v9271 = vpack.c.b16 %v9079, %v9071
  %v9272 = vpack.c.b16 %v9088, %v9080
  %v9273 = vpack.c.b16 %v9089, %v9081
  %v9274 = vpack.c.b16 %v9090, %v9082
  %v9275 = vpack.c.b16 %v9091, %v9083
  %v9276 = vpack.c.b16 %v9092, %v9084
  %v9277 = vpack.c.b16 %v9093, %v9085
  %v9278 = vpack.c.b16 %v9094, %v9086
  %v9279 = vpack.c.b16 %v9095, %v9087
  %v9280 = vpack.c.b16 %v9104, %v9096
  %v9281 = vpack.c.b16 %v9105, %v9097
  %v9282 = vpack.c.b16 %v9106, %v9098
  %v9283 = vpack.c.b16 %v9107, %v9099
  %v9284 = vpack.c.b16 %v9108, %v9100
  %v9285 = vpack.c.b16 %v9109, %v9101
  %v9286 = vpack.c.b16 %v9110, %v9102
  %v9287 = vpack.c.b16 %v9111, %v9103
  %v9288 = vpack.c.b16 %v9120, %v9112
  %v9289 = vpack.c.b16 %v9121, %v9113
  %v9290 = vpack.c.b16 %v9122, %v9114
  %v9291 = vpack.c.b16 %v9123, %v9115
  %v9292 = vpack.c.b16 %v9124, %v9116
  %v9293 = vpack.c.b16 %v9125, %v9117
  %v9294 = vpack.c.b16 %v9126, %v9118
  %v9295 = vpack.c.b16 %v9127, %v9119
  %v9296 = vpack.c.b16 %v9136, %v9128
  %v9297 = vpack.c.b16 %v9137, %v9129
  %v9298 = vpack.c.b16 %v9138, %v9130
  %v9299 = vpack.c.b16 %v9139, %v9131
  %v9300 = vpack.c.b16 %v9140, %v9132
  %v9301 = vpack.c.b16 %v9141, %v9133
  %v9302 = vpack.c.b16 %v9142, %v9134
  %v9303 = vpack.c.b16 %v9143, %v9135
  %v9304 = vpack.c.b16 %v9152, %v9144
  %v9305 = vpack.c.b16 %v9153, %v9145
  %v9306 = vpack.c.b16 %v9154, %v9146
  %v9307 = vpack.c.b16 %v9155, %v9147
  %v9308 = vpack.c.b16 %v9156, %v9148
  %v9309 = vpack.c.b16 %v9157, %v9149
  %v9310 = vpack.c.b16 %v9158, %v9150
  %v9311 = vpack.c.b16 %v9159, %v9151
  %v9312 = vpack.c.b16 %v9168, %v9160
  %v9313 = vpack.c.b16 %v9169, %v9161
  %v9314 = vpack.c.b16 %v9170, %v9162
  %v9315 = vpack.c.b16 %v9171, %v9163
  %v9316 = vpack.c.b16 %v9172, %v9164
  %v9317 = vpack.c.b16 %v9173, %v9165
  %v9318 = vpack.c.b16 %v9174, %v9166
  %v9319 = vpack.c.b16 %v9175, %v9167
  %v9320 = vpack.c.b16 %v9184, %v9176
  %v9321 = vpack.c.b16 %v9185, %v9177
  %v9322 = vpack.c.b16 %v9186, %v9178
  %v9323 = vpack.c.b16 %v9187, %v9179
  %v9324 = vpack.c.b16 %v9188, %v9180
  %v9325 = vpack.c.b16 %v9189, %v9181
  %v9326 = vpack.c.b16 %v9190, %v9182
  %v9327 = vpack.c.b16 %v9191, %v9183
  %v9328 = vpack.c.b16 %v9200, %v9192
  %v9329 = vpack.c.b16 %v9201, %v9193
  %v9330 = vpack.c.b16 %v9202, %v9194
  %v9331 = vpack.c.b16 %v9203, %v9195
  %v9332 = vpack.c.b16 %v9204, %v9196
  %v9333 = vpack.c.b16 %v9205, %v9197
  %v9334 = vpack.c.b16 %v9206, %v9198
  %v9335 = vpack.c.b16 %v9207, %v9199
  %9464 = vmatpush.bf16.msra.mxu0 %v9264
  %9465 = vmatpush.bf16.msra.mxu0 %v9256
  %9466 = vmatpush.bf16.msra.mxu0 %v9248
  %9467 = vmatpush.bf16.msra.mxu0 %v9240
  %9468 = vmatpush.bf16.msra.mxu0 %v9232
  %9469 = vmatpush.bf16.msra.mxu0 %v9224
  %9470 = vmatpush.bf16.msra.mxu0 %v9216
  %9471 = vmatpush.bf16.msra.mxu0 %v9208
  %9472 = vmatmul.bf16.gmra.mxu0 %v8694
  %v9473 = vpop.f32.mrf.mxu0
  %v9474 = vadd.f32 0.0, %v9473
  %v9475 = vpop.f32.mrf.mxu0
  %9476 = vdwg.mxu0
  %9477 = vmatpush.bf16.msra.mxu0 %v9328
  %9478 = vmatpush.bf16.msra.mxu0 %v9320
  %9479 = vmatpush.bf16.msra.mxu0 %v9312
  %9480 = vmatpush.bf16.msra.mxu0 %v9304
  %9481 = vmatpush.bf16.msra.mxu0 %v9296
  %9482 = vmatpush.bf16.msra.mxu0 %v9288
  %9483 = vmatpush.bf16.msra.mxu0 %v9280
  %9484 = vmatpush.bf16.msra.mxu0 %v9272
  %9485 = vmatmul.bf16.gmra.mxu0 %v8695
  %v9486 = vpop.f32.mrf.mxu0
  %v9487 = vadd.f32 %v9474, %v9486
  %v9488 = vpop.f32.mrf.mxu0
  %9489 = vdwg.mxu0
  %9490 = vmatpush.bf16.msra.mxu0 %v9265
  %9491 = vmatpush.bf16.msra.mxu0 %v9257
  %9492 = vmatpush.bf16.msra.mxu0 %v9249
  %9493 = vmatpush.bf16.msra.mxu0 %v9241
  %9494 = vmatpush.bf16.msra.mxu0 %v9233
  %9495 = vmatpush.bf16.msra.mxu0 %v9225
  %9496 = vmatpush.bf16.msra.mxu0 %v9217
  %9497 = vmatpush.bf16.msra.mxu0 %v9209
  %9498 = vmatmul.bf16.gmra.mxu0 %v8694
  %v9499 = vpop.f32.mrf.mxu0
  %v9500 = vadd.f32 0.0, %v9499
  %v9501 = vpop.f32.mrf.mxu0
  %9502 = vdwg.mxu0
  %9503 = vmatpush.bf16.msra.mxu0 %v9329
  %9504 = vmatpush.bf16.msra.mxu0 %v9321
  %9505 = vmatpush.bf16.msra.mxu0 %v9313
  %9506 = vmatpush.bf16.msra.mxu0 %v9305
  %9507 = vmatpush.bf16.msra.mxu0 %v9297
  %9508 = vmatpush.bf16.msra.mxu0 %v9289
  %9509 = vmatpush.bf16.msra.mxu0 %v9281
  %9510 = vmatpush.bf16.msra.mxu0 %v9273
  %9511 = vmatmul.bf16.gmra.mxu0 %v8695
  %v9512 = vpop.f32.mrf.mxu0
  %v9513 = vadd.f32 %v9500, %v9512
  %v9514 = vpop.f32.mrf.mxu0
  %9515 = vdwg.mxu0
  %9516 = vmatpush.bf16.msra.mxu0 %v9266
  %9517 = vmatpush.bf16.msra.mxu0 %v9258
  %9518 = vmatpush.bf16.msra.mxu0 %v9250
  %9519 = vmatpush.bf16.msra.mxu0 %v9242
  %9520 = vmatpush.bf16.msra.mxu0 %v9234
  %9521 = vmatpush.bf16.msra.mxu0 %v9226
  %9522 = vmatpush.bf16.msra.mxu0 %v9218
  %9523 = vmatpush.bf16.msra.mxu0 %v9210
  %9524 = vmatmul.bf16.gmra.mxu0 %v8694
  %v9525 = vpop.f32.mrf.mxu0
  %v9526 = vadd.f32 0.0, %v9525
  %v9527 = vpop.f32.mrf.mxu0
  %9528 = vdwg.mxu0
  %9529 = vmatpush.bf16.msra.mxu0 %v9330
  %9530 = vmatpush.bf16.msra.mxu0 %v9322
  %9531 = vmatpush.bf16.msra.mxu0 %v9314
  %9532 = vmatpush.bf16.msra.mxu0 %v9306
  %9533 = vmatpush.bf16.msra.mxu0 %v9298
  %9534 = vmatpush.bf16.msra.mxu0 %v9290
  %9535 = vmatpush.bf16.msra.mxu0 %v9282
  %9536 = vmatpush.bf16.msra.mxu0 %v9274
  %9537 = vmatmul.bf16.gmra.mxu0 %v8695
  %v9538 = vpop.f32.mrf.mxu0
  %v9539 = vadd.f32 %v9526, %v9538
  %v9540 = vpop.f32.mrf.mxu0
  %9541 = vdwg.mxu0
  %9542 = vmatpush.bf16.msra.mxu0 %v9267
  %9543 = vmatpush.bf16.msra.mxu0 %v9259
  %9544 = vmatpush.bf16.msra.mxu0 %v9251
  %9545 = vmatpush.bf16.msra.mxu0 %v9243
  %9546 = vmatpush.bf16.msra.mxu0 %v9235
  %9547 = vmatpush.bf16.msra.mxu0 %v9227
  %9548 = vmatpush.bf16.msra.mxu0 %v9219
  %9549 = vmatpush.bf16.msra.mxu0 %v9211
  %9550 = vmatmul.bf16.gmra.mxu0 %v8694
  %v9551 = vpop.f32.mrf.mxu0
  %v9552 = vadd.f32 0.0, %v9551
  %v9553 = vpop.f32.mrf.mxu0
  %9554 = vdwg.mxu0
  %9555 = vmatpush.bf16.msra.mxu0 %v9331
  %9556 = vmatpush.bf16.msra.mxu0 %v9323
  %9557 = vmatpush.bf16.msra.mxu0 %v9315
  %9558 = vmatpush.bf16.msra.mxu0 %v9307
  %9559 = vmatpush.bf16.msra.mxu0 %v9299
  %9560 = vmatpush.bf16.msra.mxu0 %v9291
  %9561 = vmatpush.bf16.msra.mxu0 %v9283
  %9562 = vmatpush.bf16.msra.mxu0 %v9275
  %9563 = vmatmul.bf16.gmra.mxu0 %v8695
  %v9564 = vpop.f32.mrf.mxu0
  %v9565 = vadd.f32 %v9552, %v9564
  %v9566 = vpop.f32.mrf.mxu0
  %9567 = vdwg.mxu0
  %9568 = vmatpush.bf16.msra.mxu0 %v9268
  %9569 = vmatpush.bf16.msra.mxu0 %v9260
  %9570 = vmatpush.bf16.msra.mxu0 %v9252
  %9571 = vmatpush.bf16.msra.mxu0 %v9244
  %9572 = vmatpush.bf16.msra.mxu0 %v9236
  %9573 = vmatpush.bf16.msra.mxu0 %v9228
  %9574 = vmatpush.bf16.msra.mxu0 %v9220
  %9575 = vmatpush.bf16.msra.mxu0 %v9212
  %9576 = vmatmul.bf16.gmra.mxu0 %v8694
  %v9577 = vpop.f32.mrf.mxu0
  %v9578 = vadd.f32 0.0, %v9577
  %v9579 = vpop.f32.mrf.mxu0
  %9580 = vdwg.mxu0
  %9581 = vmatpush.bf16.msra.mxu0 %v9332
  %9582 = vmatpush.bf16.msra.mxu0 %v9324
  %9583 = vmatpush.bf16.msra.mxu0 %v9316
  %9584 = vmatpush.bf16.msra.mxu0 %v9308
  %9585 = vmatpush.bf16.msra.mxu0 %v9300
  %9586 = vmatpush.bf16.msra.mxu0 %v9292
  %9587 = vmatpush.bf16.msra.mxu0 %v9284
  %9588 = vmatpush.bf16.msra.mxu0 %v9276
  %9589 = vmatmul.bf16.gmra.mxu0 %v8695
  %v9590 = vpop.f32.mrf.mxu0
  %v9591 = vadd.f32 %v9578, %v9590
  %v9592 = vpop.f32.mrf.mxu0
  %9593 = vdwg.mxu0
  %9594 = vmatpush.bf16.msra.mxu0 %v9269
  %9595 = vmatpush.bf16.msra.mxu0 %v9261
  %9596 = vmatpush.bf16.msra.mxu0 %v9253
  %9597 = vmatpush.bf16.msra.mxu0 %v9245
  %9598 = vmatpush.bf16.msra.mxu0 %v9237
  %9599 = vmatpush.bf16.msra.mxu0 %v9229
  %9600 = vmatpush.bf16.msra.mxu0 %v9221
  %9601 = vmatpush.bf16.msra.mxu0 %v9213
  %9602 = vmatmul.bf16.gmra.mxu0 %v8694
  %v9603 = vpop.f32.mrf.mxu0
  %v9604 = vadd.f32 0.0, %v9603
  %v9605 = vpop.f32.mrf.mxu0
  %9606 = vdwg.mxu0
  %9607 = vmatpush.bf16.msra.mxu0 %v9333
  %9608 = vmatpush.bf16.msra.mxu0 %v9325
  %9609 = vmatpush.bf16.msra.mxu0 %v9317
  %9610 = vmatpush.bf16.msra.mxu0 %v9309
  %9611 = vmatpush.bf16.msra.mxu0 %v9301
  %9612 = vmatpush.bf16.msra.mxu0 %v9293
  %9613 = vmatpush.bf16.msra.mxu0 %v9285
  %9614 = vmatpush.bf16.msra.mxu0 %v9277
  %9615 = vmatmul.bf16.gmra.mxu0 %v8695
  %v9616 = vpop.f32.mrf.mxu0
  %v9617 = vadd.f32 %v9604, %v9616
  %v9618 = vpop.f32.mrf.mxu0
  %9619 = vdwg.mxu0
  %9620 = vmatpush.bf16.msra.mxu0 %v9270
  %9621 = vmatpush.bf16.msra.mxu0 %v9262
  %9622 = vmatpush.bf16.msra.mxu0 %v9254
  %9623 = vmatpush.bf16.msra.mxu0 %v9246
  %9624 = vmatpush.bf16.msra.mxu0 %v9238
  %9625 = vmatpush.bf16.msra.mxu0 %v9230
  %9626 = vmatpush.bf16.msra.mxu0 %v9222
  %9627 = vmatpush.bf16.msra.mxu0 %v9214
  %9628 = vmatmul.bf16.gmra.mxu0 %v8694
  %v9629 = vpop.f32.mrf.mxu0
  %v9630 = vadd.f32 0.0, %v9629
  %v9631 = vpop.f32.mrf.mxu0
  %9632 = vdwg.mxu0
  %9633 = vmatpush.bf16.msra.mxu0 %v9334
  %9634 = vmatpush.bf16.msra.mxu0 %v9326
  %9635 = vmatpush.bf16.msra.mxu0 %v9318
  %9636 = vmatpush.bf16.msra.mxu0 %v9310
  %9637 = vmatpush.bf16.msra.mxu0 %v9302
  %9638 = vmatpush.bf16.msra.mxu0 %v9294
  %9639 = vmatpush.bf16.msra.mxu0 %v9286
  %9640 = vmatpush.bf16.msra.mxu0 %v9278
  %9641 = vmatmul.bf16.gmra.mxu0 %v8695
  %v9642 = vpop.f32.mrf.mxu0
  %v9643 = vadd.f32 %v9630, %v9642
  %v9644 = vpop.f32.mrf.mxu0
  %9645 = vdwg.mxu0
  %9646 = vmatpush.bf16.msra.mxu0 %v9271
  %9647 = vmatpush.bf16.msra.mxu0 %v9263
  %9648 = vmatpush.bf16.msra.mxu0 %v9255
  %9649 = vmatpush.bf16.msra.mxu0 %v9247
  %9650 = vmatpush.bf16.msra.mxu0 %v9239
  %9651 = vmatpush.bf16.msra.mxu0 %v9231
  %9652 = vmatpush.bf16.msra.mxu0 %v9223
  %9653 = vmatpush.bf16.msra.mxu0 %v9215
  %9654 = vmatmul.bf16.gmra.mxu0 %v8694
  %v9655 = vpop.f32.mrf.mxu0
  %v9656 = vadd.f32 0.0, %v9655
  %v9657 = vpop.f32.mrf.mxu0
  %9658 = vdwg.mxu0
  %9659 = vmatpush.bf16.msra.mxu0 %v9335
  %9660 = vmatpush.bf16.msra.mxu0 %v9327
  %9661 = vmatpush.bf16.msra.mxu0 %v9319
  %9662 = vmatpush.bf16.msra.mxu0 %v9311
  %9663 = vmatpush.bf16.msra.mxu0 %v9303
  %9664 = vmatpush.bf16.msra.mxu0 %v9295
  %9665 = vmatpush.bf16.msra.mxu0 %v9287
  %9666 = vmatpush.bf16.msra.mxu0 %v9279
  %9667 = vmatmul.bf16.gmra.mxu0 %v8695
  %v9668 = vpop.f32.mrf.mxu0
  %v9669 = vadd.f32 %v9656, %v9668
  %v9670 = vpop.f32.mrf.mxu0
  %9671 = vdwg.mxu0
  %v9672 = vld [vmem:[%s1812] sm:$0xff]
  %v9673 = vld [vmem:[%s1812 + $0x8] sm:$0xff]
  %v9674 = vld [vmem:[%s1812 + $0x10] sm:$0xff]
  %v9675 = vld [vmem:[%s1812 + $0x18] sm:$0xff]
  %v9676 = vadd.f32 %v9672, %v9487
  %v9677 = vadd.f32 %v9673, %v9513
  %v9678 = vadd.f32 %v9674, %v9539
  %v9679 = vadd.f32 %v9675, %v9565
  %v9680 = vld [vmem:[#allocation2 + $0x20] sm:$0xff]
  %v9681 = vld [vmem:[#allocation2 + $0x28] sm:$0xff]
  %v9682 = vld [vmem:[#allocation2 + $0x30] sm:$0xff]
  %v9683 = vld [vmem:[#allocation2 + $0x38] sm:$0xff]
  %v9684 = vadd.f32 %v9680, %v9591
  %v9685 = vadd.f32 %v9681, %v9617
  %v9686 = vadd.f32 %v9682, %v9643
  %v9687 = vadd.f32 %v9683, %v9669
  %v9688 = vxor.u32 %v9676, 2147483648
  %v9689 = vmul.f32 %v9688, 1.442695
  %v9690 = vpow.pop %v9689
  %v9691 = vadd.f32 %v9690, 1.0
  %v9692 = vrcp.pop %v9691
  %v9693 = vmul.f32 %v9691, %v9692
  %v9694 = vsub.f32 1.0, %v9693
  %v9695 = vmul.f32 %v9692, %v9694
  %v9696 = vadd.f32 %v9692, %v9695
  %vm9697 = vweird.f32 %v9691
  %vm9698 = vweird.f32 %v9692
  %vm9699 = vmor %vm9697, %vm9698
  %v9700 = vsel %vm9699, %v9692, %v9696
  %v9701 = vand.u32 2147483647, %v9691
  %vm9702 = vcmp.eq.f32.partialorder %v9701, 8.507059e+37
  %v9703 = vand.u32 %v9691, 2147483648
  %v9704 = vor.u32 1.1754944e-38, %v9703
  %v9705 = vsel %vm9702, %v9704, %v9700
  %v9706 = vmul.f32 1.0, %v9705
  %v9707 = vxor.u32 %v9677, 2147483648
  %v9708 = vmul.f32 %v9707, 1.442695
  %v9709 = vpow.pop %v9708
  %v9710 = vadd.f32 %v9709, 1.0
  %v9711 = vrcp.pop %v9710
  %v9712 = vmul.f32 %v9710, %v9711
  %v9713 = vsub.f32 1.0, %v9712
  %v9714 = vmul.f32 %v9711, %v9713
  %v9715 = vadd.f32 %v9711, %v9714
  %vm9716 = vweird.f32 %v9710
  %vm9717 = vweird.f32 %v9711
  %vm9718 = vmor %vm9716, %vm9717
  %v9719 = vsel %vm9718, %v9711, %v9715
  %v9720 = vand.u32 2147483647, %v9710
  %vm9721 = vcmp.eq.f32.partialorder %v9720, 8.507059e+37
  %v9722 = vand.u32 %v9710, 2147483648
  %v9723 = vor.u32 1.1754944e-38, %v9722
  %v9724 = vsel %vm9721, %v9723, %v9719
  %v9725 = vmul.f32 1.0, %v9724
  %v9726 = vtanh.pop %v9678
  %v9727 = vxor.u32 %v9679, 2147483648
  %v9728 = vmul.f32 %v9727, 1.442695
  %v9729 = vpow.pop %v9728
  %v9730 = vadd.f32 %v9729, 1.0
  %v9731 = vrcp.pop %v9730
  %v9732 = vmul.f32 %v9730, %v9731
  %v9733 = vsub.f32 1.0, %v9732
  %v9734 = vmul.f32 %v9731, %v9733
  %v9735 = vadd.f32 %v9731, %v9734
  %vm9736 = vweird.f32 %v9730
  %vm9737 = vweird.f32 %v9731
  %vm9738 = vmor %vm9736, %vm9737
  %v9739 = vsel %vm9738, %v9731, %v9735
  %v9740 = vand.u32 2147483647, %v9730
  %vm9741 = vcmp.eq.f32.partialorder %v9740, 8.507059e+37
  %v9742 = vand.u32 %v9730, 2147483648
  %v9743 = vor.u32 1.1754944e-38, %v9742
  %v9744 = vsel %vm9741, %v9743, %v9739
  %v9745 = vmul.f32 1.0, %v9744
  %v9746 = vmul.f32 %v9725, %v8626
  %v9747 = vmul.f32 %v9706, %v9726
  %v9748 = vadd.f32 %v9746, %v9747
  %v9749 = vtanh.pop %v9748
  %v9750 = vmul.f32 %v9745, %v9749
  %v9751 = vxor.u32 %v9684, 2147483648
  %v9752 = vmul.f32 %v9751, 1.442695
  %v9753 = vpow.pop %v9752
  %v9754 = vadd.f32 %v9753, 1.0
  %v9755 = vrcp.pop %v9754
  %v9756 = vmul.f32 %v9754, %v9755
  %v9757 = vsub.f32 1.0, %v9756
  %v9758 = vmul.f32 %v9755, %v9757
  %v9759 = vadd.f32 %v9755, %v9758
  %vm9760 = vweird.f32 %v9754
  %vm9761 = vweird.f32 %v9755
  %vm9762 = vmor %vm9760, %vm9761
  %v9763 = vsel %vm9762, %v9755, %v9759
  %v9764 = vand.u32 2147483647, %v9754
  %vm9765 = vcmp.eq.f32.partialorder %v9764, 8.507059e+37
  %v9766 = vand.u32 %v9754, 2147483648
  %v9767 = vor.u32 1.1754944e-38, %v9766
  %v9768 = vsel %vm9765, %v9767, %v9763
  %v9769 = vmul.f32 1.0, %v9768
  %v9770 = vxor.u32 %v9685, 2147483648
  %v9771 = vmul.f32 %v9770, 1.442695
  %v9772 = vpow.pop %v9771
  %v9773 = vadd.f32 %v9772, 1.0
  %v9774 = vrcp.pop %v9773
  %v9775 = vmul.f32 %v9773, %v9774
  %v9776 = vsub.f32 1.0, %v9775
  %v9777 = vmul.f32 %v9774, %v9776
  %v9778 = vadd.f32 %v9774, %v9777
  %vm9779 = vweird.f32 %v9773
  %vm9780 = vweird.f32 %v9774
  %vm9781 = vmor %vm9779, %vm9780
  %v9782 = vsel %vm9781, %v9774, %v9778
  %v9783 = vand.u32 2147483647, %v9773
  %vm9784 = vcmp.eq.f32.partialorder %v9783, 8.507059e+37
  %v9785 = vand.u32 %v9773, 2147483648
  %v9786 = vor.u32 1.1754944e-38, %v9785
  %v9787 = vsel %vm9784, %v9786, %v9782
  %v9788 = vmul.f32 1.0, %v9787
  %v9789 = vtanh.pop %v9686
  %v9790 = vxor.u32 %v9687, 2147483648
  %v9791 = vmul.f32 %v9790, 1.442695
  %v9792 = vpow.pop %v9791
  %v9793 = vadd.f32 %v9792, 1.0
  %v9794 = vrcp.pop %v9793
  %v9795 = vmul.f32 %v9793, %v9794
  %v9796 = vsub.f32 1.0, %v9795
  %v9797 = vmul.f32 %v9794, %v9796
  %v9798 = vadd.f32 %v9794, %v9797
  %vm9799 = vweird.f32 %v9793
  %vm9800 = vweird.f32 %v9794
  %vm9801 = vmor %vm9799, %vm9800
  %v9802 = vsel %vm9801, %v9794, %v9798
  %v9803 = vand.u32 2147483647, %v9793
  %vm9804 = vcmp.eq.f32.partialorder %v9803, 8.507059e+37
  %v9805 = vand.u32 %v9793, 2147483648
  %v9806 = vor.u32 1.1754944e-38, %v9805
  %v9807 = vsel %vm9804, %v9806, %v9802
  %v9808 = vmul.f32 1.0, %v9807
  %v9809 = vmul.f32 %v9788, %v8689
  %v9810 = vmul.f32 %v9769, %v9789
  %v9811 = vadd.f32 %v9809, %v9810
  %v9812 = vtanh.pop %v9811
  %v9813 = vmul.f32 %v9808, %v9812
  %9814 = vst [vmem:[%s1948] sm:$0xff] %v9750
  %9815 = vst [vmem:[#allocation3 + $0x8] sm:$0xff] %v9813
  %v9816 = vld [vmem:[#allocation3] sm:$0xff]
  %v9817 = vld [vmem:[#allocation3 + $0x8] sm:$0xff]
  %v9818 = vld [vmem:[#allocation3 + $0x10] sm:$0xff]
  %v9819 = vld [vmem:[#allocation3 + $0x18] sm:$0xff]
  %v9820 = vld [vmem:[#allocation3 + $0x20] sm:$0xff]
  %v9821 = vld [vmem:[#allocation3 + $0x28] sm:$0xff]
  %v9822 = vld [vmem:[#allocation3 + $0x30] sm:$0xff]
  %v9823 = vld [vmem:[#allocation3 + $0x38] sm:$0xff]
  %v9824 = vld [vmem:[#allocation3 + $0x40] sm:$0xff]
  %v9825 = vld [vmem:[#allocation3 + $0x48] sm:$0xff]
  %v9826 = vld [vmem:[#allocation3 + $0x50] sm:$0xff]
  %v9827 = vld [vmem:[#allocation3 + $0x58] sm:$0xff]
  %v9828 = vld [vmem:[#allocation3 + $0x60] sm:$0xff]
  %v9829 = vld [vmem:[#allocation3 + $0x68] sm:$0xff]
  %v9830 = vld [vmem:[#allocation3 + $0x70] sm:$0xff]
  %v9831 = vld [vmem:[#allocation3 + $0x78] sm:$0xff]
  %v9832 = vpack.c.bf16 %v9818, %v9816
  %v9833 = vpack.c.bf16 %v9819, %v9817
  %v9834 = vpack.c.bf16 %v9822, %v9820
  %v9835 = vpack.c.bf16 %v9823, %v9821
  %v9836 = vpack.c.bf16 %v9826, %v9824
  %v9837 = vpack.c.bf16 %v9827, %v9825
  %v9838 = vpack.c.bf16 %v9830, %v9828
  %v9839 = vpack.c.bf16 %v9831, %v9829
  %v9840 = vld [vmem:[%s6] sm:$0xf]
  %v9841 = vld [vmem:[%s6 + $0x4] sm:$0xf]
  %v9842 = vld [vmem:[%s6 + $0x8] sm:$0xf]
  %v9843 = vld [vmem:[%s6 + $0xc] sm:$0xf]
  %v9844 = vld [vmem:[%s6 + $0x10] sm:$0xf]
  %v9845 = vld [vmem:[%s6 + $0x14] sm:$0xf]
  %v9846 = vld [vmem:[%s6 + $0x18] sm:$0xf]
  %v9847 = vld [vmem:[%s6 + $0x1c] sm:$0xf]
  %v9848 = vld [vmem:[%s6 + $0x20] sm:$0xf]
  %v9849 = vld [vmem:[%s6 + $0x24] sm:$0xf]
  %v9850 = vld [vmem:[%s6 + $0x28] sm:$0xf]
  %v9851 = vld [vmem:[%s6 + $0x2c] sm:$0xf]
  %v9852 = vld [vmem:[%s6 + $0x30] sm:$0xf]
  %v9853 = vld [vmem:[%s6 + $0x34] sm:$0xf]
  %v9854 = vld [vmem:[%s6 + $0x38] sm:$0xf]
  %v9855 = vld [vmem:[%s6 + $0x3c] sm:$0xf]
  %v9856 = vld [vmem:[%s6 + $0x40] sm:$0xf]
  %v9857 = vld [vmem:[%s6 + $0x44] sm:$0xf]
  %v9858 = vld [vmem:[%s6 + $0x48] sm:$0xf]
  %v9859 = vld [vmem:[%s6 + $0x4c] sm:$0xf]
  %v9860 = vld [vmem:[%s6 + $0x50] sm:$0xf]
  %v9861 = vld [vmem:[%s6 + $0x54] sm:$0xf]
  %v9862 = vld [vmem:[%s6 + $0x58] sm:$0xf]
  %v9863 = vld [vmem:[%s6 + $0x5c] sm:$0xf]
  %v9864 = vld [vmem:[%s6 + $0x60] sm:$0xf]
  %v9865 = vld [vmem:[%s6 + $0x64] sm:$0xf]
  %v9866 = vld [vmem:[%s6 + $0x68] sm:$0xf]
  %v9867 = vld [vmem:[%s6 + $0x6c] sm:$0xf]
  %v9868 = vld [vmem:[%s6 + $0x70] sm:$0xf]
  %v9869 = vld [vmem:[%s6 + $0x74] sm:$0xf]
  %v9870 = vld [vmem:[%s6 + $0x78] sm:$0xf]
  %v9871 = vld [vmem:[%s6 + $0x7c] sm:$0xf]
  %v9872 = vld [vmem:[%s7] sm:$0x1]
  %v9874 = vperm.slane %v9872, 0
  %v9908 = vunpack.c.l.b16 %v9840
  %v9909 = vunpack.c.l.b16 %v9841
  %v9910 = vunpack.c.l.b16 %v9842
  %v9911 = vunpack.c.l.b16 %v9843
  %v9912 = vunpack.c.l.b16 %v9844
  %v9913 = vunpack.c.l.b16 %v9845
  %v9914 = vunpack.c.l.b16 %v9846
  %v9915 = vunpack.c.l.b16 %v9847
  %v9916 = vunpack.c.l.b16 %v9848
  %v9917 = vunpack.c.l.b16 %v9849
  %v9918 = vunpack.c.l.b16 %v9850
  %v9919 = vunpack.c.l.b16 %v9851
  %v9920 = vunpack.c.l.b16 %v9852
  %v9921 = vunpack.c.l.b16 %v9853
  %v9922 = vunpack.c.l.b16 %v9854
  %v9923 = vunpack.c.l.b16 %v9855
  %v9924 = vunpack.c.l.b16 %v9856
  %v9925 = vunpack.c.l.b16 %v9857
  %v9926 = vunpack.c.l.b16 %v9858
  %v9927 = vunpack.c.l.b16 %v9859
  %v9928 = vunpack.c.l.b16 %v9860
  %v9929 = vunpack.c.l.b16 %v9861
  %v9930 = vunpack.c.l.b16 %v9862
  %v9931 = vunpack.c.l.b16 %v9863
  %v9932 = vunpack.c.l.b16 %v9864
  %v9933 = vunpack.c.l.b16 %v9865
  %v9934 = vunpack.c.l.b16 %v9866
  %v9935 = vunpack.c.l.b16 %v9867
  %v9936 = vunpack.c.l.b16 %v9868
  %v9937 = vunpack.c.l.b16 %v9869
  %v9938 = vunpack.c.l.b16 %v9870
  %v9939 = vunpack.c.l.b16 %v9871
  %v9940 = vpack.c.b16 %v9909, %v9908
  %v9941 = vpack.c.b16 %v9911, %v9910
  %v9942 = vpack.c.b16 %v9913, %v9912
  %v9943 = vpack.c.b16 %v9915, %v9914
  %v9944 = vpack.c.b16 %v9917, %v9916
  %v9945 = vpack.c.b16 %v9919, %v9918
  %v9946 = vpack.c.b16 %v9921, %v9920
  %v9947 = vpack.c.b16 %v9923, %v9922
  %v9948 = vpack.c.b16 %v9925, %v9924
  %v9949 = vpack.c.b16 %v9927, %v9926
  %v9950 = vpack.c.b16 %v9929, %v9928
  %v9951 = vpack.c.b16 %v9931, %v9930
  %v9952 = vpack.c.b16 %v9933, %v9932
  %v9953 = vpack.c.b16 %v9935, %v9934
  %v9954 = vpack.c.b16 %v9937, %v9936
  %v9955 = vpack.c.b16 %v9939, %v9938
  %9972 = vmatpush.bf16.msra.mxu0 %v9947
  %9973 = vmatpush.bf16.msra.mxu0 %v9946
  %9974 = vmatpush.bf16.msra.mxu0 %v9945
  %9975 = vmatpush.bf16.msra.mxu0 %v9944
  %9976 = vmatpush.bf16.msra.mxu0 %v9943
  %9977 = vmatpush.bf16.msra.mxu0 %v9942
  %9978 = vmatpush.bf16.msra.mxu0 %v9941
  %9979 = vmatpush.bf16.msra.mxu0 %v9940
  %9980 = vmatmul.bf16.gmra.mxu0 %v9832
  %v9981 = vpop.f32.mrf.mxu0
  %v9982 = vadd.f32 %v9874, %v9981
  %v9983 = vpop.f32.mrf.mxu0
  %v9984 = vadd.f32 %v9874, %v9983
  %9985 = vmatmul.bf16.gmra.mxu0 %v9834
  %v9986 = vpop.f32.mrf.mxu0
  %v9987 = vadd.f32 %v9874, %v9986
  %v9988 = vpop.f32.mrf.mxu0
  %v9989 = vadd.f32 %v9874, %v9988
  %9990 = vmatmul.bf16.gmra.mxu0 %v9836
  %v9991 = vpop.f32.mrf.mxu0
  %v9992 = vadd.f32 %v9874, %v9991
  %v9993 = vpop.f32.mrf.mxu0
  %v9994 = vadd.f32 %v9874, %v9993
  %9995 = vmatmul.bf16.gmra.mxu0 %v9838
  %v9996 = vpop.f32.mrf.mxu0
  %v9997 = vadd.f32 %v9874, %v9996
  %v9998 = vpop.f32.mrf.mxu0
  %v9999 = vadd.f32 %v9874, %v9998
  %10000 = vdwg.mxu0
  %10001 = vmatpush.bf16.msra.mxu0 %v9955
  %10002 = vmatpush.bf16.msra.mxu0 %v9954
  %10003 = vmatpush.bf16.msra.mxu0 %v9953
  %10004 = vmatpush.bf16.msra.mxu0 %v9952
  %10005 = vmatpush.bf16.msra.mxu0 %v9951
  %10006 = vmatpush.bf16.msra.mxu0 %v9950
  %10007 = vmatpush.bf16.msra.mxu0 %v9949
  %10008 = vmatpush.bf16.msra.mxu0 %v9948
  %10009 = vmatmul.bf16.gmra.mxu0 %v9833
  %v10010 = vpop.f32.mrf.mxu0
  %v10011 = vadd.f32 %v9982, %v10010
  %v10012 = vpop.f32.mrf.mxu0
  %v10013 = vadd.f32 %v9984, %v10012
  %10014 = vmatmul.bf16.gmra.mxu0 %v9835
  %v10015 = vpop.f32.mrf.mxu0
  %v10016 = vadd.f32 %v9987, %v10015
  %v10017 = vpop.f32.mrf.mxu0
  %v10018 = vadd.f32 %v9989, %v10017
  %10019 = vmatmul.bf16.gmra.mxu0 %v9837
  %v10020 = vpop.f32.mrf.mxu0
  %v10021 = vadd.f32 %v9992, %v10020
  %v10022 = vpop.f32.mrf.mxu0
  %v10023 = vadd.f32 %v9994, %v10022
  %10024 = vmatmul.bf16.gmra.mxu0 %v9839
  %v10025 = vpop.f32.mrf.mxu0
  %v10026 = vadd.f32 %v9997, %v10025
  %v10027 = vpop.f32.mrf.mxu0
  %v10028 = vadd.f32 %v9999, %v10027
  %10029 = vdwg.mxu0
  %v10030 = vpack.c.bf16 %v10011, %v10011
  %v10031 = vpack.c.bf16 %v10013, %v10013
  %v10032 = vpack.c.bf16 %v10016, %v10016
  %v10033 = vpack.c.bf16 %v10018, %v10018
  %v10034 = vpack.c.bf16 %v10021, %v10021
  %v10035 = vpack.c.bf16 %v10023, %v10023
  %v10036 = vpack.c.bf16 %v10026, %v10026
  %v10037 = vpack.c.bf16 %v10028, %v10028
  %v10038 = vld [vmem:[%s8] sm:$0xff]
  %v10039 = vld [vmem:[%s8 + $0x8] sm:$0xff]
  %v10040 = vld [vmem:[%s8 + $0x10] sm:$0xff]
  %v10041 = vld [vmem:[%s8 + $0x18] sm:$0xff]
  %v10042 = vld [vmem:[%s8 + $0x20] sm:$0xff]
  %v10043 = vld [vmem:[%s8 + $0x28] sm:$0xff]
  %v10044 = vld [vmem:[%s8 + $0x30] sm:$0xff]
  %v10045 = vld [vmem:[%s8 + $0x38] sm:$0xff]
  %v10046 = vld [vmem:[%s8 + $0x40] sm:$0xff]
  %v10047 = vld [vmem:[%s8 + $0x48] sm:$0xff]
  %v10048 = vld [vmem:[%s8 + $0x50] sm:$0xff]
  %v10049 = vld [vmem:[%s8 + $0x58] sm:$0xff]
  %v10050 = vld [vmem:[%s8 + $0x60] sm:$0xff]
  %v10051 = vld [vmem:[%s8 + $0x68] sm:$0xff]
  %v10052 = vld [vmem:[%s8 + $0x70] sm:$0xff]
  %v10053 = vld [vmem:[%s8 + $0x78] sm:$0xff]
  %s10054 = scalar_lea.vmem %s8, 128
  %v10055 = vld [vmem:[%s10054] sm:$0xff]
  %v10056 = vld [vmem:[%s10054 + $0x8] sm:$0xff]
  %v10057 = vld [vmem:[%s10054 + $0x10] sm:$0xff]
  %v10058 = vld [vmem:[%s10054 + $0x18] sm:$0xff]
  %v10059 = vld [vmem:[%s10054 + $0x20] sm:$0xff]
  %v10060 = vld [vmem:[%s10054 + $0x28] sm:$0xff]
  %v10061 = vld [vmem:[%s10054 + $0x30] sm:$0xff]
  %v10062 = vld [vmem:[%s10054 + $0x38] sm:$0xff]
  %v10063 = vld [vmem:[%s10054 + $0x40] sm:$0xff]
  %v10064 = vld [vmem:[%s10054 + $0x48] sm:$0xff]
  %v10065 = vld [vmem:[%s10054 + $0x50] sm:$0xff]
  %v10066 = vld [vmem:[%s10054 + $0x58] sm:$0xff]
  %v10067 = vld [vmem:[%s10054 + $0x60] sm:$0xff]
  %v10068 = vld [vmem:[%s10054 + $0x68] sm:$0xff]
  %v10069 = vld [vmem:[%s10054 + $0x70] sm:$0xff]
  %v10070 = vld [vmem:[%s10054 + $0x78] sm:$0xff]
  %v10087 = vunpack.c.l.b16 %v10055
  %v10088 = vunpack.c.h.b16 %v10055
  %v10089 = vunpack.c.l.b16 %v10056
  %v10090 = vunpack.c.h.b16 %v10056
  %v10091 = vunpack.c.l.b16 %v10057
  %v10092 = vunpack.c.h.b16 %v10057
  %v10093 = vunpack.c.l.b16 %v10058
  %v10094 = vunpack.c.h.b16 %v10058
  %v10095 = vunpack.c.l.b16 %v10059
  %v10096 = vunpack.c.h.b16 %v10059
  %v10097 = vunpack.c.l.b16 %v10060
  %v10098 = vunpack.c.h.b16 %v10060
  %v10099 = vunpack.c.l.b16 %v10061
  %v10100 = vunpack.c.h.b16 %v10061
  %v10101 = vunpack.c.l.b16 %v10062
  %v10102 = vunpack.c.h.b16 %v10062
  %v10103 = vunpack.c.l.b16 %v10063
  %v10104 = vunpack.c.h.b16 %v10063
  %v10105 = vunpack.c.l.b16 %v10064
  %v10106 = vunpack.c.h.b16 %v10064
  %v10107 = vunpack.c.l.b16 %v10065
  %v10108 = vunpack.c.h.b16 %v10065
  %v10109 = vunpack.c.l.b16 %v10066
  %v10110 = vunpack.c.h.b16 %v10066
  %v10111 = vunpack.c.l.b16 %v10067
  %v10112 = vunpack.c.h.b16 %v10067
  %v10113 = vunpack.c.l.b16 %v10068
  %v10114 = vunpack.c.h.b16 %v10068
  %v10115 = vunpack.c.l.b16 %v10069
  %v10116 = vunpack.c.h.b16 %v10069
  %v10117 = vunpack.c.l.b16 %v10070
  %v10118 = vunpack.c.h.b16 %v10070
  %v10119 = vpack.c.b16 %v10089, %v10087
  %v10120 = vpack.c.b16 %v10090, %v10088
  %v10121 = vpack.c.b16 %v10093, %v10091
  %v10122 = vpack.c.b16 %v10094, %v10092
  %v10123 = vpack.c.b16 %v10097, %v10095
  %v10124 = vpack.c.b16 %v10098, %v10096
  %v10125 = vpack.c.b16 %v10101, %v10099
  %v10126 = vpack.c.b16 %v10102, %v10100
  %v10127 = vpack.c.b16 %v10105, %v10103
  %v10128 = vpack.c.b16 %v10106, %v10104
  %v10129 = vpack.c.b16 %v10109, %v10107
  %v10130 = vpack.c.b16 %v10110, %v10108
  %v10131 = vpack.c.b16 %v10113, %v10111
  %v10132 = vpack.c.b16 %v10114, %v10112
  %v10133 = vpack.c.b16 %v10117, %v10115
  %v10134 = vpack.c.b16 %v10118, %v10116
  %10151 = vmatpush.bf16.msra.mxu0 %v10133
  %10152 = vmatpush.bf16.msra.mxu0 %v10131
  %10153 = vmatpush.bf16.msra.mxu0 %v10129
  %10154 = vmatpush.bf16.msra.mxu0 %v10127
  %10155 = vmatpush.bf16.msra.mxu0 %v10125
  %10156 = vmatpush.bf16.msra.mxu0 %v10123
  %10157 = vmatpush.bf16.msra.mxu0 %v10121
  %10158 = vmatpush.bf16.msra.mxu0 %v10119
  %10159 = vmatmul.bf16.gmra.mxu0 %v10031
  %v10160 = vpop.f32.mrf.mxu0
  %v10161 = vadd.f32 0.0, %v10160
  %v10162 = vpop.f32.mrf.mxu0
  %10163 = vdwg.mxu0
  %10164 = vmatpush.bf16.msra.mxu0 %v10134
  %10165 = vmatpush.bf16.msra.mxu0 %v10132
  %10166 = vmatpush.bf16.msra.mxu0 %v10130
  %10167 = vmatpush.bf16.msra.mxu0 %v10128
  %10168 = vmatpush.bf16.msra.mxu0 %v10126
  %10169 = vmatpush.bf16.msra.mxu0 %v10124
  %10170 = vmatpush.bf16.msra.mxu0 %v10122
  %10171 = vmatpush.bf16.msra.mxu0 %v10120
  %10172 = vmatmul.bf16.gmra.mxu0 %v10031
  %v10173 = vpop.f32.mrf.mxu0
  %v10174 = vadd.f32 0.0, %v10173
  %v10175 = vpop.f32.mrf.mxu0
  %10176 = vdwg.mxu0
  %v10193 = vunpack.c.l.b16 %v10038
  %v10194 = vunpack.c.h.b16 %v10038
  %v10195 = vunpack.c.l.b16 %v10039
  %v10196 = vunpack.c.h.b16 %v10039
  %v10197 = vunpack.c.l.b16 %v10040
  %v10198 = vunpack.c.h.b16 %v10040
  %v10199 = vunpack.c.l.b16 %v10041
  %v10200 = vunpack.c.h.b16 %v10041
  %v10201 = vunpack.c.l.b16 %v10042
  %v10202 = vunpack.c.h.b16 %v10042
  %v10203 = vunpack.c.l.b16 %v10043
  %v10204 = vunpack.c.h.b16 %v10043
  %v10205 = vunpack.c.l.b16 %v10044
  %v10206 = vunpack.c.h.b16 %v10044
  %v10207 = vunpack.c.l.b16 %v10045
  %v10208 = vunpack.c.h.b16 %v10045
  %v10209 = vunpack.c.l.b16 %v10046
  %v10210 = vunpack.c.h.b16 %v10046
  %v10211 = vunpack.c.l.b16 %v10047
  %v10212 = vunpack.c.h.b16 %v10047
  %v10213 = vunpack.c.l.b16 %v10048
  %v10214 = vunpack.c.h.b16 %v10048
  %v10215 = vunpack.c.l.b16 %v10049
  %v10216 = vunpack.c.h.b16 %v10049
  %v10217 = vunpack.c.l.b16 %v10050
  %v10218 = vunpack.c.h.b16 %v10050
  %v10219 = vunpack.c.l.b16 %v10051
  %v10220 = vunpack.c.h.b16 %v10051
  %v10221 = vunpack.c.l.b16 %v10052
  %v10222 = vunpack.c.h.b16 %v10052
  %v10223 = vunpack.c.l.b16 %v10053
  %v10224 = vunpack.c.h.b16 %v10053
  %v10225 = vpack.c.b16 %v10195, %v10193
  %v10226 = vpack.c.b16 %v10196, %v10194
  %v10227 = vpack.c.b16 %v10199, %v10197
  %v10228 = vpack.c.b16 %v10200, %v10198
  %v10229 = vpack.c.b16 %v10203, %v10201
  %v10230 = vpack.c.b16 %v10204, %v10202
  %v10231 = vpack.c.b16 %v10207, %v10205
  %v10232 = vpack.c.b16 %v10208, %v10206
  %v10233 = vpack.c.b16 %v10211, %v10209
  %v10234 = vpack.c.b16 %v10212, %v10210
  %v10235 = vpack.c.b16 %v10215, %v10213
  %v10236 = vpack.c.b16 %v10216, %v10214
  %v10237 = vpack.c.b16 %v10219, %v10217
  %v10238 = vpack.c.b16 %v10220, %v10218
  %v10239 = vpack.c.b16 %v10223, %v10221
  %v10240 = vpack.c.b16 %v10224, %v10222
  %10257 = vmatpush.bf16.msra.mxu0 %v10239
  %10258 = vmatpush.bf16.msra.mxu0 %v10237
  %10259 = vmatpush.bf16.msra.mxu0 %v10235
  %10260 = vmatpush.bf16.msra.mxu0 %v10233
  %10261 = vmatpush.bf16.msra.mxu0 %v10231
  %10262 = vmatpush.bf16.msra.mxu0 %v10229
  %10263 = vmatpush.bf16.msra.mxu0 %v10227
  %10264 = vmatpush.bf16.msra.mxu0 %v10225
  %10265 = vmatmul.bf16.gmra.mxu0 %v10030
  %v10266 = vpop.f32.mrf.mxu0
  %v10267 = vadd.f32 %v10161, %v10266
  %v10268 = vpop.f32.mrf.mxu0
  %10269 = vdwg.mxu0
  %10270 = vmatpush.bf16.msra.mxu0 %v10240
  %10271 = vmatpush.bf16.msra.mxu0 %v10238
  %10272 = vmatpush.bf16.msra.mxu0 %v10236
  %10273 = vmatpush.bf16.msra.mxu0 %v10234
  %10274 = vmatpush.bf16.msra.mxu0 %v10232
  %10275 = vmatpush.bf16.msra.mxu0 %v10230
  %10276 = vmatpush.bf16.msra.mxu0 %v10228
  %10277 = vmatpush.bf16.msra.mxu0 %v10226
  %10278 = vmatmul.bf16.gmra.mxu0 %v10030
  %v10279 = vpop.f32.mrf.mxu0
  %v10280 = vadd.f32 %v10174, %v10279
  %v10281 = vpop.f32.mrf.mxu0
  %10282 = vdwg.mxu0
  %s10283 = scalar_lea.vmem %s8, 256
  %v10284 = vld [vmem:[%s10283] sm:$0xff]
  %v10285 = vld [vmem:[%s10283 + $0x8] sm:$0xff]
  %v10286 = vld [vmem:[%s10283 + $0x10] sm:$0xff]
  %v10287 = vld [vmem:[%s10283 + $0x18] sm:$0xff]
  %v10288 = vld [vmem:[%s10283 + $0x20] sm:$0xff]
  %v10289 = vld [vmem:[%s10283 + $0x28] sm:$0xff]
  %v10290 = vld [vmem:[%s10283 + $0x30] sm:$0xff]
  %v10291 = vld [vmem:[%s10283 + $0x38] sm:$0xff]
  %v10292 = vld [vmem:[%s10283 + $0x40] sm:$0xff]
  %v10293 = vld [vmem:[%s10283 + $0x48] sm:$0xff]
  %v10294 = vld [vmem:[%s10283 + $0x50] sm:$0xff]
  %v10295 = vld [vmem:[%s10283 + $0x58] sm:$0xff]
  %v10296 = vld [vmem:[%s10283 + $0x60] sm:$0xff]
  %v10297 = vld [vmem:[%s10283 + $0x68] sm:$0xff]
  %v10298 = vld [vmem:[%s10283 + $0x70] sm:$0xff]
  %v10299 = vld [vmem:[%s10283 + $0x78] sm:$0xff]
  %v10316 = vunpack.c.l.b16 %v10284
  %v10317 = vunpack.c.h.b16 %v10284
  %v10318 = vunpack.c.l.b16 %v10285
  %v10319 = vunpack.c.h.b16 %v10285
  %v10320 = vunpack.c.l.b16 %v10286
  %v10321 = vunpack.c.h.b16 %v10286
  %v10322 = vunpack.c.l.b16 %v10287
  %v10323 = vunpack.c.h.b16 %v10287
  %v10324 = vunpack.c.l.b16 %v10288
  %v10325 = vunpack.c.h.b16 %v10288
  %v10326 = vunpack.c.l.b16 %v10289
  %v10327 = vunpack.c.h.b16 %v10289
  %v10328 = vunpack.c.l.b16 %v10290
  %v10329 = vunpack.c.h.b16 %v10290
  %v10330 = vunpack.c.l.b16 %v10291
  %v10331 = vunpack.c.h.b16 %v10291
  %v10332 = vunpack.c.l.b16 %v10292
  %v10333 = vunpack.c.h.b16 %v10292
  %v10334 = vunpack.c.l.b16 %v10293
  %v10335 = vunpack.c.h.b16 %v10293
  %v10336 = vunpack.c.l.b16 %v10294
  %v10337 = vunpack.c.h.b16 %v10294
  %v10338 = vunpack.c.l.b16 %v10295
  %v10339 = vunpack.c.h.b16 %v10295
  %v10340 = vunpack.c.l.b16 %v10296
  %v10341 = vunpack.c.h.b16 %v10296
  %v10342 = vunpack.c.l.b16 %v10297
  %v10343 = vunpack.c.h.b16 %v10297
  %v10344 = vunpack.c.l.b16 %v10298
  %v10345 = vunpack.c.h.b16 %v10298
  %v10346 = vunpack.c.l.b16 %v10299
  %v10347 = vunpack.c.h.b16 %v10299
  %v10348 = vpack.c.b16 %v10318, %v10316
  %v10349 = vpack.c.b16 %v10319, %v10317
  %v10350 = vpack.c.b16 %v10322, %v10320
  %v10351 = vpack.c.b16 %v10323, %v10321
  %v10352 = vpack.c.b16 %v10326, %v10324
  %v10353 = vpack.c.b16 %v10327, %v10325
  %v10354 = vpack.c.b16 %v10330, %v10328
  %v10355 = vpack.c.b16 %v10331, %v10329
  %v10356 = vpack.c.b16 %v10334, %v10332
  %v10357 = vpack.c.b16 %v10335, %v10333
  %v10358 = vpack.c.b16 %v10338, %v10336
  %v10359 = vpack.c.b16 %v10339, %v10337
  %v10360 = vpack.c.b16 %v10342, %v10340
  %v10361 = vpack.c.b16 %v10343, %v10341
  %v10362 = vpack.c.b16 %v10346, %v10344
  %v10363 = vpack.c.b16 %v10347, %v10345
  %10380 = vmatpush.bf16.msra.mxu0 %v10362
  %10381 = vmatpush.bf16.msra.mxu0 %v10360
  %10382 = vmatpush.bf16.msra.mxu0 %v10358
  %10383 = vmatpush.bf16.msra.mxu0 %v10356
  %10384 = vmatpush.bf16.msra.mxu0 %v10354
  %10385 = vmatpush.bf16.msra.mxu0 %v10352
  %10386 = vmatpush.bf16.msra.mxu0 %v10350
  %10387 = vmatpush.bf16.msra.mxu0 %v10348
  %10388 = vmatmul.bf16.gmra.mxu0 %v10032
  %v10389 = vpop.f32.mrf.mxu0
  %v10390 = vadd.f32 0.0, %v10389
  %v10391 = vpop.f32.mrf.mxu0
  %10392 = vdwg.mxu0
  %10393 = vmatpush.bf16.msra.mxu0 %v10363
  %10394 = vmatpush.bf16.msra.mxu0 %v10361
  %10395 = vmatpush.bf16.msra.mxu0 %v10359
  %10396 = vmatpush.bf16.msra.mxu0 %v10357
  %10397 = vmatpush.bf16.msra.mxu0 %v10355
  %10398 = vmatpush.bf16.msra.mxu0 %v10353
  %10399 = vmatpush.bf16.msra.mxu0 %v10351
  %10400 = vmatpush.bf16.msra.mxu0 %v10349
  %10401 = vmatmul.bf16.gmra.mxu0 %v10032
  %v10402 = vpop.f32.mrf.mxu0
  %v10403 = vadd.f32 0.0, %v10402
  %v10404 = vpop.f32.mrf.mxu0
  %10405 = vdwg.mxu0
  %v10406 = vadd.f32 %v10267, %v10390
  %v10407 = vadd.f32 %v10280, %v10403
  %s10408 = scalar_lea.vmem %s8, 384
  %v10409 = vld [vmem:[%s10408] sm:$0xff]
  %v10410 = vld [vmem:[%s10408 + $0x8] sm:$0xff]
  %v10411 = vld [vmem:[%s10408 + $0x10] sm:$0xff]
  %v10412 = vld [vmem:[%s10408 + $0x18] sm:$0xff]
  %v10413 = vld [vmem:[%s10408 + $0x20] sm:$0xff]
  %v10414 = vld [vmem:[%s10408 + $0x28] sm:$0xff]
  %v10415 = vld [vmem:[%s10408 + $0x30] sm:$0xff]
  %v10416 = vld [vmem:[%s10408 + $0x38] sm:$0xff]
  %v10417 = vld [vmem:[%s10408 + $0x40] sm:$0xff]
  %v10418 = vld [vmem:[%s10408 + $0x48] sm:$0xff]
  %v10419 = vld [vmem:[%s10408 + $0x50] sm:$0xff]
  %v10420 = vld [vmem:[%s10408 + $0x58] sm:$0xff]
  %v10421 = vld [vmem:[%s10408 + $0x60] sm:$0xff]
  %v10422 = vld [vmem:[%s10408 + $0x68] sm:$0xff]
  %v10423 = vld [vmem:[%s10408 + $0x70] sm:$0xff]
  %v10424 = vld [vmem:[%s10408 + $0x78] sm:$0xff]
  %v10441 = vunpack.c.l.b16 %v10409
  %v10442 = vunpack.c.h.b16 %v10409
  %v10443 = vunpack.c.l.b16 %v10410
  %v10444 = vunpack.c.h.b16 %v10410
  %v10445 = vunpack.c.l.b16 %v10411
  %v10446 = vunpack.c.h.b16 %v10411
  %v10447 = vunpack.c.l.b16 %v10412
  %v10448 = vunpack.c.h.b16 %v10412
  %v10449 = vunpack.c.l.b16 %v10413
  %v10450 = vunpack.c.h.b16 %v10413
  %v10451 = vunpack.c.l.b16 %v10414
  %v10452 = vunpack.c.h.b16 %v10414
  %v10453 = vunpack.c.l.b16 %v10415
  %v10454 = vunpack.c.h.b16 %v10415
  %v10455 = vunpack.c.l.b16 %v10416
  %v10456 = vunpack.c.h.b16 %v10416
  %v10457 = vunpack.c.l.b16 %v10417
  %v10458 = vunpack.c.h.b16 %v10417
  %v10459 = vunpack.c.l.b16 %v10418
  %v10460 = vunpack.c.h.b16 %v10418
  %v10461 = vunpack.c.l.b16 %v10419
  %v10462 = vunpack.c.h.b16 %v10419
  %v10463 = vunpack.c.l.b16 %v10420
  %v10464 = vunpack.c.h.b16 %v10420
  %v10465 = vunpack.c.l.b16 %v10421
  %v10466 = vunpack.c.h.b16 %v10421
  %v10467 = vunpack.c.l.b16 %v10422
  %v10468 = vunpack.c.h.b16 %v10422
  %v10469 = vunpack.c.l.b16 %v10423
  %v10470 = vunpack.c.h.b16 %v10423
  %v10471 = vunpack.c.l.b16 %v10424
  %v10472 = vunpack.c.h.b16 %v10424
  %v10473 = vpack.c.b16 %v10443, %v10441
  %v10474 = vpack.c.b16 %v10444, %v10442
  %v10475 = vpack.c.b16 %v10447, %v10445
  %v10476 = vpack.c.b16 %v10448, %v10446
  %v10477 = vpack.c.b16 %v10451, %v10449
  %v10478 = vpack.c.b16 %v10452, %v10450
  %v10479 = vpack.c.b16 %v10455, %v10453
  %v10480 = vpack.c.b16 %v10456, %v10454
  %v10481 = vpack.c.b16 %v10459, %v10457
  %v10482 = vpack.c.b16 %v10460, %v10458
  %v10483 = vpack.c.b16 %v10463, %v10461
  %v10484 = vpack.c.b16 %v10464, %v10462
  %v10485 = vpack.c.b16 %v10467, %v10465
  %v10486 = vpack.c.b16 %v10468, %v10466
  %v10487 = vpack.c.b16 %v10471, %v10469
  %v10488 = vpack.c.b16 %v10472, %v10470
  %10505 = vmatpush.bf16.msra.mxu0 %v10487
  %10506 = vmatpush.bf16.msra.mxu0 %v10485
  %10507 = vmatpush.bf16.msra.mxu0 %v10483
  %10508 = vmatpush.bf16.msra.mxu0 %v10481
  %10509 = vmatpush.bf16.msra.mxu0 %v10479
  %10510 = vmatpush.bf16.msra.mxu0 %v10477
  %10511 = vmatpush.bf16.msra.mxu0 %v10475
  %10512 = vmatpush.bf16.msra.mxu0 %v10473
  %10513 = vmatmul.bf16.gmra.mxu0 %v10033
  %v10514 = vpop.f32.mrf.mxu0
  %v10515 = vadd.f32 0.0, %v10514
  %v10516 = vpop.f32.mrf.mxu0
  %10517 = vdwg.mxu0
  %10518 = vmatpush.bf16.msra.mxu0 %v10488
  %10519 = vmatpush.bf16.msra.mxu0 %v10486
  %10520 = vmatpush.bf16.msra.mxu0 %v10484
  %10521 = vmatpush.bf16.msra.mxu0 %v10482
  %10522 = vmatpush.bf16.msra.mxu0 %v10480
  %10523 = vmatpush.bf16.msra.mxu0 %v10478
  %10524 = vmatpush.bf16.msra.mxu0 %v10476
  %10525 = vmatpush.bf16.msra.mxu0 %v10474
  %10526 = vmatmul.bf16.gmra.mxu0 %v10033
  %v10527 = vpop.f32.mrf.mxu0
  %v10528 = vadd.f32 0.0, %v10527
  %v10529 = vpop.f32.mrf.mxu0
  %10530 = vdwg.mxu0
  %v10531 = vadd.f32 %v10406, %v10515
  %v10532 = vadd.f32 %v10407, %v10528
  %s10533 = scalar_lea.vmem %s8, 512
  %v10534 = vld [vmem:[%s10533] sm:$0xff]
  %v10535 = vld [vmem:[%s10533 + $0x8] sm:$0xff]
  %v10536 = vld [vmem:[%s10533 + $0x10] sm:$0xff]
  %v10537 = vld [vmem:[%s10533 + $0x18] sm:$0xff]
  %v10538 = vld [vmem:[%s10533 + $0x20] sm:$0xff]
  %v10539 = vld [vmem:[%s10533 + $0x28] sm:$0xff]
  %v10540 = vld [vmem:[%s10533 + $0x30] sm:$0xff]
  %v10541 = vld [vmem:[%s10533 + $0x38] sm:$0xff]
  %v10542 = vld [vmem:[%s10533 + $0x40] sm:$0xff]
  %v10543 = vld [vmem:[%s10533 + $0x48] sm:$0xff]
  %v10544 = vld [vmem:[%s10533 + $0x50] sm:$0xff]
  %v10545 = vld [vmem:[%s10533 + $0x58] sm:$0xff]
  %v10546 = vld [vmem:[%s10533 + $0x60] sm:$0xff]
  %v10547 = vld [vmem:[%s10533 + $0x68] sm:$0xff]
  %v10548 = vld [vmem:[%s10533 + $0x70] sm:$0xff]
  %v10549 = vld [vmem:[%s10533 + $0x78] sm:$0xff]
  %v10566 = vunpack.c.l.b16 %v10534
  %v10567 = vunpack.c.h.b16 %v10534
  %v10568 = vunpack.c.l.b16 %v10535
  %v10569 = vunpack.c.h.b16 %v10535
  %v10570 = vunpack.c.l.b16 %v10536
  %v10571 = vunpack.c.h.b16 %v10536
  %v10572 = vunpack.c.l.b16 %v10537
  %v10573 = vunpack.c.h.b16 %v10537
  %v10574 = vunpack.c.l.b16 %v10538
  %v10575 = vunpack.c.h.b16 %v10538
  %v10576 = vunpack.c.l.b16 %v10539
  %v10577 = vunpack.c.h.b16 %v10539
  %v10578 = vunpack.c.l.b16 %v10540
  %v10579 = vunpack.c.h.b16 %v10540
  %v10580 = vunpack.c.l.b16 %v10541
  %v10581 = vunpack.c.h.b16 %v10541
  %v10582 = vunpack.c.l.b16 %v10542
  %v10583 = vunpack.c.h.b16 %v10542
  %v10584 = vunpack.c.l.b16 %v10543
  %v10585 = vunpack.c.h.b16 %v10543
  %v10586 = vunpack.c.l.b16 %v10544
  %v10587 = vunpack.c.h.b16 %v10544
  %v10588 = vunpack.c.l.b16 %v10545
  %v10589 = vunpack.c.h.b16 %v10545
  %v10590 = vunpack.c.l.b16 %v10546
  %v10591 = vunpack.c.h.b16 %v10546
  %v10592 = vunpack.c.l.b16 %v10547
  %v10593 = vunpack.c.h.b16 %v10547
  %v10594 = vunpack.c.l.b16 %v10548
  %v10595 = vunpack.c.h.b16 %v10548
  %v10596 = vunpack.c.l.b16 %v10549
  %v10597 = vunpack.c.h.b16 %v10549
  %v10598 = vpack.c.b16 %v10568, %v10566
  %v10599 = vpack.c.b16 %v10569, %v10567
  %v10600 = vpack.c.b16 %v10572, %v10570
  %v10601 = vpack.c.b16 %v10573, %v10571
  %v10602 = vpack.c.b16 %v10576, %v10574
  %v10603 = vpack.c.b16 %v10577, %v10575
  %v10604 = vpack.c.b16 %v10580, %v10578
  %v10605 = vpack.c.b16 %v10581, %v10579
  %v10606 = vpack.c.b16 %v10584, %v10582
  %v10607 = vpack.c.b16 %v10585, %v10583
  %v10608 = vpack.c.b16 %v10588, %v10586
  %v10609 = vpack.c.b16 %v10589, %v10587
  %v10610 = vpack.c.b16 %v10592, %v10590
  %v10611 = vpack.c.b16 %v10593, %v10591
  %v10612 = vpack.c.b16 %v10596, %v10594
  %v10613 = vpack.c.b16 %v10597, %v10595
  %10630 = vmatpush.bf16.msra.mxu0 %v10612
  %10631 = vmatpush.bf16.msra.mxu0 %v10610
  %10632 = vmatpush.bf16.msra.mxu0 %v10608
  %10633 = vmatpush.bf16.msra.mxu0 %v10606
  %10634 = vmatpush.bf16.msra.mxu0 %v10604
  %10635 = vmatpush.bf16.msra.mxu0 %v10602
  %10636 = vmatpush.bf16.msra.mxu0 %v10600
  %10637 = vmatpush.bf16.msra.mxu0 %v10598
  %10638 = vmatmul.bf16.gmra.mxu0 %v10034
  %v10639 = vpop.f32.mrf.mxu0
  %v10640 = vadd.f32 0.0, %v10639
  %v10641 = vpop.f32.mrf.mxu0
  %10642 = vdwg.mxu0
  %10643 = vmatpush.bf16.msra.mxu0 %v10613
  %10644 = vmatpush.bf16.msra.mxu0 %v10611
  %10645 = vmatpush.bf16.msra.mxu0 %v10609
  %10646 = vmatpush.bf16.msra.mxu0 %v10607
  %10647 = vmatpush.bf16.msra.mxu0 %v10605
  %10648 = vmatpush.bf16.msra.mxu0 %v10603
  %10649 = vmatpush.bf16.msra.mxu0 %v10601
  %10650 = vmatpush.bf16.msra.mxu0 %v10599
  %10651 = vmatmul.bf16.gmra.mxu0 %v10034
  %v10652 = vpop.f32.mrf.mxu0
  %v10653 = vadd.f32 0.0, %v10652
  %v10654 = vpop.f32.mrf.mxu0
  %10655 = vdwg.mxu0
  %v10656 = vadd.f32 %v10531, %v10640
  %v10657 = vadd.f32 %v10532, %v10653
  %s10658 = scalar_lea.vmem %s8, 640
  %v10659 = vld [vmem:[%s10658] sm:$0xff]
  %v10660 = vld [vmem:[%s10658 + $0x8] sm:$0xff]
  %v10661 = vld [vmem:[%s10658 + $0x10] sm:$0xff]
  %v10662 = vld [vmem:[%s10658 + $0x18] sm:$0xff]
  %v10663 = vld [vmem:[%s10658 + $0x20] sm:$0xff]
  %v10664 = vld [vmem:[%s10658 + $0x28] sm:$0xff]
  %v10665 = vld [vmem:[%s10658 + $0x30] sm:$0xff]
  %v10666 = vld [vmem:[%s10658 + $0x38] sm:$0xff]
  %v10667 = vld [vmem:[%s10658 + $0x40] sm:$0xff]
  %v10668 = vld [vmem:[%s10658 + $0x48] sm:$0xff]
  %v10669 = vld [vmem:[%s10658 + $0x50] sm:$0xff]
  %v10670 = vld [vmem:[%s10658 + $0x58] sm:$0xff]
  %v10671 = vld [vmem:[%s10658 + $0x60] sm:$0xff]
  %v10672 = vld [vmem:[%s10658 + $0x68] sm:$0xff]
  %v10673 = vld [vmem:[%s10658 + $0x70] sm:$0xff]
  %v10674 = vld [vmem:[%s10658 + $0x78] sm:$0xff]
  %v10691 = vunpack.c.l.b16 %v10659
  %v10692 = vunpack.c.h.b16 %v10659
  %v10693 = vunpack.c.l.b16 %v10660
  %v10694 = vunpack.c.h.b16 %v10660
  %v10695 = vunpack.c.l.b16 %v10661
  %v10696 = vunpack.c.h.b16 %v10661
  %v10697 = vunpack.c.l.b16 %v10662
  %v10698 = vunpack.c.h.b16 %v10662
  %v10699 = vunpack.c.l.b16 %v10663
  %v10700 = vunpack.c.h.b16 %v10663
  %v10701 = vunpack.c.l.b16 %v10664
  %v10702 = vunpack.c.h.b16 %v10664
  %v10703 = vunpack.c.l.b16 %v10665
  %v10704 = vunpack.c.h.b16 %v10665
  %v10705 = vunpack.c.l.b16 %v10666
  %v10706 = vunpack.c.h.b16 %v10666
  %v10707 = vunpack.c.l.b16 %v10667
  %v10708 = vunpack.c.h.b16 %v10667
  %v10709 = vunpack.c.l.b16 %v10668
  %v10710 = vunpack.c.h.b16 %v10668
  %v10711 = vunpack.c.l.b16 %v10669
  %v10712 = vunpack.c.h.b16 %v10669
  %v10713 = vunpack.c.l.b16 %v10670
  %v10714 = vunpack.c.h.b16 %v10670
  %v10715 = vunpack.c.l.b16 %v10671
  %v10716 = vunpack.c.h.b16 %v10671
  %v10717 = vunpack.c.l.b16 %v10672
  %v10718 = vunpack.c.h.b16 %v10672
  %v10719 = vunpack.c.l.b16 %v10673
  %v10720 = vunpack.c.h.b16 %v10673
  %v10721 = vunpack.c.l.b16 %v10674
  %v10722 = vunpack.c.h.b16 %v10674
  %v10723 = vpack.c.b16 %v10693, %v10691
  %v10724 = vpack.c.b16 %v10694, %v10692
  %v10725 = vpack.c.b16 %v10697, %v10695
  %v10726 = vpack.c.b16 %v10698, %v10696
  %v10727 = vpack.c.b16 %v10701, %v10699
  %v10728 = vpack.c.b16 %v10702, %v10700
  %v10729 = vpack.c.b16 %v10705, %v10703
  %v10730 = vpack.c.b16 %v10706, %v10704
  %v10731 = vpack.c.b16 %v10709, %v10707
  %v10732 = vpack.c.b16 %v10710, %v10708
  %v10733 = vpack.c.b16 %v10713, %v10711
  %v10734 = vpack.c.b16 %v10714, %v10712
  %v10735 = vpack.c.b16 %v10717, %v10715
  %v10736 = vpack.c.b16 %v10718, %v10716
  %v10737 = vpack.c.b16 %v10721, %v10719
  %v10738 = vpack.c.b16 %v10722, %v10720
  %10755 = vmatpush.bf16.msra.mxu0 %v10737
  %10756 = vmatpush.bf16.msra.mxu0 %v10735
  %10757 = vmatpush.bf16.msra.mxu0 %v10733
  %10758 = vmatpush.bf16.msra.mxu0 %v10731
  %10759 = vmatpush.bf16.msra.mxu0 %v10729
  %10760 = vmatpush.bf16.msra.mxu0 %v10727
  %10761 = vmatpush.bf16.msra.mxu0 %v10725
  %10762 = vmatpush.bf16.msra.mxu0 %v10723
  %10763 = vmatmul.bf16.gmra.mxu0 %v10035
  %v10764 = vpop.f32.mrf.mxu0
  %v10765 = vadd.f32 0.0, %v10764
  %v10766 = vpop.f32.mrf.mxu0
  %10767 = vdwg.mxu0
  %10768 = vmatpush.bf16.msra.mxu0 %v10738
  %10769 = vmatpush.bf16.msra.mxu0 %v10736
  %10770 = vmatpush.bf16.msra.mxu0 %v10734
  %10771 = vmatpush.bf16.msra.mxu0 %v10732
  %10772 = vmatpush.bf16.msra.mxu0 %v10730
  %10773 = vmatpush.bf16.msra.mxu0 %v10728
  %10774 = vmatpush.bf16.msra.mxu0 %v10726
  %10775 = vmatpush.bf16.msra.mxu0 %v10724
  %10776 = vmatmul.bf16.gmra.mxu0 %v10035
  %v10777 = vpop.f32.mrf.mxu0
  %v10778 = vadd.f32 0.0, %v10777
  %v10779 = vpop.f32.mrf.mxu0
  %10780 = vdwg.mxu0
  %v10781 = vadd.f32 %v10656, %v10765
  %v10782 = vadd.f32 %v10657, %v10778
  %s10783 = scalar_lea.vmem %s8, 768
  %v10784 = vld [vmem:[%s10783] sm:$0xff]
  %v10785 = vld [vmem:[%s10783 + $0x8] sm:$0xff]
  %v10786 = vld [vmem:[%s10783 + $0x10] sm:$0xff]
  %v10787 = vld [vmem:[%s10783 + $0x18] sm:$0xff]
  %v10788 = vld [vmem:[%s10783 + $0x20] sm:$0xff]
  %v10789 = vld [vmem:[%s10783 + $0x28] sm:$0xff]
  %v10790 = vld [vmem:[%s10783 + $0x30] sm:$0xff]
  %v10791 = vld [vmem:[%s10783 + $0x38] sm:$0xff]
  %v10792 = vld [vmem:[%s10783 + $0x40] sm:$0xff]
  %v10793 = vld [vmem:[%s10783 + $0x48] sm:$0xff]
  %v10794 = vld [vmem:[%s10783 + $0x50] sm:$0xff]
  %v10795 = vld [vmem:[%s10783 + $0x58] sm:$0xff]
  %v10796 = vld [vmem:[%s10783 + $0x60] sm:$0xff]
  %v10797 = vld [vmem:[%s10783 + $0x68] sm:$0xff]
  %v10798 = vld [vmem:[%s10783 + $0x70] sm:$0xff]
  %v10799 = vld [vmem:[%s10783 + $0x78] sm:$0xff]
  %v10816 = vunpack.c.l.b16 %v10784
  %v10817 = vunpack.c.h.b16 %v10784
  %v10818 = vunpack.c.l.b16 %v10785
  %v10819 = vunpack.c.h.b16 %v10785
  %v10820 = vunpack.c.l.b16 %v10786
  %v10821 = vunpack.c.h.b16 %v10786
  %v10822 = vunpack.c.l.b16 %v10787
  %v10823 = vunpack.c.h.b16 %v10787
  %v10824 = vunpack.c.l.b16 %v10788
  %v10825 = vunpack.c.h.b16 %v10788
  %v10826 = vunpack.c.l.b16 %v10789
  %v10827 = vunpack.c.h.b16 %v10789
  %v10828 = vunpack.c.l.b16 %v10790
  %v10829 = vunpack.c.h.b16 %v10790
  %v10830 = vunpack.c.l.b16 %v10791
  %v10831 = vunpack.c.h.b16 %v10791
  %v10832 = vunpack.c.l.b16 %v10792
  %v10833 = vunpack.c.h.b16 %v10792
  %v10834 = vunpack.c.l.b16 %v10793
  %v10835 = vunpack.c.h.b16 %v10793
  %v10836 = vunpack.c.l.b16 %v10794
  %v10837 = vunpack.c.h.b16 %v10794
  %v10838 = vunpack.c.l.b16 %v10795
  %v10839 = vunpack.c.h.b16 %v10795
  %v10840 = vunpack.c.l.b16 %v10796
  %v10841 = vunpack.c.h.b16 %v10796
  %v10842 = vunpack.c.l.b16 %v10797
  %v10843 = vunpack.c.h.b16 %v10797
  %v10844 = vunpack.c.l.b16 %v10798
  %v10845 = vunpack.c.h.b16 %v10798
  %v10846 = vunpack.c.l.b16 %v10799
  %v10847 = vunpack.c.h.b16 %v10799
  %v10848 = vpack.c.b16 %v10818, %v10816
  %v10849 = vpack.c.b16 %v10819, %v10817
  %v10850 = vpack.c.b16 %v10822, %v10820
  %v10851 = vpack.c.b16 %v10823, %v10821
  %v10852 = vpack.c.b16 %v10826, %v10824
  %v10853 = vpack.c.b16 %v10827, %v10825
  %v10854 = vpack.c.b16 %v10830, %v10828
  %v10855 = vpack.c.b16 %v10831, %v10829
  %v10856 = vpack.c.b16 %v10834, %v10832
  %v10857 = vpack.c.b16 %v10835, %v10833
  %v10858 = vpack.c.b16 %v10838, %v10836
  %v10859 = vpack.c.b16 %v10839, %v10837
  %v10860 = vpack.c.b16 %v10842, %v10840
  %v10861 = vpack.c.b16 %v10843, %v10841
  %v10862 = vpack.c.b16 %v10846, %v10844
  %v10863 = vpack.c.b16 %v10847, %v10845
  %10880 = vmatpush.bf16.msra.mxu0 %v10862
  %10881 = vmatpush.bf16.msra.mxu0 %v10860
  %10882 = vmatpush.bf16.msra.mxu0 %v10858
  %10883 = vmatpush.bf16.msra.mxu0 %v10856
  %10884 = vmatpush.bf16.msra.mxu0 %v10854
  %10885 = vmatpush.bf16.msra.mxu0 %v10852
  %10886 = vmatpush.bf16.msra.mxu0 %v10850
  %10887 = vmatpush.bf16.msra.mxu0 %v10848
  %10888 = vmatmul.bf16.gmra.mxu0 %v10036
  %v10889 = vpop.f32.mrf.mxu0
  %v10890 = vadd.f32 0.0, %v10889
  %v10891 = vpop.f32.mrf.mxu0
  %10892 = vdwg.mxu0
  %10893 = vmatpush.bf16.msra.mxu0 %v10863
  %10894 = vmatpush.bf16.msra.mxu0 %v10861
  %10895 = vmatpush.bf16.msra.mxu0 %v10859
  %10896 = vmatpush.bf16.msra.mxu0 %v10857
  %10897 = vmatpush.bf16.msra.mxu0 %v10855
  %10898 = vmatpush.bf16.msra.mxu0 %v10853
  %10899 = vmatpush.bf16.msra.mxu0 %v10851
  %10900 = vmatpush.bf16.msra.mxu0 %v10849
  %10901 = vmatmul.bf16.gmra.mxu0 %v10036
  %v10902 = vpop.f32.mrf.mxu0
  %v10903 = vadd.f32 0.0, %v10902
  %v10904 = vpop.f32.mrf.mxu0
  %10905 = vdwg.mxu0
  %v10906 = vadd.f32 %v10781, %v10890
  %v10907 = vadd.f32 %v10782, %v10903
  %s10908 = scalar_lea.vmem %s8, 896
  %v10909 = vld [vmem:[%s10908] sm:$0xff]
  %v10910 = vld [vmem:[%s10908 + $0x8] sm:$0xff]
  %v10911 = vld [vmem:[%s10908 + $0x10] sm:$0xff]
  %v10912 = vld [vmem:[%s10908 + $0x18] sm:$0xff]
  %v10913 = vld [vmem:[%s10908 + $0x20] sm:$0xff]
  %v10914 = vld [vmem:[%s10908 + $0x28] sm:$0xff]
  %v10915 = vld [vmem:[%s10908 + $0x30] sm:$0xff]
  %v10916 = vld [vmem:[%s10908 + $0x38] sm:$0xff]
  %v10917 = vld [vmem:[%s10908 + $0x40] sm:$0xff]
  %v10918 = vld [vmem:[%s10908 + $0x48] sm:$0xff]
  %v10919 = vld [vmem:[%s10908 + $0x50] sm:$0xff]
  %v10920 = vld [vmem:[%s10908 + $0x58] sm:$0xff]
  %v10921 = vld [vmem:[%s10908 + $0x60] sm:$0xff]
  %v10922 = vld [vmem:[%s10908 + $0x68] sm:$0xff]
  %v10923 = vld [vmem:[%s10908 + $0x70] sm:$0xff]
  %v10924 = vld [vmem:[%s10908 + $0x78] sm:$0xff]
  %v10941 = vunpack.c.l.b16 %v10909
  %v10942 = vunpack.c.h.b16 %v10909
  %v10943 = vunpack.c.l.b16 %v10910
  %v10944 = vunpack.c.h.b16 %v10910
  %v10945 = vunpack.c.l.b16 %v10911
  %v10946 = vunpack.c.h.b16 %v10911
  %v10947 = vunpack.c.l.b16 %v10912
  %v10948 = vunpack.c.h.b16 %v10912
  %v10949 = vunpack.c.l.b16 %v10913
  %v10950 = vunpack.c.h.b16 %v10913
  %v10951 = vunpack.c.l.b16 %v10914
  %v10952 = vunpack.c.h.b16 %v10914
  %v10953 = vunpack.c.l.b16 %v10915
  %v10954 = vunpack.c.h.b16 %v10915
  %v10955 = vunpack.c.l.b16 %v10916
  %v10956 = vunpack.c.h.b16 %v10916
  %v10957 = vunpack.c.l.b16 %v10917
  %v10958 = vunpack.c.h.b16 %v10917
  %v10959 = vunpack.c.l.b16 %v10918
  %v10960 = vunpack.c.h.b16 %v10918
  %v10961 = vunpack.c.l.b16 %v10919
  %v10962 = vunpack.c.h.b16 %v10919
  %v10963 = vunpack.c.l.b16 %v10920
  %v10964 = vunpack.c.h.b16 %v10920
  %v10965 = vunpack.c.l.b16 %v10921
  %v10966 = vunpack.c.h.b16 %v10921
  %v10967 = vunpack.c.l.b16 %v10922
  %v10968 = vunpack.c.h.b16 %v10922
  %v10969 = vunpack.c.l.b16 %v10923
  %v10970 = vunpack.c.h.b16 %v10923
  %v10971 = vunpack.c.l.b16 %v10924
  %v10972 = vunpack.c.h.b16 %v10924
  %v10973 = vpack.c.b16 %v10943, %v10941
  %v10974 = vpack.c.b16 %v10944, %v10942
  %v10975 = vpack.c.b16 %v10947, %v10945
  %v10976 = vpack.c.b16 %v10948, %v10946
  %v10977 = vpack.c.b16 %v10951, %v10949
  %v10978 = vpack.c.b16 %v10952, %v10950
  %v10979 = vpack.c.b16 %v10955, %v10953
  %v10980 = vpack.c.b16 %v10956, %v10954
  %v10981 = vpack.c.b16 %v10959, %v10957
  %v10982 = vpack.c.b16 %v10960, %v10958
  %v10983 = vpack.c.b16 %v10963, %v10961
  %v10984 = vpack.c.b16 %v10964, %v10962
  %v10985 = vpack.c.b16 %v10967, %v10965
  %v10986 = vpack.c.b16 %v10968, %v10966
  %v10987 = vpack.c.b16 %v10971, %v10969
  %v10988 = vpack.c.b16 %v10972, %v10970
  %11005 = vmatpush.bf16.msra.mxu0 %v10987
  %11006 = vmatpush.bf16.msra.mxu0 %v10985
  %11007 = vmatpush.bf16.msra.mxu0 %v10983
  %11008 = vmatpush.bf16.msra.mxu0 %v10981
  %11009 = vmatpush.bf16.msra.mxu0 %v10979
  %11010 = vmatpush.bf16.msra.mxu0 %v10977
  %11011 = vmatpush.bf16.msra.mxu0 %v10975
  %11012 = vmatpush.bf16.msra.mxu0 %v10973
  %11013 = vmatmul.bf16.gmra.mxu0 %v10037
  %v11014 = vpop.f32.mrf.mxu0
  %v11015 = vadd.f32 0.0, %v11014
  %v11016 = vpop.f32.mrf.mxu0
  %11017 = vdwg.mxu0
  %11018 = vmatpush.bf16.msra.mxu0 %v10988
  %11019 = vmatpush.bf16.msra.mxu0 %v10986
  %11020 = vmatpush.bf16.msra.mxu0 %v10984
  %11021 = vmatpush.bf16.msra.mxu0 %v10982
  %11022 = vmatpush.bf16.msra.mxu0 %v10980
  %11023 = vmatpush.bf16.msra.mxu0 %v10978
  %11024 = vmatpush.bf16.msra.mxu0 %v10976
  %11025 = vmatpush.bf16.msra.mxu0 %v10974
  %11026 = vmatmul.bf16.gmra.mxu0 %v10037
  %v11027 = vpop.f32.mrf.mxu0
  %v11028 = vadd.f32 0.0, %v11027
  %v11029 = vpop.f32.mrf.mxu0
  %11030 = vdwg.mxu0
  %v11031 = vadd.f32 %v10906, %v11015
  %v11032 = vadd.f32 %v10907, %v11028
  %11033 = vst [vmem:[%s9] sm:$0xff] %v11031
  %11034 = vst [vmem:[%s9 + $0x8] sm:$0xff] %v11032
  // Predicated region
  $region38: #{word_embedding_forward.1} parent=0 // pred_check
    _
  $region39: #{word_embedding_forward.1} parent=0 // pred_check_branch
    %11036 = sbr.rel (0) target = $region41
  $region40: #{word_embedding_forward.1} parent=0 // pred_region
    _
  $region41: #{word_embedding_forward.1} parent=0 // pred_fallthru
    _
  // Predicated region
  $region42: #{word_embedding_forward.1} parent=0 // pred_check
    _
  $region43: #{word_embedding_forward.1} parent=0 // pred_check_branch
    %11038 = sbr.rel (0) target = $region45
  $region44: #{word_embedding_forward.1} parent=0 // pred_region
    _
  $region45: #{word_embedding_forward.1} parent=0 // pred_fallthru
    _
  // Predicated region
  $region46: #{word_embedding_forward.1} parent=0 // pred_check
    _
  $region47: #{word_embedding_forward.1} parent=0 // pred_check_branch
    %11040 = sbr.rel (0) target = $region49
  $region48: #{word_embedding_forward.1} parent=0 // pred_region
    _
  $region49: #{word_embedding_forward.1} parent=0 // pred_fallthru
    _
  // Predicated region
  $region50: #{word_embedding_forward.1} parent=0 // pred_check
    _
  $region51: #{word_embedding_forward.1} parent=0 // pred_check_branch
    %11042 = sbr.rel (0) target = $region53
  $region52: #{word_embedding_forward.1} parent=0 // pred_region
    _
  $region53: #{word_embedding_forward.1} parent=0 // pred_fallthru
    _

</llo_original>
